<compile_context>
chip_gen: v7x
topology: tpu7x:2x2x1
jax: 0.10.0
libtpu: 0.0.40
codegen_flags: <defaults>
</compile_context>

<pallas_src>
import functools
import math

import jax
import jax.numpy as jnp
from jax import lax
from jax.experimental import pallas as pl
from jax.experimental.pallas import tpu as pltpu

NUM_CLASSES = 4
GCN1_OUT = 128
GCN2_OUT = 512
MHA_HEADS = 4
HEAD_DIM = GCN2_OUT // MHA_HEADS   # 128, lane-aligned


def _round_up(x, m):
    return ((x + m - 1) // m) * m


def _vmem_capacity_bytes():
    try:
        return int(pltpu.get_tpu_info().vmem_capacity_bytes)
    except Exception:
        return 64 << 20            # conservative (v7x-sized) fallback


def _cparams(streamed_bytes, resident_bytes, scratch_bytes, vmem_cap):
    # Streamed and resident blocks are double-buffered by the Pallas pipeline.
    # TODO(synk): mark constant-index (resident) operands pipeline_mode=pl.Buffered(1) once
    # single-buffering is verified on the deployed jax; that halves their VMEM footprint.
    need = 2 * (streamed_bytes + resident_bytes) + scratch_bytes + (4 << 20)
    limit = int(min(max(need, 16 << 20), vmem_cap - (8 << 20)))
    return pltpu.CompilerParams(
        dimension_semantics=("parallel",),
        vmem_limit_bytes=limit,
    )


# ----------------------------------------------------------------------------------
# Kernel 1: GCN layer 1 (reassociated).   h1 = relu(A_rows @ (X W1) + b1)
# ----------------------------------------------------------------------------------
def _gcn1_kernel(a_ref, xw1_ref, b1_ref, h1_ref):
    ax = jnp.dot(a_ref[...], xw1_ref[...], preferred_element_type=jnp.float32)
    h1_ref[...] = jnp.maximum(ax + b1_ref[...], 0.0).astype(h1_ref.dtype)


# ----------------------------------------------------------------------------------
# Kernel 2: GCN layer 2 fused with one packed MHA in-projection matmul.
#   h2  = (A_rows @ H1) @ W2 + b2
#   qkv = h2 @ W_qkv + b_qkv          (W_qkv = [Wq*1/sqrt(d) | Wk | Wv], (512, 1536))
#   q, k, v emitted as separate (TILE, 512) bf16 tiles (no transpose).
# ----------------------------------------------------------------------------------
def _gcn2_qkv_kernel(a_ref, h1_ref, w2_ref, b2_ref, wqkv_ref, bqkv_ref,
                     q_ref, k_ref, v_ref):
    f32 = jnp.float32
    bf16 = jnp.bfloat16
    E = q_ref.shape[1]
    ah1 = jnp.dot(a_ref[...], h1_ref[...], preferred_element_type=f32)
    h2 = jnp.dot(ah1.astype(bf16), w2_ref[...], preferred_element_type=f32) + b2_ref[...]
    qkv = jnp.dot(h2.astype(bf16), wqkv_ref[...], preferred_element_type=f32) + bqkv_ref[...]
    q_ref[...] = qkv[:, 0:E].astype(bf16)
    k_ref[...] = qkv[:, E:2 * E].astype(bf16)
    v_ref[...] = qkv[:, 2 * E:3 * E].astype(bf16)


# ----------------------------------------------------------------------------------
# Kernel 3: multi-head self-attention over one tile of query rows (eval-mode, dropout
# inactive).  Head-averaged attention weights (PyTorch average_attn_weights=True) are
# accumulated in a value and stored once, in bf16.
# ----------------------------------------------------------------------------------
def _mha_kernel(q_ref, k_ref, v_ref, wo_ref, bo_ref,
                out_ref, attnw_ref, ctx_ref, *, n_valid):
    f32 = jnp.float32
    bf16 = jnp.bfloat16
    n_pad = k_ref.shape[0]

    # (1, N_pad) additive mask over padded key columns (padded K/V rows are NOT zero: they
    # pick up the b2/bk/bv biases, so this mask is load-bearing).  Skipped when no padding.
    if n_valid < n_pad:
        col = lax.broadcasted_iota(jnp.int32, (1, n_pad), 1)
        neg_mask = jnp.where(col < n_valid, 0.0, -1e30).astype(f32)
    else:
        neg_mask = None

    dims = (((1,), (1,)), ((), ()))   # contract last dims: q @ k^T without a transpose
    acc_w = None
    for h in range(MHA_HEADS):        # statically unrolled (4 heads)
        lo = h * HEAD_DIM
        hi = lo + HEAD_DIM
        s = lax.dot_general(q_ref[:, lo:hi], k_ref[:, lo:hi], dims,
                            preferred_element_type=f32)
        if neg_mask is not None:
            s = s + neg_mask
        m = jnp.max(s, axis=-1, keepdims=True)
        p = jnp.exp(s - m)
        l = jnp.sum(p, axis=-1, keepdims=True)
        inv_l = pl.reciprocal(l, approx=False)     # exact: l is only (TILE, 1)
        pn = p * inv_l
        acc_w = pn if acc_w is None else acc_w + pn
        # lane-aligned per-head store into the bf16 context scratch (head_dim = 128)
        ctx_ref[:, lo:hi] = jnp.dot(pn.astype(bf16), v_ref[:, lo:hi],
                                    preferred_element_type=f32).astype(bf16)

    # single store of the head-averaged attention weights (bf16 writeback)
    attnw_ref[...] = (acc_w * (1.0 / MHA_HEADS)).astype(attnw_ref.dtype)
    out_ref[...] = jnp.dot(ctx_ref[...], wo_ref[...],
                           preferred_element_type=f32) + bo_ref[...]


@functools.partial(jax.jit, static_argnums=(4,))
def mha_gcn_forward(params, x, edge_index, batch, num_graphs):
    """Returns (logits (B, NUM_CLASSES), attn_weights (1, N, N)) like the PyTorch module."""
    N, _ = x.shape
    E = GCN2_OUT
    f32 = jnp.float32
    bf16 = jnp.bfloat16

    # ---- glue: dense GCN-normalized adjacency, PyG semantics ----
    src, dst = edge_index[0], edge_index[1]
    A = jnp.zeros((N, N), f32).at[dst, src].add(1.0)
    diag = jnp.diagonal(A)
    A = A + jnp.diag(jnp.where(diag > 0.0, 0.0, 1.0))   # add_remaining_self_loops
    deg = jnp.sum(A, axis=1)
    dinv = lax.rsqrt(jnp.maximum(deg, 1.0))
    A_norm = A * dinv[:, None] * dinv[None, :]

    # ---- padding / tiling (N padded to a multiple of 256; generation-aware tiles) ----
    N_pad = _round_up(max(N, 256), 256)
    vmem_cap = _vmem_capacity_bytes()
    if N_pad >= 512:
        tile_mha = 256
        tile_gcn = 512 if (vmem_cap >= (100 << 20) and N_pad % 512 == 0) else 256
    else:
        # small graphs: 128-row tiles -> >= 2 grid steps so both v7x TensorCores get work
        tile_gcn = tile_mha = 128

    a_pad = jnp.zeros((N_pad, N_pad), bf16).at[:N, :N].set(A_norm.astype(bf16))

    # ---- GCN1 reassociation: XW1 = x @ W1 is tiny ((N, f_in) x (f_in, 128)) -> XLA ----
    xw1 = x.astype(f32) @ params['w1'].astype(f32)
    xw1_pad = jnp.zeros((N_pad, GCN1_OUT), bf16).at[:N].set(xw1.astype(bf16))
    b1 = params['b1'].astype(f32)[None, :]

    w2 = params['w2'].astype(bf16)
    b2 = params['b2'].astype(f32)[None, :]

    # ---- packed QKV weight (E, 3E) with 1/sqrt(d) folded into the Q columns ----
    win, binp = params['in_proj_w'], params['in_proj_b']
    scale = 1.0 / math.sqrt(HEAD_DIM)
    wqkv = jnp.concatenate(
        [win[0:E, :].T * scale, win[E:2 * E, :].T, win[2 * E:3 * E, :].T],
        axis=1).astype(bf16)
    bqkv = jnp.concatenate(
        [binp[0:E] * scale, binp[E:2 * E], binp[2 * E:3 * E]]).astype(f32)[None, :]

    wo = params['out_proj_w'].T.astype(bf16)
    bo = params['out_proj_b'].astype(f32)[None, :]

    # ---- kernel 1: GCN layer 1 ----
    k1_streamed = tile_gcn * N_pad * 2 + tile_gcn * GCN1_OUT * 2
    k1_resident = N_pad * GCN1_OUT * 2 + GCN1_OUT * 4
    h1 = pl.pallas_call(
        _gcn1_kernel,
        grid=(N_pad // tile_gcn,),
        in_specs=[
            pl.BlockSpec((tile_gcn, N_pad), lambda i: (i, 0)),
            pl.BlockSpec((N_pad, GCN1_OUT), lambda i: (0, 0)),
            pl.BlockSpec((1, GCN1_OUT), lambda i: (0, 0)),
        ],
        out_specs=pl.BlockSpec((tile_gcn, GCN1_OUT), lambda i: (i, 0)),
        out_shape=jax.ShapeDtypeStruct((N_pad, GCN1_OUT), bf16),
        compiler_params=_cparams(k1_streamed, k1_resident, 0, vmem_cap),
    )(a_pad, xw1_pad, b1)

    # ---- kernel 2: GCN layer 2 + packed QKV in-projection ----
    k2_streamed = tile_gcn * N_pad * 2 + 3 * tile_gcn * E * 2
    k2_resident = (N_pad * GCN1_OUT + GCN1_OUT * E + E * 3 * E) * 2 + 4 * E * 4
    q, k, v = pl.pallas_call(
        _gcn2_qkv_kernel,
        grid=(N_pad // tile_gcn,),
        in_specs=[
            pl.BlockSpec((tile_gcn, N_pad), lambda i: (i, 0)),
            pl.BlockSpec((N_pad, GCN1_OUT), lambda i: (0, 0)),
            pl.BlockSpec((GCN1_OUT, E), lambda i: (0, 0)),
            pl.BlockSpec((1, E), lambda i: (0, 0)),
            pl.BlockSpec((E, 3 * E), lambda i: (0, 0)),
            pl.BlockSpec((1, 3 * E), lambda i: (0, 0)),
        ],
        out_specs=(
            pl.BlockSpec((tile_gcn, E), lambda i: (i, 0)),
            pl.BlockSpec((tile_gcn, E), lambda i: (i, 0)),
            pl.BlockSpec((tile_gcn, E), lambda i: (i, 0)),
        ),
        out_shape=(
            jax.ShapeDtypeStruct((N_pad, E), bf16),
            jax.ShapeDtypeStruct((N_pad, E), bf16),
            jax.ShapeDtypeStruct((N_pad, E), bf16),
        ),
        compiler_params=_cparams(k2_streamed, k2_resident, 0, vmem_cap),
    )(a_pad, h1, w2, b2, wqkv, bqkv)

    # ---- kernel 3: multi-head self-attention (row-tiled over queries; K/V resident) ----
    # TODO(synk): for very large N on v7x (64 MiB VMEM), add a second "arbitrary" grid axis
    # over key blocks (flash-style) instead of keeping K/V fully resident.
    k3_streamed = tile_mha * E * 2 + tile_mha * E * 4 + tile_mha * N_pad * 2
    k3_resident = 2 * N_pad * E * 2 + E * E * 2 + E * 4
    k3_scratch = tile_mha * E * 2 + 2 * tile_mha * N_pad * 4   # ctx + f32 score/acc temps
    attn_out, attnw = pl.pallas_call(
        functools.partial(_mha_kernel, n_valid=N),
        grid=(N_pad // tile_mha,),
        in_specs=[
            pl.BlockSpec((tile_mha, E), lambda i: (i, 0)),
            pl.BlockSpec((N_pad, E), lambda i: (0, 0)),
            pl.BlockSpec((N_pad, E), lambda i: (0, 0)),
            pl.BlockSpec((E, E), lambda i: (0, 0)),
            pl.BlockSpec((1, E), lambda i: (0, 0)),
        ],
        out_specs=(
            pl.BlockSpec((tile_mha, E), lambda i: (i, 0)),
            pl.BlockSpec((tile_mha, N_pad), lambda i: (i, 0)),
        ),
        out_shape=(
            jax.ShapeDtypeStruct((N_pad, E), f32),
            jax.ShapeDtypeStruct((N_pad, N_pad), bf16),
        ),
        scratch_shapes=[pltpu.VMEM((tile_mha, E), bf16)],
        compiler_params=_cparams(k3_streamed, k3_resident, k3_scratch, vmem_cap),
    )(q, k, v, wo, bo)

    # ---- global_mean_pool + fc_out: tiny (B x 512) work, left to XLA ----
    attn_valid = attn_out[:N]
    onehot = (batch[None, :] == jnp.arange(num_graphs)[:, None]).astype(f32)
    counts = jnp.maximum(jnp.sum(onehot, axis=1, keepdims=True), 1.0)
    pool = onehot / counts
    ge = pool @ attn_valid
    logits = ge @ params['fc_w'].T + params['fc_b']

    # TODO(synk): nn.MultiheadAttention dropout=0.1 applies only in training mode; eval
    # semantics are implemented here (dropout is a no-op).
    attn_weights = attnw[:N, :N].astype(f32)[None, :, :]
    return logits, attn_weights


def init_params(key, node_feature_dim):
    keys = jax.random.split(key, 6)

    def glorot(k, shape):
        lim = (6.0 / (shape[0] + shape[1])) ** 0.5
        return jax.random.uniform(k, shape, jnp.float32, -lim, lim)

    return {
        # GCNConv weights stored as (F_in, F_out) for x @ W
        'w1': glorot(keys[0], (node_feature_dim, GCN1_OUT)),
        'b1': jnp.zeros((GCN1_OUT,), jnp.float32),
        'w2': glorot(keys[1], (GCN1_OUT, GCN2_OUT)),
        'b2': jnp.zeros((GCN2_OUT,), jnp.float32),
        # nn.MultiheadAttention packed in-projection (3E, E) / (3E,)
        'in_proj_w': glorot(keys[2], (3 * GCN2_OUT, GCN2_OUT)),
        'in_proj_b': jnp.zeros((3 * GCN2_OUT,), jnp.float32),
        'out_proj_w': glorot(keys[3], (GCN2_OUT, GCN2_OUT)),
        'out_proj_b': jnp.zeros((GCN2_OUT,), jnp.float32),
        # fc_out: Linear(GCN2_OUT, NUM_CLASSES), PyTorch layout (out, in)
        'fc_w': glorot(keys[4], (NUM_CLASSES, GCN2_OUT)),
        'fc_b': jnp.zeros((NUM_CLASSES,), jnp.float32),
    }


if __name__ == "__main__":
    key = jax.random.PRNGKey(0)
    k_x, k_e, k_p = jax.random.split(key, 3)

    N = 16            # total nodes across the batch of graphs
    F_IN = 16         # node_feature_dim
    B = 2             # number of graphs
    NUM_EDGES = 40

    x = jax.random.normal(k_x, (N, F_IN), jnp.float32)
    src = jax.random.randint(k_e, (NUM_EDGES,), 0, N)
    dst = jax.random.randint(jax.random.fold_in(k_e, 1), (NUM_EDGES,), 0, N)
    edge_index = jnp.stack([src, dst]).astype(jnp.int32)
    batch = jnp.concatenate([jnp.zeros(N // 2, jnp.int32), jnp.ones(N // 2, jnp.int32)])

    params = init_params(k_p, F_IN)

    logits, attn_weights = mha_gcn_forward(params, x, edge_index, batch, B)
    jax.block_until_ready((logits, attn_weights))

    assert logits.shape == (B, NUM_CLASSES)
    assert attn_weights.shape == (1, N, N)
    assert bool(jnp.all(jnp.isfinite(logits)))
    assert bool(jnp.all(jnp.isfinite(attn_weights)))
    print("KERNEL_OK")
</pallas_src>

<mosaic_0001>
module attributes {stable_mosaic.version = 11 : i64} {
  func.func @_gcn1_kernel(%arg0: i32, %arg1: memref<128x256xbf16, #tpu.memory_space<vmem>>, %arg2: memref<256x128xbf16, #tpu.memory_space<vmem>>, %arg3: memref<1x128xf32, #tpu.memory_space<vmem>>, %arg4: memref<128x128xbf16, #tpu.memory_space<vmem>>) attributes {dimension_semantics = [#tpu.dimension_semantics<parallel>], iteration_bounds = array<i64: 2>, scalar_prefetch = 0 : i64, scratch_operands = 0 : i64, tpu.core_type = #tpu.core_type<tc>, window_params = [{transform_indices = @transform_0, window_bounds = array<i64: 128, 256>}, {pipeline_mode = #tpu.pipeline_mode<synchronous>, transform_indices = @transform_1, window_bounds = array<i64: 256, 128>}, {pipeline_mode = #tpu.pipeline_mode<synchronous>, transform_indices = @transform_2, window_bounds = array<i64: 1, 128>}, {transform_indices = @transform_3, window_bounds = array<i64: 128, 128>}]} {
    %c0 = arith.constant 0 : index
    %c0_0 = arith.constant 0 : index
    %0 = vector.load %arg1[%c0, %c0_0] : memref<128x256xbf16, #tpu.memory_space<vmem>>, vector<128x256xbf16>
    %c0_1 = arith.constant 0 : index
    %c0_2 = arith.constant 0 : index
    %1 = vector.load %arg2[%c0_1, %c0_2] : memref<256x128xbf16, #tpu.memory_space<vmem>>, vector<256x128xbf16>
    %cst = arith.constant dense<0.000000e+00> : vector<128x128xf32>
    %2 = tpu.matmul %0, %1, %cst {dimension_numbers = #tpu.dot_dimension_numbers<[1], [0], [0], [1], [0, 0, 1, 1], [], []>} : vector<128x256xbf16>, vector<256x128xbf16>, vector<128x128xf32> -> vector<128x128xf32>
    %c0_3 = arith.constant 0 : index
    %c0_4 = arith.constant 0 : index
    %3 = vector.load %arg3[%c0_3, %c0_4] : memref<1x128xf32, #tpu.memory_space<vmem>>, vector<1x128xf32>
    %4 = vector.broadcast %3 : vector<1x128xf32> to vector<128x128xf32>
    %5 = arith.addf %2, %4 : vector<128x128xf32>
    %cst_5 = arith.constant 0.000000e+00 : f32
    %6 = vector.broadcast %cst_5 : f32 to vector<128x128xf32>
    %7 = arith.maximumf %5, %6 : vector<128x128xf32>
    %8 = arith.truncf %7 : vector<128x128xf32> to vector<128x128xbf16>
    %c0_6 = arith.constant 0 : index
    %c0_7 = arith.constant 0 : index
    %9 = vector.load %arg4[%c0_6, %c0_7] : memref<128x128xbf16, #tpu.memory_space<vmem>>, vector<128x128xbf16>
    tpu.vector_store %arg4[%c0_6, %c0_7], %8 {strides = array<i32>} : memref<128x128xbf16, #tpu.memory_space<vmem>>, vector<128x128xbf16>,
    return
  }
  func.func @transform_0(%arg0: i32) -> (i32, i32) {
    %c0_i32 = arith.constant 0 : i32
    %c0_i32_0 = arith.constant 0 : i32
    return %arg0, %c0_i32 : i32, i32
  }
  func.func @transform_1(%arg0: i32) -> (i32, i32) {
    %c0_i32 = arith.constant 0 : i32
    %c0_i32_0 = arith.constant 0 : i32
    %c0_i32_1 = arith.constant 0 : i32
    return %c0_i32, %c0_i32_0 : i32, i32
  }
  func.func @transform_2(%arg0: i32) -> (i32, i32) {
    %c0_i32 = arith.constant 0 : i32
    %c0_i32_0 = arith.constant 0 : i32
    %c0_i32_1 = arith.constant 0 : i32
    return %c0_i32, %c0_i32_0 : i32, i32
  }
  func.func @transform_3(%arg0: i32) -> (i32, i32) {
    %c0_i32 = arith.constant 0 : i32
    %c0_i32_0 = arith.constant 0 : i32
    return %arg0, %c0_i32 : i32, i32
  }
}

module attributes {stable_mosaic.version = 11 : i64} {
  func.func @_gcn2_qkv_kernel(%arg0: i32, %arg1: memref<128x256xbf16, #tpu.memory_space<vmem>>, %arg2: memref<256x128xbf16, #tpu.memory_space<vmem>>, %arg3: memref<128x512xbf16, #tpu.memory_space<vmem>>, %arg4: memref<1x512xf32, #tpu.memory_space<vmem>>, %arg5: memref<512x1536xbf16, #tpu.memory_space<vmem>>, %arg6: memref<1x1536xf32, #tpu.memory_space<vmem>>, %arg7: memref<128x512xbf16, #tpu.memory_space<vmem>>, %arg8: memref<128x512xbf16, #tpu.memory_space<vmem>>, %arg9: memref<128x512xbf16, #tpu.memory_space<vmem>>) attributes {dimension_semantics = [#tpu.dimension_semantics<parallel>], iteration_bounds = array<i64: 2>, scalar_prefetch = 0 : i64, scratch_operands = 0 : i64, tpu.core_type = #tpu.core_type<tc>, window_params = [{transform_indices = @transform_0, window_bounds = array<i64: 128, 256>}, {pipeline_mode = #tpu.pipeline_mode<synchronous>, transform_indices = @transform_1, window_bounds = array<i64: 256, 128>}, {pipeline_mode = #tpu.pipeline_mode<synchronous>, transform_indices = @transform_2, window_bounds = array<i64: 128, 512>}, {pipeline_mode = #tpu.pipeline_mode<synchronous>, transform_indices = @transform_3, window_bounds = array<i64: 1, 512>}, {pipeline_mode = #tpu.pipeline_mode<synchronous>, transform_indices = @transform_4, window_bounds = array<i64: 512, 1536>}, {pipeline_mode = #tpu.pipeline_mode<synchronous>, transform_indices = @transform_5, window_bounds = array<i64: 1, 1536>}, {transform_indices = @transform_6, window_bounds = array<i64: 128, 512>}, {transform_indices = @transform_7, window_bounds = array<i64: 128, 512>}, {transform_indices = @transform_8, window_bounds = array<i64: 128, 512>}]} {
    %c0 = arith.constant 0 : index
    %c0_0 = arith.constant 0 : index
    %0 = vector.load %arg1[%c0, %c0_0] : memref<128x256xbf16, #tpu.memory_space<vmem>>, vector<128x256xbf16>
    %c0_1 = arith.constant 0 : index
    %c0_2 = arith.constant 0 : index
    %1 = vector.load %arg2[%c0_1, %c0_2] : memref<256x128xbf16, #tpu.memory_space<vmem>>, vector<256x128xbf16>
    %cst = arith.constant dense<0.000000e+00> : vector<128x128xf32>
    %2 = tpu.matmul %0, %1, %cst {dimension_numbers = #tpu.dot_dimension_numbers<[1], [0], [0], [1], [0, 0, 1, 1], [], []>} : vector<128x256xbf16>, vector<256x128xbf16>, vector<128x128xf32> -> vector<128x128xf32>
    %3 = arith.truncf %2 : vector<128x128xf32> to vector<128x128xbf16>
    %c0_3 = arith.constant 0 : index
    %c0_4 = arith.constant 0 : index
    %4 = vector.load %arg3[%c0_3, %c0_4] : memref<128x512xbf16, #tpu.memory_space<vmem>>, vector<128x512xbf16>
    %cst_5 = arith.constant dense<0.000000e+00> : vector<128x512xf32>
    %5 = tpu.matmul %3, %4, %cst_5 {dimension_numbers = #tpu.dot_dimension_numbers<[1], [0], [0], [1], [0, 0, 1, 1], [], []>} : vector<128x128xbf16>, vector<128x512xbf16>, vector<128x512xf32> -> vector<128x512xf32>
    %c0_6 = arith.constant 0 : index
    %c0_7 = arith.constant 0 : index
    %6 = vector.load %arg4[%c0_6, %c0_7] : memref<1x512xf32, #tpu.memory_space<vmem>>, vector<1x512xf32>
    %7 = vector.broadcast %6 : vector<1x512xf32> to vector<128x512xf32>
    %8 = arith.addf %5, %7 : vector<128x512xf32>
    %9 = arith.truncf %8 : vector<128x512xf32> to vector<128x512xbf16>
    %c0_8 = arith.constant 0 : index
    %c0_9 = arith.constant 0 : index
    %10 = vector.load %arg5[%c0_8, %c0_9] : memref<512x1536xbf16, #tpu.memory_space<vmem>>, vector<512x1536xbf16>
    %cst_10 = arith.constant dense<0.000000e+00> : vector<128x1536xf32>
    %11 = tpu.matmul %9, %10, %cst_10 {dimension_numbers = #tpu.dot_dimension_numbers<[1], [0], [0], [1], [0, 0, 1, 1], [], []>} : vector<128x512xbf16>, vector<512x1536xbf16>, vector<128x1536xf32> -> vector<128x1536xf32>
    %c0_11 = arith.constant 0 : index
    %c0_12 = arith.constant 0 : index
    %12 = vector.load %arg6[%c0_11, %c0_12] : memref<1x1536xf32, #tpu.memory_space<vmem>>, vector<1x1536xf32>
    %13 = vector.broadcast %12 : vector<1x1536xf32> to vector<128x1536xf32>
    %14 = arith.addf %11, %13 : vector<128x1536xf32>
    %15 = vector.extract_strided_slice %14 {offsets = [0, 0], sizes = [128, 512], strides = [1, 1]} : vector<128x1536xf32> to vector<128x512xf32>
    %16 = arith.truncf %15 : vector<128x512xf32> to vector<128x512xbf16>
    %c0_13 = arith.constant 0 : index
    %c0_14 = arith.constant 0 : index
    %17 = vector.load %arg7[%c0_13, %c0_14] : memref<128x512xbf16, #tpu.memory_space<vmem>>, vector<128x512xbf16>
    tpu.vector_store %arg7[%c0_13, %c0_14], %16 {strides = array<i32>} : memref<128x512xbf16, #tpu.memory_space<vmem>>, vector<128x512xbf16>,
    %18 = vector.extract_strided_slice %14 {offsets = [0, 512], sizes = [128, 512], strides = [1, 1]} : vector<128x1536xf32> to vector<128x512xf32>
    %19 = arith.truncf %18 : vector<128x512xf32> to vector<128x512xbf16>
    %c0_15 = arith.constant 0 : index
    %c0_16 = arith.constant 0 : index
    %20 = vector.load %arg8[%c0_15, %c0_16] : memref<128x512xbf16, #tpu.memory_space<vmem>>, vector<128x512xbf16>
    tpu.vector_store %arg8[%c0_15, %c0_16], %19 {strides = array<i32>} : memref<128x512xbf16, #tpu.memory_space<vmem>>, vector<128x512xbf16>,
    %21 = vector.extract_strided_slice %14 {offsets = [0, 1024], sizes = [128, 512], strides = [1, 1]} : vector<128x1536xf32> to vector<128x512xf32>
    %22 = arith.truncf %21 : vector<128x512xf32> to vector<128x512xbf16>
    %c0_17 = arith.constant 0 : index
    %c0_18 = arith.constant 0 : index
    %23 = vector.load %arg9[%c0_17, %c0_18] : memref<128x512xbf16, #tpu.memory_space<vmem>>, vector<128x512xbf16>
    tpu.vector_store %arg9[%c0_17, %c0_18], %22 {strides = array<i32>} : memref<128x512xbf16, #tpu.memory_space<vmem>>, vector<128x512xbf16>,
    return
  }
  func.func @transform_0(%arg0: i32) -> (i32, i32) {
    %c0_i32 = arith.constant 0 : i32
    %c0_i32_0 = arith.constant 0 : i32
    return %arg0, %c0_i32 : i32, i32
  }
  func.func @transform_1(%arg0: i32) -> (i32, i32) {
    %c0_i32 = arith.constant 0 : i32
    %c0_i32_0 = arith.constant 0 : i32
    %c0_i32_1 = arith.constant 0 : i32
    return %c0_i32, %c0_i32_0 : i32, i32
  }
  func.func @transform_2(%arg0: i32) -> (i32, i32) {
    %c0_i32 = arith.constant 0 : i32
    %c0_i32_0 = arith.constant 0 : i32
    %c0_i32_1 = arith.constant 0 : i32
    return %c0_i32, %c0_i32_0 : i32, i32
  }
  func.func @transform_3(%arg0: i32) -> (i32, i32) {
    %c0_i32 = arith.constant 0 : i32
    %c0_i32_0 = arith.constant 0 : i32
    %c0_i32_1 = arith.constant 0 : i32
    return %c0_i32, %c0_i32_0 : i32, i32
  }
  func.func @transform_4(%arg0: i32) -> (i32, i32) {
    %c0_i32 = arith.constant 0 : i32
    %c0_i32_0 = arith.constant 0 : i32
    %c0_i32_1 = arith.constant 0 : i32
    return %c0_i32, %c0_i32_0 : i32, i32
  }
  func.func @transform_5(%arg0: i32) -> (i32, i32) {
    %c0_i32 = arith.constant 0 : i32
    %c0_i32_0 = arith.constant 0 : i32
    %c0_i32_1 = arith.constant 0 : i32
    return %c0_i32, %c0_i32_0 : i32, i32
  }
  func.func @transform_6(%arg0: i32) -> (i32, i32) {
    %c0_i32 = arith.constant 0 : i32
    %c0_i32_0 = arith.constant 0 : i32
    return %arg0, %c0_i32 : i32, i32
  }
  func.func @transform_7(%arg0: i32) -> (i32, i32) {
    %c0_i32 = arith.constant 0 : i32
    %c0_i32_0 = arith.constant 0 : i32
    return %arg0, %c0_i32 : i32, i32
  }
  func.func @transform_8(%arg0: i32) -> (i32, i32) {
    %c0_i32 = arith.constant 0 : i32
    %c0_i32_0 = arith.constant 0 : i32
    return %arg0, %c0_i32 : i32, i32
  }
}

module attributes {stable_mosaic.version = 11 : i64} {
  func.func @_mha_kernel(%arg0: i32, %arg1: memref<128x512xbf16, #tpu.memory_space<vmem>>, %arg2: memref<256x512xbf16, #tpu.memory_space<vmem>>, %arg3: memref<256x512xbf16, #tpu.memory_space<vmem>>, %arg4: memref<512x512xbf16, #tpu.memory_space<vmem>>, %arg5: memref<1x512xf32, #tpu.memory_space<vmem>>, %arg6: memref<128x512xf32, #tpu.memory_space<vmem>>, %arg7: memref<128x256xbf16, #tpu.memory_space<vmem>>, %arg8: memref<128x512xbf16, #tpu.memory_space<vmem>>) attributes {dimension_semantics = [#tpu.dimension_semantics<parallel>], iteration_bounds = array<i64: 2>, scalar_prefetch = 0 : i64, scratch_operands = 1 : i64, tpu.core_type = #tpu.core_type<tc>, window_params = [{transform_indices = @transform_0, window_bounds = array<i64: 128, 512>}, {pipeline_mode = #tpu.pipeline_mode<synchronous>, transform_indices = @transform_1, window_bounds = array<i64: 256, 512>}, {pipeline_mode = #tpu.pipeline_mode<synchronous>, transform_indices = @transform_2, window_bounds = array<i64: 256, 512>}, {pipeline_mode = #tpu.pipeline_mode<synchronous>, transform_indices = @transform_3, window_bounds = array<i64: 512, 512>}, {pipeline_mode = #tpu.pipeline_mode<synchronous>, transform_indices = @transform_4, window_bounds = array<i64: 1, 512>}, {transform_indices = @transform_5, window_bounds = array<i64: 128, 512>}, {transform_indices = @transform_6, window_bounds = array<i64: 128, 256>}]} {
    %0 = tpu.iota {dimensions = array<i32: 1>} : vector<1x256xi32>
    %c16_i32 = arith.constant 16 : i32
    %1 = vector.broadcast %c16_i32 : i32 to vector<1x256xi32>
    %2 = arith.cmpi slt, %0, %1 : vector<1x256xi32>
    %cst = arith.constant 0.000000e+00 : f32
    %cst_0 = arith.constant -1.000000e+30 : f32
    %3 = vector.broadcast %cst : f32 to vector<1x256xf32>
    %4 = vector.broadcast %cst_0 : f32 to vector<1x256xf32>
    %5 = arith.select %2, %3, %4 : vector<1x256xi1>, vector<1x256xf32>
    %c0 = arith.constant 0 : index
    %c0_1 = arith.constant 0 : index
    %6 = vector.load %arg1[%c0, %c0_1] : memref<128x512xbf16, #tpu.memory_space<vmem>>, vector<128x128xbf16>
    %c0_2 = arith.constant 0 : index
    %c0_3 = arith.constant 0 : index
    %7 = vector.load %arg2[%c0_2, %c0_3] : memref<256x512xbf16, #tpu.memory_space<vmem>>, vector<256x128xbf16>
    %cst_4 = arith.constant dense<0.000000e+00> : vector<128x256xf32>
    %8 = tpu.matmul %6, %7, %cst_4 {dimension_numbers = #tpu.dot_dimension_numbers<[1], [1], [0], [0], [0, 0, 1, 0], [], []>} : vector<128x128xbf16>, vector<256x128xbf16>, vector<128x256xf32> -> vector<128x256xf32>
    %9 = vector.broadcast %5 : vector<1x256xf32> to vector<128x256xf32>
    %10 = arith.addf %8, %9 : vector<128x256xf32>
    %cst_5 = arith.constant dense<0xFF800000> : vector<128xf32>
    %11 = vector.multi_reduction <maximumf>, %10, %cst_5 [1] : vector<128x256xf32> to vector<128xf32>
    %12 = vector.shape_cast %11 : vector<128xf32> to vector<128x1xf32>
    %13 = vector.broadcast %12 : vector<128x1xf32> to vector<128x256xf32>
    %14 = arith.subf %10, %13 : vector<128x256xf32>
    %15 = math.exp %14 : vector<128x256xf32>
    %cst_6 = arith.constant dense<0.000000e+00> : vector<128xf32>
    %16 = vector.multi_reduction <add>, %15, %cst_6 [1] : vector<128x256xf32> to vector<128xf32>
    %17 = vector.shape_cast %16 : vector<128xf32> to vector<128x1xf32>
    %18 = tpu.reciprocal %17 : vector<128x1xf32> -> vector<128x1xf32>
    %19 = vector.broadcast %18 : vector<128x1xf32> to vector<128x256xf32>
    %20 = arith.mulf %15, %19 : vector<128x256xf32>
    %21 = arith.truncf %20 : vector<128x256xf32> to vector<128x256xbf16>
    %c0_7 = arith.constant 0 : index
    %c0_8 = arith.constant 0 : index
    %22 = vector.load %arg3[%c0_7, %c0_8] : memref<256x512xbf16, #tpu.memory_space<vmem>>, vector<256x128xbf16>
    %cst_9 = arith.constant dense<0.000000e+00> : vector<128x128xf32>
    %23 = tpu.matmul %21, %22, %cst_9 {dimension_numbers = #tpu.dot_dimension_numbers<[1], [0], [0], [1], [0, 0, 1, 1], [], []>} : vector<128x256xbf16>, vector<256x128xbf16>, vector<128x128xf32> -> vector<128x128xf32>
    %24 = arith.truncf %23 : vector<128x128xf32> to vector<128x128xbf16>
    %c0_10 = arith.constant 0 : index
    %c0_11 = arith.constant 0 : index
    %25 = vector.load %arg8[%c0_10, %c0_11] : memref<128x512xbf16, #tpu.memory_space<vmem>>, vector<128x128xbf16>
    tpu.vector_store %arg8[%c0_10, %c0_11], %24 {strides = array<i32>} : memref<128x512xbf16, #tpu.memory_space<vmem>>, vector<128x128xbf16>,
    %c0_12 = arith.constant 0 : index
    %c128 = arith.constant 128 : index
    %26 = vector.load %arg1[%c0_12, %c128] : memref<128x512xbf16, #tpu.memory_space<vmem>>, vector<128x128xbf16>
    %c0_13 = arith.constant 0 : index
    %c128_14 = arith.constant 128 : index
    %27 = vector.load %arg2[%c0_13, %c128_14] : memref<256x512xbf16, #tpu.memory_space<vmem>>, vector<256x128xbf16>
    %cst_15 = arith.constant dense<0.000000e+00> : vector<128x256xf32>
    %28 = tpu.matmul %26, %27, %cst_15 {dimension_numbers = #tpu.dot_dimension_numbers<[1], [1], [0], [0], [0, 0, 1, 0], [], []>} : vector<128x128xbf16>, vector<256x128xbf16>, vector<128x256xf32> -> vector<128x256xf32>
    %29 = vector.broadcast %5 : vector<1x256xf32> to vector<128x256xf32>
    %30 = arith.addf %28, %29 : vector<128x256xf32>
    %cst_16 = arith.constant dense<0xFF800000> : vector<128xf32>
    %31 = vector.multi_reduction <maximumf>, %30, %cst_16 [1] : vector<128x256xf32> to vector<128xf32>
    %32 = vector.shape_cast %31 : vector<128xf32> to vector<128x1xf32>
    %33 = vector.broadcast %32 : vector<128x1xf32> to vector<128x256xf32>
    %34 = arith.subf %30, %33 : vector<128x256xf32>
    %35 = math.exp %34 : vector<128x256xf32>
    %cst_17 = arith.constant dense<0.000000e+00> : vector<128xf32>
    %36 = vector.multi_reduction <add>, %35, %cst_17 [1] : vector<128x256xf32> to vector<128xf32>
    %37 = vector.shape_cast %36 : vector<128xf32> to vector<128x1xf32>
    %38 = tpu.reciprocal %37 : vector<128x1xf32> -> vector<128x1xf32>
    %39 = vector.broadcast %38 : vector<128x1xf32> to vector<128x256xf32>
    %40 = arith.mulf %35, %39 : vector<128x256xf32>
    %41 = arith.addf %20, %40 : vector<128x256xf32>
    %42 = arith.truncf %40 : vector<128x256xf32> to vector<128x256xbf16>
    %c0_18 = arith.constant 0 : index
    %c128_19 = arith.constant 128 : index
    %43 = vector.load %arg3[%c0_18, %c128_19] : memref<256x512xbf16, #tpu.memory_space<vmem>>, vector<256x128xbf16>
    %cst_20 = arith.constant dense<0.000000e+00> : vector<128x128xf32>
    %44 = tpu.matmul %42, %43, %cst_20 {dimension_numbers = #tpu.dot_dimension_numbers<[1], [0], [0], [1], [0, 0, 1, 1], [], []>} : vector<128x256xbf16>, vector<256x128xbf16>, vector<128x128xf32> -> vector<128x128xf32>
    %45 = arith.truncf %44 : vector<128x128xf32> to vector<128x128xbf16>
    %c0_21 = arith.constant 0 : index
    %c128_22 = arith.constant 128 : index
    %46 = vector.load %arg8[%c0_21, %c128_22] : memref<128x512xbf16, #tpu.memory_space<vmem>>, vector<128x128xbf16>
    tpu.vector_store %arg8[%c0_21, %c128_22], %45 {strides = array<i32>} : memref<128x512xbf16, #tpu.memory_space<vmem>>, vector<128x128xbf16>,
    %c0_23 = arith.constant 0 : index
    %c256 = arith.constant 256 : index
    %47 = vector.load %arg1[%c0_23, %c256] : memref<128x512xbf16, #tpu.memory_space<vmem>>, vector<128x128xbf16>
    %c0_24 = arith.constant 0 : index
    %c256_25 = arith.constant 256 : index
    %48 = vector.load %arg2[%c0_24, %c256_25] : memref<256x512xbf16, #tpu.memory_space<vmem>>, vector<256x128xbf16>
    %cst_26 = arith.constant dense<0.000000e+00> : vector<128x256xf32>
    %49 = tpu.matmul %47, %48, %cst_26 {dimension_numbers = #tpu.dot_dimension_numbers<[1], [1], [0], [0], [0, 0, 1, 0], [], []>} : vector<128x128xbf16>, vector<256x128xbf16>, vector<128x256xf32> -> vector<128x256xf32>
    %50 = vector.broadcast %5 : vector<1x256xf32> to vector<128x256xf32>
    %51 = arith.addf %49, %50 : vector<128x256xf32>
    %cst_27 = arith.constant dense<0xFF800000> : vector<128xf32>
    %52 = vector.multi_reduction <maximumf>, %51, %cst_27 [1] : vector<128x256xf32> to vector<128xf32>
    %53 = vector.shape_cast %52 : vector<128xf32> to vector<128x1xf32>
    %54 = vector.broadcast %53 : vector<128x1xf32> to vector<128x256xf32>
    %55 = arith.subf %51, %54 : vector<128x256xf32>
    %56 = math.exp %55 : vector<128x256xf32>
    %cst_28 = arith.constant dense<0.000000e+00> : vector<128xf32>
    %57 = vector.multi_reduction <add>, %56, %cst_28 [1] : vector<128x256xf32> to vector<128xf32>
    %58 = vector.shape_cast %57 : vector<128xf32> to vector<128x1xf32>
    %59 = tpu.reciprocal %58 : vector<128x1xf32> -> vector<128x1xf32>
    %60 = vector.broadcast %59 : vector<128x1xf32> to vector<128x256xf32>
    %61 = arith.mulf %56, %60 : vector<128x256xf32>
    %62 = arith.addf %41, %61 : vector<128x256xf32>
    %63 = arith.truncf %61 : vector<128x256xf32> to vector<128x256xbf16>
    %c0_29 = arith.constant 0 : index
    %c256_30 = arith.constant 256 : index
    %64 = vector.load %arg3[%c0_29, %c256_30] : memref<256x512xbf16, #tpu.memory_space<vmem>>, vector<256x128xbf16>
    %cst_31 = arith.constant dense<0.000000e+00> : vector<128x128xf32>
    %65 = tpu.matmul %63, %64, %cst_31 {dimension_numbers = #tpu.dot_dimension_numbers<[1], [0], [0], [1], [0, 0, 1, 1], [], []>} : vector<128x256xbf16>, vector<256x128xbf16>, vector<128x128xf32> -> vector<128x128xf32>
    %66 = arith.truncf %65 : vector<128x128xf32> to vector<128x128xbf16>
    %c0_32 = arith.constant 0 : index
    %c256_33 = arith.constant 256 : index
    %67 = vector.load %arg8[%c0_32, %c256_33] : memref<128x512xbf16, #tpu.memory_space<vmem>>, vector<128x128xbf16>
    tpu.vector_store %arg8[%c0_32, %c256_33], %66 {strides = array<i32>} : memref<128x512xbf16, #tpu.memory_space<vmem>>, vector<128x128xbf16>,
    %c0_34 = arith.constant 0 : index
    %c384 = arith.constant 384 : index
    %68 = vector.load %arg1[%c0_34, %c384] : memref<128x512xbf16, #tpu.memory_space<vmem>>, vector<128x128xbf16>
    %c0_35 = arith.constant 0 : index
    %c384_36 = arith.constant 384 : index
    %69 = vector.load %arg2[%c0_35, %c384_36] : memref<256x512xbf16, #tpu.memory_space<vmem>>, vector<256x128xbf16>
    %cst_37 = arith.constant dense<0.000000e+00> : vector<128x256xf32>
    %70 = tpu.matmul %68, %69, %cst_37 {dimension_numbers = #tpu.dot_dimension_numbers<[1], [1], [0], [0], [0, 0, 1, 0], [], []>} : vector<128x128xbf16>, vector<256x128xbf16>, vector<128x256xf32> -> vector<128x256xf32>
    %71 = vector.broadcast %5 : vector<1x256xf32> to vector<128x256xf32>
    %72 = arith.addf %70, %71 : vector<128x256xf32>
    %cst_38 = arith.constant dense<0xFF800000> : vector<128xf32>
    %73 = vector.multi_reduction <maximumf>, %72, %cst_38 [1] : vector<128x256xf32> to vector<128xf32>
    %74 = vector.shape_cast %73 : vector<128xf32> to vector<128x1xf32>
    %75 = vector.broadcast %74 : vector<128x1xf32> to vector<128x256xf32>
    %76 = arith.subf %72, %75 : vector<128x256xf32>
    %77 = math.exp %76 : vector<128x256xf32>
    %cst_39 = arith.constant dense<0.000000e+00> : vector<128xf32>
    %78 = vector.multi_reduction <add>, %77, %cst_39 [1] : vector<128x256xf32> to vector<128xf32>
    %79 = vector.shape_cast %78 : vector<128xf32> to vector<128x1xf32>
    %80 = tpu.reciprocal %79 : vector<128x1xf32> -> vector<128x1xf32>
    %81 = vector.broadcast %80 : vector<128x1xf32> to vector<128x256xf32>
    %82 = arith.mulf %77, %81 : vector<128x256xf32>
    %83 = arith.addf %62, %82 : vector<128x256xf32>
    %84 = arith.truncf %82 : vector<128x256xf32> to vector<128x256xbf16>
    %c0_40 = arith.constant 0 : index
    %c384_41 = arith.constant 384 : index
    %85 = vector.load %arg3[%c0_40, %c384_41] : memref<256x512xbf16, #tpu.memory_space<vmem>>, vector<256x128xbf16>
    %cst_42 = arith.constant dense<0.000000e+00> : vector<128x128xf32>
    %86 = tpu.matmul %84, %85, %cst_42 {dimension_numbers = #tpu.dot_dimension_numbers<[1], [0], [0], [1], [0, 0, 1, 1], [], []>} : vector<128x256xbf16>, vector<256x128xbf16>, vector<128x128xf32> -> vector<128x128xf32>
    %87 = arith.truncf %86 : vector<128x128xf32> to vector<128x128xbf16>
    %c0_43 = arith.constant 0 : index
    %c384_44 = arith.constant 384 : index
    %88 = vector.load %arg8[%c0_43, %c384_44] : memref<128x512xbf16, #tpu.memory_space<vmem>>, vector<128x128xbf16>
    tpu.vector_store %arg8[%c0_43, %c384_44], %87 {strides = array<i32>} : memref<128x512xbf16, #tpu.memory_space<vmem>>, vector<128x128xbf16>,
    %cst_45 = arith.constant 2.500000e-01 : f32
    %89 = vector.broadcast %cst_45 : f32 to vector<128x256xf32>
    %90 = arith.mulf %83, %89 : vector<128x256xf32>
    %91 = arith.truncf %90 : vector<128x256xf32> to vector<128x256xbf16>
    %c0_46 = arith.constant 0 : index
    %c0_47 = arith.constant 0 : index
    %92 = vector.load %arg7[%c0_46, %c0_47] : memref<128x256xbf16, #tpu.memory_space<vmem>>, vector<128x256xbf16>
    tpu.vector_store %arg7[%c0_46, %c0_47], %91 {strides = array<i32>} : memref<128x256xbf16, #tpu.memory_space<vmem>>, vector<128x256xbf16>,
    %c0_48 = arith.constant 0 : index
    %c0_49 = arith.constant 0 : index
    %93 = vector.load %arg8[%c0_48, %c0_49] : memref<128x512xbf16, #tpu.memory_space<vmem>>, vector<128x512xbf16>
    %c0_50 = arith.constant 0 : index
    %c0_51 = arith.constant 0 : index
    %94 = vector.load %arg4[%c0_50, %c0_51] : memref<512x512xbf16, #tpu.memory_space<vmem>>, vector<512x512xbf16>
    %cst_52 = arith.constant dense<0.000000e+00> : vector<128x512xf32>
    %95 = tpu.matmul %93, %94, %cst_52 {dimension_numbers = #tpu.dot_dimension_numbers<[1], [0], [0], [1], [0, 0, 1, 1], [], []>} : vector<128x512xbf16>, vector<512x512xbf16>, vector<128x512xf32> -> vector<128x512xf32>
    %c0_53 = arith.constant 0 : index
    %c0_54 = arith.constant 0 : index
    %96 = vector.load %arg5[%c0_53, %c0_54] : memref<1x512xf32, #tpu.memory_space<vmem>>, vector<1x512xf32>
    %97 = vector.broadcast %96 : vector<1x512xf32> to vector<128x512xf32>
    %98 = arith.addf %95, %97 : vector<128x512xf32>
    %c0_55 = arith.constant 0 : index
    %c0_56 = arith.constant 0 : index
    %99 = vector.load %arg6[%c0_55, %c0_56] : memref<128x512xf32, #tpu.memory_space<vmem>>, vector<128x512xf32>
    tpu.vector_store %arg6[%c0_55, %c0_56], %98 {strides = array<i32>} : memref<128x512xf32, #tpu.memory_space<vmem>>, vector<128x512xf32>,
    return
  }
  func.func @transform_0(%arg0: i32) -> (i32, i32) {
    %c0_i32 = arith.constant 0 : i32
    %c0_i32_0 = arith.constant 0 : i32
    return %arg0, %c0_i32 : i32, i32
  }
  func.func @transform_1(%arg0: i32) -> (i32, i32) {
    %c0_i32 = arith.constant 0 : i32
    %c0_i32_0 = arith.constant 0 : i32
    %c0_i32_1 = arith.constant 0 : i32
    return %c0_i32, %c0_i32_0 : i32, i32
  }
  func.func @transform_2(%arg0: i32) -> (i32, i32) {
    %c0_i32 = arith.constant 0 : i32
    %c0_i32_0 = arith.constant 0 : i32
    %c0_i32_1 = arith.constant 0 : i32
    return %c0_i32, %c0_i32_0 : i32, i32
  }
  func.func @transform_3(%arg0: i32) -> (i32, i32) {
    %c0_i32 = arith.constant 0 : i32
    %c0_i32_0 = arith.constant 0 : i32
    %c0_i32_1 = arith.constant 0 : i32
    return %c0_i32, %c0_i32_0 : i32, i32
  }
  func.func @transform_4(%arg0: i32) -> (i32, i32) {
    %c0_i32 = arith.constant 0 : i32
    %c0_i32_0 = arith.constant 0 : i32
    %c0_i32_1 = arith.constant 0 : i32
    return %c0_i32, %c0_i32_0 : i32, i32
  }
  func.func @transform_5(%arg0: i32) -> (i32, i32) {
    %c0_i32 = arith.constant 0 : i32
    %c0_i32_0 = arith.constant 0 : i32
    return %arg0, %c0_i32 : i32, i32
  }
  func.func @transform_6(%arg0: i32) -> (i32, i32) {
    %c0_i32 = arith.constant 0 : i32
    %c0_i32_0 = arith.constant 0 : i32
    return %arg0, %c0_i32 : i32, i32
  }
}

</mosaic_0001>

<llo_original>
// kernel: mha_gcn_forward.3
$region0: #{mha_gcn_forward.3}
  #allocation0 [shape = 'u32[]', space=smem, size = 0x4, offset = 0x4, fixed_abs, tag = 'smem constant byte address 0x4 - core index']
  #allocation1 [shape = 'u32[144,128]{1,0:T(1,128)}', space=vmem, size = 0x12000, scoped, tag = 'internal scratch']
  %s0 = inlined_call_operand.vmem [shape: bf16[256,256], index: 0, kind: input, shape index: {}]
  %s1 = inlined_call_operand.vmem [shape: bf16[256,128], index: 1, kind: input, shape index: {}]
  %s2 = inlined_call_operand.vmem [shape: f32[1,128], index: 2, kind: input, shape index: {}]
  %s3 = inlined_call_operand.vmem [shape: bf16[256,128], index: 3, kind: output, shape index: {}]
  %s4 = sld [smem:[#allocation0]]
  $region45: #{mha_gcn_forward.3} parent=0
    _
  %s6 = ssub.s32 1, %s4
  %s7 = scalar_select 0, %s6, %s4
  loop: start=0, step=1, limit=4
  $region2: #{mha_gcn_forward.3} parent=0 // loop_pre_header
    _
  $region3: #{mha_gcn_forward.3} parent=0 // loop_header
    %s9 = sphi 0, %s13
    %p10 = scmp.ge.s32.totalorder %s9, 4
    %s19 = sphi 0, %s21
    %s22 = sphi 0, %s19
    %s23 = sphi 0, %s22
    %s39 = sphi 0, %s23
    %s43 = sphi 0, %s43
    %s45 = sphi 0, %s43
    %s46 = sphi 0, %s45
    %s60 = sphi 0, %s46
    %s64 = sphi 0, %s64
    %s66 = sphi 0, %s64
    %s67 = sphi 0, %s66
    %s81 = sphi 0, %s67
    %s87 = sphi 0, %s89
    %s90 = sphi 0, %s87
    %s91 = sphi 0, %s90
    %s107 = sphi 0, %s91
  $region4: #{mha_gcn_forward.3} parent=0 // loop_header_branch
    %12 = sbr.rel (%p10) target = $region8
  $region5: #{mha_gcn_forward.3} parent=0 // loop_body
    %s14 = ssub.s32 %s9, 1
    %s15 = ssub.s32 %s9, 2
    %s16 = sadd.s32 %s9, 1
    %s17 = ssub.s32 %s9, %s16
    %p18 = scmp.eq.s32.totalorder %s17, 0
    %s20 = sadd.s32 %s19, 1
    %s21 = scalar_select %p18, %s19, %s20
    %p24 = pneg %p18
    %p25 = scmp.eq.s32.totalorder %s9, 1
    %p26 = por %p24, %p25
    %p27 = scmp.ne.s32.totalorder %s19, %s22
    %p28 = scmp.eq.s32.totalorder %s9, 0
    %p29 = por %p27, %p28
    %p30 = scmp.ne.s32.totalorder %s19, %s22
    %p31 = scmp.eq.s32.totalorder %s14, 1
    %p32 = por %p30, %p31
    %p33 = scmp.ne.s32.totalorder %s22, %s23
    %p34 = scmp.eq.s32.totalorder %s14, 0
    %p35 = por %p33, %p34
    %p36 = scmp.ne.s32.totalorder %s22, %s23
    %p37 = scmp.eq.s32.totalorder %s15, 1
    %p38 = por %p36, %p37
    %p40 = scmp.ne.s32.totalorder %s23, %s39
    %p41 = scmp.eq.s32.totalorder %s15, 0
    %p42 = por %p40, %p41
    %s44 = sadd.s32 %s43, 1
    %p47 = scmp.eq.s32.totalorder %s9, 1
    %p48 = scmp.ne.s32.totalorder %s43, %s45
    %p49 = scmp.eq.s32.totalorder %s9, 0
    %p50 = por %p48, %p49
    %p51 = scmp.ne.s32.totalorder %s43, %s45
    %p52 = scmp.eq.s32.totalorder %s14, 1
    %p53 = por %p51, %p52
    %p54 = scmp.ne.s32.totalorder %s45, %s46
    %p55 = scmp.eq.s32.totalorder %s14, 0
    %p56 = por %p54, %p55
    %p57 = scmp.ne.s32.totalorder %s45, %s46
    %p58 = scmp.eq.s32.totalorder %s15, 1
    %p59 = por %p57, %p58
    %p61 = scmp.ne.s32.totalorder %s46, %s60
    %p62 = scmp.eq.s32.totalorder %s15, 0
    %p63 = por %p61, %p62
    %s65 = sadd.s32 %s64, 1
    %p68 = scmp.eq.s32.totalorder %s9, 1
    %p69 = scmp.ne.s32.totalorder %s64, %s66
    %p70 = scmp.eq.s32.totalorder %s9, 0
    %p71 = por %p69, %p70
    %p72 = scmp.ne.s32.totalorder %s64, %s66
    %p73 = scmp.eq.s32.totalorder %s14, 1
    %p74 = por %p72, %p73
    %p75 = scmp.ne.s32.totalorder %s66, %s67
    %p76 = scmp.eq.s32.totalorder %s14, 0
    %p77 = por %p75, %p76
    %p78 = scmp.ne.s32.totalorder %s66, %s67
    %p79 = scmp.eq.s32.totalorder %s15, 1
    %p80 = por %p78, %p79
    %p82 = scmp.ne.s32.totalorder %s67, %s81
    %p83 = scmp.eq.s32.totalorder %s15, 0
    %p84 = por %p82, %p83
    %s85 = ssub.s32 %s9, %s16
    %p86 = scmp.eq.s32.totalorder %s85, 0
    %s88 = sadd.s32 %s87, 1
    %s89 = scalar_select %p86, %s87, %s88
    %p92 = pneg %p86
    %p93 = scmp.eq.s32.totalorder %s9, 1
    %p94 = por %p92, %p93
    %p95 = scmp.ne.s32.totalorder %s87, %s90
    %p96 = scmp.eq.s32.totalorder %s9, 0
    %p97 = por %p95, %p96
    %p98 = scmp.ne.s32.totalorder %s87, %s90
    %p99 = scmp.eq.s32.totalorder %s14, 1
    %p100 = por %p98, %p99
    %p101 = scmp.ne.s32.totalorder %s90, %s91
    %p102 = scmp.eq.s32.totalorder %s14, 0
    %p103 = por %p101, %p102
    %p104 = scmp.ne.s32.totalorder %s90, %s91
    %p105 = scmp.eq.s32.totalorder %s15, 1
    %p106 = por %p104, %p105
    %p108 = scmp.ne.s32.totalorder %s91, %s107
    %p109 = scmp.eq.s32.totalorder %s15, 0
    %p110 = por %p108, %p109
    %p111 = scmp.le.s32.totalorder 1, %s9
    %p112 = scmp.lt.s32.totalorder %s9, 3
    %p113 = pnand %p111, %p112
    %p114 = pneg %p113
    // Predicated region
    $region9: #{mha_gcn_forward.3} parent=5 // pred_check
      _
    $region10: #{mha_gcn_forward.3} parent=5 // pred_check_branch
      %116 = sbr.rel (%p113) target = $region12
    $region11: #{mha_gcn_forward.3} parent=5 // pred_region
      %s117 = ssub.s32 %s9, 1
      // Predicated region
      $region13: #{mha_gcn_forward.3} parent=11 // pred_check
        %p118 = pneg %p56
      $region14: #{mha_gcn_forward.3} parent=11 // pred_check_branch
        %120 = sbr.rel (%p118) target = $region16
      $region15: #{mha_gcn_forward.3} parent=11 // pred_region
        _
      $region16: #{mha_gcn_forward.3} parent=11 // pred_fallthru
        _
      // Predicated region
      $region17: #{mha_gcn_forward.3} parent=11 // pred_check
        %p121 = pneg %p77
      $region18: #{mha_gcn_forward.3} parent=11 // pred_check_branch
        %123 = sbr.rel (%p121) target = $region20
      $region19: #{mha_gcn_forward.3} parent=11 // pred_region
        _
      $region20: #{mha_gcn_forward.3} parent=11 // pred_fallthru
        _
    $region12: #{mha_gcn_forward.3} parent=5 // pred_fallthru
      _
    %p124 = scmp.lt.s32.totalorder %s9, 2
    // Predicated region
    $region21: #{mha_gcn_forward.3} parent=5 // pred_check
      %p125 = pneg %p124
    $region22: #{mha_gcn_forward.3} parent=5 // pred_check_branch
      %127 = sbr.rel (%p125) target = $region24
    $region23: #{mha_gcn_forward.3} parent=5 // pred_region
      // Predicated region
      $region25: #{mha_gcn_forward.3} parent=23 // pred_check
        %p128 = pneg %p29
      $region26: #{mha_gcn_forward.3} parent=23 // pred_check_branch
        %130 = sbr.rel (%p128) target = $region28
      $region27: #{mha_gcn_forward.3} parent=23 // pred_region
        %s131 = smul.u32 16, %s9
        %p132 = scmp.lt.s32.totalorder %s131, 31
        %s133 = scalar_select %p132, %s131, 31
        %s134 = smul.addr %s133, 2
        %s135 = smul.addr %s134, 4
        %s136 = scalar_lea.vmem %s0, %s135
        %s137 = smul.u32 16, %s9
      $region28: #{mha_gcn_forward.3} parent=23 // pred_fallthru
        _
    $region24: #{mha_gcn_forward.3} parent=5 // pred_fallthru
      _
    %p138 = scmp.le.s32.totalorder 1, %s9
    %p139 = scmp.lt.s32.totalorder %s9, 3
    %p140 = pnand %p138, %p139
    %p141 = pneg %p140
    // Predicated region
    $region29: #{mha_gcn_forward.3} parent=5 // pred_check
      _
    $region30: #{mha_gcn_forward.3} parent=5 // pred_check_branch
      %143 = sbr.rel (%p140) target = $region32
    $region31: #{mha_gcn_forward.3} parent=5 // pred_region
      %s144 = ssub.s32 %s9, 1
      %s145 = smul.u32 16, %s14
      %p146 = scmp.lt.s32.totalorder %s145, 31
      %s147 = scalar_select %p146, %s145, 31
      %s148 = smul.addr %s147, 2
      %s149 = smul.addr %s148, 4
      %s150 = scalar_lea.vmem %s0, %s149
      %p151 = pneg %p35
      %p152 = pneg %p32
      %p153 = pneg %p56
      %p154 = pneg %p53
      %p155 = pneg %p77
      %p156 = pneg %p74
      %p157 = pneg %p103
      %p158 = pneg %p100
      %s159 = smul.u32 16, %s14
      %p160 = scmp.lt.s32.totalorder %s159, 31
      %s161 = scalar_select %p160, %s159, 31
      %s162 = smul.addr %s161, 4
      %s163 = scalar_lea.vmem %s3, %s162
      %s164 = smul.u32 16, %s14
      %p165 = scmp.lt.s32.totalorder %s164, 31
      %s166 = scalar_select %p165, %s164, 31
      %s167 = smul.addr %s166, 2
      %s168 = smul.addr %s167, 4
      %s169 = scalar_lea.vmem %s0, %s168
      %s170 = smul.u32 16, %s14
      %s171 = smul.u32 16, %s14
      %p172 = scmp.lt.s32.totalorder %s171, 31
      %s173 = scalar_select %p172, %s171, 31
      %s174 = smul.addr %s173, 4
      %s175 = scalar_lea.vmem %s3, %s174
      %s176 = smul.u32 16, %s14
      %v178 = vld [vmem:[%s169] sm:$0xff]
      %v179 = vld [vmem:[%s169 + $0x8] sm:$0xff]
      %v180 = vld [vmem:[%s169 + $0x10] sm:$0xff]
      %v181 = vld [vmem:[%s169 + $0x18] sm:$0xff]
      %v182 = vld [vmem:[%s169 + $0x20] sm:$0xff]
      %v183 = vld [vmem:[%s169 + $0x28] sm:$0xff]
      %v184 = vld [vmem:[%s169 + $0x30] sm:$0xff]
      %v185 = vld [vmem:[%s169 + $0x38] sm:$0xff]
      %v186 = vld [vmem:[%s169 + $0x40] sm:$0xff]
      %v187 = vld [vmem:[%s169 + $0x48] sm:$0xff]
      %v188 = vld [vmem:[%s169 + $0x50] sm:$0xff]
      %v189 = vld [vmem:[%s169 + $0x58] sm:$0xff]
      %v190 = vld [vmem:[%s169 + $0x60] sm:$0xff]
      %v191 = vld [vmem:[%s169 + $0x68] sm:$0xff]
      %v192 = vld [vmem:[%s169 + $0x70] sm:$0xff]
      %v193 = vld [vmem:[%s169 + $0x78] sm:$0xff]
      %v194 = vld [vmem:[%s1] sm:$0xf]
      %v195 = vld [vmem:[%s1 + $0x4] sm:$0xf]
      %v196 = vld [vmem:[%s1 + $0x8] sm:$0xf]
      %v197 = vld [vmem:[%s1 + $0xc] sm:$0xf]
      %v198 = vld [vmem:[%s1 + $0x10] sm:$0xf]
      %v199 = vld [vmem:[%s1 + $0x14] sm:$0xf]
      %v200 = vld [vmem:[%s1 + $0x18] sm:$0xf]
      %v201 = vld [vmem:[%s1 + $0x1c] sm:$0xf]
      %v202 = vld [vmem:[%s1 + $0x20] sm:$0xf]
      %v203 = vld [vmem:[%s1 + $0x24] sm:$0xf]
      %v204 = vld [vmem:[%s1 + $0x28] sm:$0xf]
      %v205 = vld [vmem:[%s1 + $0x2c] sm:$0xf]
      %v206 = vld [vmem:[%s1 + $0x30] sm:$0xf]
      %v207 = vld [vmem:[%s1 + $0x34] sm:$0xf]
      %v208 = vld [vmem:[%s1 + $0x38] sm:$0xf]
      %v209 = vld [vmem:[%s1 + $0x3c] sm:$0xf]
      %v210 = vld [vmem:[%s1 + $0x40] sm:$0xf]
      %v211 = vld [vmem:[%s1 + $0x44] sm:$0xf]
      %v212 = vld [vmem:[%s1 + $0x48] sm:$0xf]
      %v213 = vld [vmem:[%s1 + $0x4c] sm:$0xf]
      %v214 = vld [vmem:[%s1 + $0x50] sm:$0xf]
      %v215 = vld [vmem:[%s1 + $0x54] sm:$0xf]
      %v216 = vld [vmem:[%s1 + $0x58] sm:$0xf]
      %v217 = vld [vmem:[%s1 + $0x5c] sm:$0xf]
      %v218 = vld [vmem:[%s1 + $0x60] sm:$0xf]
      %v219 = vld [vmem:[%s1 + $0x64] sm:$0xf]
      %v220 = vld [vmem:[%s1 + $0x68] sm:$0xf]
      %v221 = vld [vmem:[%s1 + $0x6c] sm:$0xf]
      %v222 = vld [vmem:[%s1 + $0x70] sm:$0xf]
      %v223 = vld [vmem:[%s1 + $0x74] sm:$0xf]
      %v224 = vld [vmem:[%s1 + $0x78] sm:$0xf]
      %v225 = vld [vmem:[%s1 + $0x7c] sm:$0xf]
      %v226 = vld [vmem:[%s2] sm:$0x1]
      %v228 = vlaneseq
      %v229 = vshrl.u32 %v228, 7
      %v230 = vsub.s32 0, %v229
      %v231 = vrot.slane %v226, %v230
      %v249 = vunpack.c.l.b16 %v178
      %v250 = vunpack.c.h.b16 %v178
      %v251 = vunpack.c.l.b16 %v179
      %v252 = vunpack.c.h.b16 %v179
      %v253 = vunpack.c.l.b16 %v180
      %v254 = vunpack.c.h.b16 %v180
      %v255 = vunpack.c.l.b16 %v181
      %v256 = vunpack.c.h.b16 %v181
      %v257 = vunpack.c.l.b16 %v182
      %v258 = vunpack.c.h.b16 %v182
      %v259 = vunpack.c.l.b16 %v183
      %v260 = vunpack.c.h.b16 %v183
      %v261 = vunpack.c.l.b16 %v184
      %v262 = vunpack.c.h.b16 %v184
      %v263 = vunpack.c.l.b16 %v185
      %v264 = vunpack.c.h.b16 %v185
      %v265 = vunpack.c.l.b16 %v186
      %v266 = vunpack.c.h.b16 %v186
      %v267 = vunpack.c.l.b16 %v187
      %v268 = vunpack.c.h.b16 %v187
      %v269 = vunpack.c.l.b16 %v188
      %v270 = vunpack.c.h.b16 %v188
      %v271 = vunpack.c.l.b16 %v189
      %v272 = vunpack.c.h.b16 %v189
      %v273 = vunpack.c.l.b16 %v190
      %v274 = vunpack.c.h.b16 %v190
      %v275 = vunpack.c.l.b16 %v191
      %v276 = vunpack.c.h.b16 %v191
      %v277 = vunpack.c.l.b16 %v192
      %v278 = vunpack.c.h.b16 %v192
      %v279 = vunpack.c.l.b16 %v193
      %v280 = vunpack.c.h.b16 %v193
      %v281 = vpack.c.b16 %v251, %v249
      %v282 = vpack.c.b16 %v252, %v250
      %v283 = vpack.c.b16 %v255, %v253
      %v284 = vpack.c.b16 %v256, %v254
      %v285 = vpack.c.b16 %v259, %v257
      %v286 = vpack.c.b16 %v260, %v258
      %v287 = vpack.c.b16 %v263, %v261
      %v288 = vpack.c.b16 %v264, %v262
      %v289 = vpack.c.b16 %v267, %v265
      %v290 = vpack.c.b16 %v268, %v266
      %v291 = vpack.c.b16 %v271, %v269
      %v292 = vpack.c.b16 %v272, %v270
      %v293 = vpack.c.b16 %v275, %v273
      %v294 = vpack.c.b16 %v276, %v274
      %v295 = vpack.c.b16 %v279, %v277
      %v296 = vpack.c.b16 %v280, %v278
      %v345 = vunpack.c.l.b16 %v194
      %v346 = vunpack.c.l.b16 %v195
      %v347 = vunpack.c.l.b16 %v196
      %v348 = vunpack.c.l.b16 %v197
      %v349 = vunpack.c.l.b16 %v198
      %v350 = vunpack.c.l.b16 %v199
      %v351 = vunpack.c.l.b16 %v200
      %v352 = vunpack.c.l.b16 %v201
      %v353 = vunpack.c.l.b16 %v202
      %v354 = vunpack.c.l.b16 %v203
      %v355 = vunpack.c.l.b16 %v204
      %v356 = vunpack.c.l.b16 %v205
      %v357 = vunpack.c.l.b16 %v206
      %v358 = vunpack.c.l.b16 %v207
      %v359 = vunpack.c.l.b16 %v208
      %v360 = vunpack.c.l.b16 %v209
      %v361 = vunpack.c.l.b16 %v210
      %v362 = vunpack.c.l.b16 %v211
      %v363 = vunpack.c.l.b16 %v212
      %v364 = vunpack.c.l.b16 %v213
      %v365 = vunpack.c.l.b16 %v214
      %v366 = vunpack.c.l.b16 %v215
      %v367 = vunpack.c.l.b16 %v216
      %v368 = vunpack.c.l.b16 %v217
      %v369 = vunpack.c.l.b16 %v218
      %v370 = vunpack.c.l.b16 %v219
      %v371 = vunpack.c.l.b16 %v220
      %v372 = vunpack.c.l.b16 %v221
      %v373 = vunpack.c.l.b16 %v222
      %v374 = vunpack.c.l.b16 %v223
      %v375 = vunpack.c.l.b16 %v224
      %v376 = vunpack.c.l.b16 %v225
      %v377 = vpack.c.b16 %v346, %v345
      %v378 = vpack.c.b16 %v348, %v347
      %v379 = vpack.c.b16 %v350, %v349
      %v380 = vpack.c.b16 %v352, %v351
      %v381 = vpack.c.b16 %v354, %v353
      %v382 = vpack.c.b16 %v356, %v355
      %v383 = vpack.c.b16 %v358, %v357
      %v384 = vpack.c.b16 %v360, %v359
      %v385 = vpack.c.b16 %v362, %v361
      %v386 = vpack.c.b16 %v364, %v363
      %v387 = vpack.c.b16 %v366, %v365
      %v388 = vpack.c.b16 %v368, %v367
      %v389 = vpack.c.b16 %v370, %v369
      %v390 = vpack.c.b16 %v372, %v371
      %v391 = vpack.c.b16 %v374, %v373
      %v392 = vpack.c.b16 %v376, %v375
      %409 = vmatprep.subr.bf16.mxu0 0
      %410 = vmatpush1.bf16.msra.mxu0 %v377
      %411 = vmatprep.subr.bf16.mxu0 0
      %412 = vmatpush1.bf16.msra.mxu0 %v378
      %413 = vmatprep.subr.bf16.mxu0 0
      %414 = vmatpush1.bf16.msra.mxu0 %v379
      %415 = vmatprep.subr.bf16.mxu0 0
      %416 = vmatpush1.bf16.msra.mxu0 %v380
      %417 = vmatprep.subr.bf16.mxu0 0
      %418 = vmatpush1.bf16.msra.mxu0 %v381
      %419 = vmatprep.subr.bf16.mxu0 0
      %420 = vmatpush1.bf16.msra.mxu0 %v382
      %421 = vmatprep.subr.bf16.mxu0 0
      %422 = vmatpush1.bf16.msra.mxu0 %v383
      %423 = vmatprep.subr.bf16.mxu0 0
      %424 = vmatpush1.bf16.msra.mxu0 %v384
      %425 = vmatprep.subr.bf16.mxu0 0
      %426 = vmatpush1.bf16.msra.mxu0 %v385
      %427 = vmatprep.subr.bf16.mxu0 0
      %428 = vmatpush1.bf16.msra.mxu0 %v386
      %429 = vmatprep.subr.bf16.mxu0 0
      %430 = vmatpush1.bf16.msra.mxu0 %v387
      %431 = vmatprep.subr.bf16.mxu0 0
      %432 = vmatpush1.bf16.msra.mxu0 %v388
      %433 = vmatprep.subr.bf16.mxu0 0
      %434 = vmatpush1.bf16.msra.mxu0 %v389
      %435 = vmatprep.subr.bf16.mxu0 0
      %436 = vmatpush1.bf16.msra.mxu0 %v390
      %437 = vmatprep.subr.bf16.mxu0 0
      %438 = vmatpush1.bf16.msra.mxu0 %v391
      %439 = vmatprep.subr.bf16.mxu0 0
      %440 = vmatpush1.bf16.msra.mxu0 %v392
      %441 = vmatprep.mubr.bf16.mxu0 %v282
      %442 = vmatmul.mubr.bf16.gmra.mrb[0].mxu0 %v281
      %v443 = vpop.f32.mrb[0].mxu0
      %v444 = vadd.f32 %v231, %v443
      %v445 = vpop.f32.mrb[0].mxu0
      %v446 = vpop.f32.mrb[0].mxu0
      %v447 = vadd.f32 %v231, %v446
      %v448 = vpop.f32.mrb[0].mxu0
      %449 = vmatprep.mubr.bf16.mxu0 %v284
      %450 = vmatmul.mubr.bf16.gmra.mrb[0].mxu0 %v283
      %v451 = vpop.f32.mrb[0].mxu0
      %v452 = vadd.f32 %v231, %v451
      %v453 = vpop.f32.mrb[0].mxu0
      %v454 = vpop.f32.mrb[0].mxu0
      %v455 = vadd.f32 %v231, %v454
      %v456 = vpop.f32.mrb[0].mxu0
      %457 = vmatprep.mubr.bf16.mxu0 %v286
      %458 = vmatmul.mubr.bf16.gmra.mrb[0].mxu0 %v285
      %v459 = vpop.f32.mrb[0].mxu0
      %v460 = vadd.f32 %v231, %v459
      %v461 = vpop.f32.mrb[0].mxu0
      %v462 = vpop.f32.mrb[0].mxu0
      %v463 = vadd.f32 %v231, %v462
      %v464 = vpop.f32.mrb[0].mxu0
      %465 = vmatprep.mubr.bf16.mxu0 %v288
      %466 = vmatmul.mubr.bf16.gmra.mrb[0].mxu0 %v287
      %v467 = vpop.f32.mrb[0].mxu0
      %v468 = vadd.f32 %v231, %v467
      %v469 = vpop.f32.mrb[0].mxu0
      %v470 = vpop.f32.mrb[0].mxu0
      %v471 = vadd.f32 %v231, %v470
      %v472 = vpop.f32.mrb[0].mxu0
      %473 = vmatprep.mubr.bf16.mxu0 %v290
      %474 = vmatmul.mubr.bf16.gmra.mrb[0].mxu0 %v289
      %v475 = vpop.f32.mrb[0].mxu0
      %v476 = vadd.f32 %v231, %v475
      %v477 = vpop.f32.mrb[0].mxu0
      %v478 = vpop.f32.mrb[0].mxu0
      %v479 = vadd.f32 %v231, %v478
      %v480 = vpop.f32.mrb[0].mxu0
      %481 = vmatprep.mubr.bf16.mxu0 %v292
      %482 = vmatmul.mubr.bf16.gmra.mrb[0].mxu0 %v291
      %v483 = vpop.f32.mrb[0].mxu0
      %v484 = vadd.f32 %v231, %v483
      %v485 = vpop.f32.mrb[0].mxu0
      %v486 = vpop.f32.mrb[0].mxu0
      %v487 = vadd.f32 %v231, %v486
      %v488 = vpop.f32.mrb[0].mxu0
      %489 = vmatprep.mubr.bf16.mxu0 %v294
      %490 = vmatmul.mubr.bf16.gmra.mrb[0].mxu0 %v293
      %v491 = vpop.f32.mrb[0].mxu0
      %v492 = vadd.f32 %v231, %v491
      %v493 = vpop.f32.mrb[0].mxu0
      %v494 = vpop.f32.mrb[0].mxu0
      %v495 = vadd.f32 %v231, %v494
      %v496 = vpop.f32.mrb[0].mxu0
      %497 = vmatprep.mubr.bf16.mxu0 %v296
      %498 = vmatmul.mubr.bf16.gmra.mrb[0].mxu0 %v295
      %v499 = vpop.f32.mrb[0].mxu0
      %v500 = vadd.f32 %v231, %v499
      %v501 = vpop.f32.mrb[0].mxu0
      %v502 = vpop.f32.mrb[0].mxu0
      %v503 = vadd.f32 %v231, %v502
      %v504 = vpop.f32.mrb[0].mxu0
      %505 = vdwg.mxu0
      %v506 = vmax.f32 %v444, 0.0
      %v507 = vmax.f32 %v447, 0.0
      %v508 = vmax.f32 %v452, 0.0
      %v509 = vmax.f32 %v455, 0.0
      %v510 = vmax.f32 %v460, 0.0
      %v511 = vmax.f32 %v463, 0.0
      %v512 = vmax.f32 %v468, 0.0
      %v513 = vmax.f32 %v471, 0.0
      %v514 = vmax.f32 %v476, 0.0
      %v515 = vmax.f32 %v479, 0.0
      %v516 = vmax.f32 %v484, 0.0
      %v517 = vmax.f32 %v487, 0.0
      %v518 = vmax.f32 %v492, 0.0
      %v519 = vmax.f32 %v495, 0.0
      %v520 = vmax.f32 %v500, 0.0
      %v521 = vmax.f32 %v503, 0.0
      %v522 = vpack.c.bf16 %v507, %v506
      %v523 = vpack.c.bf16 %v509, %v508
      %v524 = vpack.c.bf16 %v511, %v510
      %v525 = vpack.c.bf16 %v513, %v512
      %v526 = vpack.c.bf16 %v515, %v514
      %v527 = vpack.c.bf16 %v517, %v516
      %v528 = vpack.c.bf16 %v519, %v518
      %v529 = vpack.c.bf16 %v521, %v520
      %v538 = vunpack.c.l.b16 %v522
      %v539 = vunpack.c.h.b16 %v522
      %v540 = vunpack.c.l.b16 %v523
      %v541 = vunpack.c.h.b16 %v523
      %v542 = vunpack.c.l.b16 %v524
      %v543 = vunpack.c.h.b16 %v524
      %v544 = vunpack.c.l.b16 %v525
      %v545 = vunpack.c.h.b16 %v525
      %v546 = vunpack.c.l.b16 %v526
      %v547 = vunpack.c.h.b16 %v526
      %v548 = vunpack.c.l.b16 %v527
      %v549 = vunpack.c.h.b16 %v527
      %v550 = vunpack.c.l.b16 %v528
      %v551 = vunpack.c.h.b16 %v528
      %v552 = vunpack.c.l.b16 %v529
      %v553 = vunpack.c.h.b16 %v529
      %v554 = vpack.c.b16 %v538, %v538
      %v555 = vpack.c.b16 %v539, %v539
      %v556 = vpack.c.b16 %v540, %v540
      %v557 = vpack.c.b16 %v541, %v541
      %v558 = vpack.c.b16 %v542, %v542
      %v559 = vpack.c.b16 %v543, %v543
      %v560 = vpack.c.b16 %v544, %v544
      %v561 = vpack.c.b16 %v545, %v545
      %v562 = vpack.c.b16 %v546, %v546
      %v563 = vpack.c.b16 %v547, %v547
      %v564 = vpack.c.b16 %v548, %v548
      %v565 = vpack.c.b16 %v549, %v549
      %v566 = vpack.c.b16 %v550, %v550
      %v567 = vpack.c.b16 %v551, %v551
      %v568 = vpack.c.b16 %v552, %v552
      %v569 = vpack.c.b16 %v553, %v553
      %586 = vst [vmem:[%s175] sm:$0xf] %v554
      %587 = vst [vmem:[%s175 + $0x4] sm:$0xf] %v555
      %588 = vst [vmem:[%s175 + $0x8] sm:$0xf] %v556
      %589 = vst [vmem:[%s175 + $0xc] sm:$0xf] %v557
      %590 = vst [vmem:[%s175 + $0x10] sm:$0xf] %v558
      %591 = vst [vmem:[%s175 + $0x14] sm:$0xf] %v559
      %592 = vst [vmem:[%s175 + $0x18] sm:$0xf] %v560
      %593 = vst [vmem:[%s175 + $0x1c] sm:$0xf] %v561
      %594 = vst [vmem:[%s175 + $0x20] sm:$0xf] %v562
      %595 = vst [vmem:[%s175 + $0x24] sm:$0xf] %v563
      %596 = vst [vmem:[%s175 + $0x28] sm:$0xf] %v564
      %597 = vst [vmem:[%s175 + $0x2c] sm:$0xf] %v565
      %598 = vst [vmem:[%s175 + $0x30] sm:$0xf] %v566
      %599 = vst [vmem:[%s175 + $0x34] sm:$0xf] %v567
      %600 = vst [vmem:[%s175 + $0x38] sm:$0xf] %v568
      %601 = vst [vmem:[%s175 + $0x3c] sm:$0xf] %v569
      %s602 = smul.u32 16, %s14
      %p603 = scmp.lt.s32.totalorder %s602, 31
      %s604 = scalar_select %p603, %s602, 31
      %s605 = smul.addr %s604, 4
      %s606 = scalar_lea.vmem %s3, %s605
      // Predicated region
      $region33: #{mha_gcn_forward.3} parent=31 // pred_check
        %p607 = pneg %p100
      $region34: #{mha_gcn_forward.3} parent=31 // pred_check_branch
        %609 = sbr.rel (%p607) target = $region36
      $region35: #{mha_gcn_forward.3} parent=31 // pred_region
        %s610 = smul.u32 16, %s14
      $region36: #{mha_gcn_forward.3} parent=31 // pred_fallthru
        _
    $region32: #{mha_gcn_forward.3} parent=5 // pred_fallthru
      _
    %p611 = scmp.le.s32.totalorder 2, %s9
    // Predicated region
    $region37: #{mha_gcn_forward.3} parent=5 // pred_check
      %p612 = pneg %p611
    $region38: #{mha_gcn_forward.3} parent=5 // pred_check_branch
      %614 = sbr.rel (%p612) target = $region40
    $region39: #{mha_gcn_forward.3} parent=5 // pred_region
      %s615 = ssub.s32 %s9, 2
      // Predicated region
      $region41: #{mha_gcn_forward.3} parent=39 // pred_check
        %p616 = pneg %p106
      $region42: #{mha_gcn_forward.3} parent=39 // pred_check_branch
        %618 = sbr.rel (%p616) target = $region44
      $region43: #{mha_gcn_forward.3} parent=39 // pred_region
        %s619 = smul.u32 16, %s15
        %p620 = scmp.lt.s32.totalorder %s619, 31
        %s621 = scalar_select %p620, %s619, 31
        %s622 = smul.addr %s621, 4
        %s623 = scalar_lea.vmem %s3, %s622
      $region44: #{mha_gcn_forward.3} parent=39 // pred_fallthru
        _
    $region40: #{mha_gcn_forward.3} parent=5 // pred_fallthru
      _
  $region6: #{mha_gcn_forward.3} parent=0 // loop_footer
    %s13 = sadd.s32 1, %s9
  $region7: #{mha_gcn_forward.3} parent=0 // loop_footer_branch
    %8 = sbr.rel target = $region3
  $region8: #{mha_gcn_forward.3} parent=0 // loop_exit
    _

// kernel: mha_gcn_forward.4
$region0: #{mha_gcn_forward.4}
  #allocation0 [shape = 'u32[]', space=smem, size = 0x4, offset = 0x4, fixed_abs, tag = 'smem constant byte address 0x4 - core index']
  #allocation1 [shape = 'u32[144,128]{1,0:T(1,128)}', space=vmem, size = 0x12000, scoped, tag = 'internal scratch']
  %s0 = inlined_call_operand.vmem [shape: bf16[256,256], index: 0, kind: input, shape index: {}]
  %s1 = inlined_call_operand.vmem [shape: bf16[256,128], index: 1, kind: input, shape index: {}]
  %s2 = inlined_call_operand.vmem [shape: bf16[128,512], index: 2, kind: input, shape index: {}]
  %s3 = inlined_call_operand.vmem [shape: f32[1,512], index: 3, kind: input, shape index: {}]
  %s4 = inlined_call_operand.vmem [shape: bf16[512,1536], index: 4, kind: input, shape index: {}]
  %s5 = inlined_call_operand.vmem [shape: f32[1,1536], index: 5, kind: input, shape index: {}]
  %s6 = inlined_call_operand.vmem [shape: bf16[256,512], index: 6, kind: output, shape index: {0}]
  %s7 = inlined_call_operand.vmem [shape: bf16[256,512], index: 7, kind: output, shape index: {1}]
  %s8 = inlined_call_operand.vmem [shape: bf16[256,512], index: 8, kind: output, shape index: {2}]
  %9 = xla_tuple %s6, %s7, %s8
  %s10 = sld [smem:[#allocation0]]
  $region73: #{mha_gcn_forward.4} parent=0
    _
  %s12 = ssub.s32 1, %s10
  %s13 = scalar_select 0, %s12, %s10
  loop: start=0, step=1, limit=4
  $region2: #{mha_gcn_forward.4} parent=0 // loop_pre_header
    _
  $region3: #{mha_gcn_forward.4} parent=0 // loop_header
    %s15 = sphi 0, %s19
    %p16 = scmp.ge.s32.totalorder %s15, 4
    %s25 = sphi 0, %s27
    %s28 = sphi 0, %s25
    %s29 = sphi 0, %s28
    %s45 = sphi 0, %s29
    %s49 = sphi 0, %s49
    %s51 = sphi 0, %s49
    %s52 = sphi 0, %s51
    %s66 = sphi 0, %s52
    %s70 = sphi 0, %s70
    %s72 = sphi 0, %s70
    %s73 = sphi 0, %s72
    %s87 = sphi 0, %s73
    %s91 = sphi 0, %s91
    %s93 = sphi 0, %s91
    %s94 = sphi 0, %s93
    %s108 = sphi 0, %s94
    %s112 = sphi 0, %s112
    %s114 = sphi 0, %s112
    %s115 = sphi 0, %s114
    %s129 = sphi 0, %s115
    %s133 = sphi 0, %s133
    %s135 = sphi 0, %s133
    %s136 = sphi 0, %s135
    %s150 = sphi 0, %s136
    %s156 = sphi 0, %s158
    %s159 = sphi 0, %s156
    %s160 = sphi 0, %s159
    %s176 = sphi 0, %s160
    %s182 = sphi 0, %s184
    %s185 = sphi 0, %s182
    %s186 = sphi 0, %s185
    %s202 = sphi 0, %s186
    %s208 = sphi 0, %s210
    %s211 = sphi 0, %s208
    %s212 = sphi 0, %s211
    %s228 = sphi 0, %s212
  $region4: #{mha_gcn_forward.4} parent=0 // loop_header_branch
    %18 = sbr.rel (%p16) target = $region8
  $region5: #{mha_gcn_forward.4} parent=0 // loop_body
    %s20 = ssub.s32 %s15, 1
    %s21 = ssub.s32 %s15, 2
    %s22 = sadd.s32 %s15, 1
    %s23 = ssub.s32 %s15, %s22
    %p24 = scmp.eq.s32.totalorder %s23, 0
    %s26 = sadd.s32 %s25, 1
    %s27 = scalar_select %p24, %s25, %s26
    %p30 = pneg %p24
    %p31 = scmp.eq.s32.totalorder %s15, 1
    %p32 = por %p30, %p31
    %p33 = scmp.ne.s32.totalorder %s25, %s28
    %p34 = scmp.eq.s32.totalorder %s15, 0
    %p35 = por %p33, %p34
    %p36 = scmp.ne.s32.totalorder %s25, %s28
    %p37 = scmp.eq.s32.totalorder %s20, 1
    %p38 = por %p36, %p37
    %p39 = scmp.ne.s32.totalorder %s28, %s29
    %p40 = scmp.eq.s32.totalorder %s20, 0
    %p41 = por %p39, %p40
    %p42 = scmp.ne.s32.totalorder %s28, %s29
    %p43 = scmp.eq.s32.totalorder %s21, 1
    %p44 = por %p42, %p43
    %p46 = scmp.ne.s32.totalorder %s29, %s45
    %p47 = scmp.eq.s32.totalorder %s21, 0
    %p48 = por %p46, %p47
    %s50 = sadd.s32 %s49, 1
    %p53 = scmp.eq.s32.totalorder %s15, 1
    %p54 = scmp.ne.s32.totalorder %s49, %s51
    %p55 = scmp.eq.s32.totalorder %s15, 0
    %p56 = por %p54, %p55
    %p57 = scmp.ne.s32.totalorder %s49, %s51
    %p58 = scmp.eq.s32.totalorder %s20, 1
    %p59 = por %p57, %p58
    %p60 = scmp.ne.s32.totalorder %s51, %s52
    %p61 = scmp.eq.s32.totalorder %s20, 0
    %p62 = por %p60, %p61
    %p63 = scmp.ne.s32.totalorder %s51, %s52
    %p64 = scmp.eq.s32.totalorder %s21, 1
    %p65 = por %p63, %p64
    %p67 = scmp.ne.s32.totalorder %s52, %s66
    %p68 = scmp.eq.s32.totalorder %s21, 0
    %p69 = por %p67, %p68
    %s71 = sadd.s32 %s70, 1
    %p74 = scmp.eq.s32.totalorder %s15, 1
    %p75 = scmp.ne.s32.totalorder %s70, %s72
    %p76 = scmp.eq.s32.totalorder %s15, 0
    %p77 = por %p75, %p76
    %p78 = scmp.ne.s32.totalorder %s70, %s72
    %p79 = scmp.eq.s32.totalorder %s20, 1
    %p80 = por %p78, %p79
    %p81 = scmp.ne.s32.totalorder %s72, %s73
    %p82 = scmp.eq.s32.totalorder %s20, 0
    %p83 = por %p81, %p82
    %p84 = scmp.ne.s32.totalorder %s72, %s73
    %p85 = scmp.eq.s32.totalorder %s21, 1
    %p86 = por %p84, %p85
    %p88 = scmp.ne.s32.totalorder %s73, %s87
    %p89 = scmp.eq.s32.totalorder %s21, 0
    %p90 = por %p88, %p89
    %s92 = sadd.s32 %s91, 1
    %p95 = scmp.eq.s32.totalorder %s15, 1
    %p96 = scmp.ne.s32.totalorder %s91, %s93
    %p97 = scmp.eq.s32.totalorder %s15, 0
    %p98 = por %p96, %p97
    %p99 = scmp.ne.s32.totalorder %s91, %s93
    %p100 = scmp.eq.s32.totalorder %s20, 1
    %p101 = por %p99, %p100
    %p102 = scmp.ne.s32.totalorder %s93, %s94
    %p103 = scmp.eq.s32.totalorder %s20, 0
    %p104 = por %p102, %p103
    %p105 = scmp.ne.s32.totalorder %s93, %s94
    %p106 = scmp.eq.s32.totalorder %s21, 1
    %p107 = por %p105, %p106
    %p109 = scmp.ne.s32.totalorder %s94, %s108
    %p110 = scmp.eq.s32.totalorder %s21, 0
    %p111 = por %p109, %p110
    %s113 = sadd.s32 %s112, 1
    %p116 = scmp.eq.s32.totalorder %s15, 1
    %p117 = scmp.ne.s32.totalorder %s112, %s114
    %p118 = scmp.eq.s32.totalorder %s15, 0
    %p119 = por %p117, %p118
    %p120 = scmp.ne.s32.totalorder %s112, %s114
    %p121 = scmp.eq.s32.totalorder %s20, 1
    %p122 = por %p120, %p121
    %p123 = scmp.ne.s32.totalorder %s114, %s115
    %p124 = scmp.eq.s32.totalorder %s20, 0
    %p125 = por %p123, %p124
    %p126 = scmp.ne.s32.totalorder %s114, %s115
    %p127 = scmp.eq.s32.totalorder %s21, 1
    %p128 = por %p126, %p127
    %p130 = scmp.ne.s32.totalorder %s115, %s129
    %p131 = scmp.eq.s32.totalorder %s21, 0
    %p132 = por %p130, %p131
    %s134 = sadd.s32 %s133, 1
    %p137 = scmp.eq.s32.totalorder %s15, 1
    %p138 = scmp.ne.s32.totalorder %s133, %s135
    %p139 = scmp.eq.s32.totalorder %s15, 0
    %p140 = por %p138, %p139
    %p141 = scmp.ne.s32.totalorder %s133, %s135
    %p142 = scmp.eq.s32.totalorder %s20, 1
    %p143 = por %p141, %p142
    %p144 = scmp.ne.s32.totalorder %s135, %s136
    %p145 = scmp.eq.s32.totalorder %s20, 0
    %p146 = por %p144, %p145
    %p147 = scmp.ne.s32.totalorder %s135, %s136
    %p148 = scmp.eq.s32.totalorder %s21, 1
    %p149 = por %p147, %p148
    %p151 = scmp.ne.s32.totalorder %s136, %s150
    %p152 = scmp.eq.s32.totalorder %s21, 0
    %p153 = por %p151, %p152
    %s154 = ssub.s32 %s15, %s22
    %p155 = scmp.eq.s32.totalorder %s154, 0
    %s157 = sadd.s32 %s156, 1
    %s158 = scalar_select %p155, %s156, %s157
    %p161 = pneg %p155
    %p162 = scmp.eq.s32.totalorder %s15, 1
    %p163 = por %p161, %p162
    %p164 = scmp.ne.s32.totalorder %s156, %s159
    %p165 = scmp.eq.s32.totalorder %s15, 0
    %p166 = por %p164, %p165
    %p167 = scmp.ne.s32.totalorder %s156, %s159
    %p168 = scmp.eq.s32.totalorder %s20, 1
    %p169 = por %p167, %p168
    %p170 = scmp.ne.s32.totalorder %s159, %s160
    %p171 = scmp.eq.s32.totalorder %s20, 0
    %p172 = por %p170, %p171
    %p173 = scmp.ne.s32.totalorder %s159, %s160
    %p174 = scmp.eq.s32.totalorder %s21, 1
    %p175 = por %p173, %p174
    %p177 = scmp.ne.s32.totalorder %s160, %s176
    %p178 = scmp.eq.s32.totalorder %s21, 0
    %p179 = por %p177, %p178
    %s180 = ssub.s32 %s15, %s22
    %p181 = scmp.eq.s32.totalorder %s180, 0
    %s183 = sadd.s32 %s182, 1
    %s184 = scalar_select %p181, %s182, %s183
    %p187 = pneg %p181
    %p188 = scmp.eq.s32.totalorder %s15, 1
    %p189 = por %p187, %p188
    %p190 = scmp.ne.s32.totalorder %s182, %s185
    %p191 = scmp.eq.s32.totalorder %s15, 0
    %p192 = por %p190, %p191
    %p193 = scmp.ne.s32.totalorder %s182, %s185
    %p194 = scmp.eq.s32.totalorder %s20, 1
    %p195 = por %p193, %p194
    %p196 = scmp.ne.s32.totalorder %s185, %s186
    %p197 = scmp.eq.s32.totalorder %s20, 0
    %p198 = por %p196, %p197
    %p199 = scmp.ne.s32.totalorder %s185, %s186
    %p200 = scmp.eq.s32.totalorder %s21, 1
    %p201 = por %p199, %p200
    %p203 = scmp.ne.s32.totalorder %s186, %s202
    %p204 = scmp.eq.s32.totalorder %s21, 0
    %p205 = por %p203, %p204
    %s206 = ssub.s32 %s15, %s22
    %p207 = scmp.eq.s32.totalorder %s206, 0
    %s209 = sadd.s32 %s208, 1
    %s210 = scalar_select %p207, %s208, %s209
    %p213 = pneg %p207
    %p214 = scmp.eq.s32.totalorder %s15, 1
    %p215 = por %p213, %p214
    %p216 = scmp.ne.s32.totalorder %s208, %s211
    %p217 = scmp.eq.s32.totalorder %s15, 0
    %p218 = por %p216, %p217
    %p219 = scmp.ne.s32.totalorder %s208, %s211
    %p220 = scmp.eq.s32.totalorder %s20, 1
    %p221 = por %p219, %p220
    %p222 = scmp.ne.s32.totalorder %s211, %s212
    %p223 = scmp.eq.s32.totalorder %s20, 0
    %p224 = por %p222, %p223
    %p225 = scmp.ne.s32.totalorder %s211, %s212
    %p226 = scmp.eq.s32.totalorder %s21, 1
    %p227 = por %p225, %p226
    %p229 = scmp.ne.s32.totalorder %s212, %s228
    %p230 = scmp.eq.s32.totalorder %s21, 0
    %p231 = por %p229, %p230
    %p232 = scmp.le.s32.totalorder 1, %s15
    %p233 = scmp.lt.s32.totalorder %s15, 3
    %p234 = pnand %p232, %p233
    %p235 = pneg %p234
    // Predicated region
    $region9: #{mha_gcn_forward.4} parent=5 // pred_check
      _
    $region10: #{mha_gcn_forward.4} parent=5 // pred_check_branch
      %237 = sbr.rel (%p234) target = $region12
    $region11: #{mha_gcn_forward.4} parent=5 // pred_region
      %s238 = ssub.s32 %s15, 1
      // Predicated region
      $region13: #{mha_gcn_forward.4} parent=11 // pred_check
        %p239 = pneg %p62
      $region14: #{mha_gcn_forward.4} parent=11 // pred_check_branch
        %241 = sbr.rel (%p239) target = $region16
      $region15: #{mha_gcn_forward.4} parent=11 // pred_region
        _
      $region16: #{mha_gcn_forward.4} parent=11 // pred_fallthru
        _
      // Predicated region
      $region17: #{mha_gcn_forward.4} parent=11 // pred_check
        %p242 = pneg %p83
      $region18: #{mha_gcn_forward.4} parent=11 // pred_check_branch
        %244 = sbr.rel (%p242) target = $region20
      $region19: #{mha_gcn_forward.4} parent=11 // pred_region
        _
      $region20: #{mha_gcn_forward.4} parent=11 // pred_fallthru
        _
      // Predicated region
      $region21: #{mha_gcn_forward.4} parent=11 // pred_check
        %p245 = pneg %p104
      $region22: #{mha_gcn_forward.4} parent=11 // pred_check_branch
        %247 = sbr.rel (%p245) target = $region24
      $region23: #{mha_gcn_forward.4} parent=11 // pred_region
        _
      $region24: #{mha_gcn_forward.4} parent=11 // pred_fallthru
        _
      // Predicated region
      $region25: #{mha_gcn_forward.4} parent=11 // pred_check
        %p248 = pneg %p125
      $region26: #{mha_gcn_forward.4} parent=11 // pred_check_branch
        %250 = sbr.rel (%p248) target = $region28
      $region27: #{mha_gcn_forward.4} parent=11 // pred_region
        _
      $region28: #{mha_gcn_forward.4} parent=11 // pred_fallthru
        _
      // Predicated region
      $region29: #{mha_gcn_forward.4} parent=11 // pred_check
        %p251 = pneg %p146
      $region30: #{mha_gcn_forward.4} parent=11 // pred_check_branch
        %253 = sbr.rel (%p251) target = $region32
      $region31: #{mha_gcn_forward.4} parent=11 // pred_region
        _
      $region32: #{mha_gcn_forward.4} parent=11 // pred_fallthru
        _
    $region12: #{mha_gcn_forward.4} parent=5 // pred_fallthru
      _
    %p254 = scmp.lt.s32.totalorder %s15, 2
    // Predicated region
    $region33: #{mha_gcn_forward.4} parent=5 // pred_check
      %p255 = pneg %p254
    $region34: #{mha_gcn_forward.4} parent=5 // pred_check_branch
      %257 = sbr.rel (%p255) target = $region36
    $region35: #{mha_gcn_forward.4} parent=5 // pred_region
      // Predicated region
      $region37: #{mha_gcn_forward.4} parent=35 // pred_check
        %p258 = pneg %p35
      $region38: #{mha_gcn_forward.4} parent=35 // pred_check_branch
        %260 = sbr.rel (%p258) target = $region40
      $region39: #{mha_gcn_forward.4} parent=35 // pred_region
        %s261 = smul.u32 16, %s15
        %p262 = scmp.lt.s32.totalorder %s261, 31
        %s263 = scalar_select %p262, %s261, 31
        %s264 = smul.addr %s263, 2
        %s265 = smul.addr %s264, 4
        %s266 = scalar_lea.vmem %s0, %s265
        %s267 = smul.u32 16, %s15
      $region40: #{mha_gcn_forward.4} parent=35 // pred_fallthru
        _
    $region36: #{mha_gcn_forward.4} parent=5 // pred_fallthru
      _
    %p268 = scmp.le.s32.totalorder 1, %s15
    %p269 = scmp.lt.s32.totalorder %s15, 3
    %p270 = pnand %p268, %p269
    %p271 = pneg %p270
    // Predicated region
    $region41: #{mha_gcn_forward.4} parent=5 // pred_check
      _
    $region42: #{mha_gcn_forward.4} parent=5 // pred_check_branch
      %273 = sbr.rel (%p270) target = $region44
    $region43: #{mha_gcn_forward.4} parent=5 // pred_region
      %s274 = ssub.s32 %s15, 1
      %s275 = smul.u32 16, %s20
      %p276 = scmp.lt.s32.totalorder %s275, 31
      %s277 = scalar_select %p276, %s275, 31
      %s278 = smul.addr %s277, 2
      %s279 = smul.addr %s278, 4
      %s280 = scalar_lea.vmem %s0, %s279
      %p281 = pneg %p41
      %p282 = pneg %p38
      %p283 = pneg %p62
      %p284 = pneg %p59
      %p285 = pneg %p83
      %p286 = pneg %p80
      %p287 = pneg %p104
      %p288 = pneg %p101
      %p289 = pneg %p125
      %p290 = pneg %p122
      %p291 = pneg %p146
      %p292 = pneg %p143
      %p293 = pneg %p172
      %p294 = pneg %p169
      %s295 = smul.u32 16, %s20
      %p296 = scmp.lt.s32.totalorder %s295, 31
      %s297 = scalar_select %p296, %s295, 31
      %s298 = smul.addr %s297, 4
      %s299 = smul.addr %s298, 4
      %s300 = scalar_lea.vmem %s6, %s299
      %p301 = pneg %p198
      %p302 = pneg %p195
      %s303 = smul.u32 16, %s20
      %p304 = scmp.lt.s32.totalorder %s303, 31
      %s305 = scalar_select %p304, %s303, 31
      %s306 = smul.addr %s305, 4
      %s307 = smul.addr %s306, 4
      %s308 = scalar_lea.vmem %s7, %s307
      %p309 = pneg %p224
      %p310 = pneg %p221
      %s311 = smul.u32 16, %s20
      %p312 = scmp.lt.s32.totalorder %s311, 31
      %s313 = scalar_select %p312, %s311, 31
      %s314 = smul.addr %s313, 4
      %s315 = smul.addr %s314, 4
      %s316 = scalar_lea.vmem %s8, %s315
      %s317 = smul.u32 16, %s20
      %p318 = scmp.lt.s32.totalorder %s317, 31
      %s319 = scalar_select %p318, %s317, 31
      %s320 = smul.addr %s319, 2
      %s321 = smul.addr %s320, 4
      %s322 = scalar_lea.vmem %s0, %s321
      %s323 = smul.u32 16, %s20
      %s324 = smul.u32 16, %s20
      %p325 = scmp.lt.s32.totalorder %s324, 31
      %s326 = scalar_select %p325, %s324, 31
      %s327 = smul.addr %s326, 4
      %s328 = smul.addr %s327, 4
      %s329 = scalar_lea.vmem %s6, %s328
      %s330 = smul.u32 16, %s20
      %s331 = smul.u32 16, %s20
      %p332 = scmp.lt.s32.totalorder %s331, 31
      %s333 = scalar_select %p332, %s331, 31
      %s334 = smul.addr %s333, 4
      %s335 = smul.addr %s334, 4
      %s336 = scalar_lea.vmem %s7, %s335
      %s337 = smul.u32 16, %s20
      %s338 = smul.u32 16, %s20
      %p339 = scmp.lt.s32.totalorder %s338, 31
      %s340 = scalar_select %p339, %s338, 31
      %s341 = smul.addr %s340, 4
      %s342 = smul.addr %s341, 4
      %s343 = scalar_lea.vmem %s8, %s342
      %s344 = smul.u32 16, %s20
      %v346 = vld [vmem:[%s322] sm:$0xff]
      %v347 = vld [vmem:[%s322 + $0x8] sm:$0xff]
      %v348 = vld [vmem:[%s322 + $0x10] sm:$0xff]
      %v349 = vld [vmem:[%s322 + $0x18] sm:$0xff]
      %v350 = vld [vmem:[%s322 + $0x20] sm:$0xff]
      %v351 = vld [vmem:[%s322 + $0x28] sm:$0xff]
      %v352 = vld [vmem:[%s322 + $0x30] sm:$0xff]
      %v353 = vld [vmem:[%s322 + $0x38] sm:$0xff]
      %v354 = vld [vmem:[%s322 + $0x40] sm:$0xff]
      %v355 = vld [vmem:[%s322 + $0x48] sm:$0xff]
      %v356 = vld [vmem:[%s322 + $0x50] sm:$0xff]
      %v357 = vld [vmem:[%s322 + $0x58] sm:$0xff]
      %v358 = vld [vmem:[%s322 + $0x60] sm:$0xff]
      %v359 = vld [vmem:[%s322 + $0x68] sm:$0xff]
      %v360 = vld [vmem:[%s322 + $0x70] sm:$0xff]
      %v361 = vld [vmem:[%s322 + $0x78] sm:$0xff]
      %v362 = vld [vmem:[%s1] sm:$0xf]
      %v363 = vld [vmem:[%s1 + $0x4] sm:$0xf]
      %v364 = vld [vmem:[%s1 + $0x8] sm:$0xf]
      %v365 = vld [vmem:[%s1 + $0xc] sm:$0xf]
      %v366 = vld [vmem:[%s1 + $0x10] sm:$0xf]
      %v367 = vld [vmem:[%s1 + $0x14] sm:$0xf]
      %v368 = vld [vmem:[%s1 + $0x18] sm:$0xf]
      %v369 = vld [vmem:[%s1 + $0x1c] sm:$0xf]
      %v370 = vld [vmem:[%s1 + $0x20] sm:$0xf]
      %v371 = vld [vmem:[%s1 + $0x24] sm:$0xf]
      %v372 = vld [vmem:[%s1 + $0x28] sm:$0xf]
      %v373 = vld [vmem:[%s1 + $0x2c] sm:$0xf]
      %v374 = vld [vmem:[%s1 + $0x30] sm:$0xf]
      %v375 = vld [vmem:[%s1 + $0x34] sm:$0xf]
      %v376 = vld [vmem:[%s1 + $0x38] sm:$0xf]
      %v377 = vld [vmem:[%s1 + $0x3c] sm:$0xf]
      %v378 = vld [vmem:[%s1 + $0x40] sm:$0xf]
      %v379 = vld [vmem:[%s1 + $0x44] sm:$0xf]
      %v380 = vld [vmem:[%s1 + $0x48] sm:$0xf]
      %v381 = vld [vmem:[%s1 + $0x4c] sm:$0xf]
      %v382 = vld [vmem:[%s1 + $0x50] sm:$0xf]
      %v383 = vld [vmem:[%s1 + $0x54] sm:$0xf]
      %v384 = vld [vmem:[%s1 + $0x58] sm:$0xf]
      %v385 = vld [vmem:[%s1 + $0x5c] sm:$0xf]
      %v386 = vld [vmem:[%s1 + $0x60] sm:$0xf]
      %v387 = vld [vmem:[%s1 + $0x64] sm:$0xf]
      %v388 = vld [vmem:[%s1 + $0x68] sm:$0xf]
      %v389 = vld [vmem:[%s1 + $0x6c] sm:$0xf]
      %v390 = vld [vmem:[%s1 + $0x70] sm:$0xf]
      %v391 = vld [vmem:[%s1 + $0x74] sm:$0xf]
      %v392 = vld [vmem:[%s1 + $0x78] sm:$0xf]
      %v393 = vld [vmem:[%s1 + $0x7c] sm:$0xf]
      %v410 = vunpack.c.l.b16 %v346
      %v411 = vunpack.c.h.b16 %v346
      %v412 = vunpack.c.l.b16 %v347
      %v413 = vunpack.c.h.b16 %v347
      %v414 = vunpack.c.l.b16 %v348
      %v415 = vunpack.c.h.b16 %v348
      %v416 = vunpack.c.l.b16 %v349
      %v417 = vunpack.c.h.b16 %v349
      %v418 = vunpack.c.l.b16 %v350
      %v419 = vunpack.c.h.b16 %v350
      %v420 = vunpack.c.l.b16 %v351
      %v421 = vunpack.c.h.b16 %v351
      %v422 = vunpack.c.l.b16 %v352
      %v423 = vunpack.c.h.b16 %v352
      %v424 = vunpack.c.l.b16 %v353
      %v425 = vunpack.c.h.b16 %v353
      %v426 = vunpack.c.l.b16 %v354
      %v427 = vunpack.c.h.b16 %v354
      %v428 = vunpack.c.l.b16 %v355
      %v429 = vunpack.c.h.b16 %v355
      %v430 = vunpack.c.l.b16 %v356
      %v431 = vunpack.c.h.b16 %v356
      %v432 = vunpack.c.l.b16 %v357
      %v433 = vunpack.c.h.b16 %v357
      %v434 = vunpack.c.l.b16 %v358
      %v435 = vunpack.c.h.b16 %v358
      %v436 = vunpack.c.l.b16 %v359
      %v437 = vunpack.c.h.b16 %v359
      %v438 = vunpack.c.l.b16 %v360
      %v439 = vunpack.c.h.b16 %v360
      %v440 = vunpack.c.l.b16 %v361
      %v441 = vunpack.c.h.b16 %v361
      %v442 = vpack.c.b16 %v412, %v410
      %v443 = vpack.c.b16 %v413, %v411
      %v444 = vpack.c.b16 %v416, %v414
      %v445 = vpack.c.b16 %v417, %v415
      %v446 = vpack.c.b16 %v420, %v418
      %v447 = vpack.c.b16 %v421, %v419
      %v448 = vpack.c.b16 %v424, %v422
      %v449 = vpack.c.b16 %v425, %v423
      %v450 = vpack.c.b16 %v428, %v426
      %v451 = vpack.c.b16 %v429, %v427
      %v452 = vpack.c.b16 %v432, %v430
      %v453 = vpack.c.b16 %v433, %v431
      %v454 = vpack.c.b16 %v436, %v434
      %v455 = vpack.c.b16 %v437, %v435
      %v456 = vpack.c.b16 %v440, %v438
      %v457 = vpack.c.b16 %v441, %v439
      %v506 = vunpack.c.l.b16 %v362
      %v507 = vunpack.c.l.b16 %v363
      %v508 = vunpack.c.l.b16 %v364
      %v509 = vunpack.c.l.b16 %v365
      %v510 = vunpack.c.l.b16 %v366
      %v511 = vunpack.c.l.b16 %v367
      %v512 = vunpack.c.l.b16 %v368
      %v513 = vunpack.c.l.b16 %v369
      %v514 = vunpack.c.l.b16 %v370
      %v515 = vunpack.c.l.b16 %v371
      %v516 = vunpack.c.l.b16 %v372
      %v517 = vunpack.c.l.b16 %v373
      %v518 = vunpack.c.l.b16 %v374
      %v519 = vunpack.c.l.b16 %v375
      %v520 = vunpack.c.l.b16 %v376
      %v521 = vunpack.c.l.b16 %v377
      %v522 = vunpack.c.l.b16 %v378
      %v523 = vunpack.c.l.b16 %v379
      %v524 = vunpack.c.l.b16 %v380
      %v525 = vunpack.c.l.b16 %v381
      %v526 = vunpack.c.l.b16 %v382
      %v527 = vunpack.c.l.b16 %v383
      %v528 = vunpack.c.l.b16 %v384
      %v529 = vunpack.c.l.b16 %v385
      %v530 = vunpack.c.l.b16 %v386
      %v531 = vunpack.c.l.b16 %v387
      %v532 = vunpack.c.l.b16 %v388
      %v533 = vunpack.c.l.b16 %v389
      %v534 = vunpack.c.l.b16 %v390
      %v535 = vunpack.c.l.b16 %v391
      %v536 = vunpack.c.l.b16 %v392
      %v537 = vunpack.c.l.b16 %v393
      %v538 = vpack.c.b16 %v507, %v506
      %v539 = vpack.c.b16 %v509, %v508
      %v540 = vpack.c.b16 %v511, %v510
      %v541 = vpack.c.b16 %v513, %v512
      %v542 = vpack.c.b16 %v515, %v514
      %v543 = vpack.c.b16 %v517, %v516
      %v544 = vpack.c.b16 %v519, %v518
      %v545 = vpack.c.b16 %v521, %v520
      %v546 = vpack.c.b16 %v523, %v522
      %v547 = vpack.c.b16 %v525, %v524
      %v548 = vpack.c.b16 %v527, %v526
      %v549 = vpack.c.b16 %v529, %v528
      %v550 = vpack.c.b16 %v531, %v530
      %v551 = vpack.c.b16 %v533, %v532
      %v552 = vpack.c.b16 %v535, %v534
      %v553 = vpack.c.b16 %v537, %v536
      %570 = vmatprep.subr.bf16.mxu0 0
      %571 = vmatpush1.bf16.msra.mxu0 %v538
      %572 = vmatprep.subr.bf16.mxu0 0
      %573 = vmatpush1.bf16.msra.mxu0 %v539
      %574 = vmatprep.subr.bf16.mxu0 0
      %575 = vmatpush1.bf16.msra.mxu0 %v540
      %576 = vmatprep.subr.bf16.mxu0 0
      %577 = vmatpush1.bf16.msra.mxu0 %v541
      %578 = vmatprep.subr.bf16.mxu0 0
      %579 = vmatpush1.bf16.msra.mxu0 %v542
      %580 = vmatprep.subr.bf16.mxu0 0
      %581 = vmatpush1.bf16.msra.mxu0 %v543
      %582 = vmatprep.subr.bf16.mxu0 0
      %583 = vmatpush1.bf16.msra.mxu0 %v544
      %584 = vmatprep.subr.bf16.mxu0 0
      %585 = vmatpush1.bf16.msra.mxu0 %v545
      %586 = vmatprep.subr.bf16.mxu0 0
      %587 = vmatpush1.bf16.msra.mxu0 %v546
      %588 = vmatprep.subr.bf16.mxu0 0
      %589 = vmatpush1.bf16.msra.mxu0 %v547
      %590 = vmatprep.subr.bf16.mxu0 0
      %591 = vmatpush1.bf16.msra.mxu0 %v548
      %592 = vmatprep.subr.bf16.mxu0 0
      %593 = vmatpush1.bf16.msra.mxu0 %v549
      %594 = vmatprep.subr.bf16.mxu0 0
      %595 = vmatpush1.bf16.msra.mxu0 %v550
      %596 = vmatprep.subr.bf16.mxu0 0
      %597 = vmatpush1.bf16.msra.mxu0 %v551
      %598 = vmatprep.subr.bf16.mxu0 0
      %599 = vmatpush1.bf16.msra.mxu0 %v552
      %600 = vmatprep.subr.bf16.mxu0 0
      %601 = vmatpush1.bf16.msra.mxu0 %v553
      %602 = vmatprep.mubr.bf16.mxu0 %v443
      %603 = vmatmul.mubr.bf16.gmra.mrb[0].mxu0 %v442
      %v604 = vpop.f32.mrb[0].mxu0
      %v605 = vadd.f32 0.0, %v604
      %v606 = vpop.f32.mrb[0].mxu0
      %v607 = vpop.f32.mrb[0].mxu0
      %v608 = vadd.f32 0.0, %v607
      %v609 = vpop.f32.mrb[0].mxu0
      %610 = vmatprep.mubr.bf16.mxu0 %v445
      %611 = vmatmul.mubr.bf16.gmra.mrb[0].mxu0 %v444
      %v612 = vpop.f32.mrb[0].mxu0
      %v613 = vadd.f32 0.0, %v612
      %v614 = vpop.f32.mrb[0].mxu0
      %v615 = vpop.f32.mrb[0].mxu0
      %v616 = vadd.f32 0.0, %v615
      %v617 = vpop.f32.mrb[0].mxu0
      %618 = vmatprep.mubr.bf16.mxu0 %v447
      %619 = vmatmul.mubr.bf16.gmra.mrb[0].mxu0 %v446
      %v620 = vpop.f32.mrb[0].mxu0
      %v621 = vadd.f32 0.0, %v620
      %v622 = vpop.f32.mrb[0].mxu0
      %v623 = vpop.f32.mrb[0].mxu0
      %v624 = vadd.f32 0.0, %v623
      %v625 = vpop.f32.mrb[0].mxu0
      %626 = vmatprep.mubr.bf16.mxu0 %v449
      %627 = vmatmul.mubr.bf16.gmra.mrb[0].mxu0 %v448
      %v628 = vpop.f32.mrb[0].mxu0
      %v629 = vadd.f32 0.0, %v628
      %v630 = vpop.f32.mrb[0].mxu0
      %v631 = vpop.f32.mrb[0].mxu0
      %v632 = vadd.f32 0.0, %v631
      %v633 = vpop.f32.mrb[0].mxu0
      %634 = vmatprep.mubr.bf16.mxu0 %v451
      %635 = vmatmul.mubr.bf16.gmra.mrb[0].mxu0 %v450
      %v636 = vpop.f32.mrb[0].mxu0
      %v637 = vadd.f32 0.0, %v636
      %v638 = vpop.f32.mrb[0].mxu0
      %v639 = vpop.f32.mrb[0].mxu0
      %v640 = vadd.f32 0.0, %v639
      %v641 = vpop.f32.mrb[0].mxu0
      %642 = vmatprep.mubr.bf16.mxu0 %v453
      %643 = vmatmul.mubr.bf16.gmra.mrb[0].mxu0 %v452
      %v644 = vpop.f32.mrb[0].mxu0
      %v645 = vadd.f32 0.0, %v644
      %v646 = vpop.f32.mrb[0].mxu0
      %v647 = vpop.f32.mrb[0].mxu0
      %v648 = vadd.f32 0.0, %v647
      %v649 = vpop.f32.mrb[0].mxu0
      %650 = vmatprep.mubr.bf16.mxu0 %v455
      %651 = vmatmul.mubr.bf16.gmra.mrb[0].mxu0 %v454
      %v652 = vpop.f32.mrb[0].mxu0
      %v653 = vadd.f32 0.0, %v652
      %v654 = vpop.f32.mrb[0].mxu0
      %v655 = vpop.f32.mrb[0].mxu0
      %v656 = vadd.f32 0.0, %v655
      %v657 = vpop.f32.mrb[0].mxu0
      %658 = vmatprep.mubr.bf16.mxu0 %v457
      %659 = vmatmul.mubr.bf16.gmra.mrb[0].mxu0 %v456
      %v660 = vpop.f32.mrb[0].mxu0
      %v661 = vadd.f32 0.0, %v660
      %v662 = vpop.f32.mrb[0].mxu0
      %v663 = vpop.f32.mrb[0].mxu0
      %v664 = vadd.f32 0.0, %v663
      %v665 = vpop.f32.mrb[0].mxu0
      %666 = vdwg.mxu0
      %v667 = vpack.c.bf16 %v608, %v605
      %v668 = vpack.c.bf16 %v616, %v613
      %v669 = vpack.c.bf16 %v624, %v621
      %v670 = vpack.c.bf16 %v632, %v629
      %v671 = vpack.c.bf16 %v640, %v637
      %v672 = vpack.c.bf16 %v648, %v645
      %v673 = vpack.c.bf16 %v656, %v653
      %v674 = vpack.c.bf16 %v664, %v661
      %v675 = vld [vmem:[%s2] sm:$0xff]
      %v676 = vld [vmem:[%s2 + $0x8] sm:$0xff]
      %v677 = vld [vmem:[%s2 + $0x10] sm:$0xff]
      %v678 = vld [vmem:[%s2 + $0x18] sm:$0xff]
      %v679 = vld [vmem:[%s2 + $0x20] sm:$0xff]
      %v680 = vld [vmem:[%s2 + $0x28] sm:$0xff]
      %v681 = vld [vmem:[%s2 + $0x30] sm:$0xff]
      %v682 = vld [vmem:[%s2 + $0x38] sm:$0xff]
      %v683 = vld [vmem:[%s2 + $0x40] sm:$0xff]
      %v684 = vld [vmem:[%s2 + $0x48] sm:$0xff]
      %v685 = vld [vmem:[%s2 + $0x50] sm:$0xff]
      %v686 = vld [vmem:[%s2 + $0x58] sm:$0xff]
      %v687 = vld [vmem:[%s2 + $0x60] sm:$0xff]
      %v688 = vld [vmem:[%s2 + $0x68] sm:$0xff]
      %v689 = vld [vmem:[%s2 + $0x70] sm:$0xff]
      %v690 = vld [vmem:[%s2 + $0x78] sm:$0xff]
      %v691 = vld [vmem:[%s2 + $0x80] sm:$0xff]
      %v692 = vld [vmem:[%s2 + $0x88] sm:$0xff]
      %v693 = vld [vmem:[%s2 + $0x90] sm:$0xff]
      %v694 = vld [vmem:[%s2 + $0x98] sm:$0xff]
      %v695 = vld [vmem:[%s2 + $0xa0] sm:$0xff]
      %v696 = vld [vmem:[%s2 + $0xa8] sm:$0xff]
      %v697 = vld [vmem:[%s2 + $0xb0] sm:$0xff]
      %v698 = vld [vmem:[%s2 + $0xb8] sm:$0xff]
      %v699 = vld [vmem:[%s2 + $0xc0] sm:$0xff]
      %v700 = vld [vmem:[%s2 + $0xc8] sm:$0xff]
      %v701 = vld [vmem:[%s2 + $0xd0] sm:$0xff]
      %v702 = vld [vmem:[%s2 + $0xd8] sm:$0xff]
      %v703 = vld [vmem:[%s2 + $0xe0] sm:$0xff]
      %v704 = vld [vmem:[%s2 + $0xe8] sm:$0xff]
      %v705 = vld [vmem:[%s2 + $0xf0] sm:$0xff]
      %v706 = vld [vmem:[%s2 + $0xf8] sm:$0xff]
      %v707 = vld [vmem:[%s3] sm:$0xf]
      %v709 = vlaneseq
      %v710 = vshrl.u32 %v709, 7
      %v711 = vsub.s32 0, %v710
      %v712 = vrot.slane %v707, %v711
      %v713 = vlaneseq
      %v714 = vshrl.u32 %v713, 7
      %v715 = vsub.s32 1, %v714
      %v716 = vrot.slane %v707, %v715
      %v717 = vlaneseq
      %v718 = vshrl.u32 %v717, 7
      %v719 = vsub.s32 2, %v718
      %v720 = vrot.slane %v707, %v719
      %v721 = vlaneseq
      %v722 = vshrl.u32 %v721, 7
      %v723 = vsub.s32 3, %v722
      %v724 = vrot.slane %v707, %v723
      %v761 = vunpack.c.l.b16 %v675
      %v762 = vunpack.c.h.b16 %v675
      %v763 = vunpack.c.l.b16 %v676
      %v764 = vunpack.c.h.b16 %v676
      %v765 = vunpack.c.l.b16 %v677
      %v766 = vunpack.c.h.b16 %v677
      %v767 = vunpack.c.l.b16 %v678
      %v768 = vunpack.c.h.b16 %v678
      %v769 = vunpack.c.l.b16 %v679
      %v770 = vunpack.c.h.b16 %v679
      %v771 = vunpack.c.l.b16 %v680
      %v772 = vunpack.c.h.b16 %v680
      %v773 = vunpack.c.l.b16 %v681
      %v774 = vunpack.c.h.b16 %v681
      %v775 = vunpack.c.l.b16 %v682
      %v776 = vunpack.c.h.b16 %v682
      %v777 = vunpack.c.l.b16 %v683
      %v778 = vunpack.c.h.b16 %v683
      %v779 = vunpack.c.l.b16 %v684
      %v780 = vunpack.c.h.b16 %v684
      %v781 = vunpack.c.l.b16 %v685
      %v782 = vunpack.c.h.b16 %v685
      %v783 = vunpack.c.l.b16 %v686
      %v784 = vunpack.c.h.b16 %v686
      %v785 = vunpack.c.l.b16 %v687
      %v786 = vunpack.c.h.b16 %v687
      %v787 = vunpack.c.l.b16 %v688
      %v788 = vunpack.c.h.b16 %v688
      %v789 = vunpack.c.l.b16 %v689
      %v790 = vunpack.c.h.b16 %v689
      %v791 = vunpack.c.l.b16 %v690
      %v792 = vunpack.c.h.b16 %v690
      %v793 = vunpack.c.l.b16 %v691
      %v794 = vunpack.c.h.b16 %v691
      %v795 = vunpack.c.l.b16 %v692
      %v796 = vunpack.c.h.b16 %v692
      %v797 = vunpack.c.l.b16 %v693
      %v798 = vunpack.c.h.b16 %v693
      %v799 = vunpack.c.l.b16 %v694
      %v800 = vunpack.c.h.b16 %v694
      %v801 = vunpack.c.l.b16 %v695
      %v802 = vunpack.c.h.b16 %v695
      %v803 = vunpack.c.l.b16 %v696
      %v804 = vunpack.c.h.b16 %v696
      %v805 = vunpack.c.l.b16 %v697
      %v806 = vunpack.c.h.b16 %v697
      %v807 = vunpack.c.l.b16 %v698
      %v808 = vunpack.c.h.b16 %v698
      %v809 = vunpack.c.l.b16 %v699
      %v810 = vunpack.c.h.b16 %v699
      %v811 = vunpack.c.l.b16 %v700
      %v812 = vunpack.c.h.b16 %v700
      %v813 = vunpack.c.l.b16 %v701
      %v814 = vunpack.c.h.b16 %v701
      %v815 = vunpack.c.l.b16 %v702
      %v816 = vunpack.c.h.b16 %v702
      %v817 = vunpack.c.l.b16 %v703
      %v818 = vunpack.c.h.b16 %v703
      %v819 = vunpack.c.l.b16 %v704
      %v820 = vunpack.c.h.b16 %v704
      %v821 = vunpack.c.l.b16 %v705
      %v822 = vunpack.c.h.b16 %v705
      %v823 = vunpack.c.l.b16 %v706
      %v824 = vunpack.c.h.b16 %v706
      %v825 = vpack.c.b16 %v765, %v761
      %v826 = vpack.c.b16 %v766, %v762
      %v827 = vpack.c.b16 %v767, %v763
      %v828 = vpack.c.b16 %v768, %v764
      %v829 = vpack.c.b16 %v773, %v769
      %v830 = vpack.c.b16 %v774, %v770
      %v831 = vpack.c.b16 %v775, %v771
      %v832 = vpack.c.b16 %v776, %v772
      %v833 = vpack.c.b16 %v781, %v777
      %v834 = vpack.c.b16 %v782, %v778
      %v835 = vpack.c.b16 %v783, %v779
      %v836 = vpack.c.b16 %v784, %v780
      %v837 = vpack.c.b16 %v789, %v785
      %v838 = vpack.c.b16 %v790, %v786
      %v839 = vpack.c.b16 %v791, %v787
      %v840 = vpack.c.b16 %v792, %v788
      %v841 = vpack.c.b16 %v797, %v793
      %v842 = vpack.c.b16 %v798, %v794
      %v843 = vpack.c.b16 %v799, %v795
      %v844 = vpack.c.b16 %v800, %v796
      %v845 = vpack.c.b16 %v805, %v801
      %v846 = vpack.c.b16 %v806, %v802
      %v847 = vpack.c.b16 %v807, %v803
      %v848 = vpack.c.b16 %v808, %v804
      %v849 = vpack.c.b16 %v813, %v809
      %v850 = vpack.c.b16 %v814, %v810
      %v851 = vpack.c.b16 %v815, %v811
      %v852 = vpack.c.b16 %v816, %v812
      %v853 = vpack.c.b16 %v821, %v817
      %v854 = vpack.c.b16 %v822, %v818
      %v855 = vpack.c.b16 %v823, %v819
      %v856 = vpack.c.b16 %v824, %v820
      %889 = vmatprep.subr.bf16.mxu0 %v826
      %890 = vmatpush1.bf16.msra.mxu0 %v825
      %891 = vmatprep.subr.bf16.mxu0 %v830
      %892 = vmatpush1.bf16.msra.mxu0 %v829
      %893 = vmatprep.subr.bf16.mxu0 %v834
      %894 = vmatpush1.bf16.msra.mxu0 %v833
      %895 = vmatprep.subr.bf16.mxu0 %v838
      %896 = vmatpush1.bf16.msra.mxu0 %v837
      %897 = vmatprep.subr.bf16.mxu0 %v842
      %898 = vmatpush1.bf16.msra.mxu0 %v841
      %899 = vmatprep.subr.bf16.mxu0 %v846
      %900 = vmatpush1.bf16.msra.mxu0 %v845
      %901 = vmatprep.subr.bf16.mxu0 %v850
      %902 = vmatpush1.bf16.msra.mxu0 %v849
      %903 = vmatprep.subr.bf16.mxu0 %v854
      %904 = vmatpush1.bf16.msra.mxu0 %v853
      %905 = vmatprep.subr.bf16.mxu0 0
      %906 = vmatpush1.bf16.msra.mxu0 0
      %907 = vmatprep.subr.bf16.mxu0 0
      %908 = vmatpush1.bf16.msra.mxu0 0
      %909 = vmatprep.subr.bf16.mxu0 0
      %910 = vmatpush1.bf16.msra.mxu0 0
      %911 = vmatprep.subr.bf16.mxu0 0
      %912 = vmatpush1.bf16.msra.mxu0 0
      %913 = vmatprep.subr.bf16.mxu0 0
      %914 = vmatpush1.bf16.msra.mxu0 0
      %915 = vmatprep.subr.bf16.mxu0 0
      %916 = vmatpush1.bf16.msra.mxu0 0
      %917 = vmatprep.subr.bf16.mxu0 0
      %918 = vmatpush1.bf16.msra.mxu0 0
      %919 = vmatprep.subr.bf16.mxu0 0
      %920 = vmatpush1.bf16.msra.mxu0 0
      %921 = vmatprep.mubr.bf16.mxu0 0
      %922 = vmatmul.mubr.bf16.gmra.mrb[0].mxu0 %v667
      %v923 = vpop.f32.mrb[0].mxu0
      %v924 = vadd.f32 %v712, %v923
      %v925 = vpop.f32.mrb[0].mxu0
      %v926 = vadd.f32 %v716, %v925
      %v927 = vpop.f32.mrb[0].mxu0
      %v928 = vadd.f32 %v712, %v927
      %v929 = vpop.f32.mrb[0].mxu0
      %v930 = vadd.f32 %v716, %v929
      %931 = vmatprep.mubr.bf16.mxu0 0
      %932 = vmatmul.mubr.bf16.gmra.mrb[0].mxu0 %v668
      %v933 = vpop.f32.mrb[0].mxu0
      %v934 = vadd.f32 %v712, %v933
      %v935 = vpop.f32.mrb[0].mxu0
      %v936 = vadd.f32 %v716, %v935
      %v937 = vpop.f32.mrb[0].mxu0
      %v938 = vadd.f32 %v712, %v937
      %v939 = vpop.f32.mrb[0].mxu0
      %v940 = vadd.f32 %v716, %v939
      %941 = vmatprep.mubr.bf16.mxu0 0
      %942 = vmatmul.mubr.bf16.gmra.mrb[0].mxu0 %v669
      %v943 = vpop.f32.mrb[0].mxu0
      %v944 = vadd.f32 %v712, %v943
      %v945 = vpop.f32.mrb[0].mxu0
      %v946 = vadd.f32 %v716, %v945
      %v947 = vpop.f32.mrb[0].mxu0
      %v948 = vadd.f32 %v712, %v947
      %v949 = vpop.f32.mrb[0].mxu0
      %v950 = vadd.f32 %v716, %v949
      %951 = vmatprep.mubr.bf16.mxu0 0
      %952 = vmatmul.mubr.bf16.gmra.mrb[0].mxu0 %v670
      %v953 = vpop.f32.mrb[0].mxu0
      %v954 = vadd.f32 %v712, %v953
      %v955 = vpop.f32.mrb[0].mxu0
      %v956 = vadd.f32 %v716, %v955
      %v957 = vpop.f32.mrb[0].mxu0
      %v958 = vadd.f32 %v712, %v957
      %v959 = vpop.f32.mrb[0].mxu0
      %v960 = vadd.f32 %v716, %v959
      %961 = vmatprep.mubr.bf16.mxu0 0
      %962 = vmatmul.mubr.bf16.gmra.mrb[0].mxu0 %v671
      %v963 = vpop.f32.mrb[0].mxu0
      %v964 = vadd.f32 %v712, %v963
      %v965 = vpop.f32.mrb[0].mxu0
      %v966 = vadd.f32 %v716, %v965
      %v967 = vpop.f32.mrb[0].mxu0
      %v968 = vadd.f32 %v712, %v967
      %v969 = vpop.f32.mrb[0].mxu0
      %v970 = vadd.f32 %v716, %v969
      %971 = vmatprep.mubr.bf16.mxu0 0
      %972 = vmatmul.mubr.bf16.gmra.mrb[0].mxu0 %v672
      %v973 = vpop.f32.mrb[0].mxu0
      %v974 = vadd.f32 %v712, %v973
      %v975 = vpop.f32.mrb[0].mxu0
      %v976 = vadd.f32 %v716, %v975
      %v977 = vpop.f32.mrb[0].mxu0
      %v978 = vadd.f32 %v712, %v977
      %v979 = vpop.f32.mrb[0].mxu0
      %v980 = vadd.f32 %v716, %v979
      %981 = vmatprep.mubr.bf16.mxu0 0
      %982 = vmatmul.mubr.bf16.gmra.mrb[0].mxu0 %v673
      %v983 = vpop.f32.mrb[0].mxu0
      %v984 = vadd.f32 %v712, %v983
      %v985 = vpop.f32.mrb[0].mxu0
      %v986 = vadd.f32 %v716, %v985
      %v987 = vpop.f32.mrb[0].mxu0
      %v988 = vadd.f32 %v712, %v987
      %v989 = vpop.f32.mrb[0].mxu0
      %v990 = vadd.f32 %v716, %v989
      %991 = vmatprep.mubr.bf16.mxu0 0
      %992 = vmatmul.mubr.bf16.gmra.mrb[0].mxu0 %v674
      %v993 = vpop.f32.mrb[0].mxu0
      %v994 = vadd.f32 %v712, %v993
      %v995 = vpop.f32.mrb[0].mxu0
      %v996 = vadd.f32 %v716, %v995
      %v997 = vpop.f32.mrb[0].mxu0
      %v998 = vadd.f32 %v712, %v997
      %v999 = vpop.f32.mrb[0].mxu0
      %v1000 = vadd.f32 %v716, %v999
      %1001 = vdwg.mxu0
      %1002 = vmatprep.subr.bf16.mxu0 %v828
      %1003 = vmatpush1.bf16.msra.mxu0 %v827
      %1004 = vmatprep.subr.bf16.mxu0 %v832
      %1005 = vmatpush1.bf16.msra.mxu0 %v831
      %1006 = vmatprep.subr.bf16.mxu0 %v836
      %1007 = vmatpush1.bf16.msra.mxu0 %v835
      %1008 = vmatprep.subr.bf16.mxu0 %v840
      %1009 = vmatpush1.bf16.msra.mxu0 %v839
      %1010 = vmatprep.subr.bf16.mxu0 %v844
      %1011 = vmatpush1.bf16.msra.mxu0 %v843
      %1012 = vmatprep.subr.bf16.mxu0 %v848
      %1013 = vmatpush1.bf16.msra.mxu0 %v847
      %1014 = vmatprep.subr.bf16.mxu0 %v852
      %1015 = vmatpush1.bf16.msra.mxu0 %v851
      %1016 = vmatprep.subr.bf16.mxu0 %v856
      %1017 = vmatpush1.bf16.msra.mxu0 %v855
      %1018 = vmatprep.subr.bf16.mxu0 0
      %1019 = vmatpush1.bf16.msra.mxu0 0
      %1020 = vmatprep.subr.bf16.mxu0 0
      %1021 = vmatpush1.bf16.msra.mxu0 0
      %1022 = vmatprep.subr.bf16.mxu0 0
      %1023 = vmatpush1.bf16.msra.mxu0 0
      %1024 = vmatprep.subr.bf16.mxu0 0
      %1025 = vmatpush1.bf16.msra.mxu0 0
      %1026 = vmatprep.subr.bf16.mxu0 0
      %1027 = vmatpush1.bf16.msra.mxu0 0
      %1028 = vmatprep.subr.bf16.mxu0 0
      %1029 = vmatpush1.bf16.msra.mxu0 0
      %1030 = vmatprep.subr.bf16.mxu0 0
      %1031 = vmatpush1.bf16.msra.mxu0 0
      %1032 = vmatprep.subr.bf16.mxu0 0
      %1033 = vmatpush1.bf16.msra.mxu0 0
      %1034 = vmatprep.mubr.bf16.mxu0 0
      %1035 = vmatmul.mubr.bf16.gmra.mrb[0].mxu0 %v667
      %v1036 = vpop.f32.mrb[0].mxu0
      %v1037 = vadd.f32 %v720, %v1036
      %v1038 = vpop.f32.mrb[0].mxu0
      %v1039 = vadd.f32 %v724, %v1038
      %v1040 = vpop.f32.mrb[0].mxu0
      %v1041 = vadd.f32 %v720, %v1040
      %v1042 = vpop.f32.mrb[0].mxu0
      %v1043 = vadd.f32 %v724, %v1042
      %1044 = vmatprep.mubr.bf16.mxu0 0
      %1045 = vmatmul.mubr.bf16.gmra.mrb[0].mxu0 %v668
      %v1046 = vpop.f32.mrb[0].mxu0
      %v1047 = vadd.f32 %v720, %v1046
      %v1048 = vpop.f32.mrb[0].mxu0
      %v1049 = vadd.f32 %v724, %v1048
      %v1050 = vpop.f32.mrb[0].mxu0
      %v1051 = vadd.f32 %v720, %v1050
      %v1052 = vpop.f32.mrb[0].mxu0
      %v1053 = vadd.f32 %v724, %v1052
      %1054 = vmatprep.mubr.bf16.mxu0 0
      %1055 = vmatmul.mubr.bf16.gmra.mrb[0].mxu0 %v669
      %v1056 = vpop.f32.mrb[0].mxu0
      %v1057 = vadd.f32 %v720, %v1056
      %v1058 = vpop.f32.mrb[0].mxu0
      %v1059 = vadd.f32 %v724, %v1058
      %v1060 = vpop.f32.mrb[0].mxu0
      %v1061 = vadd.f32 %v720, %v1060
      %v1062 = vpop.f32.mrb[0].mxu0
      %v1063 = vadd.f32 %v724, %v1062
      %1064 = vmatprep.mubr.bf16.mxu0 0
      %1065 = vmatmul.mubr.bf16.gmra.mrb[0].mxu0 %v670
      %v1066 = vpop.f32.mrb[0].mxu0
      %v1067 = vadd.f32 %v720, %v1066
      %v1068 = vpop.f32.mrb[0].mxu0
      %v1069 = vadd.f32 %v724, %v1068
      %v1070 = vpop.f32.mrb[0].mxu0
      %v1071 = vadd.f32 %v720, %v1070
      %v1072 = vpop.f32.mrb[0].mxu0
      %v1073 = vadd.f32 %v724, %v1072
      %1074 = vmatprep.mubr.bf16.mxu0 0
      %1075 = vmatmul.mubr.bf16.gmra.mrb[0].mxu0 %v671
      %v1076 = vpop.f32.mrb[0].mxu0
      %v1077 = vadd.f32 %v720, %v1076
      %v1078 = vpop.f32.mrb[0].mxu0
      %v1079 = vadd.f32 %v724, %v1078
      %v1080 = vpop.f32.mrb[0].mxu0
      %v1081 = vadd.f32 %v720, %v1080
      %v1082 = vpop.f32.mrb[0].mxu0
      %v1083 = vadd.f32 %v724, %v1082
      %1084 = vmatprep.mubr.bf16.mxu0 0
      %1085 = vmatmul.mubr.bf16.gmra.mrb[0].mxu0 %v672
      %v1086 = vpop.f32.mrb[0].mxu0
      %v1087 = vadd.f32 %v720, %v1086
      %v1088 = vpop.f32.mrb[0].mxu0
      %v1089 = vadd.f32 %v724, %v1088
      %v1090 = vpop.f32.mrb[0].mxu0
      %v1091 = vadd.f32 %v720, %v1090
      %v1092 = vpop.f32.mrb[0].mxu0
      %v1093 = vadd.f32 %v724, %v1092
      %1094 = vmatprep.mubr.bf16.mxu0 0
      %1095 = vmatmul.mubr.bf16.gmra.mrb[0].mxu0 %v673
      %v1096 = vpop.f32.mrb[0].mxu0
      %v1097 = vadd.f32 %v720, %v1096
      %v1098 = vpop.f32.mrb[0].mxu0
      %v1099 = vadd.f32 %v724, %v1098
      %v1100 = vpop.f32.mrb[0].mxu0
      %v1101 = vadd.f32 %v720, %v1100
      %v1102 = vpop.f32.mrb[0].mxu0
      %v1103 = vadd.f32 %v724, %v1102
      %1104 = vmatprep.mubr.bf16.mxu0 0
      %1105 = vmatmul.mubr.bf16.gmra.mrb[0].mxu0 %v674
      %v1106 = vpop.f32.mrb[0].mxu0
      %v1107 = vadd.f32 %v720, %v1106
      %v1108 = vpop.f32.mrb[0].mxu0
      %v1109 = vadd.f32 %v724, %v1108
      %v1110 = vpop.f32.mrb[0].mxu0
      %v1111 = vadd.f32 %v720, %v1110
      %v1112 = vpop.f32.mrb[0].mxu0
      %v1113 = vadd.f32 %v724, %v1112
      %1114 = vdwg.mxu0
      %v1115 = vpack.c.bf16 %v928, %v924
      %v1116 = vpack.c.bf16 %v930, %v926
      %v1117 = vpack.c.bf16 %v1041, %v1037
      %v1118 = vpack.c.bf16 %v1043, %v1039
      %v1119 = vpack.c.bf16 %v938, %v934
      %v1120 = vpack.c.bf16 %v940, %v936
      %v1121 = vpack.c.bf16 %v1051, %v1047
      %v1122 = vpack.c.bf16 %v1053, %v1049
      %v1123 = vpack.c.bf16 %v948, %v944
      %v1124 = vpack.c.bf16 %v950, %v946
      %v1125 = vpack.c.bf16 %v1061, %v1057
      %v1126 = vpack.c.bf16 %v1063, %v1059
      %v1127 = vpack.c.bf16 %v958, %v954
      %v1128 = vpack.c.bf16 %v960, %v956
      %v1129 = vpack.c.bf16 %v1071, %v1067
      %v1130 = vpack.c.bf16 %v1073, %v1069
      %v1131 = vpack.c.bf16 %v968, %v964
      %v1132 = vpack.c.bf16 %v970, %v966
      %v1133 = vpack.c.bf16 %v1081, %v1077
      %v1134 = vpack.c.bf16 %v1083, %v1079
      %v1135 = vpack.c.bf16 %v978, %v974
      %v1136 = vpack.c.bf16 %v980, %v976
      %v1137 = vpack.c.bf16 %v1091, %v1087
      %v1138 = vpack.c.bf16 %v1093, %v1089
      %v1139 = vpack.c.bf16 %v988, %v984
      %v1140 = vpack.c.bf16 %v990, %v986
      %v1141 = vpack.c.bf16 %v1101, %v1097
      %v1142 = vpack.c.bf16 %v1103, %v1099
      %v1143 = vpack.c.bf16 %v998, %v994
      %v1144 = vpack.c.bf16 %v1000, %v996
      %v1145 = vpack.c.bf16 %v1111, %v1107
      %v1146 = vpack.c.bf16 %v1113, %v1109
      %v1147 = vld [vmem:[%s4] sm:$0xff]
      %v1148 = vld [vmem:[%s4 + $0x8] sm:$0xff]
      %v1149 = vld [vmem:[%s4 + $0x10] sm:$0xff]
      %v1150 = vld [vmem:[%s4 + $0x18] sm:$0xff]
      %v1151 = vld [vmem:[%s4 + $0x20] sm:$0xff]
      %v1152 = vld [vmem:[%s4 + $0x28] sm:$0xff]
      %v1153 = vld [vmem:[%s4 + $0x30] sm:$0xff]
      %v1154 = vld [vmem:[%s4 + $0x38] sm:$0xff]
      %v1155 = vld [vmem:[%s4 + $0x40] sm:$0xff]
      %v1156 = vld [vmem:[%s4 + $0x48] sm:$0xff]
      %v1157 = vld [vmem:[%s4 + $0x50] sm:$0xff]
      %v1158 = vld [vmem:[%s4 + $0x58] sm:$0xff]
      %v1159 = vld [vmem:[%s4 + $0x60] sm:$0xff]
      %v1160 = vld [vmem:[%s4 + $0x68] sm:$0xff]
      %v1161 = vld [vmem:[%s4 + $0x70] sm:$0xff]
      %v1162 = vld [vmem:[%s4 + $0x78] sm:$0xff]
      %v1163 = vld [vmem:[%s4 + $0x80] sm:$0xff]
      %v1164 = vld [vmem:[%s4 + $0x88] sm:$0xff]
      %v1165 = vld [vmem:[%s4 + $0x90] sm:$0xff]
      %v1166 = vld [vmem:[%s4 + $0x98] sm:$0xff]
      %v1167 = vld [vmem:[%s4 + $0xa0] sm:$0xff]
      %v1168 = vld [vmem:[%s4 + $0xa8] sm:$0xff]
      %v1169 = vld [vmem:[%s4 + $0xb0] sm:$0xff]
      %v1170 = vld [vmem:[%s4 + $0xb8] sm:$0xff]
      %v1171 = vld [vmem:[%s4 + $0xc0] sm:$0xff]
      %v1172 = vld [vmem:[%s4 + $0xc8] sm:$0xff]
      %v1173 = vld [vmem:[%s4 + $0xd0] sm:$0xff]
      %v1174 = vld [vmem:[%s4 + $0xd8] sm:$0xff]
      %v1175 = vld [vmem:[%s4 + $0xe0] sm:$0xff]
      %v1176 = vld [vmem:[%s4 + $0xe8] sm:$0xff]
      %v1177 = vld [vmem:[%s4 + $0xf0] sm:$0xff]
      %v1178 = vld [vmem:[%s4 + $0xf8] sm:$0xff]
      %v1179 = vld [vmem:[%s4 + $0x100] sm:$0xff]
      %v1180 = vld [vmem:[%s4 + $0x108] sm:$0xff]
      %v1181 = vld [vmem:[%s4 + $0x110] sm:$0xff]
      %v1182 = vld [vmem:[%s4 + $0x118] sm:$0xff]
      %v1183 = vld [vmem:[%s4 + $0x120] sm:$0xff]
      %v1184 = vld [vmem:[%s4 + $0x128] sm:$0xff]
      %v1185 = vld [vmem:[%s4 + $0x130] sm:$0xff]
      %v1186 = vld [vmem:[%s4 + $0x138] sm:$0xff]
      %v1187 = vld [vmem:[%s4 + $0x140] sm:$0xff]
      %v1188 = vld [vmem:[%s4 + $0x148] sm:$0xff]
      %v1189 = vld [vmem:[%s4 + $0x150] sm:$0xff]
      %v1190 = vld [vmem:[%s4 + $0x158] sm:$0xff]
      %v1191 = vld [vmem:[%s4 + $0x160] sm:$0xff]
      %v1192 = vld [vmem:[%s4 + $0x168] sm:$0xff]
      %v1193 = vld [vmem:[%s4 + $0x170] sm:$0xff]
      %v1194 = vld [vmem:[%s4 + $0x178] sm:$0xff]
      %v1195 = vld [vmem:[%s4 + $0x180] sm:$0xff]
      %v1196 = vld [vmem:[%s4 + $0x188] sm:$0xff]
      %v1197 = vld [vmem:[%s4 + $0x190] sm:$0xff]
      %v1198 = vld [vmem:[%s4 + $0x198] sm:$0xff]
      %v1199 = vld [vmem:[%s4 + $0x1a0] sm:$0xff]
      %v1200 = vld [vmem:[%s4 + $0x1a8] sm:$0xff]
      %v1201 = vld [vmem:[%s4 + $0x1b0] sm:$0xff]
      %v1202 = vld [vmem:[%s4 + $0x1b8] sm:$0xff]
      %v1203 = vld [vmem:[%s4 + $0x1c0] sm:$0xff]
      %v1204 = vld [vmem:[%s4 + $0x1c8] sm:$0xff]
      %v1205 = vld [vmem:[%s4 + $0x1d0] sm:$0xff]
      %v1206 = vld [vmem:[%s4 + $0x1d8] sm:$0xff]
      %v1207 = vld [vmem:[%s4 + $0x1e0] sm:$0xff]
      %v1208 = vld [vmem:[%s4 + $0x1e8] sm:$0xff]
      %v1209 = vld [vmem:[%s4 + $0x1f0] sm:$0xff]
      %v1210 = vld [vmem:[%s4 + $0x1f8] sm:$0xff]
      %v1211 = vld [vmem:[%s4 + $0x200] sm:$0xff]
      %v1212 = vld [vmem:[%s4 + $0x208] sm:$0xff]
      %v1213 = vld [vmem:[%s4 + $0x210] sm:$0xff]
      %v1214 = vld [vmem:[%s4 + $0x218] sm:$0xff]
      %v1215 = vld [vmem:[%s4 + $0x220] sm:$0xff]
      %v1216 = vld [vmem:[%s4 + $0x228] sm:$0xff]
      %v1217 = vld [vmem:[%s4 + $0x230] sm:$0xff]
      %v1218 = vld [vmem:[%s4 + $0x238] sm:$0xff]
      %v1219 = vld [vmem:[%s4 + $0x240] sm:$0xff]
      %v1220 = vld [vmem:[%s4 + $0x248] sm:$0xff]
      %v1221 = vld [vmem:[%s4 + $0x250] sm:$0xff]
      %v1222 = vld [vmem:[%s4 + $0x258] sm:$0xff]
      %v1223 = vld [vmem:[%s4 + $0x260] sm:$0xff]
      %v1224 = vld [vmem:[%s4 + $0x268] sm:$0xff]
      %v1225 = vld [vmem:[%s4 + $0x270] sm:$0xff]
      %v1226 = vld [vmem:[%s4 + $0x278] sm:$0xff]
      %v1227 = vld [vmem:[%s4 + $0x280] sm:$0xff]
      %v1228 = vld [vmem:[%s4 + $0x288] sm:$0xff]
      %v1229 = vld [vmem:[%s4 + $0x290] sm:$0xff]
      %v1230 = vld [vmem:[%s4 + $0x298] sm:$0xff]
      %v1231 = vld [vmem:[%s4 + $0x2a0] sm:$0xff]
      %v1232 = vld [vmem:[%s4 + $0x2a8] sm:$0xff]
      %v1233 = vld [vmem:[%s4 + $0x2b0] sm:$0xff]
      %v1234 = vld [vmem:[%s4 + $0x2b8] sm:$0xff]
      %v1235 = vld [vmem:[%s4 + $0x2c0] sm:$0xff]
      %v1236 = vld [vmem:[%s4 + $0x2c8] sm:$0xff]
      %v1237 = vld [vmem:[%s4 + $0x2d0] sm:$0xff]
      %v1238 = vld [vmem:[%s4 + $0x2d8] sm:$0xff]
      %v1239 = vld [vmem:[%s4 + $0x2e0] sm:$0xff]
      %v1240 = vld [vmem:[%s4 + $0x2e8] sm:$0xff]
      %v1241 = vld [vmem:[%s4 + $0x2f0] sm:$0xff]
      %v1242 = vld [vmem:[%s4 + $0x2f8] sm:$0xff]
      %v1243 = vld [vmem:[%s4 + $0x300] sm:$0xff]
      %v1244 = vld [vmem:[%s4 + $0x308] sm:$0xff]
      %v1245 = vld [vmem:[%s4 + $0x310] sm:$0xff]
      %v1246 = vld [vmem:[%s4 + $0x318] sm:$0xff]
      %v1247 = vld [vmem:[%s4 + $0x320] sm:$0xff]
      %v1248 = vld [vmem:[%s4 + $0x328] sm:$0xff]
      %v1249 = vld [vmem:[%s4 + $0x330] sm:$0xff]
      %v1250 = vld [vmem:[%s4 + $0x338] sm:$0xff]
      %v1251 = vld [vmem:[%s4 + $0x340] sm:$0xff]
      %v1252 = vld [vmem:[%s4 + $0x348] sm:$0xff]
      %v1253 = vld [vmem:[%s4 + $0x350] sm:$0xff]
      %v1254 = vld [vmem:[%s4 + $0x358] sm:$0xff]
      %v1255 = vld [vmem:[%s4 + $0x360] sm:$0xff]
      %v1256 = vld [vmem:[%s4 + $0x368] sm:$0xff]
      %v1257 = vld [vmem:[%s4 + $0x370] sm:$0xff]
      %v1258 = vld [vmem:[%s4 + $0x378] sm:$0xff]
      %v1259 = vld [vmem:[%s4 + $0x380] sm:$0xff]
      %v1260 = vld [vmem:[%s4 + $0x388] sm:$0xff]
      %v1261 = vld [vmem:[%s4 + $0x390] sm:$0xff]
      %v1262 = vld [vmem:[%s4 + $0x398] sm:$0xff]
      %v1263 = vld [vmem:[%s4 + $0x3a0] sm:$0xff]
      %v1264 = vld [vmem:[%s4 + $0x3a8] sm:$0xff]
      %v1265 = vld [vmem:[%s4 + $0x3b0] sm:$0xff]
      %v1266 = vld [vmem:[%s4 + $0x3b8] sm:$0xff]
      %v1267 = vld [vmem:[%s4 + $0x3c0] sm:$0xff]
      %v1268 = vld [vmem:[%s4 + $0x3c8] sm:$0xff]
      %v1269 = vld [vmem:[%s4 + $0x3d0] sm:$0xff]
      %v1270 = vld [vmem:[%s4 + $0x3d8] sm:$0xff]
      %v1271 = vld [vmem:[%s4 + $0x3e0] sm:$0xff]
      %v1272 = vld [vmem:[%s4 + $0x3e8] sm:$0xff]
      %v1273 = vld [vmem:[%s4 + $0x3f0] sm:$0xff]
      %v1274 = vld [vmem:[%s4 + $0x3f8] sm:$0xff]
      %v1275 = vld [vmem:[%s4 + $0x400] sm:$0xff]
      %v1276 = vld [vmem:[%s4 + $0x408] sm:$0xff]
      %v1277 = vld [vmem:[%s4 + $0x410] sm:$0xff]
      %v1278 = vld [vmem:[%s4 + $0x418] sm:$0xff]
      %v1279 = vld [vmem:[%s4 + $0x420] sm:$0xff]
      %v1280 = vld [vmem:[%s4 + $0x428] sm:$0xff]
      %v1281 = vld [vmem:[%s4 + $0x430] sm:$0xff]
      %v1282 = vld [vmem:[%s4 + $0x438] sm:$0xff]
      %v1283 = vld [vmem:[%s4 + $0x440] sm:$0xff]
      %v1284 = vld [vmem:[%s4 + $0x448] sm:$0xff]
      %v1285 = vld [vmem:[%s4 + $0x450] sm:$0xff]
      %v1286 = vld [vmem:[%s4 + $0x458] sm:$0xff]
      %v1287 = vld [vmem:[%s4 + $0x460] sm:$0xff]
      %v1288 = vld [vmem:[%s4 + $0x468] sm:$0xff]
      %v1289 = vld [vmem:[%s4 + $0x470] sm:$0xff]
      %v1290 = vld [vmem:[%s4 + $0x478] sm:$0xff]
      %v1291 = vld [vmem:[%s4 + $0x480] sm:$0xff]
      %v1292 = vld [vmem:[%s4 + $0x488] sm:$0xff]
      %v1293 = vld [vmem:[%s4 + $0x490] sm:$0xff]
      %v1294 = vld [vmem:[%s4 + $0x498] sm:$0xff]
      %v1295 = vld [vmem:[%s4 + $0x4a0] sm:$0xff]
      %v1296 = vld [vmem:[%s4 + $0x4a8] sm:$0xff]
      %v1297 = vld [vmem:[%s4 + $0x4b0] sm:$0xff]
      %v1298 = vld [vmem:[%s4 + $0x4b8] sm:$0xff]
      %v1299 = vld [vmem:[%s4 + $0x4c0] sm:$0xff]
      %v1300 = vld [vmem:[%s4 + $0x4c8] sm:$0xff]
      %v1301 = vld [vmem:[%s4 + $0x4d0] sm:$0xff]
      %v1302 = vld [vmem:[%s4 + $0x4d8] sm:$0xff]
      %v1303 = vld [vmem:[%s4 + $0x4e0] sm:$0xff]
      %v1304 = vld [vmem:[%s4 + $0x4e8] sm:$0xff]
      %v1305 = vld [vmem:[%s4 + $0x4f0] sm:$0xff]
      %v1306 = vld [vmem:[%s4 + $0x4f8] sm:$0xff]
      %v1307 = vld [vmem:[%s4 + $0x500] sm:$0xff]
      %v1308 = vld [vmem:[%s4 + $0x508] sm:$0xff]
      %v1309 = vld [vmem:[%s4 + $0x510] sm:$0xff]
      %v1310 = vld [vmem:[%s4 + $0x518] sm:$0xff]
      %v1311 = vld [vmem:[%s4 + $0x520] sm:$0xff]
      %v1312 = vld [vmem:[%s4 + $0x528] sm:$0xff]
      %v1313 = vld [vmem:[%s4 + $0x530] sm:$0xff]
      %v1314 = vld [vmem:[%s4 + $0x538] sm:$0xff]
      %v1315 = vld [vmem:[%s4 + $0x540] sm:$0xff]
      %v1316 = vld [vmem:[%s4 + $0x548] sm:$0xff]
      %v1317 = vld [vmem:[%s4 + $0x550] sm:$0xff]
      %v1318 = vld [vmem:[%s4 + $0x558] sm:$0xff]
      %v1319 = vld [vmem:[%s4 + $0x560] sm:$0xff]
      %v1320 = vld [vmem:[%s4 + $0x568] sm:$0xff]
      %v1321 = vld [vmem:[%s4 + $0x570] sm:$0xff]
      %v1322 = vld [vmem:[%s4 + $0x578] sm:$0xff]
      %v1323 = vld [vmem:[%s4 + $0x580] sm:$0xff]
      %v1324 = vld [vmem:[%s4 + $0x588] sm:$0xff]
      %v1325 = vld [vmem:[%s4 + $0x590] sm:$0xff]
      %v1326 = vld [vmem:[%s4 + $0x598] sm:$0xff]
      %v1327 = vld [vmem:[%s4 + $0x5a0] sm:$0xff]
      %v1328 = vld [vmem:[%s4 + $0x5a8] sm:$0xff]
      %v1329 = vld [vmem:[%s4 + $0x5b0] sm:$0xff]
      %v1330 = vld [vmem:[%s4 + $0x5b8] sm:$0xff]
      %v1331 = vld [vmem:[%s4 + $0x5c0] sm:$0xff]
      %v1332 = vld [vmem:[%s4 + $0x5c8] sm:$0xff]
      %v1333 = vld [vmem:[%s4 + $0x5d0] sm:$0xff]
      %v1334 = vld [vmem:[%s4 + $0x5d8] sm:$0xff]
      %v1335 = vld [vmem:[%s4 + $0x5e0] sm:$0xff]
      %v1336 = vld [vmem:[%s4 + $0x5e8] sm:$0xff]
      %v1337 = vld [vmem:[%s4 + $0x5f0] sm:$0xff]
      %v1338 = vld [vmem:[%s4 + $0x5f8] sm:$0xff]
      %v1339 = vld [vmem:[%s4 + $0x600] sm:$0xff]
      %v1340 = vld [vmem:[%s4 + $0x608] sm:$0xff]
      %v1341 = vld [vmem:[%s4 + $0x610] sm:$0xff]
      %v1342 = vld [vmem:[%s4 + $0x618] sm:$0xff]
      %v1343 = vld [vmem:[%s4 + $0x620] sm:$0xff]
      %v1344 = vld [vmem:[%s4 + $0x628] sm:$0xff]
      %v1345 = vld [vmem:[%s4 + $0x630] sm:$0xff]
      %v1346 = vld [vmem:[%s4 + $0x638] sm:$0xff]
      %v1347 = vld [vmem:[%s4 + $0x640] sm:$0xff]
      %v1348 = vld [vmem:[%s4 + $0x648] sm:$0xff]
      %v1349 = vld [vmem:[%s4 + $0x650] sm:$0xff]
      %v1350 = vld [vmem:[%s4 + $0x658] sm:$0xff]
      %v1351 = vld [vmem:[%s4 + $0x660] sm:$0xff]
      %v1352 = vld [vmem:[%s4 + $0x668] sm:$0xff]
      %v1353 = vld [vmem:[%s4 + $0x670] sm:$0xff]
      %v1354 = vld [vmem:[%s4 + $0x678] sm:$0xff]
      %v1355 = vld [vmem:[%s4 + $0x680] sm:$0xff]
      %v1356 = vld [vmem:[%s4 + $0x688] sm:$0xff]
      %v1357 = vld [vmem:[%s4 + $0x690] sm:$0xff]
      %v1358 = vld [vmem:[%s4 + $0x698] sm:$0xff]
      %v1359 = vld [vmem:[%s4 + $0x6a0] sm:$0xff]
      %v1360 = vld [vmem:[%s4 + $0x6a8] sm:$0xff]
      %v1361 = vld [vmem:[%s4 + $0x6b0] sm:$0xff]
      %v1362 = vld [vmem:[%s4 + $0x6b8] sm:$0xff]
      %v1363 = vld [vmem:[%s4 + $0x6c0] sm:$0xff]
      %v1364 = vld [vmem:[%s4 + $0x6c8] sm:$0xff]
      %v1365 = vld [vmem:[%s4 + $0x6d0] sm:$0xff]
      %v1366 = vld [vmem:[%s4 + $0x6d8] sm:$0xff]
      %v1367 = vld [vmem:[%s4 + $0x6e0] sm:$0xff]
      %v1368 = vld [vmem:[%s4 + $0x6e8] sm:$0xff]
      %v1369 = vld [vmem:[%s4 + $0x6f0] sm:$0xff]
      %v1370 = vld [vmem:[%s4 + $0x6f8] sm:$0xff]
      %v1371 = vld [vmem:[%s4 + $0x700] sm:$0xff]
      %v1372 = vld [vmem:[%s4 + $0x708] sm:$0xff]
      %v1373 = vld [vmem:[%s4 + $0x710] sm:$0xff]
      %v1374 = vld [vmem:[%s4 + $0x718] sm:$0xff]
      %v1375 = vld [vmem:[%s4 + $0x720] sm:$0xff]
      %v1376 = vld [vmem:[%s4 + $0x728] sm:$0xff]
      %v1377 = vld [vmem:[%s4 + $0x730] sm:$0xff]
      %v1378 = vld [vmem:[%s4 + $0x738] sm:$0xff]
      %v1379 = vld [vmem:[%s4 + $0x740] sm:$0xff]
      %v1380 = vld [vmem:[%s4 + $0x748] sm:$0xff]
      %v1381 = vld [vmem:[%s4 + $0x750] sm:$0xff]
      %v1382 = vld [vmem:[%s4 + $0x758] sm:$0xff]
      %v1383 = vld [vmem:[%s4 + $0x760] sm:$0xff]
      %v1384 = vld [vmem:[%s4 + $0x768] sm:$0xff]
      %v1385 = vld [vmem:[%s4 + $0x770] sm:$0xff]
      %v1386 = vld [vmem:[%s4 + $0x778] sm:$0xff]
      %v1387 = vld [vmem:[%s4 + $0x780] sm:$0xff]
      %v1388 = vld [vmem:[%s4 + $0x788] sm:$0xff]
      %v1389 = vld [vmem:[%s4 + $0x790] sm:$0xff]
      %v1390 = vld [vmem:[%s4 + $0x798] sm:$0xff]
      %v1391 = vld [vmem:[%s4 + $0x7a0] sm:$0xff]
      %v1392 = vld [vmem:[%s4 + $0x7a8] sm:$0xff]
      %v1393 = vld [vmem:[%s4 + $0x7b0] sm:$0xff]
      %v1394 = vld [vmem:[%s4 + $0x7b8] sm:$0xff]
      %v1395 = vld [vmem:[%s4 + $0x7c0] sm:$0xff]
      %v1396 = vld [vmem:[%s4 + $0x7c8] sm:$0xff]
      %v1397 = vld [vmem:[%s4 + $0x7d0] sm:$0xff]
      %v1398 = vld [vmem:[%s4 + $0x7d8] sm:$0xff]
      %v1399 = vld [vmem:[%s4 + $0x7e0] sm:$0xff]
      %v1400 = vld [vmem:[%s4 + $0x7e8] sm:$0xff]
      %v1401 = vld [vmem:[%s4 + $0x7f0] sm:$0xff]
      %v1402 = vld [vmem:[%s4 + $0x7f8] sm:$0xff]
      %v1403 = vld [vmem:[%s4 + $0x800] sm:$0xff]
      %v1404 = vld [vmem:[%s4 + $0x808] sm:$0xff]
      %v1405 = vld [vmem:[%s4 + $0x810] sm:$0xff]
      %v1406 = vld [vmem:[%s4 + $0x818] sm:$0xff]
      %v1407 = vld [vmem:[%s4 + $0x820] sm:$0xff]
      %v1408 = vld [vmem:[%s4 + $0x828] sm:$0xff]
      %v1409 = vld [vmem:[%s4 + $0x830] sm:$0xff]
      %v1410 = vld [vmem:[%s4 + $0x838] sm:$0xff]
      %v1411 = vld [vmem:[%s4 + $0x840] sm:$0xff]
      %v1412 = vld [vmem:[%s4 + $0x848] sm:$0xff]
      %v1413 = vld [vmem:[%s4 + $0x850] sm:$0xff]
      %v1414 = vld [vmem:[%s4 + $0x858] sm:$0xff]
      %v1415 = vld [vmem:[%s4 + $0x860] sm:$0xff]
      %v1416 = vld [vmem:[%s4 + $0x868] sm:$0xff]
      %v1417 = vld [vmem:[%s4 + $0x870] sm:$0xff]
      %v1418 = vld [vmem:[%s4 + $0x878] sm:$0xff]
      %v1419 = vld [vmem:[%s4 + $0x880] sm:$0xff]
      %v1420 = vld [vmem:[%s4 + $0x888] sm:$0xff]
      %v1421 = vld [vmem:[%s4 + $0x890] sm:$0xff]
      %v1422 = vld [vmem:[%s4 + $0x898] sm:$0xff]
      %v1423 = vld [vmem:[%s4 + $0x8a0] sm:$0xff]
      %v1424 = vld [vmem:[%s4 + $0x8a8] sm:$0xff]
      %v1425 = vld [vmem:[%s4 + $0x8b0] sm:$0xff]
      %v1426 = vld [vmem:[%s4 + $0x8b8] sm:$0xff]
      %v1427 = vld [vmem:[%s4 + $0x8c0] sm:$0xff]
      %v1428 = vld [vmem:[%s4 + $0x8c8] sm:$0xff]
      %v1429 = vld [vmem:[%s4 + $0x8d0] sm:$0xff]
      %v1430 = vld [vmem:[%s4 + $0x8d8] sm:$0xff]
      %v1431 = vld [vmem:[%s4 + $0x8e0] sm:$0xff]
      %v1432 = vld [vmem:[%s4 + $0x8e8] sm:$0xff]
      %v1433 = vld [vmem:[%s4 + $0x8f0] sm:$0xff]
      %v1434 = vld [vmem:[%s4 + $0x8f8] sm:$0xff]
      %v1435 = vld [vmem:[%s4 + $0x900] sm:$0xff]
      %v1436 = vld [vmem:[%s4 + $0x908] sm:$0xff]
      %v1437 = vld [vmem:[%s4 + $0x910] sm:$0xff]
      %v1438 = vld [vmem:[%s4 + $0x918] sm:$0xff]
      %v1439 = vld [vmem:[%s4 + $0x920] sm:$0xff]
      %v1440 = vld [vmem:[%s4 + $0x928] sm:$0xff]
      %v1441 = vld [vmem:[%s4 + $0x930] sm:$0xff]
      %v1442 = vld [vmem:[%s4 + $0x938] sm:$0xff]
      %v1443 = vld [vmem:[%s4 + $0x940] sm:$0xff]
      %v1444 = vld [vmem:[%s4 + $0x948] sm:$0xff]
      %v1445 = vld [vmem:[%s4 + $0x950] sm:$0xff]
      %v1446 = vld [vmem:[%s4 + $0x958] sm:$0xff]
      %v1447 = vld [vmem:[%s4 + $0x960] sm:$0xff]
      %v1448 = vld [vmem:[%s4 + $0x968] sm:$0xff]
      %v1449 = vld [vmem:[%s4 + $0x970] sm:$0xff]
      %v1450 = vld [vmem:[%s4 + $0x978] sm:$0xff]
      %v1451 = vld [vmem:[%s4 + $0x980] sm:$0xff]
      %v1452 = vld [vmem:[%s4 + $0x988] sm:$0xff]
      %v1453 = vld [vmem:[%s4 + $0x990] sm:$0xff]
      %v1454 = vld [vmem:[%s4 + $0x998] sm:$0xff]
      %v1455 = vld [vmem:[%s4 + $0x9a0] sm:$0xff]
      %v1456 = vld [vmem:[%s4 + $0x9a8] sm:$0xff]
      %v1457 = vld [vmem:[%s4 + $0x9b0] sm:$0xff]
      %v1458 = vld [vmem:[%s4 + $0x9b8] sm:$0xff]
      %v1459 = vld [vmem:[%s4 + $0x9c0] sm:$0xff]
      %v1460 = vld [vmem:[%s4 + $0x9c8] sm:$0xff]
      %v1461 = vld [vmem:[%s4 + $0x9d0] sm:$0xff]
      %v1462 = vld [vmem:[%s4 + $0x9d8] sm:$0xff]
      %v1463 = vld [vmem:[%s4 + $0x9e0] sm:$0xff]
      %v1464 = vld [vmem:[%s4 + $0x9e8] sm:$0xff]
      %v1465 = vld [vmem:[%s4 + $0x9f0] sm:$0xff]
      %v1466 = vld [vmem:[%s4 + $0x9f8] sm:$0xff]
      %v1467 = vld [vmem:[%s4 + $0xa00] sm:$0xff]
      %v1468 = vld [vmem:[%s4 + $0xa08] sm:$0xff]
      %v1469 = vld [vmem:[%s4 + $0xa10] sm:$0xff]
      %v1470 = vld [vmem:[%s4 + $0xa18] sm:$0xff]
      %v1471 = vld [vmem:[%s4 + $0xa20] sm:$0xff]
      %v1472 = vld [vmem:[%s4 + $0xa28] sm:$0xff]
      %v1473 = vld [vmem:[%s4 + $0xa30] sm:$0xff]
      %v1474 = vld [vmem:[%s4 + $0xa38] sm:$0xff]
      %v1475 = vld [vmem:[%s4 + $0xa40] sm:$0xff]
      %v1476 = vld [vmem:[%s4 + $0xa48] sm:$0xff]
      %v1477 = vld [vmem:[%s4 + $0xa50] sm:$0xff]
      %v1478 = vld [vmem:[%s4 + $0xa58] sm:$0xff]
      %v1479 = vld [vmem:[%s4 + $0xa60] sm:$0xff]
      %v1480 = vld [vmem:[%s4 + $0xa68] sm:$0xff]
      %v1481 = vld [vmem:[%s4 + $0xa70] sm:$0xff]
      %v1482 = vld [vmem:[%s4 + $0xa78] sm:$0xff]
      %v1483 = vld [vmem:[%s4 + $0xa80] sm:$0xff]
      %v1484 = vld [vmem:[%s4 + $0xa88] sm:$0xff]
      %v1485 = vld [vmem:[%s4 + $0xa90] sm:$0xff]
      %v1486 = vld [vmem:[%s4 + $0xa98] sm:$0xff]
      %v1487 = vld [vmem:[%s4 + $0xaa0] sm:$0xff]
      %v1488 = vld [vmem:[%s4 + $0xaa8] sm:$0xff]
      %v1489 = vld [vmem:[%s4 + $0xab0] sm:$0xff]
      %v1490 = vld [vmem:[%s4 + $0xab8] sm:$0xff]
      %v1491 = vld [vmem:[%s4 + $0xac0] sm:$0xff]
      %v1492 = vld [vmem:[%s4 + $0xac8] sm:$0xff]
      %v1493 = vld [vmem:[%s4 + $0xad0] sm:$0xff]
      %v1494 = vld [vmem:[%s4 + $0xad8] sm:$0xff]
      %v1495 = vld [vmem:[%s4 + $0xae0] sm:$0xff]
      %v1496 = vld [vmem:[%s4 + $0xae8] sm:$0xff]
      %v1497 = vld [vmem:[%s4 + $0xaf0] sm:$0xff]
      %v1498 = vld [vmem:[%s4 + $0xaf8] sm:$0xff]
      %v1499 = vld [vmem:[%s4 + $0xb00] sm:$0xff]
      %v1500 = vld [vmem:[%s4 + $0xb08] sm:$0xff]
      %v1501 = vld [vmem:[%s4 + $0xb10] sm:$0xff]
      %v1502 = vld [vmem:[%s4 + $0xb18] sm:$0xff]
      %v1503 = vld [vmem:[%s4 + $0xb20] sm:$0xff]
      %v1504 = vld [vmem:[%s4 + $0xb28] sm:$0xff]
      %v1505 = vld [vmem:[%s4 + $0xb30] sm:$0xff]
      %v1506 = vld [vmem:[%s4 + $0xb38] sm:$0xff]
      %v1507 = vld [vmem:[%s4 + $0xb40] sm:$0xff]
      %v1508 = vld [vmem:[%s4 + $0xb48] sm:$0xff]
      %v1509 = vld [vmem:[%s4 + $0xb50] sm:$0xff]
      %v1510 = vld [vmem:[%s4 + $0xb58] sm:$0xff]
      %v1511 = vld [vmem:[%s4 + $0xb60] sm:$0xff]
      %v1512 = vld [vmem:[%s4 + $0xb68] sm:$0xff]
      %v1513 = vld [vmem:[%s4 + $0xb70] sm:$0xff]
      %v1514 = vld [vmem:[%s4 + $0xb78] sm:$0xff]
      %v1515 = vld [vmem:[%s4 + $0xb80] sm:$0xff]
      %v1516 = vld [vmem:[%s4 + $0xb88] sm:$0xff]
      %v1517 = vld [vmem:[%s4 + $0xb90] sm:$0xff]
      %v1518 = vld [vmem:[%s4 + $0xb98] sm:$0xff]
      %v1519 = vld [vmem:[%s4 + $0xba0] sm:$0xff]
      %v1520 = vld [vmem:[%s4 + $0xba8] sm:$0xff]
      %v1521 = vld [vmem:[%s4 + $0xbb0] sm:$0xff]
      %v1522 = vld [vmem:[%s4 + $0xbb8] sm:$0xff]
      %v1523 = vld [vmem:[%s4 + $0xbc0] sm:$0xff]
      %v1524 = vld [vmem:[%s4 + $0xbc8] sm:$0xff]
      %v1525 = vld [vmem:[%s4 + $0xbd0] sm:$0xff]
      %v1526 = vld [vmem:[%s4 + $0xbd8] sm:$0xff]
      %v1527 = vld [vmem:[%s4 + $0xbe0] sm:$0xff]
      %v1528 = vld [vmem:[%s4 + $0xbe8] sm:$0xff]
      %v1529 = vld [vmem:[%s4 + $0xbf0] sm:$0xff]
      %v1530 = vld [vmem:[%s4 + $0xbf8] sm:$0xff]
      %v1531 = vld [vmem:[%s5] sm:$0xff]
      %v1532 = vld [vmem:[%s5 + $0x8] sm:$0xf]
      %v1535 = vlaneseq
      %v1536 = vshrl.u32 %v1535, 7
      %v1537 = vsub.s32 0, %v1536
      %v1538 = vrot.slane %v1531, %v1537
      %v1539 = vlaneseq
      %v1540 = vshrl.u32 %v1539, 7
      %v1541 = vsub.s32 1, %v1540
      %v1542 = vrot.slane %v1531, %v1541
      %v1543 = vlaneseq
      %v1544 = vshrl.u32 %v1543, 7
      %v1545 = vsub.s32 2, %v1544
      %v1546 = vrot.slane %v1531, %v1545
      %v1547 = vlaneseq
      %v1548 = vshrl.u32 %v1547, 7
      %v1549 = vsub.s32 3, %v1548
      %v1550 = vrot.slane %v1531, %v1549
      %v1551 = vlaneseq
      %v1552 = vshrl.u32 %v1551, 7
      %v1553 = vsub.s32 4, %v1552
      %v1554 = vrot.slane %v1531, %v1553
      %v1555 = vlaneseq
      %v1556 = vshrl.u32 %v1555, 7
      %v1557 = vsub.s32 5, %v1556
      %v1558 = vrot.slane %v1531, %v1557
      %v1559 = vlaneseq
      %v1560 = vshrl.u32 %v1559, 7
      %v1561 = vsub.s32 6, %v1560
      %v1562 = vrot.slane %v1531, %v1561
      %v1563 = vlaneseq
      %v1564 = vshrl.u32 %v1563, 7
      %v1565 = vsub.s32 7, %v1564
      %v1566 = vrot.slane %v1531, %v1565
      %v1567 = vlaneseq
      %v1568 = vshrl.u32 %v1567, 7
      %v1569 = vsub.s32 0, %v1568
      %v1570 = vrot.slane %v1532, %v1569
      %v1571 = vlaneseq
      %v1572 = vshrl.u32 %v1571, 7
      %v1573 = vsub.s32 1, %v1572
      %v1574 = vrot.slane %v1532, %v1573
      %v1575 = vlaneseq
      %v1576 = vshrl.u32 %v1575, 7
      %v1577 = vsub.s32 2, %v1576
      %v1578 = vrot.slane %v1532, %v1577
      %v1579 = vlaneseq
      %v1580 = vshrl.u32 %v1579, 7
      %v1581 = vsub.s32 3, %v1580
      %v1582 = vrot.slane %v1532, %v1581
      %v1979 = vunpack.c.l.b16 %v1147
      %v1980 = vunpack.c.h.b16 %v1147
      %v1981 = vunpack.c.l.b16 %v1148
      %v1982 = vunpack.c.h.b16 %v1148
      %v1983 = vunpack.c.l.b16 %v1149
      %v1984 = vunpack.c.h.b16 %v1149
      %v1985 = vunpack.c.l.b16 %v1150
      %v1986 = vunpack.c.h.b16 %v1150
      %v1987 = vunpack.c.l.b16 %v1151
      %v1988 = vunpack.c.h.b16 %v1151
      %v1989 = vunpack.c.l.b16 %v1152
      %v1990 = vunpack.c.h.b16 %v1152
      %v1991 = vunpack.c.l.b16 %v1153
      %v1992 = vunpack.c.h.b16 %v1153
      %v1993 = vunpack.c.l.b16 %v1154
      %v1994 = vunpack.c.h.b16 %v1154
      %v1995 = vunpack.c.l.b16 %v1155
      %v1996 = vunpack.c.h.b16 %v1155
      %v1997 = vunpack.c.l.b16 %v1156
      %v1998 = vunpack.c.h.b16 %v1156
      %v1999 = vunpack.c.l.b16 %v1157
      %v2000 = vunpack.c.h.b16 %v1157
      %v2001 = vunpack.c.l.b16 %v1158
      %v2002 = vunpack.c.h.b16 %v1158
      %v2003 = vunpack.c.l.b16 %v1159
      %v2004 = vunpack.c.h.b16 %v1159
      %v2005 = vunpack.c.l.b16 %v1160
      %v2006 = vunpack.c.h.b16 %v1160
      %v2007 = vunpack.c.l.b16 %v1161
      %v2008 = vunpack.c.h.b16 %v1161
      %v2009 = vunpack.c.l.b16 %v1162
      %v2010 = vunpack.c.h.b16 %v1162
      %v2011 = vunpack.c.l.b16 %v1163
      %v2012 = vunpack.c.h.b16 %v1163
      %v2013 = vunpack.c.l.b16 %v1164
      %v2014 = vunpack.c.h.b16 %v1164
      %v2015 = vunpack.c.l.b16 %v1165
      %v2016 = vunpack.c.h.b16 %v1165
      %v2017 = vunpack.c.l.b16 %v1166
      %v2018 = vunpack.c.h.b16 %v1166
      %v2019 = vunpack.c.l.b16 %v1167
      %v2020 = vunpack.c.h.b16 %v1167
      %v2021 = vunpack.c.l.b16 %v1168
      %v2022 = vunpack.c.h.b16 %v1168
      %v2023 = vunpack.c.l.b16 %v1169
      %v2024 = vunpack.c.h.b16 %v1169
      %v2025 = vunpack.c.l.b16 %v1170
      %v2026 = vunpack.c.h.b16 %v1170
      %v2027 = vunpack.c.l.b16 %v1171
      %v2028 = vunpack.c.h.b16 %v1171
      %v2029 = vunpack.c.l.b16 %v1172
      %v2030 = vunpack.c.h.b16 %v1172
      %v2031 = vunpack.c.l.b16 %v1173
      %v2032 = vunpack.c.h.b16 %v1173
      %v2033 = vunpack.c.l.b16 %v1174
      %v2034 = vunpack.c.h.b16 %v1174
      %v2035 = vunpack.c.l.b16 %v1175
      %v2036 = vunpack.c.h.b16 %v1175
      %v2037 = vunpack.c.l.b16 %v1176
      %v2038 = vunpack.c.h.b16 %v1176
      %v2039 = vunpack.c.l.b16 %v1177
      %v2040 = vunpack.c.h.b16 %v1177
      %v2041 = vunpack.c.l.b16 %v1178
      %v2042 = vunpack.c.h.b16 %v1178
      %v2043 = vunpack.c.l.b16 %v1179
      %v2044 = vunpack.c.h.b16 %v1179
      %v2045 = vunpack.c.l.b16 %v1180
      %v2046 = vunpack.c.h.b16 %v1180
      %v2047 = vunpack.c.l.b16 %v1181
      %v2048 = vunpack.c.h.b16 %v1181
      %v2049 = vunpack.c.l.b16 %v1182
      %v2050 = vunpack.c.h.b16 %v1182
      %v2051 = vunpack.c.l.b16 %v1183
      %v2052 = vunpack.c.h.b16 %v1183
      %v2053 = vunpack.c.l.b16 %v1184
      %v2054 = vunpack.c.h.b16 %v1184
      %v2055 = vunpack.c.l.b16 %v1185
      %v2056 = vunpack.c.h.b16 %v1185
      %v2057 = vunpack.c.l.b16 %v1186
      %v2058 = vunpack.c.h.b16 %v1186
      %v2059 = vunpack.c.l.b16 %v1187
      %v2060 = vunpack.c.h.b16 %v1187
      %v2061 = vunpack.c.l.b16 %v1188
      %v2062 = vunpack.c.h.b16 %v1188
      %v2063 = vunpack.c.l.b16 %v1189
      %v2064 = vunpack.c.h.b16 %v1189
      %v2065 = vunpack.c.l.b16 %v1190
      %v2066 = vunpack.c.h.b16 %v1190
      %v2067 = vunpack.c.l.b16 %v1191
      %v2068 = vunpack.c.h.b16 %v1191
      %v2069 = vunpack.c.l.b16 %v1192
      %v2070 = vunpack.c.h.b16 %v1192
      %v2071 = vunpack.c.l.b16 %v1193
      %v2072 = vunpack.c.h.b16 %v1193
      %v2073 = vunpack.c.l.b16 %v1194
      %v2074 = vunpack.c.h.b16 %v1194
      %v2075 = vunpack.c.l.b16 %v1195
      %v2076 = vunpack.c.h.b16 %v1195
      %v2077 = vunpack.c.l.b16 %v1196
      %v2078 = vunpack.c.h.b16 %v1196
      %v2079 = vunpack.c.l.b16 %v1197
      %v2080 = vunpack.c.h.b16 %v1197
      %v2081 = vunpack.c.l.b16 %v1198
      %v2082 = vunpack.c.h.b16 %v1198
      %v2083 = vunpack.c.l.b16 %v1199
      %v2084 = vunpack.c.h.b16 %v1199
      %v2085 = vunpack.c.l.b16 %v1200
      %v2086 = vunpack.c.h.b16 %v1200
      %v2087 = vunpack.c.l.b16 %v1201
      %v2088 = vunpack.c.h.b16 %v1201
      %v2089 = vunpack.c.l.b16 %v1202
      %v2090 = vunpack.c.h.b16 %v1202
      %v2091 = vunpack.c.l.b16 %v1203
      %v2092 = vunpack.c.h.b16 %v1203
      %v2093 = vunpack.c.l.b16 %v1204
      %v2094 = vunpack.c.h.b16 %v1204
      %v2095 = vunpack.c.l.b16 %v1205
      %v2096 = vunpack.c.h.b16 %v1205
      %v2097 = vunpack.c.l.b16 %v1206
      %v2098 = vunpack.c.h.b16 %v1206
      %v2099 = vunpack.c.l.b16 %v1207
      %v2100 = vunpack.c.h.b16 %v1207
      %v2101 = vunpack.c.l.b16 %v1208
      %v2102 = vunpack.c.h.b16 %v1208
      %v2103 = vunpack.c.l.b16 %v1209
      %v2104 = vunpack.c.h.b16 %v1209
      %v2105 = vunpack.c.l.b16 %v1210
      %v2106 = vunpack.c.h.b16 %v1210
      %v2107 = vunpack.c.l.b16 %v1211
      %v2108 = vunpack.c.h.b16 %v1211
      %v2109 = vunpack.c.l.b16 %v1212
      %v2110 = vunpack.c.h.b16 %v1212
      %v2111 = vunpack.c.l.b16 %v1213
      %v2112 = vunpack.c.h.b16 %v1213
      %v2113 = vunpack.c.l.b16 %v1214
      %v2114 = vunpack.c.h.b16 %v1214
      %v2115 = vunpack.c.l.b16 %v1215
      %v2116 = vunpack.c.h.b16 %v1215
      %v2117 = vunpack.c.l.b16 %v1216
      %v2118 = vunpack.c.h.b16 %v1216
      %v2119 = vunpack.c.l.b16 %v1217
      %v2120 = vunpack.c.h.b16 %v1217
      %v2121 = vunpack.c.l.b16 %v1218
      %v2122 = vunpack.c.h.b16 %v1218
      %v2123 = vunpack.c.l.b16 %v1219
      %v2124 = vunpack.c.h.b16 %v1219
      %v2125 = vunpack.c.l.b16 %v1220
      %v2126 = vunpack.c.h.b16 %v1220
      %v2127 = vunpack.c.l.b16 %v1221
      %v2128 = vunpack.c.h.b16 %v1221
      %v2129 = vunpack.c.l.b16 %v1222
      %v2130 = vunpack.c.h.b16 %v1222
      %v2131 = vunpack.c.l.b16 %v1223
      %v2132 = vunpack.c.h.b16 %v1223
      %v2133 = vunpack.c.l.b16 %v1224
      %v2134 = vunpack.c.h.b16 %v1224
      %v2135 = vunpack.c.l.b16 %v1225
      %v2136 = vunpack.c.h.b16 %v1225
      %v2137 = vunpack.c.l.b16 %v1226
      %v2138 = vunpack.c.h.b16 %v1226
      %v2139 = vunpack.c.l.b16 %v1227
      %v2140 = vunpack.c.h.b16 %v1227
      %v2141 = vunpack.c.l.b16 %v1228
      %v2142 = vunpack.c.h.b16 %v1228
      %v2143 = vunpack.c.l.b16 %v1229
      %v2144 = vunpack.c.h.b16 %v1229
      %v2145 = vunpack.c.l.b16 %v1230
      %v2146 = vunpack.c.h.b16 %v1230
      %v2147 = vunpack.c.l.b16 %v1231
      %v2148 = vunpack.c.h.b16 %v1231
      %v2149 = vunpack.c.l.b16 %v1232
      %v2150 = vunpack.c.h.b16 %v1232
      %v2151 = vunpack.c.l.b16 %v1233
      %v2152 = vunpack.c.h.b16 %v1233
      %v2153 = vunpack.c.l.b16 %v1234
      %v2154 = vunpack.c.h.b16 %v1234
      %v2155 = vunpack.c.l.b16 %v1235
      %v2156 = vunpack.c.h.b16 %v1235
      %v2157 = vunpack.c.l.b16 %v1236
      %v2158 = vunpack.c.h.b16 %v1236
      %v2159 = vunpack.c.l.b16 %v1237
      %v2160 = vunpack.c.h.b16 %v1237
      %v2161 = vunpack.c.l.b16 %v1238
      %v2162 = vunpack.c.h.b16 %v1238
      %v2163 = vunpack.c.l.b16 %v1239
      %v2164 = vunpack.c.h.b16 %v1239
      %v2165 = vunpack.c.l.b16 %v1240
      %v2166 = vunpack.c.h.b16 %v1240
      %v2167 = vunpack.c.l.b16 %v1241
      %v2168 = vunpack.c.h.b16 %v1241
      %v2169 = vunpack.c.l.b16 %v1242
      %v2170 = vunpack.c.h.b16 %v1242
      %v2171 = vunpack.c.l.b16 %v1243
      %v2172 = vunpack.c.h.b16 %v1243
      %v2173 = vunpack.c.l.b16 %v1244
      %v2174 = vunpack.c.h.b16 %v1244
      %v2175 = vunpack.c.l.b16 %v1245
      %v2176 = vunpack.c.h.b16 %v1245
      %v2177 = vunpack.c.l.b16 %v1246
      %v2178 = vunpack.c.h.b16 %v1246
      %v2179 = vunpack.c.l.b16 %v1247
      %v2180 = vunpack.c.h.b16 %v1247
      %v2181 = vunpack.c.l.b16 %v1248
      %v2182 = vunpack.c.h.b16 %v1248
      %v2183 = vunpack.c.l.b16 %v1249
      %v2184 = vunpack.c.h.b16 %v1249
      %v2185 = vunpack.c.l.b16 %v1250
      %v2186 = vunpack.c.h.b16 %v1250
      %v2187 = vunpack.c.l.b16 %v1251
      %v2188 = vunpack.c.h.b16 %v1251
      %v2189 = vunpack.c.l.b16 %v1252
      %v2190 = vunpack.c.h.b16 %v1252
      %v2191 = vunpack.c.l.b16 %v1253
      %v2192 = vunpack.c.h.b16 %v1253
      %v2193 = vunpack.c.l.b16 %v1254
      %v2194 = vunpack.c.h.b16 %v1254
      %v2195 = vunpack.c.l.b16 %v1255
      %v2196 = vunpack.c.h.b16 %v1255
      %v2197 = vunpack.c.l.b16 %v1256
      %v2198 = vunpack.c.h.b16 %v1256
      %v2199 = vunpack.c.l.b16 %v1257
      %v2200 = vunpack.c.h.b16 %v1257
      %v2201 = vunpack.c.l.b16 %v1258
      %v2202 = vunpack.c.h.b16 %v1258
      %v2203 = vunpack.c.l.b16 %v1259
      %v2204 = vunpack.c.h.b16 %v1259
      %v2205 = vunpack.c.l.b16 %v1260
      %v2206 = vunpack.c.h.b16 %v1260
      %v2207 = vunpack.c.l.b16 %v1261
      %v2208 = vunpack.c.h.b16 %v1261
      %v2209 = vunpack.c.l.b16 %v1262
      %v2210 = vunpack.c.h.b16 %v1262
      %v2211 = vunpack.c.l.b16 %v1263
      %v2212 = vunpack.c.h.b16 %v1263
      %v2213 = vunpack.c.l.b16 %v1264
      %v2214 = vunpack.c.h.b16 %v1264
      %v2215 = vunpack.c.l.b16 %v1265
      %v2216 = vunpack.c.h.b16 %v1265
      %v2217 = vunpack.c.l.b16 %v1266
      %v2218 = vunpack.c.h.b16 %v1266
      %v2219 = vunpack.c.l.b16 %v1267
      %v2220 = vunpack.c.h.b16 %v1267
      %v2221 = vunpack.c.l.b16 %v1268
      %v2222 = vunpack.c.h.b16 %v1268
      %v2223 = vunpack.c.l.b16 %v1269
      %v2224 = vunpack.c.h.b16 %v1269
      %v2225 = vunpack.c.l.b16 %v1270
      %v2226 = vunpack.c.h.b16 %v1270
      %v2227 = vunpack.c.l.b16 %v1271
      %v2228 = vunpack.c.h.b16 %v1271
      %v2229 = vunpack.c.l.b16 %v1272
      %v2230 = vunpack.c.h.b16 %v1272
      %v2231 = vunpack.c.l.b16 %v1273
      %v2232 = vunpack.c.h.b16 %v1273
      %v2233 = vunpack.c.l.b16 %v1274
      %v2234 = vunpack.c.h.b16 %v1274
      %v2235 = vunpack.c.l.b16 %v1275
      %v2236 = vunpack.c.h.b16 %v1275
      %v2237 = vunpack.c.l.b16 %v1276
      %v2238 = vunpack.c.h.b16 %v1276
      %v2239 = vunpack.c.l.b16 %v1277
      %v2240 = vunpack.c.h.b16 %v1277
      %v2241 = vunpack.c.l.b16 %v1278
      %v2242 = vunpack.c.h.b16 %v1278
      %v2243 = vunpack.c.l.b16 %v1279
      %v2244 = vunpack.c.h.b16 %v1279
      %v2245 = vunpack.c.l.b16 %v1280
      %v2246 = vunpack.c.h.b16 %v1280
      %v2247 = vunpack.c.l.b16 %v1281
      %v2248 = vunpack.c.h.b16 %v1281
      %v2249 = vunpack.c.l.b16 %v1282
      %v2250 = vunpack.c.h.b16 %v1282
      %v2251 = vunpack.c.l.b16 %v1283
      %v2252 = vunpack.c.h.b16 %v1283
      %v2253 = vunpack.c.l.b16 %v1284
      %v2254 = vunpack.c.h.b16 %v1284
      %v2255 = vunpack.c.l.b16 %v1285
      %v2256 = vunpack.c.h.b16 %v1285
      %v2257 = vunpack.c.l.b16 %v1286
      %v2258 = vunpack.c.h.b16 %v1286
      %v2259 = vunpack.c.l.b16 %v1287
      %v2260 = vunpack.c.h.b16 %v1287
      %v2261 = vunpack.c.l.b16 %v1288
      %v2262 = vunpack.c.h.b16 %v1288
      %v2263 = vunpack.c.l.b16 %v1289
      %v2264 = vunpack.c.h.b16 %v1289
      %v2265 = vunpack.c.l.b16 %v1290
      %v2266 = vunpack.c.h.b16 %v1290
      %v2267 = vunpack.c.l.b16 %v1291
      %v2268 = vunpack.c.h.b16 %v1291
      %v2269 = vunpack.c.l.b16 %v1292
      %v2270 = vunpack.c.h.b16 %v1292
      %v2271 = vunpack.c.l.b16 %v1293
      %v2272 = vunpack.c.h.b16 %v1293
      %v2273 = vunpack.c.l.b16 %v1294
      %v2274 = vunpack.c.h.b16 %v1294
      %v2275 = vunpack.c.l.b16 %v1295
      %v2276 = vunpack.c.h.b16 %v1295
      %v2277 = vunpack.c.l.b16 %v1296
      %v2278 = vunpack.c.h.b16 %v1296
      %v2279 = vunpack.c.l.b16 %v1297
      %v2280 = vunpack.c.h.b16 %v1297
      %v2281 = vunpack.c.l.b16 %v1298
      %v2282 = vunpack.c.h.b16 %v1298
      %v2283 = vunpack.c.l.b16 %v1299
      %v2284 = vunpack.c.h.b16 %v1299
      %v2285 = vunpack.c.l.b16 %v1300
      %v2286 = vunpack.c.h.b16 %v1300
      %v2287 = vunpack.c.l.b16 %v1301
      %v2288 = vunpack.c.h.b16 %v1301
      %v2289 = vunpack.c.l.b16 %v1302
      %v2290 = vunpack.c.h.b16 %v1302
      %v2291 = vunpack.c.l.b16 %v1303
      %v2292 = vunpack.c.h.b16 %v1303
      %v2293 = vunpack.c.l.b16 %v1304
      %v2294 = vunpack.c.h.b16 %v1304
      %v2295 = vunpack.c.l.b16 %v1305
      %v2296 = vunpack.c.h.b16 %v1305
      %v2297 = vunpack.c.l.b16 %v1306
      %v2298 = vunpack.c.h.b16 %v1306
      %v2299 = vunpack.c.l.b16 %v1307
      %v2300 = vunpack.c.h.b16 %v1307
      %v2301 = vunpack.c.l.b16 %v1308
      %v2302 = vunpack.c.h.b16 %v1308
      %v2303 = vunpack.c.l.b16 %v1309
      %v2304 = vunpack.c.h.b16 %v1309
      %v2305 = vunpack.c.l.b16 %v1310
      %v2306 = vunpack.c.h.b16 %v1310
      %v2307 = vunpack.c.l.b16 %v1311
      %v2308 = vunpack.c.h.b16 %v1311
      %v2309 = vunpack.c.l.b16 %v1312
      %v2310 = vunpack.c.h.b16 %v1312
      %v2311 = vunpack.c.l.b16 %v1313
      %v2312 = vunpack.c.h.b16 %v1313
      %v2313 = vunpack.c.l.b16 %v1314
      %v2314 = vunpack.c.h.b16 %v1314
      %v2315 = vunpack.c.l.b16 %v1315
      %v2316 = vunpack.c.h.b16 %v1315
      %v2317 = vunpack.c.l.b16 %v1316
      %v2318 = vunpack.c.h.b16 %v1316
      %v2319 = vunpack.c.l.b16 %v1317
      %v2320 = vunpack.c.h.b16 %v1317
      %v2321 = vunpack.c.l.b16 %v1318
      %v2322 = vunpack.c.h.b16 %v1318
      %v2323 = vunpack.c.l.b16 %v1319
      %v2324 = vunpack.c.h.b16 %v1319
      %v2325 = vunpack.c.l.b16 %v1320
      %v2326 = vunpack.c.h.b16 %v1320
      %v2327 = vunpack.c.l.b16 %v1321
      %v2328 = vunpack.c.h.b16 %v1321
      %v2329 = vunpack.c.l.b16 %v1322
      %v2330 = vunpack.c.h.b16 %v1322
      %v2331 = vunpack.c.l.b16 %v1323
      %v2332 = vunpack.c.h.b16 %v1323
      %v2333 = vunpack.c.l.b16 %v1324
      %v2334 = vunpack.c.h.b16 %v1324
      %v2335 = vunpack.c.l.b16 %v1325
      %v2336 = vunpack.c.h.b16 %v1325
      %v2337 = vunpack.c.l.b16 %v1326
      %v2338 = vunpack.c.h.b16 %v1326
      %v2339 = vunpack.c.l.b16 %v1327
      %v2340 = vunpack.c.h.b16 %v1327
      %v2341 = vunpack.c.l.b16 %v1328
      %v2342 = vunpack.c.h.b16 %v1328
      %v2343 = vunpack.c.l.b16 %v1329
      %v2344 = vunpack.c.h.b16 %v1329
      %v2345 = vunpack.c.l.b16 %v1330
      %v2346 = vunpack.c.h.b16 %v1330
      %v2347 = vunpack.c.l.b16 %v1331
      %v2348 = vunpack.c.h.b16 %v1331
      %v2349 = vunpack.c.l.b16 %v1332
      %v2350 = vunpack.c.h.b16 %v1332
      %v2351 = vunpack.c.l.b16 %v1333
      %v2352 = vunpack.c.h.b16 %v1333
      %v2353 = vunpack.c.l.b16 %v1334
      %v2354 = vunpack.c.h.b16 %v1334
      %v2355 = vunpack.c.l.b16 %v1335
      %v2356 = vunpack.c.h.b16 %v1335
      %v2357 = vunpack.c.l.b16 %v1336
      %v2358 = vunpack.c.h.b16 %v1336
      %v2359 = vunpack.c.l.b16 %v1337
      %v2360 = vunpack.c.h.b16 %v1337
      %v2361 = vunpack.c.l.b16 %v1338
      %v2362 = vunpack.c.h.b16 %v1338
      %v2363 = vunpack.c.l.b16 %v1339
      %v2364 = vunpack.c.h.b16 %v1339
      %v2365 = vunpack.c.l.b16 %v1340
      %v2366 = vunpack.c.h.b16 %v1340
      %v2367 = vunpack.c.l.b16 %v1341
      %v2368 = vunpack.c.h.b16 %v1341
      %v2369 = vunpack.c.l.b16 %v1342
      %v2370 = vunpack.c.h.b16 %v1342
      %v2371 = vunpack.c.l.b16 %v1343
      %v2372 = vunpack.c.h.b16 %v1343
      %v2373 = vunpack.c.l.b16 %v1344
      %v2374 = vunpack.c.h.b16 %v1344
      %v2375 = vunpack.c.l.b16 %v1345
      %v2376 = vunpack.c.h.b16 %v1345
      %v2377 = vunpack.c.l.b16 %v1346
      %v2378 = vunpack.c.h.b16 %v1346
      %v2379 = vunpack.c.l.b16 %v1347
      %v2380 = vunpack.c.h.b16 %v1347
      %v2381 = vunpack.c.l.b16 %v1348
      %v2382 = vunpack.c.h.b16 %v1348
      %v2383 = vunpack.c.l.b16 %v1349
      %v2384 = vunpack.c.h.b16 %v1349
      %v2385 = vunpack.c.l.b16 %v1350
      %v2386 = vunpack.c.h.b16 %v1350
      %v2387 = vunpack.c.l.b16 %v1351
      %v2388 = vunpack.c.h.b16 %v1351
      %v2389 = vunpack.c.l.b16 %v1352
      %v2390 = vunpack.c.h.b16 %v1352
      %v2391 = vunpack.c.l.b16 %v1353
      %v2392 = vunpack.c.h.b16 %v1353
      %v2393 = vunpack.c.l.b16 %v1354
      %v2394 = vunpack.c.h.b16 %v1354
      %v2395 = vunpack.c.l.b16 %v1355
      %v2396 = vunpack.c.h.b16 %v1355
      %v2397 = vunpack.c.l.b16 %v1356
      %v2398 = vunpack.c.h.b16 %v1356
      %v2399 = vunpack.c.l.b16 %v1357
      %v2400 = vunpack.c.h.b16 %v1357
      %v2401 = vunpack.c.l.b16 %v1358
      %v2402 = vunpack.c.h.b16 %v1358
      %v2403 = vunpack.c.l.b16 %v1359
      %v2404 = vunpack.c.h.b16 %v1359
      %v2405 = vunpack.c.l.b16 %v1360
      %v2406 = vunpack.c.h.b16 %v1360
      %v2407 = vunpack.c.l.b16 %v1361
      %v2408 = vunpack.c.h.b16 %v1361
      %v2409 = vunpack.c.l.b16 %v1362
      %v2410 = vunpack.c.h.b16 %v1362
      %v2411 = vunpack.c.l.b16 %v1363
      %v2412 = vunpack.c.h.b16 %v1363
      %v2413 = vunpack.c.l.b16 %v1364
      %v2414 = vunpack.c.h.b16 %v1364
      %v2415 = vunpack.c.l.b16 %v1365
      %v2416 = vunpack.c.h.b16 %v1365
      %v2417 = vunpack.c.l.b16 %v1366
      %v2418 = vunpack.c.h.b16 %v1366
      %v2419 = vunpack.c.l.b16 %v1367
      %v2420 = vunpack.c.h.b16 %v1367
      %v2421 = vunpack.c.l.b16 %v1368
      %v2422 = vunpack.c.h.b16 %v1368
      %v2423 = vunpack.c.l.b16 %v1369
      %v2424 = vunpack.c.h.b16 %v1369
      %v2425 = vunpack.c.l.b16 %v1370
      %v2426 = vunpack.c.h.b16 %v1370
      %v2427 = vunpack.c.l.b16 %v1371
      %v2428 = vunpack.c.h.b16 %v1371
      %v2429 = vunpack.c.l.b16 %v1372
      %v2430 = vunpack.c.h.b16 %v1372
      %v2431 = vunpack.c.l.b16 %v1373
      %v2432 = vunpack.c.h.b16 %v1373
      %v2433 = vunpack.c.l.b16 %v1374
      %v2434 = vunpack.c.h.b16 %v1374
      %v2435 = vunpack.c.l.b16 %v1375
      %v2436 = vunpack.c.h.b16 %v1375
      %v2437 = vunpack.c.l.b16 %v1376
      %v2438 = vunpack.c.h.b16 %v1376
      %v2439 = vunpack.c.l.b16 %v1377
      %v2440 = vunpack.c.h.b16 %v1377
      %v2441 = vunpack.c.l.b16 %v1378
      %v2442 = vunpack.c.h.b16 %v1378
      %v2443 = vunpack.c.l.b16 %v1379
      %v2444 = vunpack.c.h.b16 %v1379
      %v2445 = vunpack.c.l.b16 %v1380
      %v2446 = vunpack.c.h.b16 %v1380
      %v2447 = vunpack.c.l.b16 %v1381
      %v2448 = vunpack.c.h.b16 %v1381
      %v2449 = vunpack.c.l.b16 %v1382
      %v2450 = vunpack.c.h.b16 %v1382
      %v2451 = vunpack.c.l.b16 %v1383
      %v2452 = vunpack.c.h.b16 %v1383
      %v2453 = vunpack.c.l.b16 %v1384
      %v2454 = vunpack.c.h.b16 %v1384
      %v2455 = vunpack.c.l.b16 %v1385
      %v2456 = vunpack.c.h.b16 %v1385
      %v2457 = vunpack.c.l.b16 %v1386
      %v2458 = vunpack.c.h.b16 %v1386
      %v2459 = vunpack.c.l.b16 %v1387
      %v2460 = vunpack.c.h.b16 %v1387
      %v2461 = vunpack.c.l.b16 %v1388
      %v2462 = vunpack.c.h.b16 %v1388
      %v2463 = vunpack.c.l.b16 %v1389
      %v2464 = vunpack.c.h.b16 %v1389
      %v2465 = vunpack.c.l.b16 %v1390
      %v2466 = vunpack.c.h.b16 %v1390
      %v2467 = vunpack.c.l.b16 %v1391
      %v2468 = vunpack.c.h.b16 %v1391
      %v2469 = vunpack.c.l.b16 %v1392
      %v2470 = vunpack.c.h.b16 %v1392
      %v2471 = vunpack.c.l.b16 %v1393
      %v2472 = vunpack.c.h.b16 %v1393
      %v2473 = vunpack.c.l.b16 %v1394
      %v2474 = vunpack.c.h.b16 %v1394
      %v2475 = vunpack.c.l.b16 %v1395
      %v2476 = vunpack.c.h.b16 %v1395
      %v2477 = vunpack.c.l.b16 %v1396
      %v2478 = vunpack.c.h.b16 %v1396
      %v2479 = vunpack.c.l.b16 %v1397
      %v2480 = vunpack.c.h.b16 %v1397
      %v2481 = vunpack.c.l.b16 %v1398
      %v2482 = vunpack.c.h.b16 %v1398
      %v2483 = vunpack.c.l.b16 %v1399
      %v2484 = vunpack.c.h.b16 %v1399
      %v2485 = vunpack.c.l.b16 %v1400
      %v2486 = vunpack.c.h.b16 %v1400
      %v2487 = vunpack.c.l.b16 %v1401
      %v2488 = vunpack.c.h.b16 %v1401
      %v2489 = vunpack.c.l.b16 %v1402
      %v2490 = vunpack.c.h.b16 %v1402
      %v2491 = vunpack.c.l.b16 %v1403
      %v2492 = vunpack.c.h.b16 %v1403
      %v2493 = vunpack.c.l.b16 %v1404
      %v2494 = vunpack.c.h.b16 %v1404
      %v2495 = vunpack.c.l.b16 %v1405
      %v2496 = vunpack.c.h.b16 %v1405
      %v2497 = vunpack.c.l.b16 %v1406
      %v2498 = vunpack.c.h.b16 %v1406
      %v2499 = vunpack.c.l.b16 %v1407
      %v2500 = vunpack.c.h.b16 %v1407
      %v2501 = vunpack.c.l.b16 %v1408
      %v2502 = vunpack.c.h.b16 %v1408
      %v2503 = vunpack.c.l.b16 %v1409
      %v2504 = vunpack.c.h.b16 %v1409
      %v2505 = vunpack.c.l.b16 %v1410
      %v2506 = vunpack.c.h.b16 %v1410
      %v2507 = vunpack.c.l.b16 %v1411
      %v2508 = vunpack.c.h.b16 %v1411
      %v2509 = vunpack.c.l.b16 %v1412
      %v2510 = vunpack.c.h.b16 %v1412
      %v2511 = vunpack.c.l.b16 %v1413
      %v2512 = vunpack.c.h.b16 %v1413
      %v2513 = vunpack.c.l.b16 %v1414
      %v2514 = vunpack.c.h.b16 %v1414
      %v2515 = vunpack.c.l.b16 %v1415
      %v2516 = vunpack.c.h.b16 %v1415
      %v2517 = vunpack.c.l.b16 %v1416
      %v2518 = vunpack.c.h.b16 %v1416
      %v2519 = vunpack.c.l.b16 %v1417
      %v2520 = vunpack.c.h.b16 %v1417
      %v2521 = vunpack.c.l.b16 %v1418
      %v2522 = vunpack.c.h.b16 %v1418
      %v2523 = vunpack.c.l.b16 %v1419
      %v2524 = vunpack.c.h.b16 %v1419
      %v2525 = vunpack.c.l.b16 %v1420
      %v2526 = vunpack.c.h.b16 %v1420
      %v2527 = vunpack.c.l.b16 %v1421
      %v2528 = vunpack.c.h.b16 %v1421
      %v2529 = vunpack.c.l.b16 %v1422
      %v2530 = vunpack.c.h.b16 %v1422
      %v2531 = vunpack.c.l.b16 %v1423
      %v2532 = vunpack.c.h.b16 %v1423
      %v2533 = vunpack.c.l.b16 %v1424
      %v2534 = vunpack.c.h.b16 %v1424
      %v2535 = vunpack.c.l.b16 %v1425
      %v2536 = vunpack.c.h.b16 %v1425
      %v2537 = vunpack.c.l.b16 %v1426
      %v2538 = vunpack.c.h.b16 %v1426
      %v2539 = vunpack.c.l.b16 %v1427
      %v2540 = vunpack.c.h.b16 %v1427
      %v2541 = vunpack.c.l.b16 %v1428
      %v2542 = vunpack.c.h.b16 %v1428
      %v2543 = vunpack.c.l.b16 %v1429
      %v2544 = vunpack.c.h.b16 %v1429
      %v2545 = vunpack.c.l.b16 %v1430
      %v2546 = vunpack.c.h.b16 %v1430
      %v2547 = vunpack.c.l.b16 %v1431
      %v2548 = vunpack.c.h.b16 %v1431
      %v2549 = vunpack.c.l.b16 %v1432
      %v2550 = vunpack.c.h.b16 %v1432
      %v2551 = vunpack.c.l.b16 %v1433
      %v2552 = vunpack.c.h.b16 %v1433
      %v2553 = vunpack.c.l.b16 %v1434
      %v2554 = vunpack.c.h.b16 %v1434
      %v2555 = vunpack.c.l.b16 %v1435
      %v2556 = vunpack.c.h.b16 %v1435
      %v2557 = vunpack.c.l.b16 %v1436
      %v2558 = vunpack.c.h.b16 %v1436
      %v2559 = vunpack.c.l.b16 %v1437
      %v2560 = vunpack.c.h.b16 %v1437
      %v2561 = vunpack.c.l.b16 %v1438
      %v2562 = vunpack.c.h.b16 %v1438
      %v2563 = vunpack.c.l.b16 %v1439
      %v2564 = vunpack.c.h.b16 %v1439
      %v2565 = vunpack.c.l.b16 %v1440
      %v2566 = vunpack.c.h.b16 %v1440
      %v2567 = vunpack.c.l.b16 %v1441
      %v2568 = vunpack.c.h.b16 %v1441
      %v2569 = vunpack.c.l.b16 %v1442
      %v2570 = vunpack.c.h.b16 %v1442
      %v2571 = vunpack.c.l.b16 %v1443
      %v2572 = vunpack.c.h.b16 %v1443
      %v2573 = vunpack.c.l.b16 %v1444
      %v2574 = vunpack.c.h.b16 %v1444
      %v2575 = vunpack.c.l.b16 %v1445
      %v2576 = vunpack.c.h.b16 %v1445
      %v2577 = vunpack.c.l.b16 %v1446
      %v2578 = vunpack.c.h.b16 %v1446
      %v2579 = vunpack.c.l.b16 %v1447
      %v2580 = vunpack.c.h.b16 %v1447
      %v2581 = vunpack.c.l.b16 %v1448
      %v2582 = vunpack.c.h.b16 %v1448
      %v2583 = vunpack.c.l.b16 %v1449
      %v2584 = vunpack.c.h.b16 %v1449
      %v2585 = vunpack.c.l.b16 %v1450
      %v2586 = vunpack.c.h.b16 %v1450
      %v2587 = vunpack.c.l.b16 %v1451
      %v2588 = vunpack.c.h.b16 %v1451
      %v2589 = vunpack.c.l.b16 %v1452
      %v2590 = vunpack.c.h.b16 %v1452
      %v2591 = vunpack.c.l.b16 %v1453
      %v2592 = vunpack.c.h.b16 %v1453
      %v2593 = vunpack.c.l.b16 %v1454
      %v2594 = vunpack.c.h.b16 %v1454
      %v2595 = vunpack.c.l.b16 %v1455
      %v2596 = vunpack.c.h.b16 %v1455
      %v2597 = vunpack.c.l.b16 %v1456
      %v2598 = vunpack.c.h.b16 %v1456
      %v2599 = vunpack.c.l.b16 %v1457
      %v2600 = vunpack.c.h.b16 %v1457
      %v2601 = vunpack.c.l.b16 %v1458
      %v2602 = vunpack.c.h.b16 %v1458
      %v2603 = vunpack.c.l.b16 %v1459
      %v2604 = vunpack.c.h.b16 %v1459
      %v2605 = vunpack.c.l.b16 %v1460
      %v2606 = vunpack.c.h.b16 %v1460
      %v2607 = vunpack.c.l.b16 %v1461
      %v2608 = vunpack.c.h.b16 %v1461
      %v2609 = vunpack.c.l.b16 %v1462
      %v2610 = vunpack.c.h.b16 %v1462
      %v2611 = vunpack.c.l.b16 %v1463
      %v2612 = vunpack.c.h.b16 %v1463
      %v2613 = vunpack.c.l.b16 %v1464
      %v2614 = vunpack.c.h.b16 %v1464
      %v2615 = vunpack.c.l.b16 %v1465
      %v2616 = vunpack.c.h.b16 %v1465
      %v2617 = vunpack.c.l.b16 %v1466
      %v2618 = vunpack.c.h.b16 %v1466
      %v2619 = vunpack.c.l.b16 %v1467
      %v2620 = vunpack.c.h.b16 %v1467
      %v2621 = vunpack.c.l.b16 %v1468
      %v2622 = vunpack.c.h.b16 %v1468
      %v2623 = vunpack.c.l.b16 %v1469
      %v2624 = vunpack.c.h.b16 %v1469
      %v2625 = vunpack.c.l.b16 %v1470
      %v2626 = vunpack.c.h.b16 %v1470
      %v2627 = vunpack.c.l.b16 %v1471
      %v2628 = vunpack.c.h.b16 %v1471
      %v2629 = vunpack.c.l.b16 %v1472
      %v2630 = vunpack.c.h.b16 %v1472
      %v2631 = vunpack.c.l.b16 %v1473
      %v2632 = vunpack.c.h.b16 %v1473
      %v2633 = vunpack.c.l.b16 %v1474
      %v2634 = vunpack.c.h.b16 %v1474
      %v2635 = vunpack.c.l.b16 %v1475
      %v2636 = vunpack.c.h.b16 %v1475
      %v2637 = vunpack.c.l.b16 %v1476
      %v2638 = vunpack.c.h.b16 %v1476
      %v2639 = vunpack.c.l.b16 %v1477
      %v2640 = vunpack.c.h.b16 %v1477
      %v2641 = vunpack.c.l.b16 %v1478
      %v2642 = vunpack.c.h.b16 %v1478
      %v2643 = vunpack.c.l.b16 %v1479
      %v2644 = vunpack.c.h.b16 %v1479
      %v2645 = vunpack.c.l.b16 %v1480
      %v2646 = vunpack.c.h.b16 %v1480
      %v2647 = vunpack.c.l.b16 %v1481
      %v2648 = vunpack.c.h.b16 %v1481
      %v2649 = vunpack.c.l.b16 %v1482
      %v2650 = vunpack.c.h.b16 %v1482
      %v2651 = vunpack.c.l.b16 %v1483
      %v2652 = vunpack.c.h.b16 %v1483
      %v2653 = vunpack.c.l.b16 %v1484
      %v2654 = vunpack.c.h.b16 %v1484
      %v2655 = vunpack.c.l.b16 %v1485
      %v2656 = vunpack.c.h.b16 %v1485
      %v2657 = vunpack.c.l.b16 %v1486
      %v2658 = vunpack.c.h.b16 %v1486
      %v2659 = vunpack.c.l.b16 %v1487
      %v2660 = vunpack.c.h.b16 %v1487
      %v2661 = vunpack.c.l.b16 %v1488
      %v2662 = vunpack.c.h.b16 %v1488
      %v2663 = vunpack.c.l.b16 %v1489
      %v2664 = vunpack.c.h.b16 %v1489
      %v2665 = vunpack.c.l.b16 %v1490
      %v2666 = vunpack.c.h.b16 %v1490
      %v2667 = vunpack.c.l.b16 %v1491
      %v2668 = vunpack.c.h.b16 %v1491
      %v2669 = vunpack.c.l.b16 %v1492
      %v2670 = vunpack.c.h.b16 %v1492
      %v2671 = vunpack.c.l.b16 %v1493
      %v2672 = vunpack.c.h.b16 %v1493
      %v2673 = vunpack.c.l.b16 %v1494
      %v2674 = vunpack.c.h.b16 %v1494
      %v2675 = vunpack.c.l.b16 %v1495
      %v2676 = vunpack.c.h.b16 %v1495
      %v2677 = vunpack.c.l.b16 %v1496
      %v2678 = vunpack.c.h.b16 %v1496
      %v2679 = vunpack.c.l.b16 %v1497
      %v2680 = vunpack.c.h.b16 %v1497
      %v2681 = vunpack.c.l.b16 %v1498
      %v2682 = vunpack.c.h.b16 %v1498
      %v2683 = vunpack.c.l.b16 %v1499
      %v2684 = vunpack.c.h.b16 %v1499
      %v2685 = vunpack.c.l.b16 %v1500
      %v2686 = vunpack.c.h.b16 %v1500
      %v2687 = vunpack.c.l.b16 %v1501
      %v2688 = vunpack.c.h.b16 %v1501
      %v2689 = vunpack.c.l.b16 %v1502
      %v2690 = vunpack.c.h.b16 %v1502
      %v2691 = vunpack.c.l.b16 %v1503
      %v2692 = vunpack.c.h.b16 %v1503
      %v2693 = vunpack.c.l.b16 %v1504
      %v2694 = vunpack.c.h.b16 %v1504
      %v2695 = vunpack.c.l.b16 %v1505
      %v2696 = vunpack.c.h.b16 %v1505
      %v2697 = vunpack.c.l.b16 %v1506
      %v2698 = vunpack.c.h.b16 %v1506
      %v2699 = vunpack.c.l.b16 %v1507
      %v2700 = vunpack.c.h.b16 %v1507
      %v2701 = vunpack.c.l.b16 %v1508
      %v2702 = vunpack.c.h.b16 %v1508
      %v2703 = vunpack.c.l.b16 %v1509
      %v2704 = vunpack.c.h.b16 %v1509
      %v2705 = vunpack.c.l.b16 %v1510
      %v2706 = vunpack.c.h.b16 %v1510
      %v2707 = vunpack.c.l.b16 %v1511
      %v2708 = vunpack.c.h.b16 %v1511
      %v2709 = vunpack.c.l.b16 %v1512
      %v2710 = vunpack.c.h.b16 %v1512
      %v2711 = vunpack.c.l.b16 %v1513
      %v2712 = vunpack.c.h.b16 %v1513
      %v2713 = vunpack.c.l.b16 %v1514
      %v2714 = vunpack.c.h.b16 %v1514
      %v2715 = vunpack.c.l.b16 %v1515
      %v2716 = vunpack.c.h.b16 %v1515
      %v2717 = vunpack.c.l.b16 %v1516
      %v2718 = vunpack.c.h.b16 %v1516
      %v2719 = vunpack.c.l.b16 %v1517
      %v2720 = vunpack.c.h.b16 %v1517
      %v2721 = vunpack.c.l.b16 %v1518
      %v2722 = vunpack.c.h.b16 %v1518
      %v2723 = vunpack.c.l.b16 %v1519
      %v2724 = vunpack.c.h.b16 %v1519
      %v2725 = vunpack.c.l.b16 %v1520
      %v2726 = vunpack.c.h.b16 %v1520
      %v2727 = vunpack.c.l.b16 %v1521
      %v2728 = vunpack.c.h.b16 %v1521
      %v2729 = vunpack.c.l.b16 %v1522
      %v2730 = vunpack.c.h.b16 %v1522
      %v2731 = vunpack.c.l.b16 %v1523
      %v2732 = vunpack.c.h.b16 %v1523
      %v2733 = vunpack.c.l.b16 %v1524
      %v2734 = vunpack.c.h.b16 %v1524
      %v2735 = vunpack.c.l.b16 %v1525
      %v2736 = vunpack.c.h.b16 %v1525
      %v2737 = vunpack.c.l.b16 %v1526
      %v2738 = vunpack.c.h.b16 %v1526
      %v2739 = vunpack.c.l.b16 %v1527
      %v2740 = vunpack.c.h.b16 %v1527
      %v2741 = vunpack.c.l.b16 %v1528
      %v2742 = vunpack.c.h.b16 %v1528
      %v2743 = vunpack.c.l.b16 %v1529
      %v2744 = vunpack.c.h.b16 %v1529
      %v2745 = vunpack.c.l.b16 %v1530
      %v2746 = vunpack.c.h.b16 %v1530
      %v2747 = vpack.c.b16 %v1991, %v1979
      %v2748 = vpack.c.b16 %v1992, %v1980
      %v2749 = vpack.c.b16 %v1993, %v1981
      %v2750 = vpack.c.b16 %v1994, %v1982
      %v2751 = vpack.c.b16 %v1995, %v1983
      %v2752 = vpack.c.b16 %v1996, %v1984
      %v2753 = vpack.c.b16 %v1997, %v1985
      %v2754 = vpack.c.b16 %v1998, %v1986
      %v2755 = vpack.c.b16 %v1999, %v1987
      %v2756 = vpack.c.b16 %v2000, %v1988
      %v2757 = vpack.c.b16 %v2001, %v1989
      %v2758 = vpack.c.b16 %v2002, %v1990
      %v2759 = vpack.c.b16 %v2015, %v2003
      %v2760 = vpack.c.b16 %v2016, %v2004
      %v2761 = vpack.c.b16 %v2017, %v2005
      %v2762 = vpack.c.b16 %v2018, %v2006
      %v2763 = vpack.c.b16 %v2019, %v2007
      %v2764 = vpack.c.b16 %v2020, %v2008
      %v2765 = vpack.c.b16 %v2021, %v2009
      %v2766 = vpack.c.b16 %v2022, %v2010
      %v2767 = vpack.c.b16 %v2023, %v2011
      %v2768 = vpack.c.b16 %v2024, %v2012
      %v2769 = vpack.c.b16 %v2025, %v2013
      %v2770 = vpack.c.b16 %v2026, %v2014
      %v2771 = vpack.c.b16 %v2039, %v2027
      %v2772 = vpack.c.b16 %v2040, %v2028
      %v2773 = vpack.c.b16 %v2041, %v2029
      %v2774 = vpack.c.b16 %v2042, %v2030
      %v2775 = vpack.c.b16 %v2043, %v2031
      %v2776 = vpack.c.b16 %v2044, %v2032
      %v2777 = vpack.c.b16 %v2045, %v2033
      %v2778 = vpack.c.b16 %v2046, %v2034
      %v2779 = vpack.c.b16 %v2047, %v2035
      %v2780 = vpack.c.b16 %v2048, %v2036
      %v2781 = vpack.c.b16 %v2049, %v2037
      %v2782 = vpack.c.b16 %v2050, %v2038
      %v2783 = vpack.c.b16 %v2063, %v2051
      %v2784 = vpack.c.b16 %v2064, %v2052
      %v2785 = vpack.c.b16 %v2065, %v2053
      %v2786 = vpack.c.b16 %v2066, %v2054
      %v2787 = vpack.c.b16 %v2067, %v2055
      %v2788 = vpack.c.b16 %v2068, %v2056
      %v2789 = vpack.c.b16 %v2069, %v2057
      %v2790 = vpack.c.b16 %v2070, %v2058
      %v2791 = vpack.c.b16 %v2071, %v2059
      %v2792 = vpack.c.b16 %v2072, %v2060
      %v2793 = vpack.c.b16 %v2073, %v2061
      %v2794 = vpack.c.b16 %v2074, %v2062
      %v2795 = vpack.c.b16 %v2087, %v2075
      %v2796 = vpack.c.b16 %v2088, %v2076
      %v2797 = vpack.c.b16 %v2089, %v2077
      %v2798 = vpack.c.b16 %v2090, %v2078
      %v2799 = vpack.c.b16 %v2091, %v2079
      %v2800 = vpack.c.b16 %v2092, %v2080
      %v2801 = vpack.c.b16 %v2093, %v2081
      %v2802 = vpack.c.b16 %v2094, %v2082
      %v2803 = vpack.c.b16 %v2095, %v2083
      %v2804 = vpack.c.b16 %v2096, %v2084
      %v2805 = vpack.c.b16 %v2097, %v2085
      %v2806 = vpack.c.b16 %v2098, %v2086
      %v2807 = vpack.c.b16 %v2111, %v2099
      %v2808 = vpack.c.b16 %v2112, %v2100
      %v2809 = vpack.c.b16 %v2113, %v2101
      %v2810 = vpack.c.b16 %v2114, %v2102
      %v2811 = vpack.c.b16 %v2115, %v2103
      %v2812 = vpack.c.b16 %v2116, %v2104
      %v2813 = vpack.c.b16 %v2117, %v2105
      %v2814 = vpack.c.b16 %v2118, %v2106
      %v2815 = vpack.c.b16 %v2119, %v2107
      %v2816 = vpack.c.b16 %v2120, %v2108
      %v2817 = vpack.c.b16 %v2121, %v2109
      %v2818 = vpack.c.b16 %v2122, %v2110
      %v2819 = vpack.c.b16 %v2135, %v2123
      %v2820 = vpack.c.b16 %v2136, %v2124
      %v2821 = vpack.c.b16 %v2137, %v2125
      %v2822 = vpack.c.b16 %v2138, %v2126
      %v2823 = vpack.c.b16 %v2139, %v2127
      %v2824 = vpack.c.b16 %v2140, %v2128
      %v2825 = vpack.c.b16 %v2141, %v2129
      %v2826 = vpack.c.b16 %v2142, %v2130
      %v2827 = vpack.c.b16 %v2143, %v2131
      %v2828 = vpack.c.b16 %v2144, %v2132
      %v2829 = vpack.c.b16 %v2145, %v2133
      %v2830 = vpack.c.b16 %v2146, %v2134
      %v2831 = vpack.c.b16 %v2159, %v2147
      %v2832 = vpack.c.b16 %v2160, %v2148
      %v2833 = vpack.c.b16 %v2161, %v2149
      %v2834 = vpack.c.b16 %v2162, %v2150
      %v2835 = vpack.c.b16 %v2163, %v2151
      %v2836 = vpack.c.b16 %v2164, %v2152
      %v2837 = vpack.c.b16 %v2165, %v2153
      %v2838 = vpack.c.b16 %v2166, %v2154
      %v2839 = vpack.c.b16 %v2167, %v2155
      %v2840 = vpack.c.b16 %v2168, %v2156
      %v2841 = vpack.c.b16 %v2169, %v2157
      %v2842 = vpack.c.b16 %v2170, %v2158
      %v2843 = vpack.c.b16 %v2183, %v2171
      %v2844 = vpack.c.b16 %v2184, %v2172
      %v2845 = vpack.c.b16 %v2185, %v2173
      %v2846 = vpack.c.b16 %v2186, %v2174
      %v2847 = vpack.c.b16 %v2187, %v2175
      %v2848 = vpack.c.b16 %v2188, %v2176
      %v2849 = vpack.c.b16 %v2189, %v2177
      %v2850 = vpack.c.b16 %v2190, %v2178
      %v2851 = vpack.c.b16 %v2191, %v2179
      %v2852 = vpack.c.b16 %v2192, %v2180
      %v2853 = vpack.c.b16 %v2193, %v2181
      %v2854 = vpack.c.b16 %v2194, %v2182
      %v2855 = vpack.c.b16 %v2207, %v2195
      %v2856 = vpack.c.b16 %v2208, %v2196
      %v2857 = vpack.c.b16 %v2209, %v2197
      %v2858 = vpack.c.b16 %v2210, %v2198
      %v2859 = vpack.c.b16 %v2211, %v2199
      %v2860 = vpack.c.b16 %v2212, %v2200
      %v2861 = vpack.c.b16 %v2213, %v2201
      %v2862 = vpack.c.b16 %v2214, %v2202
      %v2863 = vpack.c.b16 %v2215, %v2203
      %v2864 = vpack.c.b16 %v2216, %v2204
      %v2865 = vpack.c.b16 %v2217, %v2205
      %v2866 = vpack.c.b16 %v2218, %v2206
      %v2867 = vpack.c.b16 %v2231, %v2219
      %v2868 = vpack.c.b16 %v2232, %v2220
      %v2869 = vpack.c.b16 %v2233, %v2221
      %v2870 = vpack.c.b16 %v2234, %v2222
      %v2871 = vpack.c.b16 %v2235, %v2223
      %v2872 = vpack.c.b16 %v2236, %v2224
      %v2873 = vpack.c.b16 %v2237, %v2225
      %v2874 = vpack.c.b16 %v2238, %v2226
      %v2875 = vpack.c.b16 %v2239, %v2227
      %v2876 = vpack.c.b16 %v2240, %v2228
      %v2877 = vpack.c.b16 %v2241, %v2229
      %v2878 = vpack.c.b16 %v2242, %v2230
      %v2879 = vpack.c.b16 %v2255, %v2243
      %v2880 = vpack.c.b16 %v2256, %v2244
      %v2881 = vpack.c.b16 %v2257, %v2245
      %v2882 = vpack.c.b16 %v2258, %v2246
      %v2883 = vpack.c.b16 %v2259, %v2247
      %v2884 = vpack.c.b16 %v2260, %v2248
      %v2885 = vpack.c.b16 %v2261, %v2249
      %v2886 = vpack.c.b16 %v2262, %v2250
      %v2887 = vpack.c.b16 %v2263, %v2251
      %v2888 = vpack.c.b16 %v2264, %v2252
      %v2889 = vpack.c.b16 %v2265, %v2253
      %v2890 = vpack.c.b16 %v2266, %v2254
      %v2891 = vpack.c.b16 %v2279, %v2267
      %v2892 = vpack.c.b16 %v2280, %v2268
      %v2893 = vpack.c.b16 %v2281, %v2269
      %v2894 = vpack.c.b16 %v2282, %v2270
      %v2895 = vpack.c.b16 %v2283, %v2271
      %v2896 = vpack.c.b16 %v2284, %v2272
      %v2897 = vpack.c.b16 %v2285, %v2273
      %v2898 = vpack.c.b16 %v2286, %v2274
      %v2899 = vpack.c.b16 %v2287, %v2275
      %v2900 = vpack.c.b16 %v2288, %v2276
      %v2901 = vpack.c.b16 %v2289, %v2277
      %v2902 = vpack.c.b16 %v2290, %v2278
      %v2903 = vpack.c.b16 %v2303, %v2291
      %v2904 = vpack.c.b16 %v2304, %v2292
      %v2905 = vpack.c.b16 %v2305, %v2293
      %v2906 = vpack.c.b16 %v2306, %v2294
      %v2907 = vpack.c.b16 %v2307, %v2295
      %v2908 = vpack.c.b16 %v2308, %v2296
      %v2909 = vpack.c.b16 %v2309, %v2297
      %v2910 = vpack.c.b16 %v2310, %v2298
      %v2911 = vpack.c.b16 %v2311, %v2299
      %v2912 = vpack.c.b16 %v2312, %v2300
      %v2913 = vpack.c.b16 %v2313, %v2301
      %v2914 = vpack.c.b16 %v2314, %v2302
      %v2915 = vpack.c.b16 %v2327, %v2315
      %v2916 = vpack.c.b16 %v2328, %v2316
      %v2917 = vpack.c.b16 %v2329, %v2317
      %v2918 = vpack.c.b16 %v2330, %v2318
      %v2919 = vpack.c.b16 %v2331, %v2319
      %v2920 = vpack.c.b16 %v2332, %v2320
      %v2921 = vpack.c.b16 %v2333, %v2321
      %v2922 = vpack.c.b16 %v2334, %v2322
      %v2923 = vpack.c.b16 %v2335, %v2323
      %v2924 = vpack.c.b16 %v2336, %v2324
      %v2925 = vpack.c.b16 %v2337, %v2325
      %v2926 = vpack.c.b16 %v2338, %v2326
      %v2927 = vpack.c.b16 %v2351, %v2339
      %v2928 = vpack.c.b16 %v2352, %v2340
      %v2929 = vpack.c.b16 %v2353, %v2341
      %v2930 = vpack.c.b16 %v2354, %v2342
      %v2931 = vpack.c.b16 %v2355, %v2343
      %v2932 = vpack.c.b16 %v2356, %v2344
      %v2933 = vpack.c.b16 %v2357, %v2345
      %v2934 = vpack.c.b16 %v2358, %v2346
      %v2935 = vpack.c.b16 %v2359, %v2347
      %v2936 = vpack.c.b16 %v2360, %v2348
      %v2937 = vpack.c.b16 %v2361, %v2349
      %v2938 = vpack.c.b16 %v2362, %v2350
      %v2939 = vpack.c.b16 %v2375, %v2363
      %v2940 = vpack.c.b16 %v2376, %v2364
      %v2941 = vpack.c.b16 %v2377, %v2365
      %v2942 = vpack.c.b16 %v2378, %v2366
      %v2943 = vpack.c.b16 %v2379, %v2367
      %v2944 = vpack.c.b16 %v2380, %v2368
      %v2945 = vpack.c.b16 %v2381, %v2369
      %v2946 = vpack.c.b16 %v2382, %v2370
      %v2947 = vpack.c.b16 %v2383, %v2371
      %v2948 = vpack.c.b16 %v2384, %v2372
      %v2949 = vpack.c.b16 %v2385, %v2373
      %v2950 = vpack.c.b16 %v2386, %v2374
      %v2951 = vpack.c.b16 %v2399, %v2387
      %v2952 = vpack.c.b16 %v2400, %v2388
      %v2953 = vpack.c.b16 %v2401, %v2389
      %v2954 = vpack.c.b16 %v2402, %v2390
      %v2955 = vpack.c.b16 %v2403, %v2391
      %v2956 = vpack.c.b16 %v2404, %v2392
      %v2957 = vpack.c.b16 %v2405, %v2393
      %v2958 = vpack.c.b16 %v2406, %v2394
      %v2959 = vpack.c.b16 %v2407, %v2395
      %v2960 = vpack.c.b16 %v2408, %v2396
      %v2961 = vpack.c.b16 %v2409, %v2397
      %v2962 = vpack.c.b16 %v2410, %v2398
      %v2963 = vpack.c.b16 %v2423, %v2411
      %v2964 = vpack.c.b16 %v2424, %v2412
      %v2965 = vpack.c.b16 %v2425, %v2413
      %v2966 = vpack.c.b16 %v2426, %v2414
      %v2967 = vpack.c.b16 %v2427, %v2415
      %v2968 = vpack.c.b16 %v2428, %v2416
      %v2969 = vpack.c.b16 %v2429, %v2417
      %v2970 = vpack.c.b16 %v2430, %v2418
      %v2971 = vpack.c.b16 %v2431, %v2419
      %v2972 = vpack.c.b16 %v2432, %v2420
      %v2973 = vpack.c.b16 %v2433, %v2421
      %v2974 = vpack.c.b16 %v2434, %v2422
      %v2975 = vpack.c.b16 %v2447, %v2435
      %v2976 = vpack.c.b16 %v2448, %v2436
      %v2977 = vpack.c.b16 %v2449, %v2437
      %v2978 = vpack.c.b16 %v2450, %v2438
      %v2979 = vpack.c.b16 %v2451, %v2439
      %v2980 = vpack.c.b16 %v2452, %v2440
      %v2981 = vpack.c.b16 %v2453, %v2441
      %v2982 = vpack.c.b16 %v2454, %v2442
      %v2983 = vpack.c.b16 %v2455, %v2443
      %v2984 = vpack.c.b16 %v2456, %v2444
      %v2985 = vpack.c.b16 %v2457, %v2445
      %v2986 = vpack.c.b16 %v2458, %v2446
      %v2987 = vpack.c.b16 %v2471, %v2459
      %v2988 = vpack.c.b16 %v2472, %v2460
      %v2989 = vpack.c.b16 %v2473, %v2461
      %v2990 = vpack.c.b16 %v2474, %v2462
      %v2991 = vpack.c.b16 %v2475, %v2463
      %v2992 = vpack.c.b16 %v2476, %v2464
      %v2993 = vpack.c.b16 %v2477, %v2465
      %v2994 = vpack.c.b16 %v2478, %v2466
      %v2995 = vpack.c.b16 %v2479, %v2467
      %v2996 = vpack.c.b16 %v2480, %v2468
      %v2997 = vpack.c.b16 %v2481, %v2469
      %v2998 = vpack.c.b16 %v2482, %v2470
      %v2999 = vpack.c.b16 %v2495, %v2483
      %v3000 = vpack.c.b16 %v2496, %v2484
      %v3001 = vpack.c.b16 %v2497, %v2485
      %v3002 = vpack.c.b16 %v2498, %v2486
      %v3003 = vpack.c.b16 %v2499, %v2487
      %v3004 = vpack.c.b16 %v2500, %v2488
      %v3005 = vpack.c.b16 %v2501, %v2489
      %v3006 = vpack.c.b16 %v2502, %v2490
      %v3007 = vpack.c.b16 %v2503, %v2491
      %v3008 = vpack.c.b16 %v2504, %v2492
      %v3009 = vpack.c.b16 %v2505, %v2493
      %v3010 = vpack.c.b16 %v2506, %v2494
      %v3011 = vpack.c.b16 %v2519, %v2507
      %v3012 = vpack.c.b16 %v2520, %v2508
      %v3013 = vpack.c.b16 %v2521, %v2509
      %v3014 = vpack.c.b16 %v2522, %v2510
      %v3015 = vpack.c.b16 %v2523, %v2511
      %v3016 = vpack.c.b16 %v2524, %v2512
      %v3017 = vpack.c.b16 %v2525, %v2513
      %v3018 = vpack.c.b16 %v2526, %v2514
      %v3019 = vpack.c.b16 %v2527, %v2515
      %v3020 = vpack.c.b16 %v2528, %v2516
      %v3021 = vpack.c.b16 %v2529, %v2517
      %v3022 = vpack.c.b16 %v2530, %v2518
      %v3023 = vpack.c.b16 %v2543, %v2531
      %v3024 = vpack.c.b16 %v2544, %v2532
      %v3025 = vpack.c.b16 %v2545, %v2533
      %v3026 = vpack.c.b16 %v2546, %v2534
      %v3027 = vpack.c.b16 %v2547, %v2535
      %v3028 = vpack.c.b16 %v2548, %v2536
      %v3029 = vpack.c.b16 %v2549, %v2537
      %v3030 = vpack.c.b16 %v2550, %v2538
      %v3031 = vpack.c.b16 %v2551, %v2539
      %v3032 = vpack.c.b16 %v2552, %v2540
      %v3033 = vpack.c.b16 %v2553, %v2541
      %v3034 = vpack.c.b16 %v2554, %v2542
      %v3035 = vpack.c.b16 %v2567, %v2555
      %v3036 = vpack.c.b16 %v2568, %v2556
      %v3037 = vpack.c.b16 %v2569, %v2557
      %v3038 = vpack.c.b16 %v2570, %v2558
      %v3039 = vpack.c.b16 %v2571, %v2559
      %v3040 = vpack.c.b16 %v2572, %v2560
      %v3041 = vpack.c.b16 %v2573, %v2561
      %v3042 = vpack.c.b16 %v2574, %v2562
      %v3043 = vpack.c.b16 %v2575, %v2563
      %v3044 = vpack.c.b16 %v2576, %v2564
      %v3045 = vpack.c.b16 %v2577, %v2565
      %v3046 = vpack.c.b16 %v2578, %v2566
      %v3047 = vpack.c.b16 %v2591, %v2579
      %v3048 = vpack.c.b16 %v2592, %v2580
      %v3049 = vpack.c.b16 %v2593, %v2581
      %v3050 = vpack.c.b16 %v2594, %v2582
      %v3051 = vpack.c.b16 %v2595, %v2583
      %v3052 = vpack.c.b16 %v2596, %v2584
      %v3053 = vpack.c.b16 %v2597, %v2585
      %v3054 = vpack.c.b16 %v2598, %v2586
      %v3055 = vpack.c.b16 %v2599, %v2587
      %v3056 = vpack.c.b16 %v2600, %v2588
      %v3057 = vpack.c.b16 %v2601, %v2589
      %v3058 = vpack.c.b16 %v2602, %v2590
      %v3059 = vpack.c.b16 %v2615, %v2603
      %v3060 = vpack.c.b16 %v2616, %v2604
      %v3061 = vpack.c.b16 %v2617, %v2605
      %v3062 = vpack.c.b16 %v2618, %v2606
      %v3063 = vpack.c.b16 %v2619, %v2607
      %v3064 = vpack.c.b16 %v2620, %v2608
      %v3065 = vpack.c.b16 %v2621, %v2609
      %v3066 = vpack.c.b16 %v2622, %v2610
      %v3067 = vpack.c.b16 %v2623, %v2611
      %v3068 = vpack.c.b16 %v2624, %v2612
      %v3069 = vpack.c.b16 %v2625, %v2613
      %v3070 = vpack.c.b16 %v2626, %v2614
      %v3071 = vpack.c.b16 %v2639, %v2627
      %v3072 = vpack.c.b16 %v2640, %v2628
      %v3073 = vpack.c.b16 %v2641, %v2629
      %v3074 = vpack.c.b16 %v2642, %v2630
      %v3075 = vpack.c.b16 %v2643, %v2631
      %v3076 = vpack.c.b16 %v2644, %v2632
      %v3077 = vpack.c.b16 %v2645, %v2633
      %v3078 = vpack.c.b16 %v2646, %v2634
      %v3079 = vpack.c.b16 %v2647, %v2635
      %v3080 = vpack.c.b16 %v2648, %v2636
      %v3081 = vpack.c.b16 %v2649, %v2637
      %v3082 = vpack.c.b16 %v2650, %v2638
      %v3083 = vpack.c.b16 %v2663, %v2651
      %v3084 = vpack.c.b16 %v2664, %v2652
      %v3085 = vpack.c.b16 %v2665, %v2653
      %v3086 = vpack.c.b16 %v2666, %v2654
      %v3087 = vpack.c.b16 %v2667, %v2655
      %v3088 = vpack.c.b16 %v2668, %v2656
      %v3089 = vpack.c.b16 %v2669, %v2657
      %v3090 = vpack.c.b16 %v2670, %v2658
      %v3091 = vpack.c.b16 %v2671, %v2659
      %v3092 = vpack.c.b16 %v2672, %v2660
      %v3093 = vpack.c.b16 %v2673, %v2661
      %v3094 = vpack.c.b16 %v2674, %v2662
      %v3095 = vpack.c.b16 %v2687, %v2675
      %v3096 = vpack.c.b16 %v2688, %v2676
      %v3097 = vpack.c.b16 %v2689, %v2677
      %v3098 = vpack.c.b16 %v2690, %v2678
      %v3099 = vpack.c.b16 %v2691, %v2679
      %v3100 = vpack.c.b16 %v2692, %v2680
      %v3101 = vpack.c.b16 %v2693, %v2681
      %v3102 = vpack.c.b16 %v2694, %v2682
      %v3103 = vpack.c.b16 %v2695, %v2683
      %v3104 = vpack.c.b16 %v2696, %v2684
      %v3105 = vpack.c.b16 %v2697, %v2685
      %v3106 = vpack.c.b16 %v2698, %v2686
      %v3107 = vpack.c.b16 %v2711, %v2699
      %v3108 = vpack.c.b16 %v2712, %v2700
      %v3109 = vpack.c.b16 %v2713, %v2701
      %v3110 = vpack.c.b16 %v2714, %v2702
      %v3111 = vpack.c.b16 %v2715, %v2703
      %v3112 = vpack.c.b16 %v2716, %v2704
      %v3113 = vpack.c.b16 %v2717, %v2705
      %v3114 = vpack.c.b16 %v2718, %v2706
      %v3115 = vpack.c.b16 %v2719, %v2707
      %v3116 = vpack.c.b16 %v2720, %v2708
      %v3117 = vpack.c.b16 %v2721, %v2709
      %v3118 = vpack.c.b16 %v2722, %v2710
      %v3119 = vpack.c.b16 %v2735, %v2723
      %v3120 = vpack.c.b16 %v2736, %v2724
      %v3121 = vpack.c.b16 %v2737, %v2725
      %v3122 = vpack.c.b16 %v2738, %v2726
      %v3123 = vpack.c.b16 %v2739, %v2727
      %v3124 = vpack.c.b16 %v2740, %v2728
      %v3125 = vpack.c.b16 %v2741, %v2729
      %v3126 = vpack.c.b16 %v2742, %v2730
      %v3127 = vpack.c.b16 %v2743, %v2731
      %v3128 = vpack.c.b16 %v2744, %v2732
      %v3129 = vpack.c.b16 %v2745, %v2733
      %v3130 = vpack.c.b16 %v2746, %v2734
      %3515 = vmatprep.subr.bf16.mxu0 %v2748
      %3516 = vmatpush1.bf16.msra.mxu0 %v2747
      %3517 = vmatprep.subr.bf16.mxu0 %v2760
      %3518 = vmatpush1.bf16.msra.mxu0 %v2759
      %3519 = vmatprep.subr.bf16.mxu0 %v2772
      %3520 = vmatpush1.bf16.msra.mxu0 %v2771
      %3521 = vmatprep.subr.bf16.mxu0 %v2784
      %3522 = vmatpush1.bf16.msra.mxu0 %v2783
      %3523 = vmatprep.subr.bf16.mxu0 %v2796
      %3524 = vmatpush1.bf16.msra.mxu0 %v2795
      %3525 = vmatprep.subr.bf16.mxu0 %v2808
      %3526 = vmatpush1.bf16.msra.mxu0 %v2807
      %3527 = vmatprep.subr.bf16.mxu0 %v2820
      %3528 = vmatpush1.bf16.msra.mxu0 %v2819
      %3529 = vmatprep.subr.bf16.mxu0 %v2832
      %3530 = vmatpush1.bf16.msra.mxu0 %v2831
      %3531 = vmatprep.subr.bf16.mxu0 %v2844
      %3532 = vmatpush1.bf16.msra.mxu0 %v2843
      %3533 = vmatprep.subr.bf16.mxu0 %v2856
      %3534 = vmatpush1.bf16.msra.mxu0 %v2855
      %3535 = vmatprep.subr.bf16.mxu0 %v2868
      %3536 = vmatpush1.bf16.msra.mxu0 %v2867
      %3537 = vmatprep.subr.bf16.mxu0 %v2880
      %3538 = vmatpush1.bf16.msra.mxu0 %v2879
      %3539 = vmatprep.subr.bf16.mxu0 %v2892
      %3540 = vmatpush1.bf16.msra.mxu0 %v2891
      %3541 = vmatprep.subr.bf16.mxu0 %v2904
      %3542 = vmatpush1.bf16.msra.mxu0 %v2903
      %3543 = vmatprep.subr.bf16.mxu0 %v2916
      %3544 = vmatpush1.bf16.msra.mxu0 %v2915
      %3545 = vmatprep.subr.bf16.mxu0 %v2928
      %3546 = vmatpush1.bf16.msra.mxu0 %v2927
      %3547 = vmatprep.mubr.bf16.mxu0 %v1116
      %3548 = vmatmul.mubr.bf16.gmra.mrb[0].mxu0 %v1115
      %v3549 = vpop.f32.mrb[0].mxu0
      %v3550 = vadd.f32 %v1538, %v3549
      %v3551 = vpop.f32.mrb[0].mxu0
      %v3552 = vadd.f32 %v1542, %v3551
      %v3553 = vpop.f32.mrb[0].mxu0
      %v3554 = vadd.f32 %v1538, %v3553
      %v3555 = vpop.f32.mrb[0].mxu0
      %v3556 = vadd.f32 %v1542, %v3555
      %3557 = vmatprep.mubr.bf16.mxu0 %v1120
      %3558 = vmatmul.mubr.bf16.gmra.mrb[0].mxu0 %v1119
      %v3559 = vpop.f32.mrb[0].mxu0
      %v3560 = vadd.f32 %v1538, %v3559
      %v3561 = vpop.f32.mrb[0].mxu0
      %v3562 = vadd.f32 %v1542, %v3561
      %v3563 = vpop.f32.mrb[0].mxu0
      %v3564 = vadd.f32 %v1538, %v3563
      %v3565 = vpop.f32.mrb[0].mxu0
      %v3566 = vadd.f32 %v1542, %v3565
      %3567 = vmatprep.mubr.bf16.mxu0 %v1124
      %3568 = vmatmul.mubr.bf16.gmra.mrb[0].mxu0 %v1123
      %v3569 = vpop.f32.mrb[0].mxu0
      %v3570 = vadd.f32 %v1538, %v3569
      %v3571 = vpop.f32.mrb[0].mxu0
      %v3572 = vadd.f32 %v1542, %v3571
      %v3573 = vpop.f32.mrb[0].mxu0
      %v3574 = vadd.f32 %v1538, %v3573
      %v3575 = vpop.f32.mrb[0].mxu0
      %v3576 = vadd.f32 %v1542, %v3575
      %3577 = vmatprep.mubr.bf16.mxu0 %v1128
      %3578 = vmatmul.mubr.bf16.gmra.mrb[0].mxu0 %v1127
      %v3579 = vpop.f32.mrb[0].mxu0
      %v3580 = vadd.f32 %v1538, %v3579
      %v3581 = vpop.f32.mrb[0].mxu0
      %v3582 = vadd.f32 %v1542, %v3581
      %v3583 = vpop.f32.mrb[0].mxu0
      %v3584 = vadd.f32 %v1538, %v3583
      %v3585 = vpop.f32.mrb[0].mxu0
      %v3586 = vadd.f32 %v1542, %v3585
      %3587 = vmatprep.mubr.bf16.mxu0 %v1132
      %3588 = vmatmul.mubr.bf16.gmra.mrb[0].mxu0 %v1131
      %v3589 = vpop.f32.mrb[0].mxu0
      %v3590 = vadd.f32 %v1538, %v3589
      %v3591 = vpop.f32.mrb[0].mxu0
      %v3592 = vadd.f32 %v1542, %v3591
      %v3593 = vpop.f32.mrb[0].mxu0
      %v3594 = vadd.f32 %v1538, %v3593
      %v3595 = vpop.f32.mrb[0].mxu0
      %v3596 = vadd.f32 %v1542, %v3595
      %3597 = vmatprep.mubr.bf16.mxu0 %v1136
      %3598 = vmatmul.mubr.bf16.gmra.mrb[0].mxu0 %v1135
      %v3599 = vpop.f32.mrb[0].mxu0
      %v3600 = vadd.f32 %v1538, %v3599
      %v3601 = vpop.f32.mrb[0].mxu0
      %v3602 = vadd.f32 %v1542, %v3601
      %v3603 = vpop.f32.mrb[0].mxu0
      %v3604 = vadd.f32 %v1538, %v3603
      %v3605 = vpop.f32.mrb[0].mxu0
      %v3606 = vadd.f32 %v1542, %v3605
      %3607 = vmatprep.mubr.bf16.mxu0 %v1140
      %3608 = vmatmul.mubr.bf16.gmra.mrb[0].mxu0 %v1139
      %v3609 = vpop.f32.mrb[0].mxu0
      %v3610 = vadd.f32 %v1538, %v3609
      %v3611 = vpop.f32.mrb[0].mxu0
      %v3612 = vadd.f32 %v1542, %v3611
      %v3613 = vpop.f32.mrb[0].mxu0
      %v3614 = vadd.f32 %v1538, %v3613
      %v3615 = vpop.f32.mrb[0].mxu0
      %v3616 = vadd.f32 %v1542, %v3615
      %3617 = vmatprep.mubr.bf16.mxu0 %v1144
      %3618 = vmatmul.mubr.bf16.gmra.mrb[0].mxu0 %v1143
      %v3619 = vpop.f32.mrb[0].mxu0
      %v3620 = vadd.f32 %v1538, %v3619
      %v3621 = vpop.f32.mrb[0].mxu0
      %v3622 = vadd.f32 %v1542, %v3621
      %v3623 = vpop.f32.mrb[0].mxu0
      %v3624 = vadd.f32 %v1538, %v3623
      %v3625 = vpop.f32.mrb[0].mxu0
      %v3626 = vadd.f32 %v1542, %v3625
      %3627 = vdwg.mxu0
      %3628 = vmatprep.subr.bf16.mxu0 %v2940
      %3629 = vmatpush1.bf16.msra.mxu0 %v2939
      %3630 = vmatprep.subr.bf16.mxu0 %v2952
      %3631 = vmatpush1.bf16.msra.mxu0 %v2951
      %3632 = vmatprep.subr.bf16.mxu0 %v2964
      %3633 = vmatpush1.bf16.msra.mxu0 %v2963
      %3634 = vmatprep.subr.bf16.mxu0 %v2976
      %3635 = vmatpush1.bf16.msra.mxu0 %v2975
      %3636 = vmatprep.subr.bf16.mxu0 %v2988
      %3637 = vmatpush1.bf16.msra.mxu0 %v2987
      %3638 = vmatprep.subr.bf16.mxu0 %v3000
      %3639 = vmatpush1.bf16.msra.mxu0 %v2999
      %3640 = vmatprep.subr.bf16.mxu0 %v3012
      %3641 = vmatpush1.bf16.msra.mxu0 %v3011
      %3642 = vmatprep.subr.bf16.mxu0 %v3024
      %3643 = vmatpush1.bf16.msra.mxu0 %v3023
      %3644 = vmatprep.subr.bf16.mxu0 %v3036
      %3645 = vmatpush1.bf16.msra.mxu0 %v3035
      %3646 = vmatprep.subr.bf16.mxu0 %v3048
      %3647 = vmatpush1.bf16.msra.mxu0 %v3047
      %3648 = vmatprep.subr.bf16.mxu0 %v3060
      %3649 = vmatpush1.bf16.msra.mxu0 %v3059
      %3650 = vmatprep.subr.bf16.mxu0 %v3072
      %3651 = vmatpush1.bf16.msra.mxu0 %v3071
      %3652 = vmatprep.subr.bf16.mxu0 %v3084
      %3653 = vmatpush1.bf16.msra.mxu0 %v3083
      %3654 = vmatprep.subr.bf16.mxu0 %v3096
      %3655 = vmatpush1.bf16.msra.mxu0 %v3095
      %3656 = vmatprep.subr.bf16.mxu0 %v3108
      %3657 = vmatpush1.bf16.msra.mxu0 %v3107
      %3658 = vmatprep.subr.bf16.mxu0 %v3120
      %3659 = vmatpush1.bf16.msra.mxu0 %v3119
      %3660 = vmatprep.mubr.bf16.mxu0 %v1118
      %3661 = vmatmul.mubr.bf16.gmra.mrb[0].mxu0 %v1117
      %v3662 = vpop.f32.mrb[0].mxu0
      %v3663 = vadd.f32 %v3550, %v3662
      %v3664 = vpop.f32.mrb[0].mxu0
      %v3665 = vadd.f32 %v3552, %v3664
      %v3666 = vpop.f32.mrb[0].mxu0
      %v3667 = vadd.f32 %v3554, %v3666
      %v3668 = vpop.f32.mrb[0].mxu0
      %v3669 = vadd.f32 %v3556, %v3668
      %3670 = vmatprep.mubr.bf16.mxu0 %v1122
      %3671 = vmatmul.mubr.bf16.gmra.mrb[0].mxu0 %v1121
      %v3672 = vpop.f32.mrb[0].mxu0
      %v3673 = vadd.f32 %v3560, %v3672
      %v3674 = vpop.f32.mrb[0].mxu0
      %v3675 = vadd.f32 %v3562, %v3674
      %v3676 = vpop.f32.mrb[0].mxu0
      %v3677 = vadd.f32 %v3564, %v3676
      %v3678 = vpop.f32.mrb[0].mxu0
      %v3679 = vadd.f32 %v3566, %v3678
      %3680 = vmatprep.mubr.bf16.mxu0 %v1126
      %3681 = vmatmul.mubr.bf16.gmra.mrb[0].mxu0 %v1125
      %v3682 = vpop.f32.mrb[0].mxu0
      %v3683 = vadd.f32 %v3570, %v3682
      %v3684 = vpop.f32.mrb[0].mxu0
      %v3685 = vadd.f32 %v3572, %v3684
      %v3686 = vpop.f32.mrb[0].mxu0
      %v3687 = vadd.f32 %v3574, %v3686
      %v3688 = vpop.f32.mrb[0].mxu0
      %v3689 = vadd.f32 %v3576, %v3688
      %3690 = vmatprep.mubr.bf16.mxu0 %v1130
      %3691 = vmatmul.mubr.bf16.gmra.mrb[0].mxu0 %v1129
      %v3692 = vpop.f32.mrb[0].mxu0
      %v3693 = vadd.f32 %v3580, %v3692
      %v3694 = vpop.f32.mrb[0].mxu0
      %v3695 = vadd.f32 %v3582, %v3694
      %v3696 = vpop.f32.mrb[0].mxu0
      %v3697 = vadd.f32 %v3584, %v3696
      %v3698 = vpop.f32.mrb[0].mxu0
      %v3699 = vadd.f32 %v3586, %v3698
      %3700 = vmatprep.mubr.bf16.mxu0 %v1134
      %3701 = vmatmul.mubr.bf16.gmra.mrb[0].mxu0 %v1133
      %v3702 = vpop.f32.mrb[0].mxu0
      %v3703 = vadd.f32 %v3590, %v3702
      %v3704 = vpop.f32.mrb[0].mxu0
      %v3705 = vadd.f32 %v3592, %v3704
      %v3706 = vpop.f32.mrb[0].mxu0
      %v3707 = vadd.f32 %v3594, %v3706
      %v3708 = vpop.f32.mrb[0].mxu0
      %v3709 = vadd.f32 %v3596, %v3708
      %3710 = vmatprep.mubr.bf16.mxu0 %v1138
      %3711 = vmatmul.mubr.bf16.gmra.mrb[0].mxu0 %v1137
      %v3712 = vpop.f32.mrb[0].mxu0
      %v3713 = vadd.f32 %v3600, %v3712
      %v3714 = vpop.f32.mrb[0].mxu0
      %v3715 = vadd.f32 %v3602, %v3714
      %v3716 = vpop.f32.mrb[0].mxu0
      %v3717 = vadd.f32 %v3604, %v3716
      %v3718 = vpop.f32.mrb[0].mxu0
      %v3719 = vadd.f32 %v3606, %v3718
      %3720 = vmatprep.mubr.bf16.mxu0 %v1142
      %3721 = vmatmul.mubr.bf16.gmra.mrb[0].mxu0 %v1141
      %v3722 = vpop.f32.mrb[0].mxu0
      %v3723 = vadd.f32 %v3610, %v3722
      %v3724 = vpop.f32.mrb[0].mxu0
      %v3725 = vadd.f32 %v3612, %v3724
      %v3726 = vpop.f32.mrb[0].mxu0
      %v3727 = vadd.f32 %v3614, %v3726
      %v3728 = vpop.f32.mrb[0].mxu0
      %v3729 = vadd.f32 %v3616, %v3728
      %3730 = vmatprep.mubr.bf16.mxu0 %v1146
      %3731 = vmatmul.mubr.bf16.gmra.mrb[0].mxu0 %v1145
      %v3732 = vpop.f32.mrb[0].mxu0
      %v3733 = vadd.f32 %v3620, %v3732
      %v3734 = vpop.f32.mrb[0].mxu0
      %v3735 = vadd.f32 %v3622, %v3734
      %v3736 = vpop.f32.mrb[0].mxu0
      %v3737 = vadd.f32 %v3624, %v3736
      %v3738 = vpop.f32.mrb[0].mxu0
      %v3739 = vadd.f32 %v3626, %v3738
      %3740 = vdwg.mxu0
      %3741 = vmatprep.subr.bf16.mxu0 %v2750
      %3742 = vmatpush1.bf16.msra.mxu0 %v2749
      %3743 = vmatprep.subr.bf16.mxu0 %v2762
      %3744 = vmatpush1.bf16.msra.mxu0 %v2761
      %3745 = vmatprep.subr.bf16.mxu0 %v2774
      %3746 = vmatpush1.bf16.msra.mxu0 %v2773
      %3747 = vmatprep.subr.bf16.mxu0 %v2786
      %3748 = vmatpush1.bf16.msra.mxu0 %v2785
      %3749 = vmatprep.subr.bf16.mxu0 %v2798
      %3750 = vmatpush1.bf16.msra.mxu0 %v2797
      %3751 = vmatprep.subr.bf16.mxu0 %v2810
      %3752 = vmatpush1.bf16.msra.mxu0 %v2809
      %3753 = vmatprep.subr.bf16.mxu0 %v2822
      %3754 = vmatpush1.bf16.msra.mxu0 %v2821
      %3755 = vmatprep.subr.bf16.mxu0 %v2834
      %3756 = vmatpush1.bf16.msra.mxu0 %v2833
      %3757 = vmatprep.subr.bf16.mxu0 %v2846
      %3758 = vmatpush1.bf16.msra.mxu0 %v2845
      %3759 = vmatprep.subr.bf16.mxu0 %v2858
      %3760 = vmatpush1.bf16.msra.mxu0 %v2857
      %3761 = vmatprep.subr.bf16.mxu0 %v2870
      %3762 = vmatpush1.bf16.msra.mxu0 %v2869
      %3763 = vmatprep.subr.bf16.mxu0 %v2882
      %3764 = vmatpush1.bf16.msra.mxu0 %v2881
      %3765 = vmatprep.subr.bf16.mxu0 %v2894
      %3766 = vmatpush1.bf16.msra.mxu0 %v2893
      %3767 = vmatprep.subr.bf16.mxu0 %v2906
      %3768 = vmatpush1.bf16.msra.mxu0 %v2905
      %3769 = vmatprep.subr.bf16.mxu0 %v2918
      %3770 = vmatpush1.bf16.msra.mxu0 %v2917
      %3771 = vmatprep.subr.bf16.mxu0 %v2930
      %3772 = vmatpush1.bf16.msra.mxu0 %v2929
      %3773 = vmatprep.mubr.bf16.mxu0 %v1116
      %3774 = vmatmul.mubr.bf16.gmra.mrb[0].mxu0 %v1115
      %v3775 = vpop.f32.mrb[0].mxu0
      %v3776 = vadd.f32 %v1546, %v3775
      %v3777 = vpop.f32.mrb[0].mxu0
      %v3778 = vadd.f32 %v1550, %v3777
      %v3779 = vpop.f32.mrb[0].mxu0
      %v3780 = vadd.f32 %v1546, %v3779
      %v3781 = vpop.f32.mrb[0].mxu0
      %v3782 = vadd.f32 %v1550, %v3781
      %3783 = vmatprep.mubr.bf16.mxu0 %v1120
      %3784 = vmatmul.mubr.bf16.gmra.mrb[0].mxu0 %v1119
      %v3785 = vpop.f32.mrb[0].mxu0
      %v3786 = vadd.f32 %v1546, %v3785
      %v3787 = vpop.f32.mrb[0].mxu0
      %v3788 = vadd.f32 %v1550, %v3787
      %v3789 = vpop.f32.mrb[0].mxu0
      %v3790 = vadd.f32 %v1546, %v3789
      %v3791 = vpop.f32.mrb[0].mxu0
      %v3792 = vadd.f32 %v1550, %v3791
      %3793 = vmatprep.mubr.bf16.mxu0 %v1124
      %3794 = vmatmul.mubr.bf16.gmra.mrb[0].mxu0 %v1123
      %v3795 = vpop.f32.mrb[0].mxu0
      %v3796 = vadd.f32 %v1546, %v3795
      %v3797 = vpop.f32.mrb[0].mxu0
      %v3798 = vadd.f32 %v1550, %v3797
      %v3799 = vpop.f32.mrb[0].mxu0
      %v3800 = vadd.f32 %v1546, %v3799
      %v3801 = vpop.f32.mrb[0].mxu0
      %v3802 = vadd.f32 %v1550, %v3801
      %3803 = vmatprep.mubr.bf16.mxu0 %v1128
      %3804 = vmatmul.mubr.bf16.gmra.mrb[0].mxu0 %v1127
      %v3805 = vpop.f32.mrb[0].mxu0
      %v3806 = vadd.f32 %v1546, %v3805
      %v3807 = vpop.f32.mrb[0].mxu0
      %v3808 = vadd.f32 %v1550, %v3807
      %v3809 = vpop.f32.mrb[0].mxu0
      %v3810 = vadd.f32 %v1546, %v3809
      %v3811 = vpop.f32.mrb[0].mxu0
      %v3812 = vadd.f32 %v1550, %v3811
      %3813 = vmatprep.mubr.bf16.mxu0 %v1132
      %3814 = vmatmul.mubr.bf16.gmra.mrb[0].mxu0 %v1131
      %v3815 = vpop.f32.mrb[0].mxu0
      %v3816 = vadd.f32 %v1546, %v3815
      %v3817 = vpop.f32.mrb[0].mxu0
      %v3818 = vadd.f32 %v1550, %v3817
      %v3819 = vpop.f32.mrb[0].mxu0
      %v3820 = vadd.f32 %v1546, %v3819
      %v3821 = vpop.f32.mrb[0].mxu0
      %v3822 = vadd.f32 %v1550, %v3821
      %3823 = vmatprep.mubr.bf16.mxu0 %v1136
      %3824 = vmatmul.mubr.bf16.gmra.mrb[0].mxu0 %v1135
      %v3825 = vpop.f32.mrb[0].mxu0
      %v3826 = vadd.f32 %v1546, %v3825
      %v3827 = vpop.f32.mrb[0].mxu0
      %v3828 = vadd.f32 %v1550, %v3827
      %v3829 = vpop.f32.mrb[0].mxu0
      %v3830 = vadd.f32 %v1546, %v3829
      %v3831 = vpop.f32.mrb[0].mxu0
      %v3832 = vadd.f32 %v1550, %v3831
      %3833 = vmatprep.mubr.bf16.mxu0 %v1140
      %3834 = vmatmul.mubr.bf16.gmra.mrb[0].mxu0 %v1139
      %v3835 = vpop.f32.mrb[0].mxu0
      %v3836 = vadd.f32 %v1546, %v3835
      %v3837 = vpop.f32.mrb[0].mxu0
      %v3838 = vadd.f32 %v1550, %v3837
      %v3839 = vpop.f32.mrb[0].mxu0
      %v3840 = vadd.f32 %v1546, %v3839
      %v3841 = vpop.f32.mrb[0].mxu0
      %v3842 = vadd.f32 %v1550, %v3841
      %3843 = vmatprep.mubr.bf16.mxu0 %v1144
      %3844 = vmatmul.mubr.bf16.gmra.mrb[0].mxu0 %v1143
      %v3845 = vpop.f32.mrb[0].mxu0
      %v3846 = vadd.f32 %v1546, %v3845
      %v3847 = vpop.f32.mrb[0].mxu0
      %v3848 = vadd.f32 %v1550, %v3847
      %v3849 = vpop.f32.mrb[0].mxu0
      %v3850 = vadd.f32 %v1546, %v3849
      %v3851 = vpop.f32.mrb[0].mxu0
      %v3852 = vadd.f32 %v1550, %v3851
      %3853 = vdwg.mxu0
      %3854 = vmatprep.subr.bf16.mxu0 %v2942
      %3855 = vmatpush1.bf16.msra.mxu0 %v2941
      %3856 = vmatprep.subr.bf16.mxu0 %v2954
      %3857 = vmatpush1.bf16.msra.mxu0 %v2953
      %3858 = vmatprep.subr.bf16.mxu0 %v2966
      %3859 = vmatpush1.bf16.msra.mxu0 %v2965
      %3860 = vmatprep.subr.bf16.mxu0 %v2978
      %3861 = vmatpush1.bf16.msra.mxu0 %v2977
      %3862 = vmatprep.subr.bf16.mxu0 %v2990
      %3863 = vmatpush1.bf16.msra.mxu0 %v2989
      %3864 = vmatprep.subr.bf16.mxu0 %v3002
      %3865 = vmatpush1.bf16.msra.mxu0 %v3001
      %3866 = vmatprep.subr.bf16.mxu0 %v3014
      %3867 = vmatpush1.bf16.msra.mxu0 %v3013
      %3868 = vmatprep.subr.bf16.mxu0 %v3026
      %3869 = vmatpush1.bf16.msra.mxu0 %v3025
      %3870 = vmatprep.subr.bf16.mxu0 %v3038
      %3871 = vmatpush1.bf16.msra.mxu0 %v3037
      %3872 = vmatprep.subr.bf16.mxu0 %v3050
      %3873 = vmatpush1.bf16.msra.mxu0 %v3049
      %3874 = vmatprep.subr.bf16.mxu0 %v3062
      %3875 = vmatpush1.bf16.msra.mxu0 %v3061
      %3876 = vmatprep.subr.bf16.mxu0 %v3074
      %3877 = vmatpush1.bf16.msra.mxu0 %v3073
      %3878 = vmatprep.subr.bf16.mxu0 %v3086
      %3879 = vmatpush1.bf16.msra.mxu0 %v3085
      %3880 = vmatprep.subr.bf16.mxu0 %v3098
      %3881 = vmatpush1.bf16.msra.mxu0 %v3097
      %3882 = vmatprep.subr.bf16.mxu0 %v3110
      %3883 = vmatpush1.bf16.msra.mxu0 %v3109
      %3884 = vmatprep.subr.bf16.mxu0 %v3122
      %3885 = vmatpush1.bf16.msra.mxu0 %v3121
      %3886 = vmatprep.mubr.bf16.mxu0 %v1118
      %3887 = vmatmul.mubr.bf16.gmra.mrb[0].mxu0 %v1117
      %v3888 = vpop.f32.mrb[0].mxu0
      %v3889 = vadd.f32 %v3776, %v3888
      %v3890 = vpop.f32.mrb[0].mxu0
      %v3891 = vadd.f32 %v3778, %v3890
      %v3892 = vpop.f32.mrb[0].mxu0
      %v3893 = vadd.f32 %v3780, %v3892
      %v3894 = vpop.f32.mrb[0].mxu0
      %v3895 = vadd.f32 %v3782, %v3894
      %3896 = vmatprep.mubr.bf16.mxu0 %v1122
      %3897 = vmatmul.mubr.bf16.gmra.mrb[0].mxu0 %v1121
      %v3898 = vpop.f32.mrb[0].mxu0
      %v3899 = vadd.f32 %v3786, %v3898
      %v3900 = vpop.f32.mrb[0].mxu0
      %v3901 = vadd.f32 %v3788, %v3900
      %v3902 = vpop.f32.mrb[0].mxu0
      %v3903 = vadd.f32 %v3790, %v3902
      %v3904 = vpop.f32.mrb[0].mxu0
      %v3905 = vadd.f32 %v3792, %v3904
      %3906 = vmatprep.mubr.bf16.mxu0 %v1126
      %3907 = vmatmul.mubr.bf16.gmra.mrb[0].mxu0 %v1125
      %v3908 = vpop.f32.mrb[0].mxu0
      %v3909 = vadd.f32 %v3796, %v3908
      %v3910 = vpop.f32.mrb[0].mxu0
      %v3911 = vadd.f32 %v3798, %v3910
      %v3912 = vpop.f32.mrb[0].mxu0
      %v3913 = vadd.f32 %v3800, %v3912
      %v3914 = vpop.f32.mrb[0].mxu0
      %v3915 = vadd.f32 %v3802, %v3914
      %3916 = vmatprep.mubr.bf16.mxu0 %v1130
      %3917 = vmatmul.mubr.bf16.gmra.mrb[0].mxu0 %v1129
      %v3918 = vpop.f32.mrb[0].mxu0
      %v3919 = vadd.f32 %v3806, %v3918
      %v3920 = vpop.f32.mrb[0].mxu0
      %v3921 = vadd.f32 %v3808, %v3920
      %v3922 = vpop.f32.mrb[0].mxu0
      %v3923 = vadd.f32 %v3810, %v3922
      %v3924 = vpop.f32.mrb[0].mxu0
      %v3925 = vadd.f32 %v3812, %v3924
      %3926 = vmatprep.mubr.bf16.mxu0 %v1134
      %3927 = vmatmul.mubr.bf16.gmra.mrb[0].mxu0 %v1133
      %v3928 = vpop.f32.mrb[0].mxu0
      %v3929 = vadd.f32 %v3816, %v3928
      %v3930 = vpop.f32.mrb[0].mxu0
      %v3931 = vadd.f32 %v3818, %v3930
      %v3932 = vpop.f32.mrb[0].mxu0
      %v3933 = vadd.f32 %v3820, %v3932
      %v3934 = vpop.f32.mrb[0].mxu0
      %v3935 = vadd.f32 %v3822, %v3934
      %3936 = vmatprep.mubr.bf16.mxu0 %v1138
      %3937 = vmatmul.mubr.bf16.gmra.mrb[0].mxu0 %v1137
      %v3938 = vpop.f32.mrb[0].mxu0
      %v3939 = vadd.f32 %v3826, %v3938
      %v3940 = vpop.f32.mrb[0].mxu0
      %v3941 = vadd.f32 %v3828, %v3940
      %v3942 = vpop.f32.mrb[0].mxu0
      %v3943 = vadd.f32 %v3830, %v3942
      %v3944 = vpop.f32.mrb[0].mxu0
      %v3945 = vadd.f32 %v3832, %v3944
      %3946 = vmatprep.mubr.bf16.mxu0 %v1142
      %3947 = vmatmul.mubr.bf16.gmra.mrb[0].mxu0 %v1141
      %v3948 = vpop.f32.mrb[0].mxu0
      %v3949 = vadd.f32 %v3836, %v3948
      %v3950 = vpop.f32.mrb[0].mxu0
      %v3951 = vadd.f32 %v3838, %v3950
      %v3952 = vpop.f32.mrb[0].mxu0
      %v3953 = vadd.f32 %v3840, %v3952
      %v3954 = vpop.f32.mrb[0].mxu0
      %v3955 = vadd.f32 %v3842, %v3954
      %3956 = vmatprep.mubr.bf16.mxu0 %v1146
      %3957 = vmatmul.mubr.bf16.gmra.mrb[0].mxu0 %v1145
      %v3958 = vpop.f32.mrb[0].mxu0
      %v3959 = vadd.f32 %v3846, %v3958
      %v3960 = vpop.f32.mrb[0].mxu0
      %v3961 = vadd.f32 %v3848, %v3960
      %v3962 = vpop.f32.mrb[0].mxu0
      %v3963 = vadd.f32 %v3850, %v3962
      %v3964 = vpop.f32.mrb[0].mxu0
      %v3965 = vadd.f32 %v3852, %v3964
      %3966 = vdwg.mxu0
      %3967 = vmatprep.subr.bf16.mxu0 %v2752
      %3968 = vmatpush1.bf16.msra.mxu0 %v2751
      %3969 = vmatprep.subr.bf16.mxu0 %v2764
      %3970 = vmatpush1.bf16.msra.mxu0 %v2763
      %3971 = vmatprep.subr.bf16.mxu0 %v2776
      %3972 = vmatpush1.bf16.msra.mxu0 %v2775
      %3973 = vmatprep.subr.bf16.mxu0 %v2788
      %3974 = vmatpush1.bf16.msra.mxu0 %v2787
      %3975 = vmatprep.subr.bf16.mxu0 %v2800
      %3976 = vmatpush1.bf16.msra.mxu0 %v2799
      %3977 = vmatprep.subr.bf16.mxu0 %v2812
      %3978 = vmatpush1.bf16.msra.mxu0 %v2811
      %3979 = vmatprep.subr.bf16.mxu0 %v2824
      %3980 = vmatpush1.bf16.msra.mxu0 %v2823
      %3981 = vmatprep.subr.bf16.mxu0 %v2836
      %3982 = vmatpush1.bf16.msra.mxu0 %v2835
      %3983 = vmatprep.subr.bf16.mxu0 %v2848
      %3984 = vmatpush1.bf16.msra.mxu0 %v2847
      %3985 = vmatprep.subr.bf16.mxu0 %v2860
      %3986 = vmatpush1.bf16.msra.mxu0 %v2859
      %3987 = vmatprep.subr.bf16.mxu0 %v2872
      %3988 = vmatpush1.bf16.msra.mxu0 %v2871
      %3989 = vmatprep.subr.bf16.mxu0 %v2884
      %3990 = vmatpush1.bf16.msra.mxu0 %v2883
      %3991 = vmatprep.subr.bf16.mxu0 %v2896
      %3992 = vmatpush1.bf16.msra.mxu0 %v2895
      %3993 = vmatprep.subr.bf16.mxu0 %v2908
      %3994 = vmatpush1.bf16.msra.mxu0 %v2907
      %3995 = vmatprep.subr.bf16.mxu0 %v2920
      %3996 = vmatpush1.bf16.msra.mxu0 %v2919
      %3997 = vmatprep.subr.bf16.mxu0 %v2932
      %3998 = vmatpush1.bf16.msra.mxu0 %v2931
      %3999 = vmatprep.mubr.bf16.mxu0 %v1116
      %4000 = vmatmul.mubr.bf16.gmra.mrb[0].mxu0 %v1115
      %v4001 = vpop.f32.mrb[0].mxu0
      %v4002 = vadd.f32 %v1554, %v4001
      %v4003 = vpop.f32.mrb[0].mxu0
      %v4004 = vadd.f32 %v1558, %v4003
      %v4005 = vpop.f32.mrb[0].mxu0
      %v4006 = vadd.f32 %v1554, %v4005
      %v4007 = vpop.f32.mrb[0].mxu0
      %v4008 = vadd.f32 %v1558, %v4007
      %4009 = vmatprep.mubr.bf16.mxu0 %v1120
      %4010 = vmatmul.mubr.bf16.gmra.mrb[0].mxu0 %v1119
      %v4011 = vpop.f32.mrb[0].mxu0
      %v4012 = vadd.f32 %v1554, %v4011
      %v4013 = vpop.f32.mrb[0].mxu0
      %v4014 = vadd.f32 %v1558, %v4013
      %v4015 = vpop.f32.mrb[0].mxu0
      %v4016 = vadd.f32 %v1554, %v4015
      %v4017 = vpop.f32.mrb[0].mxu0
      %v4018 = vadd.f32 %v1558, %v4017
      %4019 = vmatprep.mubr.bf16.mxu0 %v1124
      %4020 = vmatmul.mubr.bf16.gmra.mrb[0].mxu0 %v1123
      %v4021 = vpop.f32.mrb[0].mxu0
      %v4022 = vadd.f32 %v1554, %v4021
      %v4023 = vpop.f32.mrb[0].mxu0
      %v4024 = vadd.f32 %v1558, %v4023
      %v4025 = vpop.f32.mrb[0].mxu0
      %v4026 = vadd.f32 %v1554, %v4025
      %v4027 = vpop.f32.mrb[0].mxu0
      %v4028 = vadd.f32 %v1558, %v4027
      %4029 = vmatprep.mubr.bf16.mxu0 %v1128
      %4030 = vmatmul.mubr.bf16.gmra.mrb[0].mxu0 %v1127
      %v4031 = vpop.f32.mrb[0].mxu0
      %v4032 = vadd.f32 %v1554, %v4031
      %v4033 = vpop.f32.mrb[0].mxu0
      %v4034 = vadd.f32 %v1558, %v4033
      %v4035 = vpop.f32.mrb[0].mxu0
      %v4036 = vadd.f32 %v1554, %v4035
      %v4037 = vpop.f32.mrb[0].mxu0
      %v4038 = vadd.f32 %v1558, %v4037
      %4039 = vmatprep.mubr.bf16.mxu0 %v1132
      %4040 = vmatmul.mubr.bf16.gmra.mrb[0].mxu0 %v1131
      %v4041 = vpop.f32.mrb[0].mxu0
      %v4042 = vadd.f32 %v1554, %v4041
      %v4043 = vpop.f32.mrb[0].mxu0
      %v4044 = vadd.f32 %v1558, %v4043
      %v4045 = vpop.f32.mrb[0].mxu0
      %v4046 = vadd.f32 %v1554, %v4045
      %v4047 = vpop.f32.mrb[0].mxu0
      %v4048 = vadd.f32 %v1558, %v4047
      %4049 = vmatprep.mubr.bf16.mxu0 %v1136
      %4050 = vmatmul.mubr.bf16.gmra.mrb[0].mxu0 %v1135
      %v4051 = vpop.f32.mrb[0].mxu0
      %v4052 = vadd.f32 %v1554, %v4051
      %v4053 = vpop.f32.mrb[0].mxu0
      %v4054 = vadd.f32 %v1558, %v4053
      %v4055 = vpop.f32.mrb[0].mxu0
      %v4056 = vadd.f32 %v1554, %v4055
      %v4057 = vpop.f32.mrb[0].mxu0
      %v4058 = vadd.f32 %v1558, %v4057
      %4059 = vmatprep.mubr.bf16.mxu0 %v1140
      %4060 = vmatmul.mubr.bf16.gmra.mrb[0].mxu0 %v1139
      %v4061 = vpop.f32.mrb[0].mxu0
      %v4062 = vadd.f32 %v1554, %v4061
      %v4063 = vpop.f32.mrb[0].mxu0
      %v4064 = vadd.f32 %v1558, %v4063
      %v4065 = vpop.f32.mrb[0].mxu0
      %v4066 = vadd.f32 %v1554, %v4065
      %v4067 = vpop.f32.mrb[0].mxu0
      %v4068 = vadd.f32 %v1558, %v4067
      %4069 = vmatprep.mubr.bf16.mxu0 %v1144
      %4070 = vmatmul.mubr.bf16.gmra.mrb[0].mxu0 %v1143
      %v4071 = vpop.f32.mrb[0].mxu0
      %v4072 = vadd.f32 %v1554, %v4071
      %v4073 = vpop.f32.mrb[0].mxu0
      %v4074 = vadd.f32 %v1558, %v4073
      %v4075 = vpop.f32.mrb[0].mxu0
      %v4076 = vadd.f32 %v1554, %v4075
      %v4077 = vpop.f32.mrb[0].mxu0
      %v4078 = vadd.f32 %v1558, %v4077
      %4079 = vdwg.mxu0
      %4080 = vmatprep.subr.bf16.mxu0 %v2944
      %4081 = vmatpush1.bf16.msra.mxu0 %v2943
      %4082 = vmatprep.subr.bf16.mxu0 %v2956
      %4083 = vmatpush1.bf16.msra.mxu0 %v2955
      %4084 = vmatprep.subr.bf16.mxu0 %v2968
      %4085 = vmatpush1.bf16.msra.mxu0 %v2967
      %4086 = vmatprep.subr.bf16.mxu0 %v2980
      %4087 = vmatpush1.bf16.msra.mxu0 %v2979
      %4088 = vmatprep.subr.bf16.mxu0 %v2992
      %4089 = vmatpush1.bf16.msra.mxu0 %v2991
      %4090 = vmatprep.subr.bf16.mxu0 %v3004
      %4091 = vmatpush1.bf16.msra.mxu0 %v3003
      %4092 = vmatprep.subr.bf16.mxu0 %v3016
      %4093 = vmatpush1.bf16.msra.mxu0 %v3015
      %4094 = vmatprep.subr.bf16.mxu0 %v3028
      %4095 = vmatpush1.bf16.msra.mxu0 %v3027
      %4096 = vmatprep.subr.bf16.mxu0 %v3040
      %4097 = vmatpush1.bf16.msra.mxu0 %v3039
      %4098 = vmatprep.subr.bf16.mxu0 %v3052
      %4099 = vmatpush1.bf16.msra.mxu0 %v3051
      %4100 = vmatprep.subr.bf16.mxu0 %v3064
      %4101 = vmatpush1.bf16.msra.mxu0 %v3063
      %4102 = vmatprep.subr.bf16.mxu0 %v3076
      %4103 = vmatpush1.bf16.msra.mxu0 %v3075
      %4104 = vmatprep.subr.bf16.mxu0 %v3088
      %4105 = vmatpush1.bf16.msra.mxu0 %v3087
      %4106 = vmatprep.subr.bf16.mxu0 %v3100
      %4107 = vmatpush1.bf16.msra.mxu0 %v3099
      %4108 = vmatprep.subr.bf16.mxu0 %v3112
      %4109 = vmatpush1.bf16.msra.mxu0 %v3111
      %4110 = vmatprep.subr.bf16.mxu0 %v3124
      %4111 = vmatpush1.bf16.msra.mxu0 %v3123
      %4112 = vmatprep.mubr.bf16.mxu0 %v1118
      %4113 = vmatmul.mubr.bf16.gmra.mrb[0].mxu0 %v1117
      %v4114 = vpop.f32.mrb[0].mxu0
      %v4115 = vadd.f32 %v4002, %v4114
      %v4116 = vpop.f32.mrb[0].mxu0
      %v4117 = vadd.f32 %v4004, %v4116
      %v4118 = vpop.f32.mrb[0].mxu0
      %v4119 = vadd.f32 %v4006, %v4118
      %v4120 = vpop.f32.mrb[0].mxu0
      %v4121 = vadd.f32 %v4008, %v4120
      %4122 = vmatprep.mubr.bf16.mxu0 %v1122
      %4123 = vmatmul.mubr.bf16.gmra.mrb[0].mxu0 %v1121
      %v4124 = vpop.f32.mrb[0].mxu0
      %v4125 = vadd.f32 %v4012, %v4124
      %v4126 = vpop.f32.mrb[0].mxu0
      %v4127 = vadd.f32 %v4014, %v4126
      %v4128 = vpop.f32.mrb[0].mxu0
      %v4129 = vadd.f32 %v4016, %v4128
      %v4130 = vpop.f32.mrb[0].mxu0
      %v4131 = vadd.f32 %v4018, %v4130
      %4132 = vmatprep.mubr.bf16.mxu0 %v1126
      %4133 = vmatmul.mubr.bf16.gmra.mrb[0].mxu0 %v1125
      %v4134 = vpop.f32.mrb[0].mxu0
      %v4135 = vadd.f32 %v4022, %v4134
      %v4136 = vpop.f32.mrb[0].mxu0
      %v4137 = vadd.f32 %v4024, %v4136
      %v4138 = vpop.f32.mrb[0].mxu0
      %v4139 = vadd.f32 %v4026, %v4138
      %v4140 = vpop.f32.mrb[0].mxu0
      %v4141 = vadd.f32 %v4028, %v4140
      %4142 = vmatprep.mubr.bf16.mxu0 %v1130
      %4143 = vmatmul.mubr.bf16.gmra.mrb[0].mxu0 %v1129
      %v4144 = vpop.f32.mrb[0].mxu0
      %v4145 = vadd.f32 %v4032, %v4144
      %v4146 = vpop.f32.mrb[0].mxu0
      %v4147 = vadd.f32 %v4034, %v4146
      %v4148 = vpop.f32.mrb[0].mxu0
      %v4149 = vadd.f32 %v4036, %v4148
      %v4150 = vpop.f32.mrb[0].mxu0
      %v4151 = vadd.f32 %v4038, %v4150
      %4152 = vmatprep.mubr.bf16.mxu0 %v1134
      %4153 = vmatmul.mubr.bf16.gmra.mrb[0].mxu0 %v1133
      %v4154 = vpop.f32.mrb[0].mxu0
      %v4155 = vadd.f32 %v4042, %v4154
      %v4156 = vpop.f32.mrb[0].mxu0
      %v4157 = vadd.f32 %v4044, %v4156
      %v4158 = vpop.f32.mrb[0].mxu0
      %v4159 = vadd.f32 %v4046, %v4158
      %v4160 = vpop.f32.mrb[0].mxu0
      %v4161 = vadd.f32 %v4048, %v4160
      %4162 = vmatprep.mubr.bf16.mxu0 %v1138
      %4163 = vmatmul.mubr.bf16.gmra.mrb[0].mxu0 %v1137
      %v4164 = vpop.f32.mrb[0].mxu0
      %v4165 = vadd.f32 %v4052, %v4164
      %v4166 = vpop.f32.mrb[0].mxu0
      %v4167 = vadd.f32 %v4054, %v4166
      %v4168 = vpop.f32.mrb[0].mxu0
      %v4169 = vadd.f32 %v4056, %v4168
      %v4170 = vpop.f32.mrb[0].mxu0
      %v4171 = vadd.f32 %v4058, %v4170
      %4172 = vmatprep.mubr.bf16.mxu0 %v1142
      %4173 = vmatmul.mubr.bf16.gmra.mrb[0].mxu0 %v1141
      %v4174 = vpop.f32.mrb[0].mxu0
      %v4175 = vadd.f32 %v4062, %v4174
      %v4176 = vpop.f32.mrb[0].mxu0
      %v4177 = vadd.f32 %v4064, %v4176
      %v4178 = vpop.f32.mrb[0].mxu0
      %v4179 = vadd.f32 %v4066, %v4178
      %v4180 = vpop.f32.mrb[0].mxu0
      %v4181 = vadd.f32 %v4068, %v4180
      %4182 = vmatprep.mubr.bf16.mxu0 %v1146
      %4183 = vmatmul.mubr.bf16.gmra.mrb[0].mxu0 %v1145
      %v4184 = vpop.f32.mrb[0].mxu0
      %v4185 = vadd.f32 %v4072, %v4184
      %v4186 = vpop.f32.mrb[0].mxu0
      %v4187 = vadd.f32 %v4074, %v4186
      %v4188 = vpop.f32.mrb[0].mxu0
      %v4189 = vadd.f32 %v4076, %v4188
      %v4190 = vpop.f32.mrb[0].mxu0
      %v4191 = vadd.f32 %v4078, %v4190
      %4192 = vdwg.mxu0
      %4193 = vmatprep.subr.bf16.mxu0 %v2754
      %4194 = vmatpush1.bf16.msra.mxu0 %v2753
      %4195 = vmatprep.subr.bf16.mxu0 %v2766
      %4196 = vmatpush1.bf16.msra.mxu0 %v2765
      %4197 = vmatprep.subr.bf16.mxu0 %v2778
      %4198 = vmatpush1.bf16.msra.mxu0 %v2777
      %4199 = vmatprep.subr.bf16.mxu0 %v2790
      %4200 = vmatpush1.bf16.msra.mxu0 %v2789
      %4201 = vmatprep.subr.bf16.mxu0 %v2802
      %4202 = vmatpush1.bf16.msra.mxu0 %v2801
      %4203 = vmatprep.subr.bf16.mxu0 %v2814
      %4204 = vmatpush1.bf16.msra.mxu0 %v2813
      %4205 = vmatprep.subr.bf16.mxu0 %v2826
      %4206 = vmatpush1.bf16.msra.mxu0 %v2825
      %4207 = vmatprep.subr.bf16.mxu0 %v2838
      %4208 = vmatpush1.bf16.msra.mxu0 %v2837
      %4209 = vmatprep.subr.bf16.mxu0 %v2850
      %4210 = vmatpush1.bf16.msra.mxu0 %v2849
      %4211 = vmatprep.subr.bf16.mxu0 %v2862
      %4212 = vmatpush1.bf16.msra.mxu0 %v2861
      %4213 = vmatprep.subr.bf16.mxu0 %v2874
      %4214 = vmatpush1.bf16.msra.mxu0 %v2873
      %4215 = vmatprep.subr.bf16.mxu0 %v2886
      %4216 = vmatpush1.bf16.msra.mxu0 %v2885
      %4217 = vmatprep.subr.bf16.mxu0 %v2898
      %4218 = vmatpush1.bf16.msra.mxu0 %v2897
      %4219 = vmatprep.subr.bf16.mxu0 %v2910
      %4220 = vmatpush1.bf16.msra.mxu0 %v2909
      %4221 = vmatprep.subr.bf16.mxu0 %v2922
      %4222 = vmatpush1.bf16.msra.mxu0 %v2921
      %4223 = vmatprep.subr.bf16.mxu0 %v2934
      %4224 = vmatpush1.bf16.msra.mxu0 %v2933
      %4225 = vmatprep.mubr.bf16.mxu0 %v1116
      %4226 = vmatmul.mubr.bf16.gmra.mrb[0].mxu0 %v1115
      %v4227 = vpop.f32.mrb[0].mxu0
      %v4228 = vadd.f32 %v1562, %v4227
      %v4229 = vpop.f32.mrb[0].mxu0
      %v4230 = vadd.f32 %v1566, %v4229
      %v4231 = vpop.f32.mrb[0].mxu0
      %v4232 = vadd.f32 %v1562, %v4231
      %v4233 = vpop.f32.mrb[0].mxu0
      %v4234 = vadd.f32 %v1566, %v4233
      %4235 = vmatprep.mubr.bf16.mxu0 %v1120
      %4236 = vmatmul.mubr.bf16.gmra.mrb[0].mxu0 %v1119
      %v4237 = vpop.f32.mrb[0].mxu0
      %v4238 = vadd.f32 %v1562, %v4237
      %v4239 = vpop.f32.mrb[0].mxu0
      %v4240 = vadd.f32 %v1566, %v4239
      %v4241 = vpop.f32.mrb[0].mxu0
      %v4242 = vadd.f32 %v1562, %v4241
      %v4243 = vpop.f32.mrb[0].mxu0
      %v4244 = vadd.f32 %v1566, %v4243
      %4245 = vmatprep.mubr.bf16.mxu0 %v1124
      %4246 = vmatmul.mubr.bf16.gmra.mrb[0].mxu0 %v1123
      %v4247 = vpop.f32.mrb[0].mxu0
      %v4248 = vadd.f32 %v1562, %v4247
      %v4249 = vpop.f32.mrb[0].mxu0
      %v4250 = vadd.f32 %v1566, %v4249
      %v4251 = vpop.f32.mrb[0].mxu0
      %v4252 = vadd.f32 %v1562, %v4251
      %v4253 = vpop.f32.mrb[0].mxu0
      %v4254 = vadd.f32 %v1566, %v4253
      %4255 = vmatprep.mubr.bf16.mxu0 %v1128
      %4256 = vmatmul.mubr.bf16.gmra.mrb[0].mxu0 %v1127
      %v4257 = vpop.f32.mrb[0].mxu0
      %v4258 = vadd.f32 %v1562, %v4257
      %v4259 = vpop.f32.mrb[0].mxu0
      %v4260 = vadd.f32 %v1566, %v4259
      %v4261 = vpop.f32.mrb[0].mxu0
      %v4262 = vadd.f32 %v1562, %v4261
      %v4263 = vpop.f32.mrb[0].mxu0
      %v4264 = vadd.f32 %v1566, %v4263
      %4265 = vmatprep.mubr.bf16.mxu0 %v1132
      %4266 = vmatmul.mubr.bf16.gmra.mrb[0].mxu0 %v1131
      %v4267 = vpop.f32.mrb[0].mxu0
      %v4268 = vadd.f32 %v1562, %v4267
      %v4269 = vpop.f32.mrb[0].mxu0
      %v4270 = vadd.f32 %v1566, %v4269
      %v4271 = vpop.f32.mrb[0].mxu0
      %v4272 = vadd.f32 %v1562, %v4271
      %v4273 = vpop.f32.mrb[0].mxu0
      %v4274 = vadd.f32 %v1566, %v4273
      %4275 = vmatprep.mubr.bf16.mxu0 %v1136
      %4276 = vmatmul.mubr.bf16.gmra.mrb[0].mxu0 %v1135
      %v4277 = vpop.f32.mrb[0].mxu0
      %v4278 = vadd.f32 %v1562, %v4277
      %v4279 = vpop.f32.mrb[0].mxu0
      %v4280 = vadd.f32 %v1566, %v4279
      %v4281 = vpop.f32.mrb[0].mxu0
      %v4282 = vadd.f32 %v1562, %v4281
      %v4283 = vpop.f32.mrb[0].mxu0
      %v4284 = vadd.f32 %v1566, %v4283
      %4285 = vmatprep.mubr.bf16.mxu0 %v1140
      %4286 = vmatmul.mubr.bf16.gmra.mrb[0].mxu0 %v1139
      %v4287 = vpop.f32.mrb[0].mxu0
      %v4288 = vadd.f32 %v1562, %v4287
      %v4289 = vpop.f32.mrb[0].mxu0
      %v4290 = vadd.f32 %v1566, %v4289
      %v4291 = vpop.f32.mrb[0].mxu0
      %v4292 = vadd.f32 %v1562, %v4291
      %v4293 = vpop.f32.mrb[0].mxu0
      %v4294 = vadd.f32 %v1566, %v4293
      %4295 = vmatprep.mubr.bf16.mxu0 %v1144
      %4296 = vmatmul.mubr.bf16.gmra.mrb[0].mxu0 %v1143
      %v4297 = vpop.f32.mrb[0].mxu0
      %v4298 = vadd.f32 %v1562, %v4297
      %v4299 = vpop.f32.mrb[0].mxu0
      %v4300 = vadd.f32 %v1566, %v4299
      %v4301 = vpop.f32.mrb[0].mxu0
      %v4302 = vadd.f32 %v1562, %v4301
      %v4303 = vpop.f32.mrb[0].mxu0
      %v4304 = vadd.f32 %v1566, %v4303
      %4305 = vdwg.mxu0
      %4306 = vmatprep.subr.bf16.mxu0 %v2946
      %4307 = vmatpush1.bf16.msra.mxu0 %v2945
      %4308 = vmatprep.subr.bf16.mxu0 %v2958
      %4309 = vmatpush1.bf16.msra.mxu0 %v2957
      %4310 = vmatprep.subr.bf16.mxu0 %v2970
      %4311 = vmatpush1.bf16.msra.mxu0 %v2969
      %4312 = vmatprep.subr.bf16.mxu0 %v2982
      %4313 = vmatpush1.bf16.msra.mxu0 %v2981
      %4314 = vmatprep.subr.bf16.mxu0 %v2994
      %4315 = vmatpush1.bf16.msra.mxu0 %v2993
      %4316 = vmatprep.subr.bf16.mxu0 %v3006
      %4317 = vmatpush1.bf16.msra.mxu0 %v3005
      %4318 = vmatprep.subr.bf16.mxu0 %v3018
      %4319 = vmatpush1.bf16.msra.mxu0 %v3017
      %4320 = vmatprep.subr.bf16.mxu0 %v3030
      %4321 = vmatpush1.bf16.msra.mxu0 %v3029
      %4322 = vmatprep.subr.bf16.mxu0 %v3042
      %4323 = vmatpush1.bf16.msra.mxu0 %v3041
      %4324 = vmatprep.subr.bf16.mxu0 %v3054
      %4325 = vmatpush1.bf16.msra.mxu0 %v3053
      %4326 = vmatprep.subr.bf16.mxu0 %v3066
      %4327 = vmatpush1.bf16.msra.mxu0 %v3065
      %4328 = vmatprep.subr.bf16.mxu0 %v3078
      %4329 = vmatpush1.bf16.msra.mxu0 %v3077
      %4330 = vmatprep.subr.bf16.mxu0 %v3090
      %4331 = vmatpush1.bf16.msra.mxu0 %v3089
      %4332 = vmatprep.subr.bf16.mxu0 %v3102
      %4333 = vmatpush1.bf16.msra.mxu0 %v3101
      %4334 = vmatprep.subr.bf16.mxu0 %v3114
      %4335 = vmatpush1.bf16.msra.mxu0 %v3113
      %4336 = vmatprep.subr.bf16.mxu0 %v3126
      %4337 = vmatpush1.bf16.msra.mxu0 %v3125
      %4338 = vmatprep.mubr.bf16.mxu0 %v1118
      %4339 = vmatmul.mubr.bf16.gmra.mrb[0].mxu0 %v1117
      %v4340 = vpop.f32.mrb[0].mxu0
      %v4341 = vadd.f32 %v4228, %v4340
      %v4342 = vpop.f32.mrb[0].mxu0
      %v4343 = vadd.f32 %v4230, %v4342
      %v4344 = vpop.f32.mrb[0].mxu0
      %v4345 = vadd.f32 %v4232, %v4344
      %v4346 = vpop.f32.mrb[0].mxu0
      %v4347 = vadd.f32 %v4234, %v4346
      %4348 = vmatprep.mubr.bf16.mxu0 %v1122
      %4349 = vmatmul.mubr.bf16.gmra.mrb[0].mxu0 %v1121
      %v4350 = vpop.f32.mrb[0].mxu0
      %v4351 = vadd.f32 %v4238, %v4350
      %v4352 = vpop.f32.mrb[0].mxu0
      %v4353 = vadd.f32 %v4240, %v4352
      %v4354 = vpop.f32.mrb[0].mxu0
      %v4355 = vadd.f32 %v4242, %v4354
      %v4356 = vpop.f32.mrb[0].mxu0
      %v4357 = vadd.f32 %v4244, %v4356
      %4358 = vmatprep.mubr.bf16.mxu0 %v1126
      %4359 = vmatmul.mubr.bf16.gmra.mrb[0].mxu0 %v1125
      %v4360 = vpop.f32.mrb[0].mxu0
      %v4361 = vadd.f32 %v4248, %v4360
      %v4362 = vpop.f32.mrb[0].mxu0
      %v4363 = vadd.f32 %v4250, %v4362
      %v4364 = vpop.f32.mrb[0].mxu0
      %v4365 = vadd.f32 %v4252, %v4364
      %v4366 = vpop.f32.mrb[0].mxu0
      %v4367 = vadd.f32 %v4254, %v4366
      %4368 = vmatprep.mubr.bf16.mxu0 %v1130
      %4369 = vmatmul.mubr.bf16.gmra.mrb[0].mxu0 %v1129
      %v4370 = vpop.f32.mrb[0].mxu0
      %v4371 = vadd.f32 %v4258, %v4370
      %v4372 = vpop.f32.mrb[0].mxu0
      %v4373 = vadd.f32 %v4260, %v4372
      %v4374 = vpop.f32.mrb[0].mxu0
      %v4375 = vadd.f32 %v4262, %v4374
      %v4376 = vpop.f32.mrb[0].mxu0
      %v4377 = vadd.f32 %v4264, %v4376
      %4378 = vmatprep.mubr.bf16.mxu0 %v1134
      %4379 = vmatmul.mubr.bf16.gmra.mrb[0].mxu0 %v1133
      %v4380 = vpop.f32.mrb[0].mxu0
      %v4381 = vadd.f32 %v4268, %v4380
      %v4382 = vpop.f32.mrb[0].mxu0
      %v4383 = vadd.f32 %v4270, %v4382
      %v4384 = vpop.f32.mrb[0].mxu0
      %v4385 = vadd.f32 %v4272, %v4384
      %v4386 = vpop.f32.mrb[0].mxu0
      %v4387 = vadd.f32 %v4274, %v4386
      %4388 = vmatprep.mubr.bf16.mxu0 %v1138
      %4389 = vmatmul.mubr.bf16.gmra.mrb[0].mxu0 %v1137
      %v4390 = vpop.f32.mrb[0].mxu0
      %v4391 = vadd.f32 %v4278, %v4390
      %v4392 = vpop.f32.mrb[0].mxu0
      %v4393 = vadd.f32 %v4280, %v4392
      %v4394 = vpop.f32.mrb[0].mxu0
      %v4395 = vadd.f32 %v4282, %v4394
      %v4396 = vpop.f32.mrb[0].mxu0
      %v4397 = vadd.f32 %v4284, %v4396
      %4398 = vmatprep.mubr.bf16.mxu0 %v1142
      %4399 = vmatmul.mubr.bf16.gmra.mrb[0].mxu0 %v1141
      %v4400 = vpop.f32.mrb[0].mxu0
      %v4401 = vadd.f32 %v4288, %v4400
      %v4402 = vpop.f32.mrb[0].mxu0
      %v4403 = vadd.f32 %v4290, %v4402
      %v4404 = vpop.f32.mrb[0].mxu0
      %v4405 = vadd.f32 %v4292, %v4404
      %v4406 = vpop.f32.mrb[0].mxu0
      %v4407 = vadd.f32 %v4294, %v4406
      %4408 = vmatprep.mubr.bf16.mxu0 %v1146
      %4409 = vmatmul.mubr.bf16.gmra.mrb[0].mxu0 %v1145
      %v4410 = vpop.f32.mrb[0].mxu0
      %v4411 = vadd.f32 %v4298, %v4410
      %v4412 = vpop.f32.mrb[0].mxu0
      %v4413 = vadd.f32 %v4300, %v4412
      %v4414 = vpop.f32.mrb[0].mxu0
      %v4415 = vadd.f32 %v4302, %v4414
      %v4416 = vpop.f32.mrb[0].mxu0
      %v4417 = vadd.f32 %v4304, %v4416
      %4418 = vdwg.mxu0
      %4419 = vmatprep.subr.bf16.mxu0 %v2756
      %4420 = vmatpush1.bf16.msra.mxu0 %v2755
      %4421 = vmatprep.subr.bf16.mxu0 %v2768
      %4422 = vmatpush1.bf16.msra.mxu0 %v2767
      %4423 = vmatprep.subr.bf16.mxu0 %v2780
      %4424 = vmatpush1.bf16.msra.mxu0 %v2779
      %4425 = vmatprep.subr.bf16.mxu0 %v2792
      %4426 = vmatpush1.bf16.msra.mxu0 %v2791
      %4427 = vmatprep.subr.bf16.mxu0 %v2804
      %4428 = vmatpush1.bf16.msra.mxu0 %v2803
      %4429 = vmatprep.subr.bf16.mxu0 %v2816
      %4430 = vmatpush1.bf16.msra.mxu0 %v2815
      %4431 = vmatprep.subr.bf16.mxu0 %v2828
      %4432 = vmatpush1.bf16.msra.mxu0 %v2827
      %4433 = vmatprep.subr.bf16.mxu0 %v2840
      %4434 = vmatpush1.bf16.msra.mxu0 %v2839
      %4435 = vmatprep.subr.bf16.mxu0 %v2852
      %4436 = vmatpush1.bf16.msra.mxu0 %v2851
      %4437 = vmatprep.subr.bf16.mxu0 %v2864
      %4438 = vmatpush1.bf16.msra.mxu0 %v2863
      %4439 = vmatprep.subr.bf16.mxu0 %v2876
      %4440 = vmatpush1.bf16.msra.mxu0 %v2875
      %4441 = vmatprep.subr.bf16.mxu0 %v2888
      %4442 = vmatpush1.bf16.msra.mxu0 %v2887
      %4443 = vmatprep.subr.bf16.mxu0 %v2900
      %4444 = vmatpush1.bf16.msra.mxu0 %v2899
      %4445 = vmatprep.subr.bf16.mxu0 %v2912
      %4446 = vmatpush1.bf16.msra.mxu0 %v2911
      %4447 = vmatprep.subr.bf16.mxu0 %v2924
      %4448 = vmatpush1.bf16.msra.mxu0 %v2923
      %4449 = vmatprep.subr.bf16.mxu0 %v2936
      %4450 = vmatpush1.bf16.msra.mxu0 %v2935
      %4451 = vmatprep.mubr.bf16.mxu0 %v1116
      %4452 = vmatmul.mubr.bf16.gmra.mrb[0].mxu0 %v1115
      %v4453 = vpop.f32.mrb[0].mxu0
      %v4454 = vadd.f32 %v1570, %v4453
      %v4455 = vpop.f32.mrb[0].mxu0
      %v4456 = vadd.f32 %v1574, %v4455
      %v4457 = vpop.f32.mrb[0].mxu0
      %v4458 = vadd.f32 %v1570, %v4457
      %v4459 = vpop.f32.mrb[0].mxu0
      %v4460 = vadd.f32 %v1574, %v4459
      %4461 = vmatprep.mubr.bf16.mxu0 %v1120
      %4462 = vmatmul.mubr.bf16.gmra.mrb[0].mxu0 %v1119
      %v4463 = vpop.f32.mrb[0].mxu0
      %v4464 = vadd.f32 %v1570, %v4463
      %v4465 = vpop.f32.mrb[0].mxu0
      %v4466 = vadd.f32 %v1574, %v4465
      %v4467 = vpop.f32.mrb[0].mxu0
      %v4468 = vadd.f32 %v1570, %v4467
      %v4469 = vpop.f32.mrb[0].mxu0
      %v4470 = vadd.f32 %v1574, %v4469
      %4471 = vmatprep.mubr.bf16.mxu0 %v1124
      %4472 = vmatmul.mubr.bf16.gmra.mrb[0].mxu0 %v1123
      %v4473 = vpop.f32.mrb[0].mxu0
      %v4474 = vadd.f32 %v1570, %v4473
      %v4475 = vpop.f32.mrb[0].mxu0
      %v4476 = vadd.f32 %v1574, %v4475
      %v4477 = vpop.f32.mrb[0].mxu0
      %v4478 = vadd.f32 %v1570, %v4477
      %v4479 = vpop.f32.mrb[0].mxu0
      %v4480 = vadd.f32 %v1574, %v4479
      %4481 = vmatprep.mubr.bf16.mxu0 %v1128
      %4482 = vmatmul.mubr.bf16.gmra.mrb[0].mxu0 %v1127
      %v4483 = vpop.f32.mrb[0].mxu0
      %v4484 = vadd.f32 %v1570, %v4483
      %v4485 = vpop.f32.mrb[0].mxu0
      %v4486 = vadd.f32 %v1574, %v4485
      %v4487 = vpop.f32.mrb[0].mxu0
      %v4488 = vadd.f32 %v1570, %v4487
      %v4489 = vpop.f32.mrb[0].mxu0
      %v4490 = vadd.f32 %v1574, %v4489
      %4491 = vmatprep.mubr.bf16.mxu0 %v1132
      %4492 = vmatmul.mubr.bf16.gmra.mrb[0].mxu0 %v1131
      %v4493 = vpop.f32.mrb[0].mxu0
      %v4494 = vadd.f32 %v1570, %v4493
      %v4495 = vpop.f32.mrb[0].mxu0
      %v4496 = vadd.f32 %v1574, %v4495
      %v4497 = vpop.f32.mrb[0].mxu0
      %v4498 = vadd.f32 %v1570, %v4497
      %v4499 = vpop.f32.mrb[0].mxu0
      %v4500 = vadd.f32 %v1574, %v4499
      %4501 = vmatprep.mubr.bf16.mxu0 %v1136
      %4502 = vmatmul.mubr.bf16.gmra.mrb[0].mxu0 %v1135
      %v4503 = vpop.f32.mrb[0].mxu0
      %v4504 = vadd.f32 %v1570, %v4503
      %v4505 = vpop.f32.mrb[0].mxu0
      %v4506 = vadd.f32 %v1574, %v4505
      %v4507 = vpop.f32.mrb[0].mxu0
      %v4508 = vadd.f32 %v1570, %v4507
      %v4509 = vpop.f32.mrb[0].mxu0
      %v4510 = vadd.f32 %v1574, %v4509
      %4511 = vmatprep.mubr.bf16.mxu0 %v1140
      %4512 = vmatmul.mubr.bf16.gmra.mrb[0].mxu0 %v1139
      %v4513 = vpop.f32.mrb[0].mxu0
      %v4514 = vadd.f32 %v1570, %v4513
      %v4515 = vpop.f32.mrb[0].mxu0
      %v4516 = vadd.f32 %v1574, %v4515
      %v4517 = vpop.f32.mrb[0].mxu0
      %v4518 = vadd.f32 %v1570, %v4517
      %v4519 = vpop.f32.mrb[0].mxu0
      %v4520 = vadd.f32 %v1574, %v4519
      %4521 = vmatprep.mubr.bf16.mxu0 %v1144
      %4522 = vmatmul.mubr.bf16.gmra.mrb[0].mxu0 %v1143
      %v4523 = vpop.f32.mrb[0].mxu0
      %v4524 = vadd.f32 %v1570, %v4523
      %v4525 = vpop.f32.mrb[0].mxu0
      %v4526 = vadd.f32 %v1574, %v4525
      %v4527 = vpop.f32.mrb[0].mxu0
      %v4528 = vadd.f32 %v1570, %v4527
      %v4529 = vpop.f32.mrb[0].mxu0
      %v4530 = vadd.f32 %v1574, %v4529
      %4531 = vdwg.mxu0
      %4532 = vmatprep.subr.bf16.mxu0 %v2948
      %4533 = vmatpush1.bf16.msra.mxu0 %v2947
      %4534 = vmatprep.subr.bf16.mxu0 %v2960
      %4535 = vmatpush1.bf16.msra.mxu0 %v2959
      %4536 = vmatprep.subr.bf16.mxu0 %v2972
      %4537 = vmatpush1.bf16.msra.mxu0 %v2971
      %4538 = vmatprep.subr.bf16.mxu0 %v2984
      %4539 = vmatpush1.bf16.msra.mxu0 %v2983
      %4540 = vmatprep.subr.bf16.mxu0 %v2996
      %4541 = vmatpush1.bf16.msra.mxu0 %v2995
      %4542 = vmatprep.subr.bf16.mxu0 %v3008
      %4543 = vmatpush1.bf16.msra.mxu0 %v3007
      %4544 = vmatprep.subr.bf16.mxu0 %v3020
      %4545 = vmatpush1.bf16.msra.mxu0 %v3019
      %4546 = vmatprep.subr.bf16.mxu0 %v3032
      %4547 = vmatpush1.bf16.msra.mxu0 %v3031
      %4548 = vmatprep.subr.bf16.mxu0 %v3044
      %4549 = vmatpush1.bf16.msra.mxu0 %v3043
      %4550 = vmatprep.subr.bf16.mxu0 %v3056
      %4551 = vmatpush1.bf16.msra.mxu0 %v3055
      %4552 = vmatprep.subr.bf16.mxu0 %v3068
      %4553 = vmatpush1.bf16.msra.mxu0 %v3067
      %4554 = vmatprep.subr.bf16.mxu0 %v3080
      %4555 = vmatpush1.bf16.msra.mxu0 %v3079
      %4556 = vmatprep.subr.bf16.mxu0 %v3092
      %4557 = vmatpush1.bf16.msra.mxu0 %v3091
      %4558 = vmatprep.subr.bf16.mxu0 %v3104
      %4559 = vmatpush1.bf16.msra.mxu0 %v3103
      %4560 = vmatprep.subr.bf16.mxu0 %v3116
      %4561 = vmatpush1.bf16.msra.mxu0 %v3115
      %4562 = vmatprep.subr.bf16.mxu0 %v3128
      %4563 = vmatpush1.bf16.msra.mxu0 %v3127
      %4564 = vmatprep.mubr.bf16.mxu0 %v1118
      %4565 = vmatmul.mubr.bf16.gmra.mrb[0].mxu0 %v1117
      %v4566 = vpop.f32.mrb[0].mxu0
      %v4567 = vadd.f32 %v4454, %v4566
      %v4568 = vpop.f32.mrb[0].mxu0
      %v4569 = vadd.f32 %v4456, %v4568
      %v4570 = vpop.f32.mrb[0].mxu0
      %v4571 = vadd.f32 %v4458, %v4570
      %v4572 = vpop.f32.mrb[0].mxu0
      %v4573 = vadd.f32 %v4460, %v4572
      %4574 = vmatprep.mubr.bf16.mxu0 %v1122
      %4575 = vmatmul.mubr.bf16.gmra.mrb[0].mxu0 %v1121
      %v4576 = vpop.f32.mrb[0].mxu0
      %v4577 = vadd.f32 %v4464, %v4576
      %v4578 = vpop.f32.mrb[0].mxu0
      %v4579 = vadd.f32 %v4466, %v4578
      %v4580 = vpop.f32.mrb[0].mxu0
      %v4581 = vadd.f32 %v4468, %v4580
      %v4582 = vpop.f32.mrb[0].mxu0
      %v4583 = vadd.f32 %v4470, %v4582
      %4584 = vmatprep.mubr.bf16.mxu0 %v1126
      %4585 = vmatmul.mubr.bf16.gmra.mrb[0].mxu0 %v1125
      %v4586 = vpop.f32.mrb[0].mxu0
      %v4587 = vadd.f32 %v4474, %v4586
      %v4588 = vpop.f32.mrb[0].mxu0
      %v4589 = vadd.f32 %v4476, %v4588
      %v4590 = vpop.f32.mrb[0].mxu0
      %v4591 = vadd.f32 %v4478, %v4590
      %v4592 = vpop.f32.mrb[0].mxu0
      %v4593 = vadd.f32 %v4480, %v4592
      %4594 = vmatprep.mubr.bf16.mxu0 %v1130
      %4595 = vmatmul.mubr.bf16.gmra.mrb[0].mxu0 %v1129
      %v4596 = vpop.f32.mrb[0].mxu0
      %v4597 = vadd.f32 %v4484, %v4596
      %v4598 = vpop.f32.mrb[0].mxu0
      %v4599 = vadd.f32 %v4486, %v4598
      %v4600 = vpop.f32.mrb[0].mxu0
      %v4601 = vadd.f32 %v4488, %v4600
      %v4602 = vpop.f32.mrb[0].mxu0
      %v4603 = vadd.f32 %v4490, %v4602
      %4604 = vmatprep.mubr.bf16.mxu0 %v1134
      %4605 = vmatmul.mubr.bf16.gmra.mrb[0].mxu0 %v1133
      %v4606 = vpop.f32.mrb[0].mxu0
      %v4607 = vadd.f32 %v4494, %v4606
      %v4608 = vpop.f32.mrb[0].mxu0
      %v4609 = vadd.f32 %v4496, %v4608
      %v4610 = vpop.f32.mrb[0].mxu0
      %v4611 = vadd.f32 %v4498, %v4610
      %v4612 = vpop.f32.mrb[0].mxu0
      %v4613 = vadd.f32 %v4500, %v4612
      %4614 = vmatprep.mubr.bf16.mxu0 %v1138
      %4615 = vmatmul.mubr.bf16.gmra.mrb[0].mxu0 %v1137
      %v4616 = vpop.f32.mrb[0].mxu0
      %v4617 = vadd.f32 %v4504, %v4616
      %v4618 = vpop.f32.mrb[0].mxu0
      %v4619 = vadd.f32 %v4506, %v4618
      %v4620 = vpop.f32.mrb[0].mxu0
      %v4621 = vadd.f32 %v4508, %v4620
      %v4622 = vpop.f32.mrb[0].mxu0
      %v4623 = vadd.f32 %v4510, %v4622
      %4624 = vmatprep.mubr.bf16.mxu0 %v1142
      %4625 = vmatmul.mubr.bf16.gmra.mrb[0].mxu0 %v1141
      %v4626 = vpop.f32.mrb[0].mxu0
      %v4627 = vadd.f32 %v4514, %v4626
      %v4628 = vpop.f32.mrb[0].mxu0
      %v4629 = vadd.f32 %v4516, %v4628
      %v4630 = vpop.f32.mrb[0].mxu0
      %v4631 = vadd.f32 %v4518, %v4630
      %v4632 = vpop.f32.mrb[0].mxu0
      %v4633 = vadd.f32 %v4520, %v4632
      %4634 = vmatprep.mubr.bf16.mxu0 %v1146
      %4635 = vmatmul.mubr.bf16.gmra.mrb[0].mxu0 %v1145
      %v4636 = vpop.f32.mrb[0].mxu0
      %v4637 = vadd.f32 %v4524, %v4636
      %v4638 = vpop.f32.mrb[0].mxu0
      %v4639 = vadd.f32 %v4526, %v4638
      %v4640 = vpop.f32.mrb[0].mxu0
      %v4641 = vadd.f32 %v4528, %v4640
      %v4642 = vpop.f32.mrb[0].mxu0
      %v4643 = vadd.f32 %v4530, %v4642
      %4644 = vdwg.mxu0
      %4645 = vmatprep.subr.bf16.mxu0 %v2758
      %4646 = vmatpush1.bf16.msra.mxu0 %v2757
      %4647 = vmatprep.subr.bf16.mxu0 %v2770
      %4648 = vmatpush1.bf16.msra.mxu0 %v2769
      %4649 = vmatprep.subr.bf16.mxu0 %v2782
      %4650 = vmatpush1.bf16.msra.mxu0 %v2781
      %4651 = vmatprep.subr.bf16.mxu0 %v2794
      %4652 = vmatpush1.bf16.msra.mxu0 %v2793
      %4653 = vmatprep.subr.bf16.mxu0 %v2806
      %4654 = vmatpush1.bf16.msra.mxu0 %v2805
      %4655 = vmatprep.subr.bf16.mxu0 %v2818
      %4656 = vmatpush1.bf16.msra.mxu0 %v2817
      %4657 = vmatprep.subr.bf16.mxu0 %v2830
      %4658 = vmatpush1.bf16.msra.mxu0 %v2829
      %4659 = vmatprep.subr.bf16.mxu0 %v2842
      %4660 = vmatpush1.bf16.msra.mxu0 %v2841
      %4661 = vmatprep.subr.bf16.mxu0 %v2854
      %4662 = vmatpush1.bf16.msra.mxu0 %v2853
      %4663 = vmatprep.subr.bf16.mxu0 %v2866
      %4664 = vmatpush1.bf16.msra.mxu0 %v2865
      %4665 = vmatprep.subr.bf16.mxu0 %v2878
      %4666 = vmatpush1.bf16.msra.mxu0 %v2877
      %4667 = vmatprep.subr.bf16.mxu0 %v2890
      %4668 = vmatpush1.bf16.msra.mxu0 %v2889
      %4669 = vmatprep.subr.bf16.mxu0 %v2902
      %4670 = vmatpush1.bf16.msra.mxu0 %v2901
      %4671 = vmatprep.subr.bf16.mxu0 %v2914
      %4672 = vmatpush1.bf16.msra.mxu0 %v2913
      %4673 = vmatprep.subr.bf16.mxu0 %v2926
      %4674 = vmatpush1.bf16.msra.mxu0 %v2925
      %4675 = vmatprep.subr.bf16.mxu0 %v2938
      %4676 = vmatpush1.bf16.msra.mxu0 %v2937
      %4677 = vmatprep.mubr.bf16.mxu0 %v1116
      %4678 = vmatmul.mubr.bf16.gmra.mrb[0].mxu0 %v1115
      %v4679 = vpop.f32.mrb[0].mxu0
      %v4680 = vadd.f32 %v1578, %v4679
      %v4681 = vpop.f32.mrb[0].mxu0
      %v4682 = vadd.f32 %v1582, %v4681
      %v4683 = vpop.f32.mrb[0].mxu0
      %v4684 = vadd.f32 %v1578, %v4683
      %v4685 = vpop.f32.mrb[0].mxu0
      %v4686 = vadd.f32 %v1582, %v4685
      %4687 = vmatprep.mubr.bf16.mxu0 %v1120
      %4688 = vmatmul.mubr.bf16.gmra.mrb[0].mxu0 %v1119
      %v4689 = vpop.f32.mrb[0].mxu0
      %v4690 = vadd.f32 %v1578, %v4689
      %v4691 = vpop.f32.mrb[0].mxu0
      %v4692 = vadd.f32 %v1582, %v4691
      %v4693 = vpop.f32.mrb[0].mxu0
      %v4694 = vadd.f32 %v1578, %v4693
      %v4695 = vpop.f32.mrb[0].mxu0
      %v4696 = vadd.f32 %v1582, %v4695
      %4697 = vmatprep.mubr.bf16.mxu0 %v1124
      %4698 = vmatmul.mubr.bf16.gmra.mrb[0].mxu0 %v1123
      %v4699 = vpop.f32.mrb[0].mxu0
      %v4700 = vadd.f32 %v1578, %v4699
      %v4701 = vpop.f32.mrb[0].mxu0
      %v4702 = vadd.f32 %v1582, %v4701
      %v4703 = vpop.f32.mrb[0].mxu0
      %v4704 = vadd.f32 %v1578, %v4703
      %v4705 = vpop.f32.mrb[0].mxu0
      %v4706 = vadd.f32 %v1582, %v4705
      %4707 = vmatprep.mubr.bf16.mxu0 %v1128
      %4708 = vmatmul.mubr.bf16.gmra.mrb[0].mxu0 %v1127
      %v4709 = vpop.f32.mrb[0].mxu0
      %v4710 = vadd.f32 %v1578, %v4709
      %v4711 = vpop.f32.mrb[0].mxu0
      %v4712 = vadd.f32 %v1582, %v4711
      %v4713 = vpop.f32.mrb[0].mxu0
      %v4714 = vadd.f32 %v1578, %v4713
      %v4715 = vpop.f32.mrb[0].mxu0
      %v4716 = vadd.f32 %v1582, %v4715
      %4717 = vmatprep.mubr.bf16.mxu0 %v1132
      %4718 = vmatmul.mubr.bf16.gmra.mrb[0].mxu0 %v1131
      %v4719 = vpop.f32.mrb[0].mxu0
      %v4720 = vadd.f32 %v1578, %v4719
      %v4721 = vpop.f32.mrb[0].mxu0
      %v4722 = vadd.f32 %v1582, %v4721
      %v4723 = vpop.f32.mrb[0].mxu0
      %v4724 = vadd.f32 %v1578, %v4723
      %v4725 = vpop.f32.mrb[0].mxu0
      %v4726 = vadd.f32 %v1582, %v4725
      %4727 = vmatprep.mubr.bf16.mxu0 %v1136
      %4728 = vmatmul.mubr.bf16.gmra.mrb[0].mxu0 %v1135
      %v4729 = vpop.f32.mrb[0].mxu0
      %v4730 = vadd.f32 %v1578, %v4729
      %v4731 = vpop.f32.mrb[0].mxu0
      %v4732 = vadd.f32 %v1582, %v4731
      %v4733 = vpop.f32.mrb[0].mxu0
      %v4734 = vadd.f32 %v1578, %v4733
      %v4735 = vpop.f32.mrb[0].mxu0
      %v4736 = vadd.f32 %v1582, %v4735
      %4737 = vmatprep.mubr.bf16.mxu0 %v1140
      %4738 = vmatmul.mubr.bf16.gmra.mrb[0].mxu0 %v1139
      %v4739 = vpop.f32.mrb[0].mxu0
      %v4740 = vadd.f32 %v1578, %v4739
      %v4741 = vpop.f32.mrb[0].mxu0
      %v4742 = vadd.f32 %v1582, %v4741
      %v4743 = vpop.f32.mrb[0].mxu0
      %v4744 = vadd.f32 %v1578, %v4743
      %v4745 = vpop.f32.mrb[0].mxu0
      %v4746 = vadd.f32 %v1582, %v4745
      %4747 = vmatprep.mubr.bf16.mxu0 %v1144
      %4748 = vmatmul.mubr.bf16.gmra.mrb[0].mxu0 %v1143
      %v4749 = vpop.f32.mrb[0].mxu0
      %v4750 = vadd.f32 %v1578, %v4749
      %v4751 = vpop.f32.mrb[0].mxu0
      %v4752 = vadd.f32 %v1582, %v4751
      %v4753 = vpop.f32.mrb[0].mxu0
      %v4754 = vadd.f32 %v1578, %v4753
      %v4755 = vpop.f32.mrb[0].mxu0
      %v4756 = vadd.f32 %v1582, %v4755
      %4757 = vdwg.mxu0
      %4758 = vmatprep.subr.bf16.mxu0 %v2950
      %4759 = vmatpush1.bf16.msra.mxu0 %v2949
      %4760 = vmatprep.subr.bf16.mxu0 %v2962
      %4761 = vmatpush1.bf16.msra.mxu0 %v2961
      %4762 = vmatprep.subr.bf16.mxu0 %v2974
      %4763 = vmatpush1.bf16.msra.mxu0 %v2973
      %4764 = vmatprep.subr.bf16.mxu0 %v2986
      %4765 = vmatpush1.bf16.msra.mxu0 %v2985
      %4766 = vmatprep.subr.bf16.mxu0 %v2998
      %4767 = vmatpush1.bf16.msra.mxu0 %v2997
      %4768 = vmatprep.subr.bf16.mxu0 %v3010
      %4769 = vmatpush1.bf16.msra.mxu0 %v3009
      %4770 = vmatprep.subr.bf16.mxu0 %v3022
      %4771 = vmatpush1.bf16.msra.mxu0 %v3021
      %4772 = vmatprep.subr.bf16.mxu0 %v3034
      %4773 = vmatpush1.bf16.msra.mxu0 %v3033
      %4774 = vmatprep.subr.bf16.mxu0 %v3046
      %4775 = vmatpush1.bf16.msra.mxu0 %v3045
      %4776 = vmatprep.subr.bf16.mxu0 %v3058
      %4777 = vmatpush1.bf16.msra.mxu0 %v3057
      %4778 = vmatprep.subr.bf16.mxu0 %v3070
      %4779 = vmatpush1.bf16.msra.mxu0 %v3069
      %4780 = vmatprep.subr.bf16.mxu0 %v3082
      %4781 = vmatpush1.bf16.msra.mxu0 %v3081
      %4782 = vmatprep.subr.bf16.mxu0 %v3094
      %4783 = vmatpush1.bf16.msra.mxu0 %v3093
      %4784 = vmatprep.subr.bf16.mxu0 %v3106
      %4785 = vmatpush1.bf16.msra.mxu0 %v3105
      %4786 = vmatprep.subr.bf16.mxu0 %v3118
      %4787 = vmatpush1.bf16.msra.mxu0 %v3117
      %4788 = vmatprep.subr.bf16.mxu0 %v3130
      %4789 = vmatpush1.bf16.msra.mxu0 %v3129
      %4790 = vmatprep.mubr.bf16.mxu0 %v1118
      %4791 = vmatmul.mubr.bf16.gmra.mrb[0].mxu0 %v1117
      %v4792 = vpop.f32.mrb[0].mxu0
      %v4793 = vadd.f32 %v4680, %v4792
      %v4794 = vpop.f32.mrb[0].mxu0
      %v4795 = vadd.f32 %v4682, %v4794
      %v4796 = vpop.f32.mrb[0].mxu0
      %v4797 = vadd.f32 %v4684, %v4796
      %v4798 = vpop.f32.mrb[0].mxu0
      %v4799 = vadd.f32 %v4686, %v4798
      %4800 = vmatprep.mubr.bf16.mxu0 %v1122
      %4801 = vmatmul.mubr.bf16.gmra.mrb[0].mxu0 %v1121
      %v4802 = vpop.f32.mrb[0].mxu0
      %v4803 = vadd.f32 %v4690, %v4802
      %v4804 = vpop.f32.mrb[0].mxu0
      %v4805 = vadd.f32 %v4692, %v4804
      %v4806 = vpop.f32.mrb[0].mxu0
      %v4807 = vadd.f32 %v4694, %v4806
      %v4808 = vpop.f32.mrb[0].mxu0
      %v4809 = vadd.f32 %v4696, %v4808
      %4810 = vmatprep.mubr.bf16.mxu0 %v1126
      %4811 = vmatmul.mubr.bf16.gmra.mrb[0].mxu0 %v1125
      %v4812 = vpop.f32.mrb[0].mxu0
      %v4813 = vadd.f32 %v4700, %v4812
      %v4814 = vpop.f32.mrb[0].mxu0
      %v4815 = vadd.f32 %v4702, %v4814
      %v4816 = vpop.f32.mrb[0].mxu0
      %v4817 = vadd.f32 %v4704, %v4816
      %v4818 = vpop.f32.mrb[0].mxu0
      %v4819 = vadd.f32 %v4706, %v4818
      %4820 = vmatprep.mubr.bf16.mxu0 %v1130
      %4821 = vmatmul.mubr.bf16.gmra.mrb[0].mxu0 %v1129
      %v4822 = vpop.f32.mrb[0].mxu0
      %v4823 = vadd.f32 %v4710, %v4822
      %v4824 = vpop.f32.mrb[0].mxu0
      %v4825 = vadd.f32 %v4712, %v4824
      %v4826 = vpop.f32.mrb[0].mxu0
      %v4827 = vadd.f32 %v4714, %v4826
      %v4828 = vpop.f32.mrb[0].mxu0
      %v4829 = vadd.f32 %v4716, %v4828
      %4830 = vmatprep.mubr.bf16.mxu0 %v1134
      %4831 = vmatmul.mubr.bf16.gmra.mrb[0].mxu0 %v1133
      %v4832 = vpop.f32.mrb[0].mxu0
      %v4833 = vadd.f32 %v4720, %v4832
      %v4834 = vpop.f32.mrb[0].mxu0
      %v4835 = vadd.f32 %v4722, %v4834
      %v4836 = vpop.f32.mrb[0].mxu0
      %v4837 = vadd.f32 %v4724, %v4836
      %v4838 = vpop.f32.mrb[0].mxu0
      %v4839 = vadd.f32 %v4726, %v4838
      %4840 = vmatprep.mubr.bf16.mxu0 %v1138
      %4841 = vmatmul.mubr.bf16.gmra.mrb[0].mxu0 %v1137
      %v4842 = vpop.f32.mrb[0].mxu0
      %v4843 = vadd.f32 %v4730, %v4842
      %v4844 = vpop.f32.mrb[0].mxu0
      %v4845 = vadd.f32 %v4732, %v4844
      %v4846 = vpop.f32.mrb[0].mxu0
      %v4847 = vadd.f32 %v4734, %v4846
      %v4848 = vpop.f32.mrb[0].mxu0
      %v4849 = vadd.f32 %v4736, %v4848
      %4850 = vmatprep.mubr.bf16.mxu0 %v1142
      %4851 = vmatmul.mubr.bf16.gmra.mrb[0].mxu0 %v1141
      %v4852 = vpop.f32.mrb[0].mxu0
      %v4853 = vadd.f32 %v4740, %v4852
      %v4854 = vpop.f32.mrb[0].mxu0
      %v4855 = vadd.f32 %v4742, %v4854
      %v4856 = vpop.f32.mrb[0].mxu0
      %v4857 = vadd.f32 %v4744, %v4856
      %v4858 = vpop.f32.mrb[0].mxu0
      %v4859 = vadd.f32 %v4746, %v4858
      %4860 = vmatprep.mubr.bf16.mxu0 %v1146
      %4861 = vmatmul.mubr.bf16.gmra.mrb[0].mxu0 %v1145
      %v4862 = vpop.f32.mrb[0].mxu0
      %v4863 = vadd.f32 %v4750, %v4862
      %v4864 = vpop.f32.mrb[0].mxu0
      %v4865 = vadd.f32 %v4752, %v4864
      %v4866 = vpop.f32.mrb[0].mxu0
      %v4867 = vadd.f32 %v4754, %v4866
      %v4868 = vpop.f32.mrb[0].mxu0
      %v4869 = vadd.f32 %v4756, %v4868
      %4870 = vdwg.mxu0
      %v4871 = vpack.c.bf16 %v3667, %v3663
      %v4872 = vpack.c.bf16 %v3669, %v3665
      %v4873 = vpack.c.bf16 %v3893, %v3889
      %v4874 = vpack.c.bf16 %v3895, %v3891
      %v4875 = vpack.c.bf16 %v3677, %v3673
      %v4876 = vpack.c.bf16 %v3679, %v3675
      %v4877 = vpack.c.bf16 %v3903, %v3899
      %v4878 = vpack.c.bf16 %v3905, %v3901
      %v4879 = vpack.c.bf16 %v3687, %v3683
      %v4880 = vpack.c.bf16 %v3689, %v3685
      %v4881 = vpack.c.bf16 %v3913, %v3909
      %v4882 = vpack.c.bf16 %v3915, %v3911
      %v4883 = vpack.c.bf16 %v3697, %v3693
      %v4884 = vpack.c.bf16 %v3699, %v3695
      %v4885 = vpack.c.bf16 %v3923, %v3919
      %v4886 = vpack.c.bf16 %v3925, %v3921
      %v4887 = vpack.c.bf16 %v3707, %v3703
      %v4888 = vpack.c.bf16 %v3709, %v3705
      %v4889 = vpack.c.bf16 %v3933, %v3929
      %v4890 = vpack.c.bf16 %v3935, %v3931
      %v4891 = vpack.c.bf16 %v3717, %v3713
      %v4892 = vpack.c.bf16 %v3719, %v3715
      %v4893 = vpack.c.bf16 %v3943, %v3939
      %v4894 = vpack.c.bf16 %v3945, %v3941
      %v4895 = vpack.c.bf16 %v3727, %v3723
      %v4896 = vpack.c.bf16 %v3729, %v3725
      %v4897 = vpack.c.bf16 %v3953, %v3949
      %v4898 = vpack.c.bf16 %v3955, %v3951
      %v4899 = vpack.c.bf16 %v3737, %v3733
      %v4900 = vpack.c.bf16 %v3739, %v3735
      %v4901 = vpack.c.bf16 %v3963, %v3959
      %v4902 = vpack.c.bf16 %v3965, %v3961
      %v4935 = vunpack.c.l.b16 %v4871
      %v4936 = vunpack.c.l.b16 %v4872
      %v4937 = vunpack.c.l.b16 %v4873
      %v4938 = vunpack.c.l.b16 %v4874
      %v4939 = vunpack.c.h.b16 %v4871
      %v4940 = vunpack.c.h.b16 %v4872
      %v4941 = vunpack.c.h.b16 %v4873
      %v4942 = vunpack.c.h.b16 %v4874
      %v4943 = vunpack.c.l.b16 %v4875
      %v4944 = vunpack.c.l.b16 %v4876
      %v4945 = vunpack.c.l.b16 %v4877
      %v4946 = vunpack.c.l.b16 %v4878
      %v4947 = vunpack.c.h.b16 %v4875
      %v4948 = vunpack.c.h.b16 %v4876
      %v4949 = vunpack.c.h.b16 %v4877
      %v4950 = vunpack.c.h.b16 %v4878
      %v4951 = vunpack.c.l.b16 %v4879
      %v4952 = vunpack.c.l.b16 %v4880
      %v4953 = vunpack.c.l.b16 %v4881
      %v4954 = vunpack.c.l.b16 %v4882
      %v4955 = vunpack.c.h.b16 %v4879
      %v4956 = vunpack.c.h.b16 %v4880
      %v4957 = vunpack.c.h.b16 %v4881
      %v4958 = vunpack.c.h.b16 %v4882
      %v4959 = vunpack.c.l.b16 %v4883
      %v4960 = vunpack.c.l.b16 %v4884
      %v4961 = vunpack.c.l.b16 %v4885
      %v4962 = vunpack.c.l.b16 %v4886
      %v4963 = vunpack.c.h.b16 %v4883
      %v4964 = vunpack.c.h.b16 %v4884
      %v4965 = vunpack.c.h.b16 %v4885
      %v4966 = vunpack.c.h.b16 %v4886
      %v4967 = vunpack.c.l.b16 %v4887
      %v4968 = vunpack.c.l.b16 %v4888
      %v4969 = vunpack.c.l.b16 %v4889
      %v4970 = vunpack.c.l.b16 %v4890
      %v4971 = vunpack.c.h.b16 %v4887
      %v4972 = vunpack.c.h.b16 %v4888
      %v4973 = vunpack.c.h.b16 %v4889
      %v4974 = vunpack.c.h.b16 %v4890
      %v4975 = vunpack.c.l.b16 %v4891
      %v4976 = vunpack.c.l.b16 %v4892
      %v4977 = vunpack.c.l.b16 %v4893
      %v4978 = vunpack.c.l.b16 %v4894
      %v4979 = vunpack.c.h.b16 %v4891
      %v4980 = vunpack.c.h.b16 %v4892
      %v4981 = vunpack.c.h.b16 %v4893
      %v4982 = vunpack.c.h.b16 %v4894
      %v4983 = vunpack.c.l.b16 %v4895
      %v4984 = vunpack.c.l.b16 %v4896
      %v4985 = vunpack.c.l.b16 %v4897
      %v4986 = vunpack.c.l.b16 %v4898
      %v4987 = vunpack.c.h.b16 %v4895
      %v4988 = vunpack.c.h.b16 %v4896
      %v4989 = vunpack.c.h.b16 %v4897
      %v4990 = vunpack.c.h.b16 %v4898
      %v4991 = vunpack.c.l.b16 %v4899
      %v4992 = vunpack.c.l.b16 %v4900
      %v4993 = vunpack.c.l.b16 %v4901
      %v4994 = vunpack.c.l.b16 %v4902
      %v4995 = vunpack.c.h.b16 %v4899
      %v4996 = vunpack.c.h.b16 %v4900
      %v4997 = vunpack.c.h.b16 %v4901
      %v4998 = vunpack.c.h.b16 %v4902
      %v4999 = vpack.c.b16 %v4936, %v4935
      %v5000 = vpack.c.b16 %v4938, %v4937
      %v5001 = vpack.c.b16 %v4940, %v4939
      %v5002 = vpack.c.b16 %v4942, %v4941
      %v5003 = vpack.c.b16 %v4944, %v4943
      %v5004 = vpack.c.b16 %v4946, %v4945
      %v5005 = vpack.c.b16 %v4948, %v4947
      %v5006 = vpack.c.b16 %v4950, %v4949
      %v5007 = vpack.c.b16 %v4952, %v4951
      %v5008 = vpack.c.b16 %v4954, %v4953
      %v5009 = vpack.c.b16 %v4956, %v4955
      %v5010 = vpack.c.b16 %v4958, %v4957
      %v5011 = vpack.c.b16 %v4960, %v4959
      %v5012 = vpack.c.b16 %v4962, %v4961
      %v5013 = vpack.c.b16 %v4964, %v4963
      %v5014 = vpack.c.b16 %v4966, %v4965
      %v5015 = vpack.c.b16 %v4968, %v4967
      %v5016 = vpack.c.b16 %v4970, %v4969
      %v5017 = vpack.c.b16 %v4972, %v4971
      %v5018 = vpack.c.b16 %v4974, %v4973
      %v5019 = vpack.c.b16 %v4976, %v4975
      %v5020 = vpack.c.b16 %v4978, %v4977
      %v5021 = vpack.c.b16 %v4980, %v4979
      %v5022 = vpack.c.b16 %v4982, %v4981
      %v5023 = vpack.c.b16 %v4984, %v4983
      %v5024 = vpack.c.b16 %v4986, %v4985
      %v5025 = vpack.c.b16 %v4988, %v4987
      %v5026 = vpack.c.b16 %v4990, %v4989
      %v5027 = vpack.c.b16 %v4992, %v4991
      %v5028 = vpack.c.b16 %v4994, %v4993
      %v5029 = vpack.c.b16 %v4996, %v4995
      %v5030 = vpack.c.b16 %v4998, %v4997
      %5063 = vst [vmem:[%s329] sm:$0xff] %v4999
      %5064 = vst [vmem:[%s329 + $0x8] sm:$0xff] %v5000
      %5065 = vst [vmem:[%s329 + $0x10] sm:$0xff] %v5001
      %5066 = vst [vmem:[%s329 + $0x18] sm:$0xff] %v5002
      %5067 = vst [vmem:[%s329 + $0x20] sm:$0xff] %v5003
      %5068 = vst [vmem:[%s329 + $0x28] sm:$0xff] %v5004
      %5069 = vst [vmem:[%s329 + $0x30] sm:$0xff] %v5005
      %5070 = vst [vmem:[%s329 + $0x38] sm:$0xff] %v5006
      %5071 = vst [vmem:[%s329 + $0x40] sm:$0xff] %v5007
      %5072 = vst [vmem:[%s329 + $0x48] sm:$0xff] %v5008
      %5073 = vst [vmem:[%s329 + $0x50] sm:$0xff] %v5009
      %5074 = vst [vmem:[%s329 + $0x58] sm:$0xff] %v5010
      %5075 = vst [vmem:[%s329 + $0x60] sm:$0xff] %v5011
      %5076 = vst [vmem:[%s329 + $0x68] sm:$0xff] %v5012
      %5077 = vst [vmem:[%s329 + $0x70] sm:$0xff] %v5013
      %5078 = vst [vmem:[%s329 + $0x78] sm:$0xff] %v5014
      %5079 = vst [vmem:[%s329 + $0x80] sm:$0xff] %v5015
      %5080 = vst [vmem:[%s329 + $0x88] sm:$0xff] %v5016
      %5081 = vst [vmem:[%s329 + $0x90] sm:$0xff] %v5017
      %5082 = vst [vmem:[%s329 + $0x98] sm:$0xff] %v5018
      %5083 = vst [vmem:[%s329 + $0xa0] sm:$0xff] %v5019
      %5084 = vst [vmem:[%s329 + $0xa8] sm:$0xff] %v5020
      %5085 = vst [vmem:[%s329 + $0xb0] sm:$0xff] %v5021
      %5086 = vst [vmem:[%s329 + $0xb8] sm:$0xff] %v5022
      %5087 = vst [vmem:[%s329 + $0xc0] sm:$0xff] %v5023
      %5088 = vst [vmem:[%s329 + $0xc8] sm:$0xff] %v5024
      %5089 = vst [vmem:[%s329 + $0xd0] sm:$0xff] %v5025
      %5090 = vst [vmem:[%s329 + $0xd8] sm:$0xff] %v5026
      %5091 = vst [vmem:[%s329 + $0xe0] sm:$0xff] %v5027
      %5092 = vst [vmem:[%s329 + $0xe8] sm:$0xff] %v5028
      %5093 = vst [vmem:[%s329 + $0xf0] sm:$0xff] %v5029
      %5094 = vst [vmem:[%s329 + $0xf8] sm:$0xff] %v5030
      %v5095 = vpack.c.bf16 %v4119, %v4115
      %v5096 = vpack.c.bf16 %v4121, %v4117
      %v5097 = vpack.c.bf16 %v4345, %v4341
      %v5098 = vpack.c.bf16 %v4347, %v4343
      %v5099 = vpack.c.bf16 %v4129, %v4125
      %v5100 = vpack.c.bf16 %v4131, %v4127
      %v5101 = vpack.c.bf16 %v4355, %v4351
      %v5102 = vpack.c.bf16 %v4357, %v4353
      %v5103 = vpack.c.bf16 %v4139, %v4135
      %v5104 = vpack.c.bf16 %v4141, %v4137
      %v5105 = vpack.c.bf16 %v4365, %v4361
      %v5106 = vpack.c.bf16 %v4367, %v4363
      %v5107 = vpack.c.bf16 %v4149, %v4145
      %v5108 = vpack.c.bf16 %v4151, %v4147
      %v5109 = vpack.c.bf16 %v4375, %v4371
      %v5110 = vpack.c.bf16 %v4377, %v4373
      %v5111 = vpack.c.bf16 %v4159, %v4155
      %v5112 = vpack.c.bf16 %v4161, %v4157
      %v5113 = vpack.c.bf16 %v4385, %v4381
      %v5114 = vpack.c.bf16 %v4387, %v4383
      %v5115 = vpack.c.bf16 %v4169, %v4165
      %v5116 = vpack.c.bf16 %v4171, %v4167
      %v5117 = vpack.c.bf16 %v4395, %v4391
      %v5118 = vpack.c.bf16 %v4397, %v4393
      %v5119 = vpack.c.bf16 %v4179, %v4175
      %v5120 = vpack.c.bf16 %v4181, %v4177
      %v5121 = vpack.c.bf16 %v4405, %v4401
      %v5122 = vpack.c.bf16 %v4407, %v4403
      %v5123 = vpack.c.bf16 %v4189, %v4185
      %v5124 = vpack.c.bf16 %v4191, %v4187
      %v5125 = vpack.c.bf16 %v4415, %v4411
      %v5126 = vpack.c.bf16 %v4417, %v4413
      %v5159 = vunpack.c.l.b16 %v5095
      %v5160 = vunpack.c.l.b16 %v5096
      %v5161 = vunpack.c.l.b16 %v5097
      %v5162 = vunpack.c.l.b16 %v5098
      %v5163 = vunpack.c.h.b16 %v5095
      %v5164 = vunpack.c.h.b16 %v5096
      %v5165 = vunpack.c.h.b16 %v5097
      %v5166 = vunpack.c.h.b16 %v5098
      %v5167 = vunpack.c.l.b16 %v5099
      %v5168 = vunpack.c.l.b16 %v5100
      %v5169 = vunpack.c.l.b16 %v5101
      %v5170 = vunpack.c.l.b16 %v5102
      %v5171 = vunpack.c.h.b16 %v5099
      %v5172 = vunpack.c.h.b16 %v5100
      %v5173 = vunpack.c.h.b16 %v5101
      %v5174 = vunpack.c.h.b16 %v5102
      %v5175 = vunpack.c.l.b16 %v5103
      %v5176 = vunpack.c.l.b16 %v5104
      %v5177 = vunpack.c.l.b16 %v5105
      %v5178 = vunpack.c.l.b16 %v5106
      %v5179 = vunpack.c.h.b16 %v5103
      %v5180 = vunpack.c.h.b16 %v5104
      %v5181 = vunpack.c.h.b16 %v5105
      %v5182 = vunpack.c.h.b16 %v5106
      %v5183 = vunpack.c.l.b16 %v5107
      %v5184 = vunpack.c.l.b16 %v5108
      %v5185 = vunpack.c.l.b16 %v5109
      %v5186 = vunpack.c.l.b16 %v5110
      %v5187 = vunpack.c.h.b16 %v5107
      %v5188 = vunpack.c.h.b16 %v5108
      %v5189 = vunpack.c.h.b16 %v5109
      %v5190 = vunpack.c.h.b16 %v5110
      %v5191 = vunpack.c.l.b16 %v5111
      %v5192 = vunpack.c.l.b16 %v5112
      %v5193 = vunpack.c.l.b16 %v5113
      %v5194 = vunpack.c.l.b16 %v5114
      %v5195 = vunpack.c.h.b16 %v5111
      %v5196 = vunpack.c.h.b16 %v5112
      %v5197 = vunpack.c.h.b16 %v5113
      %v5198 = vunpack.c.h.b16 %v5114
      %v5199 = vunpack.c.l.b16 %v5115
      %v5200 = vunpack.c.l.b16 %v5116
      %v5201 = vunpack.c.l.b16 %v5117
      %v5202 = vunpack.c.l.b16 %v5118
      %v5203 = vunpack.c.h.b16 %v5115
      %v5204 = vunpack.c.h.b16 %v5116
      %v5205 = vunpack.c.h.b16 %v5117
      %v5206 = vunpack.c.h.b16 %v5118
      %v5207 = vunpack.c.l.b16 %v5119
      %v5208 = vunpack.c.l.b16 %v5120
      %v5209 = vunpack.c.l.b16 %v5121
      %v5210 = vunpack.c.l.b16 %v5122
      %v5211 = vunpack.c.h.b16 %v5119
      %v5212 = vunpack.c.h.b16 %v5120
      %v5213 = vunpack.c.h.b16 %v5121
      %v5214 = vunpack.c.h.b16 %v5122
      %v5215 = vunpack.c.l.b16 %v5123
      %v5216 = vunpack.c.l.b16 %v5124
      %v5217 = vunpack.c.l.b16 %v5125
      %v5218 = vunpack.c.l.b16 %v5126
      %v5219 = vunpack.c.h.b16 %v5123
      %v5220 = vunpack.c.h.b16 %v5124
      %v5221 = vunpack.c.h.b16 %v5125
      %v5222 = vunpack.c.h.b16 %v5126
      %v5223 = vpack.c.b16 %v5160, %v5159
      %v5224 = vpack.c.b16 %v5162, %v5161
      %v5225 = vpack.c.b16 %v5164, %v5163
      %v5226 = vpack.c.b16 %v5166, %v5165
      %v5227 = vpack.c.b16 %v5168, %v5167
      %v5228 = vpack.c.b16 %v5170, %v5169
      %v5229 = vpack.c.b16 %v5172, %v5171
      %v5230 = vpack.c.b16 %v5174, %v5173
      %v5231 = vpack.c.b16 %v5176, %v5175
      %v5232 = vpack.c.b16 %v5178, %v5177
      %v5233 = vpack.c.b16 %v5180, %v5179
      %v5234 = vpack.c.b16 %v5182, %v5181
      %v5235 = vpack.c.b16 %v5184, %v5183
      %v5236 = vpack.c.b16 %v5186, %v5185
      %v5237 = vpack.c.b16 %v5188, %v5187
      %v5238 = vpack.c.b16 %v5190, %v5189
      %v5239 = vpack.c.b16 %v5192, %v5191
      %v5240 = vpack.c.b16 %v5194, %v5193
      %v5241 = vpack.c.b16 %v5196, %v5195
      %v5242 = vpack.c.b16 %v5198, %v5197
      %v5243 = vpack.c.b16 %v5200, %v5199
      %v5244 = vpack.c.b16 %v5202, %v5201
      %v5245 = vpack.c.b16 %v5204, %v5203
      %v5246 = vpack.c.b16 %v5206, %v5205
      %v5247 = vpack.c.b16 %v5208, %v5207
      %v5248 = vpack.c.b16 %v5210, %v5209
      %v5249 = vpack.c.b16 %v5212, %v5211
      %v5250 = vpack.c.b16 %v5214, %v5213
      %v5251 = vpack.c.b16 %v5216, %v5215
      %v5252 = vpack.c.b16 %v5218, %v5217
      %v5253 = vpack.c.b16 %v5220, %v5219
      %v5254 = vpack.c.b16 %v5222, %v5221
      %5287 = vst [vmem:[%s336] sm:$0xff] %v5223
      %5288 = vst [vmem:[%s336 + $0x8] sm:$0xff] %v5224
      %5289 = vst [vmem:[%s336 + $0x10] sm:$0xff] %v5225
      %5290 = vst [vmem:[%s336 + $0x18] sm:$0xff] %v5226
      %5291 = vst [vmem:[%s336 + $0x20] sm:$0xff] %v5227
      %5292 = vst [vmem:[%s336 + $0x28] sm:$0xff] %v5228
      %5293 = vst [vmem:[%s336 + $0x30] sm:$0xff] %v5229
      %5294 = vst [vmem:[%s336 + $0x38] sm:$0xff] %v5230
      %5295 = vst [vmem:[%s336 + $0x40] sm:$0xff] %v5231
      %5296 = vst [vmem:[%s336 + $0x48] sm:$0xff] %v5232
      %5297 = vst [vmem:[%s336 + $0x50] sm:$0xff] %v5233
      %5298 = vst [vmem:[%s336 + $0x58] sm:$0xff] %v5234
      %5299 = vst [vmem:[%s336 + $0x60] sm:$0xff] %v5235
      %5300 = vst [vmem:[%s336 + $0x68] sm:$0xff] %v5236
      %5301 = vst [vmem:[%s336 + $0x70] sm:$0xff] %v5237
      %5302 = vst [vmem:[%s336 + $0x78] sm:$0xff] %v5238
      %5303 = vst [vmem:[%s336 + $0x80] sm:$0xff] %v5239
      %5304 = vst [vmem:[%s336 + $0x88] sm:$0xff] %v5240
      %5305 = vst [vmem:[%s336 + $0x90] sm:$0xff] %v5241
      %5306 = vst [vmem:[%s336 + $0x98] sm:$0xff] %v5242
      %5307 = vst [vmem:[%s336 + $0xa0] sm:$0xff] %v5243
      %5308 = vst [vmem:[%s336 + $0xa8] sm:$0xff] %v5244
      %5309 = vst [vmem:[%s336 + $0xb0] sm:$0xff] %v5245
      %5310 = vst [vmem:[%s336 + $0xb8] sm:$0xff] %v5246
      %5311 = vst [vmem:[%s336 + $0xc0] sm:$0xff] %v5247
      %5312 = vst [vmem:[%s336 + $0xc8] sm:$0xff] %v5248
      %5313 = vst [vmem:[%s336 + $0xd0] sm:$0xff] %v5249
      %5314 = vst [vmem:[%s336 + $0xd8] sm:$0xff] %v5250
      %5315 = vst [vmem:[%s336 + $0xe0] sm:$0xff] %v5251
      %5316 = vst [vmem:[%s336 + $0xe8] sm:$0xff] %v5252
      %5317 = vst [vmem:[%s336 + $0xf0] sm:$0xff] %v5253
      %5318 = vst [vmem:[%s336 + $0xf8] sm:$0xff] %v5254
      %v5319 = vpack.c.bf16 %v4571, %v4567
      %v5320 = vpack.c.bf16 %v4573, %v4569
      %v5321 = vpack.c.bf16 %v4797, %v4793
      %v5322 = vpack.c.bf16 %v4799, %v4795
      %v5323 = vpack.c.bf16 %v4581, %v4577
      %v5324 = vpack.c.bf16 %v4583, %v4579
      %v5325 = vpack.c.bf16 %v4807, %v4803
      %v5326 = vpack.c.bf16 %v4809, %v4805
      %v5327 = vpack.c.bf16 %v4591, %v4587
      %v5328 = vpack.c.bf16 %v4593, %v4589
      %v5329 = vpack.c.bf16 %v4817, %v4813
      %v5330 = vpack.c.bf16 %v4819, %v4815
      %v5331 = vpack.c.bf16 %v4601, %v4597
      %v5332 = vpack.c.bf16 %v4603, %v4599
      %v5333 = vpack.c.bf16 %v4827, %v4823
      %v5334 = vpack.c.bf16 %v4829, %v4825
      %v5335 = vpack.c.bf16 %v4611, %v4607
      %v5336 = vpack.c.bf16 %v4613, %v4609
      %v5337 = vpack.c.bf16 %v4837, %v4833
      %v5338 = vpack.c.bf16 %v4839, %v4835
      %v5339 = vpack.c.bf16 %v4621, %v4617
      %v5340 = vpack.c.bf16 %v4623, %v4619
      %v5341 = vpack.c.bf16 %v4847, %v4843
      %v5342 = vpack.c.bf16 %v4849, %v4845
      %v5343 = vpack.c.bf16 %v4631, %v4627
      %v5344 = vpack.c.bf16 %v4633, %v4629
      %v5345 = vpack.c.bf16 %v4857, %v4853
      %v5346 = vpack.c.bf16 %v4859, %v4855
      %v5347 = vpack.c.bf16 %v4641, %v4637
      %v5348 = vpack.c.bf16 %v4643, %v4639
      %v5349 = vpack.c.bf16 %v4867, %v4863
      %v5350 = vpack.c.bf16 %v4869, %v4865
      %v5383 = vunpack.c.l.b16 %v5319
      %v5384 = vunpack.c.l.b16 %v5320
      %v5385 = vunpack.c.l.b16 %v5321
      %v5386 = vunpack.c.l.b16 %v5322
      %v5387 = vunpack.c.h.b16 %v5319
      %v5388 = vunpack.c.h.b16 %v5320
      %v5389 = vunpack.c.h.b16 %v5321
      %v5390 = vunpack.c.h.b16 %v5322
      %v5391 = vunpack.c.l.b16 %v5323
      %v5392 = vunpack.c.l.b16 %v5324
      %v5393 = vunpack.c.l.b16 %v5325
      %v5394 = vunpack.c.l.b16 %v5326
      %v5395 = vunpack.c.h.b16 %v5323
      %v5396 = vunpack.c.h.b16 %v5324
      %v5397 = vunpack.c.h.b16 %v5325
      %v5398 = vunpack.c.h.b16 %v5326
      %v5399 = vunpack.c.l.b16 %v5327
      %v5400 = vunpack.c.l.b16 %v5328
      %v5401 = vunpack.c.l.b16 %v5329
      %v5402 = vunpack.c.l.b16 %v5330
      %v5403 = vunpack.c.h.b16 %v5327
      %v5404 = vunpack.c.h.b16 %v5328
      %v5405 = vunpack.c.h.b16 %v5329
      %v5406 = vunpack.c.h.b16 %v5330
      %v5407 = vunpack.c.l.b16 %v5331
      %v5408 = vunpack.c.l.b16 %v5332
      %v5409 = vunpack.c.l.b16 %v5333
      %v5410 = vunpack.c.l.b16 %v5334
      %v5411 = vunpack.c.h.b16 %v5331
      %v5412 = vunpack.c.h.b16 %v5332
      %v5413 = vunpack.c.h.b16 %v5333
      %v5414 = vunpack.c.h.b16 %v5334
      %v5415 = vunpack.c.l.b16 %v5335
      %v5416 = vunpack.c.l.b16 %v5336
      %v5417 = vunpack.c.l.b16 %v5337
      %v5418 = vunpack.c.l.b16 %v5338
      %v5419 = vunpack.c.h.b16 %v5335
      %v5420 = vunpack.c.h.b16 %v5336
      %v5421 = vunpack.c.h.b16 %v5337
      %v5422 = vunpack.c.h.b16 %v5338
      %v5423 = vunpack.c.l.b16 %v5339
      %v5424 = vunpack.c.l.b16 %v5340
      %v5425 = vunpack.c.l.b16 %v5341
      %v5426 = vunpack.c.l.b16 %v5342
      %v5427 = vunpack.c.h.b16 %v5339
      %v5428 = vunpack.c.h.b16 %v5340
      %v5429 = vunpack.c.h.b16 %v5341
      %v5430 = vunpack.c.h.b16 %v5342
      %v5431 = vunpack.c.l.b16 %v5343
      %v5432 = vunpack.c.l.b16 %v5344
      %v5433 = vunpack.c.l.b16 %v5345
      %v5434 = vunpack.c.l.b16 %v5346
      %v5435 = vunpack.c.h.b16 %v5343
      %v5436 = vunpack.c.h.b16 %v5344
      %v5437 = vunpack.c.h.b16 %v5345
      %v5438 = vunpack.c.h.b16 %v5346
      %v5439 = vunpack.c.l.b16 %v5347
      %v5440 = vunpack.c.l.b16 %v5348
      %v5441 = vunpack.c.l.b16 %v5349
      %v5442 = vunpack.c.l.b16 %v5350
      %v5443 = vunpack.c.h.b16 %v5347
      %v5444 = vunpack.c.h.b16 %v5348
      %v5445 = vunpack.c.h.b16 %v5349
      %v5446 = vunpack.c.h.b16 %v5350
      %v5447 = vpack.c.b16 %v5384, %v5383
      %v5448 = vpack.c.b16 %v5386, %v5385
      %v5449 = vpack.c.b16 %v5388, %v5387
      %v5450 = vpack.c.b16 %v5390, %v5389
      %v5451 = vpack.c.b16 %v5392, %v5391
      %v5452 = vpack.c.b16 %v5394, %v5393
      %v5453 = vpack.c.b16 %v5396, %v5395
      %v5454 = vpack.c.b16 %v5398, %v5397
      %v5455 = vpack.c.b16 %v5400, %v5399
      %v5456 = vpack.c.b16 %v5402, %v5401
      %v5457 = vpack.c.b16 %v5404, %v5403
      %v5458 = vpack.c.b16 %v5406, %v5405
      %v5459 = vpack.c.b16 %v5408, %v5407
      %v5460 = vpack.c.b16 %v5410, %v5409
      %v5461 = vpack.c.b16 %v5412, %v5411
      %v5462 = vpack.c.b16 %v5414, %v5413
      %v5463 = vpack.c.b16 %v5416, %v5415
      %v5464 = vpack.c.b16 %v5418, %v5417
      %v5465 = vpack.c.b16 %v5420, %v5419
      %v5466 = vpack.c.b16 %v5422, %v5421
      %v5467 = vpack.c.b16 %v5424, %v5423
      %v5468 = vpack.c.b16 %v5426, %v5425
      %v5469 = vpack.c.b16 %v5428, %v5427
      %v5470 = vpack.c.b16 %v5430, %v5429
      %v5471 = vpack.c.b16 %v5432, %v5431
      %v5472 = vpack.c.b16 %v5434, %v5433
      %v5473 = vpack.c.b16 %v5436, %v5435
      %v5474 = vpack.c.b16 %v5438, %v5437
      %v5475 = vpack.c.b16 %v5440, %v5439
      %v5476 = vpack.c.b16 %v5442, %v5441
      %v5477 = vpack.c.b16 %v5444, %v5443
      %v5478 = vpack.c.b16 %v5446, %v5445
      %5511 = vst [vmem:[%s343] sm:$0xff] %v5447
      %5512 = vst [vmem:[%s343 + $0x8] sm:$0xff] %v5448
      %5513 = vst [vmem:[%s343 + $0x10] sm:$0xff] %v5449
      %5514 = vst [vmem:[%s343 + $0x18] sm:$0xff] %v5450
      %5515 = vst [vmem:[%s343 + $0x20] sm:$0xff] %v5451
      %5516 = vst [vmem:[%s343 + $0x28] sm:$0xff] %v5452
      %5517 = vst [vmem:[%s343 + $0x30] sm:$0xff] %v5453
      %5518 = vst [vmem:[%s343 + $0x38] sm:$0xff] %v5454
      %5519 = vst [vmem:[%s343 + $0x40] sm:$0xff] %v5455
      %5520 = vst [vmem:[%s343 + $0x48] sm:$0xff] %v5456
      %5521 = vst [vmem:[%s343 + $0x50] sm:$0xff] %v5457
      %5522 = vst [vmem:[%s343 + $0x58] sm:$0xff] %v5458
      %5523 = vst [vmem:[%s343 + $0x60] sm:$0xff] %v5459
      %5524 = vst [vmem:[%s343 + $0x68] sm:$0xff] %v5460
      %5525 = vst [vmem:[%s343 + $0x70] sm:$0xff] %v5461
      %5526 = vst [vmem:[%s343 + $0x78] sm:$0xff] %v5462
      %5527 = vst [vmem:[%s343 + $0x80] sm:$0xff] %v5463
      %5528 = vst [vmem:[%s343 + $0x88] sm:$0xff] %v5464
      %5529 = vst [vmem:[%s343 + $0x90] sm:$0xff] %v5465
      %5530 = vst [vmem:[%s343 + $0x98] sm:$0xff] %v5466
      %5531 = vst [vmem:[%s343 + $0xa0] sm:$0xff] %v5467
      %5532 = vst [vmem:[%s343 + $0xa8] sm:$0xff] %v5468
      %5533 = vst [vmem:[%s343 + $0xb0] sm:$0xff] %v5469
      %5534 = vst [vmem:[%s343 + $0xb8] sm:$0xff] %v5470
      %5535 = vst [vmem:[%s343 + $0xc0] sm:$0xff] %v5471
      %5536 = vst [vmem:[%s343 + $0xc8] sm:$0xff] %v5472
      %5537 = vst [vmem:[%s343 + $0xd0] sm:$0xff] %v5473
      %5538 = vst [vmem:[%s343 + $0xd8] sm:$0xff] %v5474
      %5539 = vst [vmem:[%s343 + $0xe0] sm:$0xff] %v5475
      %5540 = vst [vmem:[%s343 + $0xe8] sm:$0xff] %v5476
      %5541 = vst [vmem:[%s343 + $0xf0] sm:$0xff] %v5477
      %5542 = vst [vmem:[%s343 + $0xf8] sm:$0xff] %v5478
      %s5543 = smul.u32 16, %s20
      %p5544 = scmp.lt.s32.totalorder %s5543, 31
      %s5545 = scalar_select %p5544, %s5543, 31
      %s5546 = smul.addr %s5545, 4
      %s5547 = smul.addr %s5546, 4
      %s5548 = scalar_lea.vmem %s6, %s5547
      %s5549 = smul.u32 16, %s20
      %p5550 = scmp.lt.s32.totalorder %s5549, 31
      %s5551 = scalar_select %p5550, %s5549, 31
      %s5552 = smul.addr %s5551, 4
      %s5553 = smul.addr %s5552, 4
      %s5554 = scalar_lea.vmem %s7, %s5553
      %s5555 = smul.u32 16, %s20
      %p5556 = scmp.lt.s32.totalorder %s5555, 31
      %s5557 = scalar_select %p5556, %s5555, 31
      %s5558 = smul.addr %s5557, 4
      %s5559 = smul.addr %s5558, 4
      %s5560 = scalar_lea.vmem %s8, %s5559
      // Predicated region
      $region45: #{mha_gcn_forward.4} parent=43 // pred_check
        %p5561 = pneg %p169
      $region46: #{mha_gcn_forward.4} parent=43 // pred_check_branch
        %5563 = sbr.rel (%p5561) target = $region48
      $region47: #{mha_gcn_forward.4} parent=43 // pred_region
        %s5564 = smul.u32 16, %s20
      $region48: #{mha_gcn_forward.4} parent=43 // pred_fallthru
        _
      // Predicated region
      $region49: #{mha_gcn_forward.4} parent=43 // pred_check
        %p5565 = pneg %p195
      $region50: #{mha_gcn_forward.4} parent=43 // pred_check_branch
        %5567 = sbr.rel (%p5565) target = $region52
      $region51: #{mha_gcn_forward.4} parent=43 // pred_region
        %s5568 = smul.u32 16, %s20
      $region52: #{mha_gcn_forward.4} parent=43 // pred_fallthru
        _
      // Predicated region
      $region53: #{mha_gcn_forward.4} parent=43 // pred_check
        %p5569 = pneg %p221
      $region54: #{mha_gcn_forward.4} parent=43 // pred_check_branch
        %5571 = sbr.rel (%p5569) target = $region56
      $region55: #{mha_gcn_forward.4} parent=43 // pred_region
        %s5572 = smul.u32 16, %s20
      $region56: #{mha_gcn_forward.4} parent=43 // pred_fallthru
        _
    $region44: #{mha_gcn_forward.4} parent=5 // pred_fallthru
      _
    %p5573 = scmp.le.s32.totalorder 2, %s15
    // Predicated region
    $region57: #{mha_gcn_forward.4} parent=5 // pred_check
      %p5574 = pneg %p5573
    $region58: #{mha_gcn_forward.4} parent=5 // pred_check_branch
      %5576 = sbr.rel (%p5574) target = $region60
    $region59: #{mha_gcn_forward.4} parent=5 // pred_region
      %s5577 = ssub.s32 %s15, 2
      // Predicated region
      $region61: #{mha_gcn_forward.4} parent=59 // pred_check
        %p5578 = pneg %p175
      $region62: #{mha_gcn_forward.4} parent=59 // pred_check_branch
        %5580 = sbr.rel (%p5578) target = $region64
      $region63: #{mha_gcn_forward.4} parent=59 // pred_region
        %s5581 = smul.u32 16, %s21
        %p5582 = scmp.lt.s32.totalorder %s5581, 31
        %s5583 = scalar_select %p5582, %s5581, 31
        %s5584 = smul.addr %s5583, 4
        %s5585 = smul.addr %s5584, 4
        %s5586 = scalar_lea.vmem %s6, %s5585
      $region64: #{mha_gcn_forward.4} parent=59 // pred_fallthru
        _
      // Predicated region
      $region65: #{mha_gcn_forward.4} parent=59 // pred_check
        %p5587 = pneg %p201
      $region66: #{mha_gcn_forward.4} parent=59 // pred_check_branch
        %5589 = sbr.rel (%p5587) target = $region68
      $region67: #{mha_gcn_forward.4} parent=59 // pred_region
        %s5590 = smul.u32 16, %s21
        %p5591 = scmp.lt.s32.totalorder %s5590, 31
        %s5592 = scalar_select %p5591, %s5590, 31
        %s5593 = smul.addr %s5592, 4
        %s5594 = smul.addr %s5593, 4
        %s5595 = scalar_lea.vmem %s7, %s5594
      $region68: #{mha_gcn_forward.4} parent=59 // pred_fallthru
        _
      // Predicated region
      $region69: #{mha_gcn_forward.4} parent=59 // pred_check
        %p5596 = pneg %p227
      $region70: #{mha_gcn_forward.4} parent=59 // pred_check_branch
        %5598 = sbr.rel (%p5596) target = $region72
      $region71: #{mha_gcn_forward.4} parent=59 // pred_region
        %s5599 = smul.u32 16, %s21
        %p5600 = scmp.lt.s32.totalorder %s5599, 31
        %s5601 = scalar_select %p5600, %s5599, 31
        %s5602 = smul.addr %s5601, 4
        %s5603 = smul.addr %s5602, 4
        %s5604 = scalar_lea.vmem %s8, %s5603
      $region72: #{mha_gcn_forward.4} parent=59 // pred_fallthru
        _
    $region60: #{mha_gcn_forward.4} parent=5 // pred_fallthru
      _
  $region6: #{mha_gcn_forward.4} parent=0 // loop_footer
    %s19 = sadd.s32 1, %s15
  $region7: #{mha_gcn_forward.4} parent=0 // loop_footer_branch
    %14 = sbr.rel target = $region3
  $region8: #{mha_gcn_forward.4} parent=0 // loop_exit
    _

// kernel: mha_gcn_forward.5
$region0: #{mha_gcn_forward.5}
  #allocation0 [shape = 'u32[]', space=smem, size = 0x4, offset = 0x4, fixed_abs, tag = 'smem constant byte address 0x4 - core index']
  #allocation1 [shape = 'u32[144,128]{1,0:T(1,128)}', space=vmem, size = 0x12000, scoped, tag = 'internal scratch']
  #allocation2 [shape = 'bf16[128,512]{1,0:T(16,128)(2,1)}', space=vmem, size = 0x20000, scoped, tag = 'scratch operand']
  %s0 = inlined_call_operand.vmem [shape: bf16[256,512], index: 0, kind: input, shape index: {}]
  %s1 = inlined_call_operand.vmem [shape: bf16[256,512], index: 1, kind: input, shape index: {}]
  %s2 = inlined_call_operand.vmem [shape: bf16[256,512], index: 2, kind: input, shape index: {}]
  %s3 = inlined_call_operand.vmem [shape: bf16[512,512], index: 3, kind: input, shape index: {}]
  %s4 = inlined_call_operand.vmem [shape: f32[1,512], index: 4, kind: input, shape index: {}]
  %s5 = inlined_call_operand.vmem [shape: f32[256,512], index: 5, kind: output, shape index: {0}]
  %s6 = inlined_call_operand.vmem [shape: bf16[256,256], index: 6, kind: output, shape index: {1}]
  %7 = xla_tuple %s5, %s6
  %s8 = sld [smem:[#allocation0]]
  $region61: #{mha_gcn_forward.5} parent=0
    _
  %s10 = ssub.s32 1, %s8
  %s11 = scalar_select 0, %s10, %s8
  loop: start=0, step=1, limit=4
  $region2: #{mha_gcn_forward.5} parent=0 // loop_pre_header
    _
  $region3: #{mha_gcn_forward.5} parent=0 // loop_header
    %s13 = sphi 0, %s17
    %p14 = scmp.ge.s32.totalorder %s13, 4
    %s23 = sphi 0, %s25
    %s26 = sphi 0, %s23
    %s27 = sphi 0, %s26
    %s43 = sphi 0, %s27
    %s47 = sphi 0, %s47
    %s49 = sphi 0, %s47
    %s50 = sphi 0, %s49
    %s64 = sphi 0, %s50
    %s68 = sphi 0, %s68
    %s70 = sphi 0, %s68
    %s71 = sphi 0, %s70
    %s85 = sphi 0, %s71
    %s89 = sphi 0, %s89
    %s91 = sphi 0, %s89
    %s92 = sphi 0, %s91
    %s106 = sphi 0, %s92
    %s110 = sphi 0, %s110
    %s112 = sphi 0, %s110
    %s113 = sphi 0, %s112
    %s127 = sphi 0, %s113
    %s133 = sphi 0, %s135
    %s136 = sphi 0, %s133
    %s137 = sphi 0, %s136
    %s153 = sphi 0, %s137
    %s159 = sphi 0, %s161
    %s162 = sphi 0, %s159
    %s163 = sphi 0, %s162
    %s179 = sphi 0, %s163
  $region4: #{mha_gcn_forward.5} parent=0 // loop_header_branch
    %16 = sbr.rel (%p14) target = $region8
  $region5: #{mha_gcn_forward.5} parent=0 // loop_body
    %s18 = ssub.s32 %s13, 1
    %s19 = ssub.s32 %s13, 2
    %s20 = sadd.s32 %s13, 1
    %s21 = ssub.s32 %s13, %s20
    %p22 = scmp.eq.s32.totalorder %s21, 0
    %s24 = sadd.s32 %s23, 1
    %s25 = scalar_select %p22, %s23, %s24
    %p28 = pneg %p22
    %p29 = scmp.eq.s32.totalorder %s13, 1
    %p30 = por %p28, %p29
    %p31 = scmp.ne.s32.totalorder %s23, %s26
    %p32 = scmp.eq.s32.totalorder %s13, 0
    %p33 = por %p31, %p32
    %p34 = scmp.ne.s32.totalorder %s23, %s26
    %p35 = scmp.eq.s32.totalorder %s18, 1
    %p36 = por %p34, %p35
    %p37 = scmp.ne.s32.totalorder %s26, %s27
    %p38 = scmp.eq.s32.totalorder %s18, 0
    %p39 = por %p37, %p38
    %p40 = scmp.ne.s32.totalorder %s26, %s27
    %p41 = scmp.eq.s32.totalorder %s19, 1
    %p42 = por %p40, %p41
    %p44 = scmp.ne.s32.totalorder %s27, %s43
    %p45 = scmp.eq.s32.totalorder %s19, 0
    %p46 = por %p44, %p45
    %s48 = sadd.s32 %s47, 1
    %p51 = scmp.eq.s32.totalorder %s13, 1
    %p52 = scmp.ne.s32.totalorder %s47, %s49
    %p53 = scmp.eq.s32.totalorder %s13, 0
    %p54 = por %p52, %p53
    %p55 = scmp.ne.s32.totalorder %s47, %s49
    %p56 = scmp.eq.s32.totalorder %s18, 1
    %p57 = por %p55, %p56
    %p58 = scmp.ne.s32.totalorder %s49, %s50
    %p59 = scmp.eq.s32.totalorder %s18, 0
    %p60 = por %p58, %p59
    %p61 = scmp.ne.s32.totalorder %s49, %s50
    %p62 = scmp.eq.s32.totalorder %s19, 1
    %p63 = por %p61, %p62
    %p65 = scmp.ne.s32.totalorder %s50, %s64
    %p66 = scmp.eq.s32.totalorder %s19, 0
    %p67 = por %p65, %p66
    %s69 = sadd.s32 %s68, 1
    %p72 = scmp.eq.s32.totalorder %s13, 1
    %p73 = scmp.ne.s32.totalorder %s68, %s70
    %p74 = scmp.eq.s32.totalorder %s13, 0
    %p75 = por %p73, %p74
    %p76 = scmp.ne.s32.totalorder %s68, %s70
    %p77 = scmp.eq.s32.totalorder %s18, 1
    %p78 = por %p76, %p77
    %p79 = scmp.ne.s32.totalorder %s70, %s71
    %p80 = scmp.eq.s32.totalorder %s18, 0
    %p81 = por %p79, %p80
    %p82 = scmp.ne.s32.totalorder %s70, %s71
    %p83 = scmp.eq.s32.totalorder %s19, 1
    %p84 = por %p82, %p83
    %p86 = scmp.ne.s32.totalorder %s71, %s85
    %p87 = scmp.eq.s32.totalorder %s19, 0
    %p88 = por %p86, %p87
    %s90 = sadd.s32 %s89, 1
    %p93 = scmp.eq.s32.totalorder %s13, 1
    %p94 = scmp.ne.s32.totalorder %s89, %s91
    %p95 = scmp.eq.s32.totalorder %s13, 0
    %p96 = por %p94, %p95
    %p97 = scmp.ne.s32.totalorder %s89, %s91
    %p98 = scmp.eq.s32.totalorder %s18, 1
    %p99 = por %p97, %p98
    %p100 = scmp.ne.s32.totalorder %s91, %s92
    %p101 = scmp.eq.s32.totalorder %s18, 0
    %p102 = por %p100, %p101
    %p103 = scmp.ne.s32.totalorder %s91, %s92
    %p104 = scmp.eq.s32.totalorder %s19, 1
    %p105 = por %p103, %p104
    %p107 = scmp.ne.s32.totalorder %s92, %s106
    %p108 = scmp.eq.s32.totalorder %s19, 0
    %p109 = por %p107, %p108
    %s111 = sadd.s32 %s110, 1
    %p114 = scmp.eq.s32.totalorder %s13, 1
    %p115 = scmp.ne.s32.totalorder %s110, %s112
    %p116 = scmp.eq.s32.totalorder %s13, 0
    %p117 = por %p115, %p116
    %p118 = scmp.ne.s32.totalorder %s110, %s112
    %p119 = scmp.eq.s32.totalorder %s18, 1
    %p120 = por %p118, %p119
    %p121 = scmp.ne.s32.totalorder %s112, %s113
    %p122 = scmp.eq.s32.totalorder %s18, 0
    %p123 = por %p121, %p122
    %p124 = scmp.ne.s32.totalorder %s112, %s113
    %p125 = scmp.eq.s32.totalorder %s19, 1
    %p126 = por %p124, %p125
    %p128 = scmp.ne.s32.totalorder %s113, %s127
    %p129 = scmp.eq.s32.totalorder %s19, 0
    %p130 = por %p128, %p129
    %s131 = ssub.s32 %s13, %s20
    %p132 = scmp.eq.s32.totalorder %s131, 0
    %s134 = sadd.s32 %s133, 1
    %s135 = scalar_select %p132, %s133, %s134
    %p138 = pneg %p132
    %p139 = scmp.eq.s32.totalorder %s13, 1
    %p140 = por %p138, %p139
    %p141 = scmp.ne.s32.totalorder %s133, %s136
    %p142 = scmp.eq.s32.totalorder %s13, 0
    %p143 = por %p141, %p142
    %p144 = scmp.ne.s32.totalorder %s133, %s136
    %p145 = scmp.eq.s32.totalorder %s18, 1
    %p146 = por %p144, %p145
    %p147 = scmp.ne.s32.totalorder %s136, %s137
    %p148 = scmp.eq.s32.totalorder %s18, 0
    %p149 = por %p147, %p148
    %p150 = scmp.ne.s32.totalorder %s136, %s137
    %p151 = scmp.eq.s32.totalorder %s19, 1
    %p152 = por %p150, %p151
    %p154 = scmp.ne.s32.totalorder %s137, %s153
    %p155 = scmp.eq.s32.totalorder %s19, 0
    %p156 = por %p154, %p155
    %s157 = ssub.s32 %s13, %s20
    %p158 = scmp.eq.s32.totalorder %s157, 0
    %s160 = sadd.s32 %s159, 1
    %s161 = scalar_select %p158, %s159, %s160
    %p164 = pneg %p158
    %p165 = scmp.eq.s32.totalorder %s13, 1
    %p166 = por %p164, %p165
    %p167 = scmp.ne.s32.totalorder %s159, %s162
    %p168 = scmp.eq.s32.totalorder %s13, 0
    %p169 = por %p167, %p168
    %p170 = scmp.ne.s32.totalorder %s159, %s162
    %p171 = scmp.eq.s32.totalorder %s18, 1
    %p172 = por %p170, %p171
    %p173 = scmp.ne.s32.totalorder %s162, %s163
    %p174 = scmp.eq.s32.totalorder %s18, 0
    %p175 = por %p173, %p174
    %p176 = scmp.ne.s32.totalorder %s162, %s163
    %p177 = scmp.eq.s32.totalorder %s19, 1
    %p178 = por %p176, %p177
    %p180 = scmp.ne.s32.totalorder %s163, %s179
    %p181 = scmp.eq.s32.totalorder %s19, 0
    %p182 = por %p180, %p181
    %p183 = scmp.le.s32.totalorder 1, %s13
    %p184 = scmp.lt.s32.totalorder %s13, 3
    %p185 = pnand %p183, %p184
    %p186 = pneg %p185
    // Predicated region
    $region9: #{mha_gcn_forward.5} parent=5 // pred_check
      _
    $region10: #{mha_gcn_forward.5} parent=5 // pred_check_branch
      %188 = sbr.rel (%p185) target = $region12
    $region11: #{mha_gcn_forward.5} parent=5 // pred_region
      %s189 = ssub.s32 %s13, 1
      // Predicated region
      $region13: #{mha_gcn_forward.5} parent=11 // pred_check
        %p190 = pneg %p60
      $region14: #{mha_gcn_forward.5} parent=11 // pred_check_branch
        %192 = sbr.rel (%p190) target = $region16
      $region15: #{mha_gcn_forward.5} parent=11 // pred_region
        _
      $region16: #{mha_gcn_forward.5} parent=11 // pred_fallthru
        _
      // Predicated region
      $region17: #{mha_gcn_forward.5} parent=11 // pred_check
        %p193 = pneg %p81
      $region18: #{mha_gcn_forward.5} parent=11 // pred_check_branch
        %195 = sbr.rel (%p193) target = $region20
      $region19: #{mha_gcn_forward.5} parent=11 // pred_region
        _
      $region20: #{mha_gcn_forward.5} parent=11 // pred_fallthru
        _
      // Predicated region
      $region21: #{mha_gcn_forward.5} parent=11 // pred_check
        %p196 = pneg %p102
      $region22: #{mha_gcn_forward.5} parent=11 // pred_check_branch
        %198 = sbr.rel (%p196) target = $region24
      $region23: #{mha_gcn_forward.5} parent=11 // pred_region
        _
      $region24: #{mha_gcn_forward.5} parent=11 // pred_fallthru
        _
      // Predicated region
      $region25: #{mha_gcn_forward.5} parent=11 // pred_check
        %p199 = pneg %p123
      $region26: #{mha_gcn_forward.5} parent=11 // pred_check_branch
        %201 = sbr.rel (%p199) target = $region28
      $region27: #{mha_gcn_forward.5} parent=11 // pred_region
        _
      $region28: #{mha_gcn_forward.5} parent=11 // pred_fallthru
        _
    $region12: #{mha_gcn_forward.5} parent=5 // pred_fallthru
      _
    %p202 = scmp.lt.s32.totalorder %s13, 2
    // Predicated region
    $region29: #{mha_gcn_forward.5} parent=5 // pred_check
      %p203 = pneg %p202
    $region30: #{mha_gcn_forward.5} parent=5 // pred_check_branch
      %205 = sbr.rel (%p203) target = $region32
    $region31: #{mha_gcn_forward.5} parent=5 // pred_region
      // Predicated region
      $region33: #{mha_gcn_forward.5} parent=31 // pred_check
        %p206 = pneg %p33
      $region34: #{mha_gcn_forward.5} parent=31 // pred_check_branch
        %208 = sbr.rel (%p206) target = $region36
      $region35: #{mha_gcn_forward.5} parent=31 // pred_region
        %s209 = smul.u32 16, %s13
        %p210 = scmp.lt.s32.totalorder %s209, 31
        %s211 = scalar_select %p210, %s209, 31
        %s212 = smul.addr %s211, 4
        %s213 = smul.addr %s212, 4
        %s214 = scalar_lea.vmem %s0, %s213
        %s215 = smul.u32 16, %s13
      $region36: #{mha_gcn_forward.5} parent=31 // pred_fallthru
        _
    $region32: #{mha_gcn_forward.5} parent=5 // pred_fallthru
      _
    %p216 = scmp.le.s32.totalorder 1, %s13
    %p217 = scmp.lt.s32.totalorder %s13, 3
    %p218 = pnand %p216, %p217
    %p219 = pneg %p218
    // Predicated region
    $region37: #{mha_gcn_forward.5} parent=5 // pred_check
      _
    $region38: #{mha_gcn_forward.5} parent=5 // pred_check_branch
      %221 = sbr.rel (%p218) target = $region40
    $region39: #{mha_gcn_forward.5} parent=5 // pred_region
      %s222 = ssub.s32 %s13, 1
      %s223 = smul.u32 16, %s18
      %p224 = scmp.lt.s32.totalorder %s223, 31
      %s225 = scalar_select %p224, %s223, 31
      %s226 = smul.addr %s225, 4
      %s227 = smul.addr %s226, 4
      %s228 = scalar_lea.vmem %s0, %s227
      %p229 = pneg %p39
      %p230 = pneg %p36
      %p231 = pneg %p60
      %p232 = pneg %p57
      %p233 = pneg %p81
      %p234 = pneg %p78
      %p235 = pneg %p102
      %p236 = pneg %p99
      %p237 = pneg %p123
      %p238 = pneg %p120
      %p239 = pneg %p149
      %p240 = pneg %p146
      %s241 = smul.u32 16, %s18
      %p242 = scmp.lt.s32.totalorder %s241, 31
      %s243 = scalar_select %p242, %s241, 31
      %s244 = smul.addr %s243, 4
      %s245 = smul.addr %s244, 8
      %s246 = scalar_lea.vmem %s5, %s245
      %p247 = pneg %p175
      %p248 = pneg %p172
      %s249 = smul.u32 16, %s18
      %p250 = scmp.lt.s32.totalorder %s249, 31
      %s251 = scalar_select %p250, %s249, 31
      %s252 = smul.addr %s251, 2
      %s253 = smul.addr %s252, 4
      %s254 = scalar_lea.vmem %s6, %s253
      %s255 = smul.u32 16, %s18
      %p256 = scmp.lt.s32.totalorder %s255, 31
      %s257 = scalar_select %p256, %s255, 31
      %s258 = smul.addr %s257, 4
      %s259 = smul.addr %s258, 4
      %s260 = scalar_lea.vmem %s0, %s259
      %s261 = smul.u32 16, %s18
      %s262 = smul.u32 16, %s18
      %p263 = scmp.lt.s32.totalorder %s262, 31
      %s264 = scalar_select %p263, %s262, 31
      %s265 = smul.addr %s264, 4
      %s266 = smul.addr %s265, 8
      %s267 = scalar_lea.vmem %s5, %s266
      %s268 = smul.u32 16, %s18
      %s269 = smul.u32 16, %s18
      %p270 = scmp.lt.s32.totalorder %s269, 31
      %s271 = scalar_select %p270, %s269, 31
      %s272 = smul.addr %s271, 2
      %s273 = smul.addr %s272, 4
      %s274 = scalar_lea.vmem %s6, %s273
      %s275 = smul.u32 16, %s18
      %v277 = vlaneseq
      %v278 = vand.u32 %v277, 127
      %v279 = vadd.s32 %v278, 128
      %vm280 = vcmp.lt.s32.totalorder %v278, 16
      %vm281 = vcmp.lt.s32.totalorder %v279, 16
      %v282 = vsel %vm280, 0.0, -1e+30
      %v283 = vsel %vm281, 0.0, -1e+30
      %v284 = vld [vmem:[%s260] sm:$0xf]
      %v285 = vld [vmem:[%s260 + $0x10] sm:$0xf]
      %v286 = vld [vmem:[%s260 + $0x20] sm:$0xf]
      %v287 = vld [vmem:[%s260 + $0x30] sm:$0xf]
      %v288 = vld [vmem:[%s260 + $0x40] sm:$0xf]
      %v289 = vld [vmem:[%s260 + $0x50] sm:$0xf]
      %v290 = vld [vmem:[%s260 + $0x60] sm:$0xf]
      %v291 = vld [vmem:[%s260 + $0x70] sm:$0xf]
      %v292 = vld [vmem:[%s260 + $0x80] sm:$0xf]
      %v293 = vld [vmem:[%s260 + $0x90] sm:$0xf]
      %v294 = vld [vmem:[%s260 + $0xa0] sm:$0xf]
      %v295 = vld [vmem:[%s260 + $0xb0] sm:$0xf]
      %v296 = vld [vmem:[%s260 + $0xc0] sm:$0xf]
      %v297 = vld [vmem:[%s260 + $0xd0] sm:$0xf]
      %v298 = vld [vmem:[%s260 + $0xe0] sm:$0xf]
      %v299 = vld [vmem:[%s260 + $0xf0] sm:$0xf]
      %v300 = vld [vmem:[%s1] sm:$0xf]
      %v301 = vld [vmem:[%s1 + $0x10] sm:$0xf]
      %v302 = vld [vmem:[%s1 + $0x20] sm:$0xf]
      %v303 = vld [vmem:[%s1 + $0x30] sm:$0xf]
      %v304 = vld [vmem:[%s1 + $0x40] sm:$0xf]
      %v305 = vld [vmem:[%s1 + $0x50] sm:$0xf]
      %v306 = vld [vmem:[%s1 + $0x60] sm:$0xf]
      %v307 = vld [vmem:[%s1 + $0x70] sm:$0xf]
      %v308 = vld [vmem:[%s1 + $0x80] sm:$0xf]
      %v309 = vld [vmem:[%s1 + $0x90] sm:$0xf]
      %v310 = vld [vmem:[%s1 + $0xa0] sm:$0xf]
      %v311 = vld [vmem:[%s1 + $0xb0] sm:$0xf]
      %v312 = vld [vmem:[%s1 + $0xc0] sm:$0xf]
      %v313 = vld [vmem:[%s1 + $0xd0] sm:$0xf]
      %v314 = vld [vmem:[%s1 + $0xe0] sm:$0xf]
      %v315 = vld [vmem:[%s1 + $0xf0] sm:$0xf]
      %v316 = vld [vmem:[%s1 + $0x100] sm:$0xf]
      %v317 = vld [vmem:[%s1 + $0x110] sm:$0xf]
      %v318 = vld [vmem:[%s1 + $0x120] sm:$0xf]
      %v319 = vld [vmem:[%s1 + $0x130] sm:$0xf]
      %v320 = vld [vmem:[%s1 + $0x140] sm:$0xf]
      %v321 = vld [vmem:[%s1 + $0x150] sm:$0xf]
      %v322 = vld [vmem:[%s1 + $0x160] sm:$0xf]
      %v323 = vld [vmem:[%s1 + $0x170] sm:$0xf]
      %v324 = vld [vmem:[%s1 + $0x180] sm:$0xf]
      %v325 = vld [vmem:[%s1 + $0x190] sm:$0xf]
      %v326 = vld [vmem:[%s1 + $0x1a0] sm:$0xf]
      %v327 = vld [vmem:[%s1 + $0x1b0] sm:$0xf]
      %v328 = vld [vmem:[%s1 + $0x1c0] sm:$0xf]
      %v329 = vld [vmem:[%s1 + $0x1d0] sm:$0xf]
      %v330 = vld [vmem:[%s1 + $0x1e0] sm:$0xf]
      %v331 = vld [vmem:[%s1 + $0x1f0] sm:$0xf]
      %v348 = vunpack.c.l.b16 %v284
      %v349 = vunpack.c.l.b16 %v285
      %v350 = vunpack.c.l.b16 %v286
      %v351 = vunpack.c.l.b16 %v287
      %v352 = vunpack.c.l.b16 %v288
      %v353 = vunpack.c.l.b16 %v289
      %v354 = vunpack.c.l.b16 %v290
      %v355 = vunpack.c.l.b16 %v291
      %v356 = vunpack.c.l.b16 %v292
      %v357 = vunpack.c.l.b16 %v293
      %v358 = vunpack.c.l.b16 %v294
      %v359 = vunpack.c.l.b16 %v295
      %v360 = vunpack.c.l.b16 %v296
      %v361 = vunpack.c.l.b16 %v297
      %v362 = vunpack.c.l.b16 %v298
      %v363 = vunpack.c.l.b16 %v299
      %v364 = vpack.c.b16 %v349, %v348
      %v365 = vpack.c.b16 %v351, %v350
      %v366 = vpack.c.b16 %v353, %v352
      %v367 = vpack.c.b16 %v355, %v354
      %v368 = vpack.c.b16 %v357, %v356
      %v369 = vpack.c.b16 %v359, %v358
      %v370 = vpack.c.b16 %v361, %v360
      %v371 = vpack.c.b16 %v363, %v362
      %v412 = vunpack.c.l.b16 %v300
      %v413 = vunpack.c.l.b16 %v301
      %v414 = vunpack.c.l.b16 %v302
      %v415 = vunpack.c.l.b16 %v303
      %v416 = vunpack.c.l.b16 %v304
      %v417 = vunpack.c.l.b16 %v305
      %v418 = vunpack.c.l.b16 %v306
      %v419 = vunpack.c.l.b16 %v307
      %v420 = vunpack.c.l.b16 %v308
      %v421 = vunpack.c.l.b16 %v309
      %v422 = vunpack.c.l.b16 %v310
      %v423 = vunpack.c.l.b16 %v311
      %v424 = vunpack.c.l.b16 %v312
      %v425 = vunpack.c.l.b16 %v313
      %v426 = vunpack.c.l.b16 %v314
      %v427 = vunpack.c.l.b16 %v315
      %v428 = vunpack.c.l.b16 %v316
      %v429 = vunpack.c.l.b16 %v317
      %v430 = vunpack.c.l.b16 %v318
      %v431 = vunpack.c.l.b16 %v319
      %v432 = vunpack.c.l.b16 %v320
      %v433 = vunpack.c.l.b16 %v321
      %v434 = vunpack.c.l.b16 %v322
      %v435 = vunpack.c.l.b16 %v323
      %v436 = vunpack.c.l.b16 %v324
      %v437 = vunpack.c.l.b16 %v325
      %v438 = vunpack.c.l.b16 %v326
      %v439 = vunpack.c.l.b16 %v327
      %v440 = vunpack.c.l.b16 %v328
      %v441 = vunpack.c.l.b16 %v329
      %v442 = vunpack.c.l.b16 %v330
      %v443 = vunpack.c.l.b16 %v331
      %v444 = vpack.c.b16 %v413, %v412
      %v445 = vpack.c.b16 %v415, %v414
      %v446 = vpack.c.b16 %v417, %v416
      %v447 = vpack.c.b16 %v419, %v418
      %v448 = vpack.c.b16 %v421, %v420
      %v449 = vpack.c.b16 %v423, %v422
      %v450 = vpack.c.b16 %v425, %v424
      %v451 = vpack.c.b16 %v427, %v426
      %v452 = vpack.c.b16 %v429, %v428
      %v453 = vpack.c.b16 %v431, %v430
      %v454 = vpack.c.b16 %v433, %v432
      %v455 = vpack.c.b16 %v435, %v434
      %v456 = vpack.c.b16 %v437, %v436
      %v457 = vpack.c.b16 %v439, %v438
      %v458 = vpack.c.b16 %v441, %v440
      %v459 = vpack.c.b16 %v443, %v442
      %476 = vmatprep.subr.bf16.mxu0 0
      %477 = vmatpush1.bf16.xpose.msra.mxu0 %v444
      %478 = vmatprep.subr.bf16.mxu0 0
      %479 = vmatpush1.bf16.xpose.msra.mxu0 %v445
      %480 = vmatprep.subr.bf16.mxu0 0
      %481 = vmatpush1.bf16.xpose.msra.mxu0 %v446
      %482 = vmatprep.subr.bf16.mxu0 0
      %483 = vmatpush1.bf16.xpose.msra.mxu0 %v447
      %484 = vmatprep.subr.bf16.mxu0 0
      %485 = vmatpush1.bf16.xpose.msra.mxu0 %v448
      %486 = vmatprep.subr.bf16.mxu0 0
      %487 = vmatpush1.bf16.xpose.msra.mxu0 %v449
      %488 = vmatprep.subr.bf16.mxu0 0
      %489 = vmatpush1.bf16.xpose.msra.mxu0 %v450
      %490 = vmatprep.subr.bf16.mxu0 0
      %491 = vmatpush1.bf16.xpose.msra.mxu0 %v451
      %492 = vmatprep.subr.bf16.mxu0 0
      %493 = vmatpush1.bf16.xpose.msra.mxu0 %v452
      %494 = vmatprep.subr.bf16.mxu0 0
      %495 = vmatpush1.bf16.xpose.msra.mxu0 %v453
      %496 = vmatprep.subr.bf16.mxu0 0
      %497 = vmatpush1.bf16.xpose.msra.mxu0 %v454
      %498 = vmatprep.subr.bf16.mxu0 0
      %499 = vmatpush1.bf16.xpose.msra.mxu0 %v455
      %500 = vmatprep.subr.bf16.mxu0 0
      %501 = vmatpush1.bf16.xpose.msra.mxu0 %v456
      %502 = vmatprep.subr.bf16.mxu0 0
      %503 = vmatpush1.bf16.xpose.msra.mxu0 %v457
      %504 = vmatprep.subr.bf16.mxu0 0
      %505 = vmatpush1.bf16.xpose.msra.mxu0 %v458
      %506 = vmatprep.subr.bf16.mxu0 0
      %507 = vmatpush1.bf16.xpose.msra.mxu0 %v459
      %508 = vmatprep.mubr.bf16.mxu0 0
      %509 = vmatmul.mubr.bf16.gmra.mrb[0].mxu0 %v364
      %v510 = vpop.f32.mrb[0].mxu0
      %v511 = vadd.f32 %v282, %v510
      %v512 = vpop.f32.mrb[0].mxu0
      %v513 = vadd.f32 %v283, %v512
      %v514 = vpop.f32.mrb[0].mxu0
      %v515 = vadd.f32 %v282, %v514
      %v516 = vpop.f32.mrb[0].mxu0
      %v517 = vadd.f32 %v283, %v516
      %518 = vmatprep.mubr.bf16.mxu0 0
      %519 = vmatmul.mubr.bf16.gmra.mrb[0].mxu0 %v365
      %v520 = vpop.f32.mrb[0].mxu0
      %v521 = vadd.f32 %v282, %v520
      %v522 = vpop.f32.mrb[0].mxu0
      %v523 = vadd.f32 %v283, %v522
      %v524 = vpop.f32.mrb[0].mxu0
      %v525 = vadd.f32 %v282, %v524
      %v526 = vpop.f32.mrb[0].mxu0
      %v527 = vadd.f32 %v283, %v526
      %528 = vmatprep.mubr.bf16.mxu0 0
      %529 = vmatmul.mubr.bf16.gmra.mrb[0].mxu0 %v366
      %v530 = vpop.f32.mrb[0].mxu0
      %v531 = vadd.f32 %v282, %v530
      %v532 = vpop.f32.mrb[0].mxu0
      %v533 = vadd.f32 %v283, %v532
      %v534 = vpop.f32.mrb[0].mxu0
      %v535 = vadd.f32 %v282, %v534
      %v536 = vpop.f32.mrb[0].mxu0
      %v537 = vadd.f32 %v283, %v536
      %538 = vmatprep.mubr.bf16.mxu0 0
      %539 = vmatmul.mubr.bf16.gmra.mrb[0].mxu0 %v367
      %v540 = vpop.f32.mrb[0].mxu0
      %v541 = vadd.f32 %v282, %v540
      %v542 = vpop.f32.mrb[0].mxu0
      %v543 = vadd.f32 %v283, %v542
      %v544 = vpop.f32.mrb[0].mxu0
      %v545 = vadd.f32 %v282, %v544
      %v546 = vpop.f32.mrb[0].mxu0
      %v547 = vadd.f32 %v283, %v546
      %548 = vmatprep.mubr.bf16.mxu0 0
      %549 = vmatmul.mubr.bf16.gmra.mrb[0].mxu0 %v368
      %v550 = vpop.f32.mrb[0].mxu0
      %v551 = vadd.f32 %v282, %v550
      %v552 = vpop.f32.mrb[0].mxu0
      %v553 = vadd.f32 %v283, %v552
      %v554 = vpop.f32.mrb[0].mxu0
      %v555 = vadd.f32 %v282, %v554
      %v556 = vpop.f32.mrb[0].mxu0
      %v557 = vadd.f32 %v283, %v556
      %558 = vmatprep.mubr.bf16.mxu0 0
      %559 = vmatmul.mubr.bf16.gmra.mrb[0].mxu0 %v369
      %v560 = vpop.f32.mrb[0].mxu0
      %v561 = vadd.f32 %v282, %v560
      %v562 = vpop.f32.mrb[0].mxu0
      %v563 = vadd.f32 %v283, %v562
      %v564 = vpop.f32.mrb[0].mxu0
      %v565 = vadd.f32 %v282, %v564
      %v566 = vpop.f32.mrb[0].mxu0
      %v567 = vadd.f32 %v283, %v566
      %568 = vmatprep.mubr.bf16.mxu0 0
      %569 = vmatmul.mubr.bf16.gmra.mrb[0].mxu0 %v370
      %v570 = vpop.f32.mrb[0].mxu0
      %v571 = vadd.f32 %v282, %v570
      %v572 = vpop.f32.mrb[0].mxu0
      %v573 = vadd.f32 %v283, %v572
      %v574 = vpop.f32.mrb[0].mxu0
      %v575 = vadd.f32 %v282, %v574
      %v576 = vpop.f32.mrb[0].mxu0
      %v577 = vadd.f32 %v283, %v576
      %578 = vmatprep.mubr.bf16.mxu0 0
      %579 = vmatmul.mubr.bf16.gmra.mrb[0].mxu0 %v371
      %v580 = vpop.f32.mrb[0].mxu0
      %v581 = vadd.f32 %v282, %v580
      %v582 = vpop.f32.mrb[0].mxu0
      %v583 = vadd.f32 %v283, %v582
      %v584 = vpop.f32.mrb[0].mxu0
      %v585 = vadd.f32 %v282, %v584
      %v586 = vpop.f32.mrb[0].mxu0
      %v587 = vadd.f32 %v283, %v586
      %588 = vdwg.mxu0
      %v589 = vmax.f32 %v511, %v513
      %590 = vmax.xlane.f32.xlu0 %v589
      %v591 = vpop.xlane.xlu0 %590
      %v592 = vmax.f32 %v515, %v517
      %593 = vmax.xlane.f32.xlu0 %v592
      %v594 = vpop.xlane.xlu0 %593
      %v595 = vmax.f32 %v521, %v523
      %596 = vmax.xlane.f32.xlu0 %v595
      %v597 = vpop.xlane.xlu0 %596
      %v598 = vmax.f32 %v525, %v527
      %599 = vmax.xlane.f32.xlu0 %v598
      %v600 = vpop.xlane.xlu0 %599
      %v601 = vmax.f32 %v531, %v533
      %602 = vmax.xlane.f32.xlu0 %v601
      %v603 = vpop.xlane.xlu0 %602
      %v604 = vmax.f32 %v535, %v537
      %605 = vmax.xlane.f32.xlu0 %v604
      %v606 = vpop.xlane.xlu0 %605
      %v607 = vmax.f32 %v541, %v543
      %608 = vmax.xlane.f32.xlu0 %v607
      %v609 = vpop.xlane.xlu0 %608
      %v610 = vmax.f32 %v545, %v547
      %611 = vmax.xlane.f32.xlu0 %v610
      %v612 = vpop.xlane.xlu0 %611
      %v613 = vmax.f32 %v551, %v553
      %614 = vmax.xlane.f32.xlu0 %v613
      %v615 = vpop.xlane.xlu0 %614
      %v616 = vmax.f32 %v555, %v557
      %617 = vmax.xlane.f32.xlu0 %v616
      %v618 = vpop.xlane.xlu0 %617
      %v619 = vmax.f32 %v561, %v563
      %620 = vmax.xlane.f32.xlu0 %v619
      %v621 = vpop.xlane.xlu0 %620
      %v622 = vmax.f32 %v565, %v567
      %623 = vmax.xlane.f32.xlu0 %v622
      %v624 = vpop.xlane.xlu0 %623
      %v625 = vmax.f32 %v571, %v573
      %626 = vmax.xlane.f32.xlu0 %v625
      %v627 = vpop.xlane.xlu0 %626
      %v628 = vmax.f32 %v575, %v577
      %629 = vmax.xlane.f32.xlu0 %v628
      %v630 = vpop.xlane.xlu0 %629
      %v631 = vmax.f32 %v581, %v583
      %632 = vmax.xlane.f32.xlu0 %v631
      %v633 = vpop.xlane.xlu0 %632
      %v634 = vmax.f32 %v585, %v587
      %635 = vmax.xlane.f32.xlu0 %v634
      %v636 = vpop.xlane.xlu0 %635
      %v637 = vsub.f32 %v511, %v591
      %v638 = vsub.f32 %v513, %v591
      %v639 = vsub.f32 %v515, %v594
      %v640 = vsub.f32 %v517, %v594
      %v641 = vsub.f32 %v521, %v597
      %v642 = vsub.f32 %v523, %v597
      %v643 = vsub.f32 %v525, %v600
      %v644 = vsub.f32 %v527, %v600
      %v645 = vsub.f32 %v531, %v603
      %v646 = vsub.f32 %v533, %v603
      %v647 = vsub.f32 %v535, %v606
      %v648 = vsub.f32 %v537, %v606
      %v649 = vsub.f32 %v541, %v609
      %v650 = vsub.f32 %v543, %v609
      %v651 = vsub.f32 %v545, %v612
      %v652 = vsub.f32 %v547, %v612
      %v653 = vsub.f32 %v551, %v615
      %v654 = vsub.f32 %v553, %v615
      %v655 = vsub.f32 %v555, %v618
      %v656 = vsub.f32 %v557, %v618
      %v657 = vsub.f32 %v561, %v621
      %v658 = vsub.f32 %v563, %v621
      %v659 = vsub.f32 %v565, %v624
      %v660 = vsub.f32 %v567, %v624
      %v661 = vsub.f32 %v571, %v627
      %v662 = vsub.f32 %v573, %v627
      %v663 = vsub.f32 %v575, %v630
      %v664 = vsub.f32 %v577, %v630
      %v665 = vsub.f32 %v581, %v633
      %v666 = vsub.f32 %v583, %v633
      %v667 = vsub.f32 %v585, %v636
      %v668 = vsub.f32 %v587, %v636
      %v669 = vmul.f32 %v637, 1.442695
      %v670 = vpow.pop %v669
      %v671 = vmul.f32 %v638, 1.442695
      %v672 = vpow.pop %v671
      %v673 = vmul.f32 %v639, 1.442695
      %v674 = vpow.pop %v673
      %v675 = vmul.f32 %v640, 1.442695
      %v676 = vpow.pop %v675
      %v677 = vmul.f32 %v641, 1.442695
      %v678 = vpow.pop %v677
      %v679 = vmul.f32 %v642, 1.442695
      %v680 = vpow.pop %v679
      %v681 = vmul.f32 %v643, 1.442695
      %v682 = vpow.pop %v681
      %v683 = vmul.f32 %v644, 1.442695
      %v684 = vpow.pop %v683
      %v685 = vmul.f32 %v645, 1.442695
      %v686 = vpow.pop %v685
      %v687 = vmul.f32 %v646, 1.442695
      %v688 = vpow.pop %v687
      %v689 = vmul.f32 %v647, 1.442695
      %v690 = vpow.pop %v689
      %v691 = vmul.f32 %v648, 1.442695
      %v692 = vpow.pop %v691
      %v693 = vmul.f32 %v649, 1.442695
      %v694 = vpow.pop %v693
      %v695 = vmul.f32 %v650, 1.442695
      %v696 = vpow.pop %v695
      %v697 = vmul.f32 %v651, 1.442695
      %v698 = vpow.pop %v697
      %v699 = vmul.f32 %v652, 1.442695
      %v700 = vpow.pop %v699
      %v701 = vmul.f32 %v653, 1.442695
      %v702 = vpow.pop %v701
      %v703 = vmul.f32 %v654, 1.442695
      %v704 = vpow.pop %v703
      %v705 = vmul.f32 %v655, 1.442695
      %v706 = vpow.pop %v705
      %v707 = vmul.f32 %v656, 1.442695
      %v708 = vpow.pop %v707
      %v709 = vmul.f32 %v657, 1.442695
      %v710 = vpow.pop %v709
      %v711 = vmul.f32 %v658, 1.442695
      %v712 = vpow.pop %v711
      %v713 = vmul.f32 %v659, 1.442695
      %v714 = vpow.pop %v713
      %v715 = vmul.f32 %v660, 1.442695
      %v716 = vpow.pop %v715
      %v717 = vmul.f32 %v661, 1.442695
      %v718 = vpow.pop %v717
      %v719 = vmul.f32 %v662, 1.442695
      %v720 = vpow.pop %v719
      %v721 = vmul.f32 %v663, 1.442695
      %v722 = vpow.pop %v721
      %v723 = vmul.f32 %v664, 1.442695
      %v724 = vpow.pop %v723
      %v725 = vmul.f32 %v665, 1.442695
      %v726 = vpow.pop %v725
      %v727 = vmul.f32 %v666, 1.442695
      %v728 = vpow.pop %v727
      %v729 = vmul.f32 %v667, 1.442695
      %v730 = vpow.pop %v729
      %v731 = vmul.f32 %v668, 1.442695
      %v732 = vpow.pop %v731
      %v733 = vadd.f32 %v670, %v672
      %734 = vadd.xlane.f32.xlu0 %v733
      %v735 = vpop.xlane.xlu0 %734
      %v736 = vadd.f32 %v674, %v676
      %737 = vadd.xlane.f32.xlu0 %v736
      %v738 = vpop.xlane.xlu0 %737
      %v739 = vadd.f32 %v678, %v680
      %740 = vadd.xlane.f32.xlu0 %v739
      %v741 = vpop.xlane.xlu0 %740
      %v742 = vadd.f32 %v682, %v684
      %743 = vadd.xlane.f32.xlu0 %v742
      %v744 = vpop.xlane.xlu0 %743
      %v745 = vadd.f32 %v686, %v688
      %746 = vadd.xlane.f32.xlu0 %v745
      %v747 = vpop.xlane.xlu0 %746
      %v748 = vadd.f32 %v690, %v692
      %749 = vadd.xlane.f32.xlu0 %v748
      %v750 = vpop.xlane.xlu0 %749
      %v751 = vadd.f32 %v694, %v696
      %752 = vadd.xlane.f32.xlu0 %v751
      %v753 = vpop.xlane.xlu0 %752
      %v754 = vadd.f32 %v698, %v700
      %755 = vadd.xlane.f32.xlu0 %v754
      %v756 = vpop.xlane.xlu0 %755
      %v757 = vadd.f32 %v702, %v704
      %758 = vadd.xlane.f32.xlu0 %v757
      %v759 = vpop.xlane.xlu0 %758
      %v760 = vadd.f32 %v706, %v708
      %761 = vadd.xlane.f32.xlu0 %v760
      %v762 = vpop.xlane.xlu0 %761
      %v763 = vadd.f32 %v710, %v712
      %764 = vadd.xlane.f32.xlu0 %v763
      %v765 = vpop.xlane.xlu0 %764
      %v766 = vadd.f32 %v714, %v716
      %767 = vadd.xlane.f32.xlu0 %v766
      %v768 = vpop.xlane.xlu0 %767
      %v769 = vadd.f32 %v718, %v720
      %770 = vadd.xlane.f32.xlu0 %v769
      %v771 = vpop.xlane.xlu0 %770
      %v772 = vadd.f32 %v722, %v724
      %773 = vadd.xlane.f32.xlu0 %v772
      %v774 = vpop.xlane.xlu0 %773
      %v775 = vadd.f32 %v726, %v728
      %776 = vadd.xlane.f32.xlu0 %v775
      %v777 = vpop.xlane.xlu0 %776
      %v778 = vadd.f32 %v730, %v732
      %779 = vadd.xlane.f32.xlu0 %v778
      %v780 = vpop.xlane.xlu0 %779
      %v781 = vrcp.pop %v735
      %v782 = vrcp.pop %v738
      %v783 = vrcp.pop %v741
      %v784 = vrcp.pop %v744
      %v785 = vrcp.pop %v747
      %v786 = vrcp.pop %v750
      %v787 = vrcp.pop %v753
      %v788 = vrcp.pop %v756
      %v789 = vrcp.pop %v759
      %v790 = vrcp.pop %v762
      %v791 = vrcp.pop %v765
      %v792 = vrcp.pop %v768
      %v793 = vrcp.pop %v771
      %v794 = vrcp.pop %v774
      %v795 = vrcp.pop %v777
      %v796 = vrcp.pop %v780
      %v797 = vmul.f32 %v670, %v781
      %v798 = vmul.f32 %v672, %v781
      %v799 = vmul.f32 %v674, %v782
      %v800 = vmul.f32 %v676, %v782
      %v801 = vmul.f32 %v678, %v783
      %v802 = vmul.f32 %v680, %v783
      %v803 = vmul.f32 %v682, %v784
      %v804 = vmul.f32 %v684, %v784
      %v805 = vmul.f32 %v686, %v785
      %v806 = vmul.f32 %v688, %v785
      %v807 = vmul.f32 %v690, %v786
      %v808 = vmul.f32 %v692, %v786
      %v809 = vmul.f32 %v694, %v787
      %v810 = vmul.f32 %v696, %v787
      %v811 = vmul.f32 %v698, %v788
      %v812 = vmul.f32 %v700, %v788
      %v813 = vmul.f32 %v702, %v789
      %v814 = vmul.f32 %v704, %v789
      %v815 = vmul.f32 %v706, %v790
      %v816 = vmul.f32 %v708, %v790
      %v817 = vmul.f32 %v710, %v791
      %v818 = vmul.f32 %v712, %v791
      %v819 = vmul.f32 %v714, %v792
      %v820 = vmul.f32 %v716, %v792
      %v821 = vmul.f32 %v718, %v793
      %v822 = vmul.f32 %v720, %v793
      %v823 = vmul.f32 %v722, %v794
      %v824 = vmul.f32 %v724, %v794
      %v825 = vmul.f32 %v726, %v795
      %v826 = vmul.f32 %v728, %v795
      %v827 = vmul.f32 %v730, %v796
      %v828 = vmul.f32 %v732, %v796
      %v829 = vpack.c.bf16 %v799, %v797
      %v830 = vpack.c.bf16 %v800, %v798
      %v831 = vpack.c.bf16 %v803, %v801
      %v832 = vpack.c.bf16 %v804, %v802
      %v833 = vpack.c.bf16 %v807, %v805
      %v834 = vpack.c.bf16 %v808, %v806
      %v835 = vpack.c.bf16 %v811, %v809
      %v836 = vpack.c.bf16 %v812, %v810
      %v837 = vpack.c.bf16 %v815, %v813
      %v838 = vpack.c.bf16 %v816, %v814
      %v839 = vpack.c.bf16 %v819, %v817
      %v840 = vpack.c.bf16 %v820, %v818
      %v841 = vpack.c.bf16 %v823, %v821
      %v842 = vpack.c.bf16 %v824, %v822
      %v843 = vpack.c.bf16 %v827, %v825
      %v844 = vpack.c.bf16 %v828, %v826
      %v845 = vld [vmem:[%s2] sm:$0xf]
      %v846 = vld [vmem:[%s2 + $0x10] sm:$0xf]
      %v847 = vld [vmem:[%s2 + $0x20] sm:$0xf]
      %v848 = vld [vmem:[%s2 + $0x30] sm:$0xf]
      %v849 = vld [vmem:[%s2 + $0x40] sm:$0xf]
      %v850 = vld [vmem:[%s2 + $0x50] sm:$0xf]
      %v851 = vld [vmem:[%s2 + $0x60] sm:$0xf]
      %v852 = vld [vmem:[%s2 + $0x70] sm:$0xf]
      %v853 = vld [vmem:[%s2 + $0x80] sm:$0xf]
      %v854 = vld [vmem:[%s2 + $0x90] sm:$0xf]
      %v855 = vld [vmem:[%s2 + $0xa0] sm:$0xf]
      %v856 = vld [vmem:[%s2 + $0xb0] sm:$0xf]
      %v857 = vld [vmem:[%s2 + $0xc0] sm:$0xf]
      %v858 = vld [vmem:[%s2 + $0xd0] sm:$0xf]
      %v859 = vld [vmem:[%s2 + $0xe0] sm:$0xf]
      %v860 = vld [vmem:[%s2 + $0xf0] sm:$0xf]
      %v861 = vld [vmem:[%s2 + $0x100] sm:$0xf]
      %v862 = vld [vmem:[%s2 + $0x110] sm:$0xf]
      %v863 = vld [vmem:[%s2 + $0x120] sm:$0xf]
      %v864 = vld [vmem:[%s2 + $0x130] sm:$0xf]
      %v865 = vld [vmem:[%s2 + $0x140] sm:$0xf]
      %v866 = vld [vmem:[%s2 + $0x150] sm:$0xf]
      %v867 = vld [vmem:[%s2 + $0x160] sm:$0xf]
      %v868 = vld [vmem:[%s2 + $0x170] sm:$0xf]
      %v869 = vld [vmem:[%s2 + $0x180] sm:$0xf]
      %v870 = vld [vmem:[%s2 + $0x190] sm:$0xf]
      %v871 = vld [vmem:[%s2 + $0x1a0] sm:$0xf]
      %v872 = vld [vmem:[%s2 + $0x1b0] sm:$0xf]
      %v873 = vld [vmem:[%s2 + $0x1c0] sm:$0xf]
      %v874 = vld [vmem:[%s2 + $0x1d0] sm:$0xf]
      %v875 = vld [vmem:[%s2 + $0x1e0] sm:$0xf]
      %v876 = vld [vmem:[%s2 + $0x1f0] sm:$0xf]
      %v909 = vunpack.c.l.b16 %v845
      %v910 = vunpack.c.l.b16 %v846
      %v911 = vunpack.c.l.b16 %v847
      %v912 = vunpack.c.l.b16 %v848
      %v913 = vunpack.c.l.b16 %v849
      %v914 = vunpack.c.l.b16 %v850
      %v915 = vunpack.c.l.b16 %v851
      %v916 = vunpack.c.l.b16 %v852
      %v917 = vunpack.c.l.b16 %v853
      %v918 = vunpack.c.l.b16 %v854
      %v919 = vunpack.c.l.b16 %v855
      %v920 = vunpack.c.l.b16 %v856
      %v921 = vunpack.c.l.b16 %v857
      %v922 = vunpack.c.l.b16 %v858
      %v923 = vunpack.c.l.b16 %v859
      %v924 = vunpack.c.l.b16 %v860
      %v925 = vunpack.c.l.b16 %v861
      %v926 = vunpack.c.l.b16 %v862
      %v927 = vunpack.c.l.b16 %v863
      %v928 = vunpack.c.l.b16 %v864
      %v929 = vunpack.c.l.b16 %v865
      %v930 = vunpack.c.l.b16 %v866
      %v931 = vunpack.c.l.b16 %v867
      %v932 = vunpack.c.l.b16 %v868
      %v933 = vunpack.c.l.b16 %v869
      %v934 = vunpack.c.l.b16 %v870
      %v935 = vunpack.c.l.b16 %v871
      %v936 = vunpack.c.l.b16 %v872
      %v937 = vunpack.c.l.b16 %v873
      %v938 = vunpack.c.l.b16 %v874
      %v939 = vunpack.c.l.b16 %v875
      %v940 = vunpack.c.l.b16 %v876
      %v941 = vpack.c.b16 %v910, %v909
      %v942 = vpack.c.b16 %v912, %v911
      %v943 = vpack.c.b16 %v914, %v913
      %v944 = vpack.c.b16 %v916, %v915
      %v945 = vpack.c.b16 %v918, %v917
      %v946 = vpack.c.b16 %v920, %v919
      %v947 = vpack.c.b16 %v922, %v921
      %v948 = vpack.c.b16 %v924, %v923
      %v949 = vpack.c.b16 %v926, %v925
      %v950 = vpack.c.b16 %v928, %v927
      %v951 = vpack.c.b16 %v930, %v929
      %v952 = vpack.c.b16 %v932, %v931
      %v953 = vpack.c.b16 %v934, %v933
      %v954 = vpack.c.b16 %v936, %v935
      %v955 = vpack.c.b16 %v938, %v937
      %v956 = vpack.c.b16 %v940, %v939
      %973 = vmatprep.subr.bf16.mxu0 0
      %974 = vmatpush1.bf16.msra.mxu0 %v941
      %975 = vmatprep.subr.bf16.mxu0 0
      %976 = vmatpush1.bf16.msra.mxu0 %v942
      %977 = vmatprep.subr.bf16.mxu0 0
      %978 = vmatpush1.bf16.msra.mxu0 %v943
      %979 = vmatprep.subr.bf16.mxu0 0
      %980 = vmatpush1.bf16.msra.mxu0 %v944
      %981 = vmatprep.subr.bf16.mxu0 0
      %982 = vmatpush1.bf16.msra.mxu0 %v945
      %983 = vmatprep.subr.bf16.mxu0 0
      %984 = vmatpush1.bf16.msra.mxu0 %v946
      %985 = vmatprep.subr.bf16.mxu0 0
      %986 = vmatpush1.bf16.msra.mxu0 %v947
      %987 = vmatprep.subr.bf16.mxu0 0
      %988 = vmatpush1.bf16.msra.mxu0 %v948
      %989 = vmatprep.subr.bf16.mxu0 0
      %990 = vmatpush1.bf16.msra.mxu0 %v949
      %991 = vmatprep.subr.bf16.mxu0 0
      %992 = vmatpush1.bf16.msra.mxu0 %v950
      %993 = vmatprep.subr.bf16.mxu0 0
      %994 = vmatpush1.bf16.msra.mxu0 %v951
      %995 = vmatprep.subr.bf16.mxu0 0
      %996 = vmatpush1.bf16.msra.mxu0 %v952
      %997 = vmatprep.subr.bf16.mxu0 0
      %998 = vmatpush1.bf16.msra.mxu0 %v953
      %999 = vmatprep.subr.bf16.mxu0 0
      %1000 = vmatpush1.bf16.msra.mxu0 %v954
      %1001 = vmatprep.subr.bf16.mxu0 0
      %1002 = vmatpush1.bf16.msra.mxu0 %v955
      %1003 = vmatprep.subr.bf16.mxu0 0
      %1004 = vmatpush1.bf16.msra.mxu0 %v956
      %1005 = vmatprep.mubr.bf16.mxu0 %v830
      %1006 = vmatmul.mubr.bf16.gmra.mrb[0].mxu0 %v829
      %v1007 = vpop.f32.mrb[0].mxu0
      %v1008 = vadd.f32 0.0, %v1007
      %v1009 = vpop.f32.mrb[0].mxu0
      %v1010 = vpop.f32.mrb[0].mxu0
      %v1011 = vadd.f32 0.0, %v1010
      %v1012 = vpop.f32.mrb[0].mxu0
      %1013 = vmatprep.mubr.bf16.mxu0 %v832
      %1014 = vmatmul.mubr.bf16.gmra.mrb[0].mxu0 %v831
      %v1015 = vpop.f32.mrb[0].mxu0
      %v1016 = vadd.f32 0.0, %v1015
      %v1017 = vpop.f32.mrb[0].mxu0
      %v1018 = vpop.f32.mrb[0].mxu0
      %v1019 = vadd.f32 0.0, %v1018
      %v1020 = vpop.f32.mrb[0].mxu0
      %1021 = vmatprep.mubr.bf16.mxu0 %v834
      %1022 = vmatmul.mubr.bf16.gmra.mrb[0].mxu0 %v833
      %v1023 = vpop.f32.mrb[0].mxu0
      %v1024 = vadd.f32 0.0, %v1023
      %v1025 = vpop.f32.mrb[0].mxu0
      %v1026 = vpop.f32.mrb[0].mxu0
      %v1027 = vadd.f32 0.0, %v1026
      %v1028 = vpop.f32.mrb[0].mxu0
      %1029 = vmatprep.mubr.bf16.mxu0 %v836
      %1030 = vmatmul.mubr.bf16.gmra.mrb[0].mxu0 %v835
      %v1031 = vpop.f32.mrb[0].mxu0
      %v1032 = vadd.f32 0.0, %v1031
      %v1033 = vpop.f32.mrb[0].mxu0
      %v1034 = vpop.f32.mrb[0].mxu0
      %v1035 = vadd.f32 0.0, %v1034
      %v1036 = vpop.f32.mrb[0].mxu0
      %1037 = vmatprep.mubr.bf16.mxu0 %v838
      %1038 = vmatmul.mubr.bf16.gmra.mrb[0].mxu0 %v837
      %v1039 = vpop.f32.mrb[0].mxu0
      %v1040 = vadd.f32 0.0, %v1039
      %v1041 = vpop.f32.mrb[0].mxu0
      %v1042 = vpop.f32.mrb[0].mxu0
      %v1043 = vadd.f32 0.0, %v1042
      %v1044 = vpop.f32.mrb[0].mxu0
      %1045 = vmatprep.mubr.bf16.mxu0 %v840
      %1046 = vmatmul.mubr.bf16.gmra.mrb[0].mxu0 %v839
      %v1047 = vpop.f32.mrb[0].mxu0
      %v1048 = vadd.f32 0.0, %v1047
      %v1049 = vpop.f32.mrb[0].mxu0
      %v1050 = vpop.f32.mrb[0].mxu0
      %v1051 = vadd.f32 0.0, %v1050
      %v1052 = vpop.f32.mrb[0].mxu0
      %1053 = vmatprep.mubr.bf16.mxu0 %v842
      %1054 = vmatmul.mubr.bf16.gmra.mrb[0].mxu0 %v841
      %v1055 = vpop.f32.mrb[0].mxu0
      %v1056 = vadd.f32 0.0, %v1055
      %v1057 = vpop.f32.mrb[0].mxu0
      %v1058 = vpop.f32.mrb[0].mxu0
      %v1059 = vadd.f32 0.0, %v1058
      %v1060 = vpop.f32.mrb[0].mxu0
      %1061 = vmatprep.mubr.bf16.mxu0 %v844
      %1062 = vmatmul.mubr.bf16.gmra.mrb[0].mxu0 %v843
      %v1063 = vpop.f32.mrb[0].mxu0
      %v1064 = vadd.f32 0.0, %v1063
      %v1065 = vpop.f32.mrb[0].mxu0
      %v1066 = vpop.f32.mrb[0].mxu0
      %v1067 = vadd.f32 0.0, %v1066
      %v1068 = vpop.f32.mrb[0].mxu0
      %1069 = vdwg.mxu0
      %v1070 = vpack.c.bf16 %v1011, %v1008
      %v1071 = vpack.c.bf16 %v1019, %v1016
      %v1072 = vpack.c.bf16 %v1027, %v1024
      %v1073 = vpack.c.bf16 %v1035, %v1032
      %v1074 = vpack.c.bf16 %v1043, %v1040
      %v1075 = vpack.c.bf16 %v1051, %v1048
      %v1076 = vpack.c.bf16 %v1059, %v1056
      %v1077 = vpack.c.bf16 %v1067, %v1064
      %1078 = vst [vmem:[#allocation2] sm:$0xff] %v1070
      %1079 = vst [vmem:[#allocation2 + $0x20] sm:$0xff] %v1071
      %1080 = vst [vmem:[#allocation2 + $0x40] sm:$0xff] %v1072
      %1081 = vst [vmem:[#allocation2 + $0x60] sm:$0xff] %v1073
      %1082 = vst [vmem:[#allocation2 + $0x80] sm:$0xff] %v1074
      %1083 = vst [vmem:[#allocation2 + $0xa0] sm:$0xff] %v1075
      %1084 = vst [vmem:[#allocation2 + $0xc0] sm:$0xff] %v1076
      %1085 = vst [vmem:[#allocation2 + $0xe0] sm:$0xff] %v1077
      %v1086 = vld [vmem:[%s260 + $0x4] sm:$0xf]
      %v1087 = vld [vmem:[%s260 + $0x14] sm:$0xf]
      %v1088 = vld [vmem:[%s260 + $0x24] sm:$0xf]
      %v1089 = vld [vmem:[%s260 + $0x34] sm:$0xf]
      %v1090 = vld [vmem:[%s260 + $0x44] sm:$0xf]
      %v1091 = vld [vmem:[%s260 + $0x54] sm:$0xf]
      %v1092 = vld [vmem:[%s260 + $0x64] sm:$0xf]
      %v1093 = vld [vmem:[%s260 + $0x74] sm:$0xf]
      %v1094 = vld [vmem:[%s260 + $0x84] sm:$0xf]
      %v1095 = vld [vmem:[%s260 + $0x94] sm:$0xf]
      %v1096 = vld [vmem:[%s260 + $0xa4] sm:$0xf]
      %v1097 = vld [vmem:[%s260 + $0xb4] sm:$0xf]
      %v1098 = vld [vmem:[%s260 + $0xc4] sm:$0xf]
      %v1099 = vld [vmem:[%s260 + $0xd4] sm:$0xf]
      %v1100 = vld [vmem:[%s260 + $0xe4] sm:$0xf]
      %v1101 = vld [vmem:[%s260 + $0xf4] sm:$0xf]
      %v1102 = vld [vmem:[%s1 + $0x4] sm:$0xf]
      %v1103 = vld [vmem:[%s1 + $0x14] sm:$0xf]
      %v1104 = vld [vmem:[%s1 + $0x24] sm:$0xf]
      %v1105 = vld [vmem:[%s1 + $0x34] sm:$0xf]
      %v1106 = vld [vmem:[%s1 + $0x44] sm:$0xf]
      %v1107 = vld [vmem:[%s1 + $0x54] sm:$0xf]
      %v1108 = vld [vmem:[%s1 + $0x64] sm:$0xf]
      %v1109 = vld [vmem:[%s1 + $0x74] sm:$0xf]
      %v1110 = vld [vmem:[%s1 + $0x84] sm:$0xf]
      %v1111 = vld [vmem:[%s1 + $0x94] sm:$0xf]
      %v1112 = vld [vmem:[%s1 + $0xa4] sm:$0xf]
      %v1113 = vld [vmem:[%s1 + $0xb4] sm:$0xf]
      %v1114 = vld [vmem:[%s1 + $0xc4] sm:$0xf]
      %v1115 = vld [vmem:[%s1 + $0xd4] sm:$0xf]
      %v1116 = vld [vmem:[%s1 + $0xe4] sm:$0xf]
      %v1117 = vld [vmem:[%s1 + $0xf4] sm:$0xf]
      %v1118 = vld [vmem:[%s1 + $0x104] sm:$0xf]
      %v1119 = vld [vmem:[%s1 + $0x114] sm:$0xf]
      %v1120 = vld [vmem:[%s1 + $0x124] sm:$0xf]
      %v1121 = vld [vmem:[%s1 + $0x134] sm:$0xf]
      %v1122 = vld [vmem:[%s1 + $0x144] sm:$0xf]
      %v1123 = vld [vmem:[%s1 + $0x154] sm:$0xf]
      %v1124 = vld [vmem:[%s1 + $0x164] sm:$0xf]
      %v1125 = vld [vmem:[%s1 + $0x174] sm:$0xf]
      %v1126 = vld [vmem:[%s1 + $0x184] sm:$0xf]
      %v1127 = vld [vmem:[%s1 + $0x194] sm:$0xf]
      %v1128 = vld [vmem:[%s1 + $0x1a4] sm:$0xf]
      %v1129 = vld [vmem:[%s1 + $0x1b4] sm:$0xf]
      %v1130 = vld [vmem:[%s1 + $0x1c4] sm:$0xf]
      %v1131 = vld [vmem:[%s1 + $0x1d4] sm:$0xf]
      %v1132 = vld [vmem:[%s1 + $0x1e4] sm:$0xf]
      %v1133 = vld [vmem:[%s1 + $0x1f4] sm:$0xf]
      %v1150 = vunpack.c.l.b16 %v1086
      %v1151 = vunpack.c.l.b16 %v1087
      %v1152 = vunpack.c.l.b16 %v1088
      %v1153 = vunpack.c.l.b16 %v1089
      %v1154 = vunpack.c.l.b16 %v1090
      %v1155 = vunpack.c.l.b16 %v1091
      %v1156 = vunpack.c.l.b16 %v1092
      %v1157 = vunpack.c.l.b16 %v1093
      %v1158 = vunpack.c.l.b16 %v1094
      %v1159 = vunpack.c.l.b16 %v1095
      %v1160 = vunpack.c.l.b16 %v1096
      %v1161 = vunpack.c.l.b16 %v1097
      %v1162 = vunpack.c.l.b16 %v1098
      %v1163 = vunpack.c.l.b16 %v1099
      %v1164 = vunpack.c.l.b16 %v1100
      %v1165 = vunpack.c.l.b16 %v1101
      %v1166 = vpack.c.b16 %v1151, %v1150
      %v1167 = vpack.c.b16 %v1153, %v1152
      %v1168 = vpack.c.b16 %v1155, %v1154
      %v1169 = vpack.c.b16 %v1157, %v1156
      %v1170 = vpack.c.b16 %v1159, %v1158
      %v1171 = vpack.c.b16 %v1161, %v1160
      %v1172 = vpack.c.b16 %v1163, %v1162
      %v1173 = vpack.c.b16 %v1165, %v1164
      %v1214 = vunpack.c.l.b16 %v1102
      %v1215 = vunpack.c.l.b16 %v1103
      %v1216 = vunpack.c.l.b16 %v1104
      %v1217 = vunpack.c.l.b16 %v1105
      %v1218 = vunpack.c.l.b16 %v1106
      %v1219 = vunpack.c.l.b16 %v1107
      %v1220 = vunpack.c.l.b16 %v1108
      %v1221 = vunpack.c.l.b16 %v1109
      %v1222 = vunpack.c.l.b16 %v1110
      %v1223 = vunpack.c.l.b16 %v1111
      %v1224 = vunpack.c.l.b16 %v1112
      %v1225 = vunpack.c.l.b16 %v1113
      %v1226 = vunpack.c.l.b16 %v1114
      %v1227 = vunpack.c.l.b16 %v1115
      %v1228 = vunpack.c.l.b16 %v1116
      %v1229 = vunpack.c.l.b16 %v1117
      %v1230 = vunpack.c.l.b16 %v1118
      %v1231 = vunpack.c.l.b16 %v1119
      %v1232 = vunpack.c.l.b16 %v1120
      %v1233 = vunpack.c.l.b16 %v1121
      %v1234 = vunpack.c.l.b16 %v1122
      %v1235 = vunpack.c.l.b16 %v1123
      %v1236 = vunpack.c.l.b16 %v1124
      %v1237 = vunpack.c.l.b16 %v1125
      %v1238 = vunpack.c.l.b16 %v1126
      %v1239 = vunpack.c.l.b16 %v1127
      %v1240 = vunpack.c.l.b16 %v1128
      %v1241 = vunpack.c.l.b16 %v1129
      %v1242 = vunpack.c.l.b16 %v1130
      %v1243 = vunpack.c.l.b16 %v1131
      %v1244 = vunpack.c.l.b16 %v1132
      %v1245 = vunpack.c.l.b16 %v1133
      %v1246 = vpack.c.b16 %v1215, %v1214
      %v1247 = vpack.c.b16 %v1217, %v1216
      %v1248 = vpack.c.b16 %v1219, %v1218
      %v1249 = vpack.c.b16 %v1221, %v1220
      %v1250 = vpack.c.b16 %v1223, %v1222
      %v1251 = vpack.c.b16 %v1225, %v1224
      %v1252 = vpack.c.b16 %v1227, %v1226
      %v1253 = vpack.c.b16 %v1229, %v1228
      %v1254 = vpack.c.b16 %v1231, %v1230
      %v1255 = vpack.c.b16 %v1233, %v1232
      %v1256 = vpack.c.b16 %v1235, %v1234
      %v1257 = vpack.c.b16 %v1237, %v1236
      %v1258 = vpack.c.b16 %v1239, %v1238
      %v1259 = vpack.c.b16 %v1241, %v1240
      %v1260 = vpack.c.b16 %v1243, %v1242
      %v1261 = vpack.c.b16 %v1245, %v1244
      %1278 = vmatprep.subr.bf16.mxu0 0
      %1279 = vmatpush1.bf16.xpose.msra.mxu0 %v1246
      %1280 = vmatprep.subr.bf16.mxu0 0
      %1281 = vmatpush1.bf16.xpose.msra.mxu0 %v1247
      %1282 = vmatprep.subr.bf16.mxu0 0
      %1283 = vmatpush1.bf16.xpose.msra.mxu0 %v1248
      %1284 = vmatprep.subr.bf16.mxu0 0
      %1285 = vmatpush1.bf16.xpose.msra.mxu0 %v1249
      %1286 = vmatprep.subr.bf16.mxu0 0
      %1287 = vmatpush1.bf16.xpose.msra.mxu0 %v1250
      %1288 = vmatprep.subr.bf16.mxu0 0
      %1289 = vmatpush1.bf16.xpose.msra.mxu0 %v1251
      %1290 = vmatprep.subr.bf16.mxu0 0
      %1291 = vmatpush1.bf16.xpose.msra.mxu0 %v1252
      %1292 = vmatprep.subr.bf16.mxu0 0
      %1293 = vmatpush1.bf16.xpose.msra.mxu0 %v1253
      %1294 = vmatprep.subr.bf16.mxu0 0
      %1295 = vmatpush1.bf16.xpose.msra.mxu0 %v1254
      %1296 = vmatprep.subr.bf16.mxu0 0
      %1297 = vmatpush1.bf16.xpose.msra.mxu0 %v1255
      %1298 = vmatprep.subr.bf16.mxu0 0
      %1299 = vmatpush1.bf16.xpose.msra.mxu0 %v1256
      %1300 = vmatprep.subr.bf16.mxu0 0
      %1301 = vmatpush1.bf16.xpose.msra.mxu0 %v1257
      %1302 = vmatprep.subr.bf16.mxu0 0
      %1303 = vmatpush1.bf16.xpose.msra.mxu0 %v1258
      %1304 = vmatprep.subr.bf16.mxu0 0
      %1305 = vmatpush1.bf16.xpose.msra.mxu0 %v1259
      %1306 = vmatprep.subr.bf16.mxu0 0
      %1307 = vmatpush1.bf16.xpose.msra.mxu0 %v1260
      %1308 = vmatprep.subr.bf16.mxu0 0
      %1309 = vmatpush1.bf16.xpose.msra.mxu0 %v1261
      %1310 = vmatprep.mubr.bf16.mxu0 0
      %1311 = vmatmul.mubr.bf16.gmra.mrb[0].mxu0 %v1166
      %v1312 = vpop.f32.mrb[0].mxu0
      %v1313 = vadd.f32 %v282, %v1312
      %v1314 = vpop.f32.mrb[0].mxu0
      %v1315 = vadd.f32 %v283, %v1314
      %v1316 = vpop.f32.mrb[0].mxu0
      %v1317 = vadd.f32 %v282, %v1316
      %v1318 = vpop.f32.mrb[0].mxu0
      %v1319 = vadd.f32 %v283, %v1318
      %1320 = vmatprep.mubr.bf16.mxu0 0
      %1321 = vmatmul.mubr.bf16.gmra.mrb[0].mxu0 %v1167
      %v1322 = vpop.f32.mrb[0].mxu0
      %v1323 = vadd.f32 %v282, %v1322
      %v1324 = vpop.f32.mrb[0].mxu0
      %v1325 = vadd.f32 %v283, %v1324
      %v1326 = vpop.f32.mrb[0].mxu0
      %v1327 = vadd.f32 %v282, %v1326
      %v1328 = vpop.f32.mrb[0].mxu0
      %v1329 = vadd.f32 %v283, %v1328
      %1330 = vmatprep.mubr.bf16.mxu0 0
      %1331 = vmatmul.mubr.bf16.gmra.mrb[0].mxu0 %v1168
      %v1332 = vpop.f32.mrb[0].mxu0
      %v1333 = vadd.f32 %v282, %v1332
      %v1334 = vpop.f32.mrb[0].mxu0
      %v1335 = vadd.f32 %v283, %v1334
      %v1336 = vpop.f32.mrb[0].mxu0
      %v1337 = vadd.f32 %v282, %v1336
      %v1338 = vpop.f32.mrb[0].mxu0
      %v1339 = vadd.f32 %v283, %v1338
      %1340 = vmatprep.mubr.bf16.mxu0 0
      %1341 = vmatmul.mubr.bf16.gmra.mrb[0].mxu0 %v1169
      %v1342 = vpop.f32.mrb[0].mxu0
      %v1343 = vadd.f32 %v282, %v1342
      %v1344 = vpop.f32.mrb[0].mxu0
      %v1345 = vadd.f32 %v283, %v1344
      %v1346 = vpop.f32.mrb[0].mxu0
      %v1347 = vadd.f32 %v282, %v1346
      %v1348 = vpop.f32.mrb[0].mxu0
      %v1349 = vadd.f32 %v283, %v1348
      %1350 = vmatprep.mubr.bf16.mxu0 0
      %1351 = vmatmul.mubr.bf16.gmra.mrb[0].mxu0 %v1170
      %v1352 = vpop.f32.mrb[0].mxu0
      %v1353 = vadd.f32 %v282, %v1352
      %v1354 = vpop.f32.mrb[0].mxu0
      %v1355 = vadd.f32 %v283, %v1354
      %v1356 = vpop.f32.mrb[0].mxu0
      %v1357 = vadd.f32 %v282, %v1356
      %v1358 = vpop.f32.mrb[0].mxu0
      %v1359 = vadd.f32 %v283, %v1358
      %1360 = vmatprep.mubr.bf16.mxu0 0
      %1361 = vmatmul.mubr.bf16.gmra.mrb[0].mxu0 %v1171
      %v1362 = vpop.f32.mrb[0].mxu0
      %v1363 = vadd.f32 %v282, %v1362
      %v1364 = vpop.f32.mrb[0].mxu0
      %v1365 = vadd.f32 %v283, %v1364
      %v1366 = vpop.f32.mrb[0].mxu0
      %v1367 = vadd.f32 %v282, %v1366
      %v1368 = vpop.f32.mrb[0].mxu0
      %v1369 = vadd.f32 %v283, %v1368
      %1370 = vmatprep.mubr.bf16.mxu0 0
      %1371 = vmatmul.mubr.bf16.gmra.mrb[0].mxu0 %v1172
      %v1372 = vpop.f32.mrb[0].mxu0
      %v1373 = vadd.f32 %v282, %v1372
      %v1374 = vpop.f32.mrb[0].mxu0
      %v1375 = vadd.f32 %v283, %v1374
      %v1376 = vpop.f32.mrb[0].mxu0
      %v1377 = vadd.f32 %v282, %v1376
      %v1378 = vpop.f32.mrb[0].mxu0
      %v1379 = vadd.f32 %v283, %v1378
      %1380 = vmatprep.mubr.bf16.mxu0 0
      %1381 = vmatmul.mubr.bf16.gmra.mrb[0].mxu0 %v1173
      %v1382 = vpop.f32.mrb[0].mxu0
      %v1383 = vadd.f32 %v282, %v1382
      %v1384 = vpop.f32.mrb[0].mxu0
      %v1385 = vadd.f32 %v283, %v1384
      %v1386 = vpop.f32.mrb[0].mxu0
      %v1387 = vadd.f32 %v282, %v1386
      %v1388 = vpop.f32.mrb[0].mxu0
      %v1389 = vadd.f32 %v283, %v1388
      %1390 = vdwg.mxu0
      %v1391 = vmax.f32 %v1313, %v1315
      %1392 = vmax.xlane.f32.xlu0 %v1391
      %v1393 = vpop.xlane.xlu0 %1392
      %v1394 = vmax.f32 %v1317, %v1319
      %1395 = vmax.xlane.f32.xlu0 %v1394
      %v1396 = vpop.xlane.xlu0 %1395
      %v1397 = vmax.f32 %v1323, %v1325
      %1398 = vmax.xlane.f32.xlu0 %v1397
      %v1399 = vpop.xlane.xlu0 %1398
      %v1400 = vmax.f32 %v1327, %v1329
      %1401 = vmax.xlane.f32.xlu0 %v1400
      %v1402 = vpop.xlane.xlu0 %1401
      %v1403 = vmax.f32 %v1333, %v1335
      %1404 = vmax.xlane.f32.xlu0 %v1403
      %v1405 = vpop.xlane.xlu0 %1404
      %v1406 = vmax.f32 %v1337, %v1339
      %1407 = vmax.xlane.f32.xlu0 %v1406
      %v1408 = vpop.xlane.xlu0 %1407
      %v1409 = vmax.f32 %v1343, %v1345
      %1410 = vmax.xlane.f32.xlu0 %v1409
      %v1411 = vpop.xlane.xlu0 %1410
      %v1412 = vmax.f32 %v1347, %v1349
      %1413 = vmax.xlane.f32.xlu0 %v1412
      %v1414 = vpop.xlane.xlu0 %1413
      %v1415 = vmax.f32 %v1353, %v1355
      %1416 = vmax.xlane.f32.xlu0 %v1415
      %v1417 = vpop.xlane.xlu0 %1416
      %v1418 = vmax.f32 %v1357, %v1359
      %1419 = vmax.xlane.f32.xlu0 %v1418
      %v1420 = vpop.xlane.xlu0 %1419
      %v1421 = vmax.f32 %v1363, %v1365
      %1422 = vmax.xlane.f32.xlu0 %v1421
      %v1423 = vpop.xlane.xlu0 %1422
      %v1424 = vmax.f32 %v1367, %v1369
      %1425 = vmax.xlane.f32.xlu0 %v1424
      %v1426 = vpop.xlane.xlu0 %1425
      %v1427 = vmax.f32 %v1373, %v1375
      %1428 = vmax.xlane.f32.xlu0 %v1427
      %v1429 = vpop.xlane.xlu0 %1428
      %v1430 = vmax.f32 %v1377, %v1379
      %1431 = vmax.xlane.f32.xlu0 %v1430
      %v1432 = vpop.xlane.xlu0 %1431
      %v1433 = vmax.f32 %v1383, %v1385
      %1434 = vmax.xlane.f32.xlu0 %v1433
      %v1435 = vpop.xlane.xlu0 %1434
      %v1436 = vmax.f32 %v1387, %v1389
      %1437 = vmax.xlane.f32.xlu0 %v1436
      %v1438 = vpop.xlane.xlu0 %1437
      %v1439 = vsub.f32 %v1313, %v1393
      %v1440 = vsub.f32 %v1315, %v1393
      %v1441 = vsub.f32 %v1317, %v1396
      %v1442 = vsub.f32 %v1319, %v1396
      %v1443 = vsub.f32 %v1323, %v1399
      %v1444 = vsub.f32 %v1325, %v1399
      %v1445 = vsub.f32 %v1327, %v1402
      %v1446 = vsub.f32 %v1329, %v1402
      %v1447 = vsub.f32 %v1333, %v1405
      %v1448 = vsub.f32 %v1335, %v1405
      %v1449 = vsub.f32 %v1337, %v1408
      %v1450 = vsub.f32 %v1339, %v1408
      %v1451 = vsub.f32 %v1343, %v1411
      %v1452 = vsub.f32 %v1345, %v1411
      %v1453 = vsub.f32 %v1347, %v1414
      %v1454 = vsub.f32 %v1349, %v1414
      %v1455 = vsub.f32 %v1353, %v1417
      %v1456 = vsub.f32 %v1355, %v1417
      %v1457 = vsub.f32 %v1357, %v1420
      %v1458 = vsub.f32 %v1359, %v1420
      %v1459 = vsub.f32 %v1363, %v1423
      %v1460 = vsub.f32 %v1365, %v1423
      %v1461 = vsub.f32 %v1367, %v1426
      %v1462 = vsub.f32 %v1369, %v1426
      %v1463 = vsub.f32 %v1373, %v1429
      %v1464 = vsub.f32 %v1375, %v1429
      %v1465 = vsub.f32 %v1377, %v1432
      %v1466 = vsub.f32 %v1379, %v1432
      %v1467 = vsub.f32 %v1383, %v1435
      %v1468 = vsub.f32 %v1385, %v1435
      %v1469 = vsub.f32 %v1387, %v1438
      %v1470 = vsub.f32 %v1389, %v1438
      %v1471 = vmul.f32 %v1439, 1.442695
      %v1472 = vpow.pop %v1471
      %v1473 = vmul.f32 %v1440, 1.442695
      %v1474 = vpow.pop %v1473
      %v1475 = vmul.f32 %v1441, 1.442695
      %v1476 = vpow.pop %v1475
      %v1477 = vmul.f32 %v1442, 1.442695
      %v1478 = vpow.pop %v1477
      %v1479 = vmul.f32 %v1443, 1.442695
      %v1480 = vpow.pop %v1479
      %v1481 = vmul.f32 %v1444, 1.442695
      %v1482 = vpow.pop %v1481
      %v1483 = vmul.f32 %v1445, 1.442695
      %v1484 = vpow.pop %v1483
      %v1485 = vmul.f32 %v1446, 1.442695
      %v1486 = vpow.pop %v1485
      %v1487 = vmul.f32 %v1447, 1.442695
      %v1488 = vpow.pop %v1487
      %v1489 = vmul.f32 %v1448, 1.442695
      %v1490 = vpow.pop %v1489
      %v1491 = vmul.f32 %v1449, 1.442695
      %v1492 = vpow.pop %v1491
      %v1493 = vmul.f32 %v1450, 1.442695
      %v1494 = vpow.pop %v1493
      %v1495 = vmul.f32 %v1451, 1.442695
      %v1496 = vpow.pop %v1495
      %v1497 = vmul.f32 %v1452, 1.442695
      %v1498 = vpow.pop %v1497
      %v1499 = vmul.f32 %v1453, 1.442695
      %v1500 = vpow.pop %v1499
      %v1501 = vmul.f32 %v1454, 1.442695
      %v1502 = vpow.pop %v1501
      %v1503 = vmul.f32 %v1455, 1.442695
      %v1504 = vpow.pop %v1503
      %v1505 = vmul.f32 %v1456, 1.442695
      %v1506 = vpow.pop %v1505
      %v1507 = vmul.f32 %v1457, 1.442695
      %v1508 = vpow.pop %v1507
      %v1509 = vmul.f32 %v1458, 1.442695
      %v1510 = vpow.pop %v1509
      %v1511 = vmul.f32 %v1459, 1.442695
      %v1512 = vpow.pop %v1511
      %v1513 = vmul.f32 %v1460, 1.442695
      %v1514 = vpow.pop %v1513
      %v1515 = vmul.f32 %v1461, 1.442695
      %v1516 = vpow.pop %v1515
      %v1517 = vmul.f32 %v1462, 1.442695
      %v1518 = vpow.pop %v1517
      %v1519 = vmul.f32 %v1463, 1.442695
      %v1520 = vpow.pop %v1519
      %v1521 = vmul.f32 %v1464, 1.442695
      %v1522 = vpow.pop %v1521
      %v1523 = vmul.f32 %v1465, 1.442695
      %v1524 = vpow.pop %v1523
      %v1525 = vmul.f32 %v1466, 1.442695
      %v1526 = vpow.pop %v1525
      %v1527 = vmul.f32 %v1467, 1.442695
      %v1528 = vpow.pop %v1527
      %v1529 = vmul.f32 %v1468, 1.442695
      %v1530 = vpow.pop %v1529
      %v1531 = vmul.f32 %v1469, 1.442695
      %v1532 = vpow.pop %v1531
      %v1533 = vmul.f32 %v1470, 1.442695
      %v1534 = vpow.pop %v1533
      %v1535 = vadd.f32 %v1472, %v1474
      %1536 = vadd.xlane.f32.xlu0 %v1535
      %v1537 = vpop.xlane.xlu0 %1536
      %v1538 = vadd.f32 %v1476, %v1478
      %1539 = vadd.xlane.f32.xlu0 %v1538
      %v1540 = vpop.xlane.xlu0 %1539
      %v1541 = vadd.f32 %v1480, %v1482
      %1542 = vadd.xlane.f32.xlu0 %v1541
      %v1543 = vpop.xlane.xlu0 %1542
      %v1544 = vadd.f32 %v1484, %v1486
      %1545 = vadd.xlane.f32.xlu0 %v1544
      %v1546 = vpop.xlane.xlu0 %1545
      %v1547 = vadd.f32 %v1488, %v1490
      %1548 = vadd.xlane.f32.xlu0 %v1547
      %v1549 = vpop.xlane.xlu0 %1548
      %v1550 = vadd.f32 %v1492, %v1494
      %1551 = vadd.xlane.f32.xlu0 %v1550
      %v1552 = vpop.xlane.xlu0 %1551
      %v1553 = vadd.f32 %v1496, %v1498
      %1554 = vadd.xlane.f32.xlu0 %v1553
      %v1555 = vpop.xlane.xlu0 %1554
      %v1556 = vadd.f32 %v1500, %v1502
      %1557 = vadd.xlane.f32.xlu0 %v1556
      %v1558 = vpop.xlane.xlu0 %1557
      %v1559 = vadd.f32 %v1504, %v1506
      %1560 = vadd.xlane.f32.xlu0 %v1559
      %v1561 = vpop.xlane.xlu0 %1560
      %v1562 = vadd.f32 %v1508, %v1510
      %1563 = vadd.xlane.f32.xlu0 %v1562
      %v1564 = vpop.xlane.xlu0 %1563
      %v1565 = vadd.f32 %v1512, %v1514
      %1566 = vadd.xlane.f32.xlu0 %v1565
      %v1567 = vpop.xlane.xlu0 %1566
      %v1568 = vadd.f32 %v1516, %v1518
      %1569 = vadd.xlane.f32.xlu0 %v1568
      %v1570 = vpop.xlane.xlu0 %1569
      %v1571 = vadd.f32 %v1520, %v1522
      %1572 = vadd.xlane.f32.xlu0 %v1571
      %v1573 = vpop.xlane.xlu0 %1572
      %v1574 = vadd.f32 %v1524, %v1526
      %1575 = vadd.xlane.f32.xlu0 %v1574
      %v1576 = vpop.xlane.xlu0 %1575
      %v1577 = vadd.f32 %v1528, %v1530
      %1578 = vadd.xlane.f32.xlu0 %v1577
      %v1579 = vpop.xlane.xlu0 %1578
      %v1580 = vadd.f32 %v1532, %v1534
      %1581 = vadd.xlane.f32.xlu0 %v1580
      %v1582 = vpop.xlane.xlu0 %1581
      %v1583 = vrcp.pop %v1537
      %v1584 = vrcp.pop %v1540
      %v1585 = vrcp.pop %v1543
      %v1586 = vrcp.pop %v1546
      %v1587 = vrcp.pop %v1549
      %v1588 = vrcp.pop %v1552
      %v1589 = vrcp.pop %v1555
      %v1590 = vrcp.pop %v1558
      %v1591 = vrcp.pop %v1561
      %v1592 = vrcp.pop %v1564
      %v1593 = vrcp.pop %v1567
      %v1594 = vrcp.pop %v1570
      %v1595 = vrcp.pop %v1573
      %v1596 = vrcp.pop %v1576
      %v1597 = vrcp.pop %v1579
      %v1598 = vrcp.pop %v1582
      %v1599 = vmul.f32 %v1472, %v1583
      %v1600 = vmul.f32 %v1474, %v1583
      %v1601 = vmul.f32 %v1476, %v1584
      %v1602 = vmul.f32 %v1478, %v1584
      %v1603 = vmul.f32 %v1480, %v1585
      %v1604 = vmul.f32 %v1482, %v1585
      %v1605 = vmul.f32 %v1484, %v1586
      %v1606 = vmul.f32 %v1486, %v1586
      %v1607 = vmul.f32 %v1488, %v1587
      %v1608 = vmul.f32 %v1490, %v1587
      %v1609 = vmul.f32 %v1492, %v1588
      %v1610 = vmul.f32 %v1494, %v1588
      %v1611 = vmul.f32 %v1496, %v1589
      %v1612 = vmul.f32 %v1498, %v1589
      %v1613 = vmul.f32 %v1500, %v1590
      %v1614 = vmul.f32 %v1502, %v1590
      %v1615 = vmul.f32 %v1504, %v1591
      %v1616 = vmul.f32 %v1506, %v1591
      %v1617 = vmul.f32 %v1508, %v1592
      %v1618 = vmul.f32 %v1510, %v1592
      %v1619 = vmul.f32 %v1512, %v1593
      %v1620 = vmul.f32 %v1514, %v1593
      %v1621 = vmul.f32 %v1516, %v1594
      %v1622 = vmul.f32 %v1518, %v1594
      %v1623 = vmul.f32 %v1520, %v1595
      %v1624 = vmul.f32 %v1522, %v1595
      %v1625 = vmul.f32 %v1524, %v1596
      %v1626 = vmul.f32 %v1526, %v1596
      %v1627 = vmul.f32 %v1528, %v1597
      %v1628 = vmul.f32 %v1530, %v1597
      %v1629 = vmul.f32 %v1532, %v1598
      %v1630 = vmul.f32 %v1534, %v1598
      %v1631 = vadd.f32 %v797, %v1599
      %v1632 = vadd.f32 %v798, %v1600
      %v1633 = vadd.f32 %v799, %v1601
      %v1634 = vadd.f32 %v800, %v1602
      %v1635 = vadd.f32 %v801, %v1603
      %v1636 = vadd.f32 %v802, %v1604
      %v1637 = vadd.f32 %v803, %v1605
      %v1638 = vadd.f32 %v804, %v1606
      %v1639 = vadd.f32 %v805, %v1607
      %v1640 = vadd.f32 %v806, %v1608
      %v1641 = vadd.f32 %v807, %v1609
      %v1642 = vadd.f32 %v808, %v1610
      %v1643 = vadd.f32 %v809, %v1611
      %v1644 = vadd.f32 %v810, %v1612
      %v1645 = vadd.f32 %v811, %v1613
      %v1646 = vadd.f32 %v812, %v1614
      %v1647 = vadd.f32 %v813, %v1615
      %v1648 = vadd.f32 %v814, %v1616
      %v1649 = vadd.f32 %v815, %v1617
      %v1650 = vadd.f32 %v816, %v1618
      %v1651 = vadd.f32 %v817, %v1619
      %v1652 = vadd.f32 %v818, %v1620
      %v1653 = vadd.f32 %v819, %v1621
      %v1654 = vadd.f32 %v820, %v1622
      %v1655 = vadd.f32 %v821, %v1623
      %v1656 = vadd.f32 %v822, %v1624
      %v1657 = vadd.f32 %v823, %v1625
      %v1658 = vadd.f32 %v824, %v1626
      %v1659 = vadd.f32 %v825, %v1627
      %v1660 = vadd.f32 %v826, %v1628
      %v1661 = vadd.f32 %v827, %v1629
      %v1662 = vadd.f32 %v828, %v1630
      %v1663 = vpack.c.bf16 %v1601, %v1599
      %v1664 = vpack.c.bf16 %v1602, %v1600
      %v1665 = vpack.c.bf16 %v1605, %v1603
      %v1666 = vpack.c.bf16 %v1606, %v1604
      %v1667 = vpack.c.bf16 %v1609, %v1607
      %v1668 = vpack.c.bf16 %v1610, %v1608
      %v1669 = vpack.c.bf16 %v1613, %v1611
      %v1670 = vpack.c.bf16 %v1614, %v1612
      %v1671 = vpack.c.bf16 %v1617, %v1615
      %v1672 = vpack.c.bf16 %v1618, %v1616
      %v1673 = vpack.c.bf16 %v1621, %v1619
      %v1674 = vpack.c.bf16 %v1622, %v1620
      %v1675 = vpack.c.bf16 %v1625, %v1623
      %v1676 = vpack.c.bf16 %v1626, %v1624
      %v1677 = vpack.c.bf16 %v1629, %v1627
      %v1678 = vpack.c.bf16 %v1630, %v1628
      %v1679 = vld [vmem:[%s2 + $0x4] sm:$0xf]
      %v1680 = vld [vmem:[%s2 + $0x14] sm:$0xf]
      %v1681 = vld [vmem:[%s2 + $0x24] sm:$0xf]
      %v1682 = vld [vmem:[%s2 + $0x34] sm:$0xf]
      %v1683 = vld [vmem:[%s2 + $0x44] sm:$0xf]
      %v1684 = vld [vmem:[%s2 + $0x54] sm:$0xf]
      %v1685 = vld [vmem:[%s2 + $0x64] sm:$0xf]
      %v1686 = vld [vmem:[%s2 + $0x74] sm:$0xf]
      %v1687 = vld [vmem:[%s2 + $0x84] sm:$0xf]
      %v1688 = vld [vmem:[%s2 + $0x94] sm:$0xf]
      %v1689 = vld [vmem:[%s2 + $0xa4] sm:$0xf]
      %v1690 = vld [vmem:[%s2 + $0xb4] sm:$0xf]
      %v1691 = vld [vmem:[%s2 + $0xc4] sm:$0xf]
      %v1692 = vld [vmem:[%s2 + $0xd4] sm:$0xf]
      %v1693 = vld [vmem:[%s2 + $0xe4] sm:$0xf]
      %v1694 = vld [vmem:[%s2 + $0xf4] sm:$0xf]
      %v1695 = vld [vmem:[%s2 + $0x104] sm:$0xf]
      %v1696 = vld [vmem:[%s2 + $0x114] sm:$0xf]
      %v1697 = vld [vmem:[%s2 + $0x124] sm:$0xf]
      %v1698 = vld [vmem:[%s2 + $0x134] sm:$0xf]
      %v1699 = vld [vmem:[%s2 + $0x144] sm:$0xf]
      %v1700 = vld [vmem:[%s2 + $0x154] sm:$0xf]
      %v1701 = vld [vmem:[%s2 + $0x164] sm:$0xf]
      %v1702 = vld [vmem:[%s2 + $0x174] sm:$0xf]
      %v1703 = vld [vmem:[%s2 + $0x184] sm:$0xf]
      %v1704 = vld [vmem:[%s2 + $0x194] sm:$0xf]
      %v1705 = vld [vmem:[%s2 + $0x1a4] sm:$0xf]
      %v1706 = vld [vmem:[%s2 + $0x1b4] sm:$0xf]
      %v1707 = vld [vmem:[%s2 + $0x1c4] sm:$0xf]
      %v1708 = vld [vmem:[%s2 + $0x1d4] sm:$0xf]
      %v1709 = vld [vmem:[%s2 + $0x1e4] sm:$0xf]
      %v1710 = vld [vmem:[%s2 + $0x1f4] sm:$0xf]
      %v1743 = vunpack.c.l.b16 %v1679
      %v1744 = vunpack.c.l.b16 %v1680
      %v1745 = vunpack.c.l.b16 %v1681
      %v1746 = vunpack.c.l.b16 %v1682
      %v1747 = vunpack.c.l.b16 %v1683
      %v1748 = vunpack.c.l.b16 %v1684
      %v1749 = vunpack.c.l.b16 %v1685
      %v1750 = vunpack.c.l.b16 %v1686
      %v1751 = vunpack.c.l.b16 %v1687
      %v1752 = vunpack.c.l.b16 %v1688
      %v1753 = vunpack.c.l.b16 %v1689
      %v1754 = vunpack.c.l.b16 %v1690
      %v1755 = vunpack.c.l.b16 %v1691
      %v1756 = vunpack.c.l.b16 %v1692
      %v1757 = vunpack.c.l.b16 %v1693
      %v1758 = vunpack.c.l.b16 %v1694
      %v1759 = vunpack.c.l.b16 %v1695
      %v1760 = vunpack.c.l.b16 %v1696
      %v1761 = vunpack.c.l.b16 %v1697
      %v1762 = vunpack.c.l.b16 %v1698
      %v1763 = vunpack.c.l.b16 %v1699
      %v1764 = vunpack.c.l.b16 %v1700
      %v1765 = vunpack.c.l.b16 %v1701
      %v1766 = vunpack.c.l.b16 %v1702
      %v1767 = vunpack.c.l.b16 %v1703
      %v1768 = vunpack.c.l.b16 %v1704
      %v1769 = vunpack.c.l.b16 %v1705
      %v1770 = vunpack.c.l.b16 %v1706
      %v1771 = vunpack.c.l.b16 %v1707
      %v1772 = vunpack.c.l.b16 %v1708
      %v1773 = vunpack.c.l.b16 %v1709
      %v1774 = vunpack.c.l.b16 %v1710
      %v1775 = vpack.c.b16 %v1744, %v1743
      %v1776 = vpack.c.b16 %v1746, %v1745
      %v1777 = vpack.c.b16 %v1748, %v1747
      %v1778 = vpack.c.b16 %v1750, %v1749
      %v1779 = vpack.c.b16 %v1752, %v1751
      %v1780 = vpack.c.b16 %v1754, %v1753
      %v1781 = vpack.c.b16 %v1756, %v1755
      %v1782 = vpack.c.b16 %v1758, %v1757
      %v1783 = vpack.c.b16 %v1760, %v1759
      %v1784 = vpack.c.b16 %v1762, %v1761
      %v1785 = vpack.c.b16 %v1764, %v1763
      %v1786 = vpack.c.b16 %v1766, %v1765
      %v1787 = vpack.c.b16 %v1768, %v1767
      %v1788 = vpack.c.b16 %v1770, %v1769
      %v1789 = vpack.c.b16 %v1772, %v1771
      %v1790 = vpack.c.b16 %v1774, %v1773
      %1807 = vmatprep.subr.bf16.mxu0 0
      %1808 = vmatpush1.bf16.msra.mxu0 %v1775
      %1809 = vmatprep.subr.bf16.mxu0 0
      %1810 = vmatpush1.bf16.msra.mxu0 %v1776
      %1811 = vmatprep.subr.bf16.mxu0 0
      %1812 = vmatpush1.bf16.msra.mxu0 %v1777
      %1813 = vmatprep.subr.bf16.mxu0 0
      %1814 = vmatpush1.bf16.msra.mxu0 %v1778
      %1815 = vmatprep.subr.bf16.mxu0 0
      %1816 = vmatpush1.bf16.msra.mxu0 %v1779
      %1817 = vmatprep.subr.bf16.mxu0 0
      %1818 = vmatpush1.bf16.msra.mxu0 %v1780
      %1819 = vmatprep.subr.bf16.mxu0 0
      %1820 = vmatpush1.bf16.msra.mxu0 %v1781
      %1821 = vmatprep.subr.bf16.mxu0 0
      %1822 = vmatpush1.bf16.msra.mxu0 %v1782
      %1823 = vmatprep.subr.bf16.mxu0 0
      %1824 = vmatpush1.bf16.msra.mxu0 %v1783
      %1825 = vmatprep.subr.bf16.mxu0 0
      %1826 = vmatpush1.bf16.msra.mxu0 %v1784
      %1827 = vmatprep.subr.bf16.mxu0 0
      %1828 = vmatpush1.bf16.msra.mxu0 %v1785
      %1829 = vmatprep.subr.bf16.mxu0 0
      %1830 = vmatpush1.bf16.msra.mxu0 %v1786
      %1831 = vmatprep.subr.bf16.mxu0 0
      %1832 = vmatpush1.bf16.msra.mxu0 %v1787
      %1833 = vmatprep.subr.bf16.mxu0 0
      %1834 = vmatpush1.bf16.msra.mxu0 %v1788
      %1835 = vmatprep.subr.bf16.mxu0 0
      %1836 = vmatpush1.bf16.msra.mxu0 %v1789
      %1837 = vmatprep.subr.bf16.mxu0 0
      %1838 = vmatpush1.bf16.msra.mxu0 %v1790
      %1839 = vmatprep.mubr.bf16.mxu0 %v1664
      %1840 = vmatmul.mubr.bf16.gmra.mrb[0].mxu0 %v1663
      %v1841 = vpop.f32.mrb[0].mxu0
      %v1842 = vadd.f32 0.0, %v1841
      %v1843 = vpop.f32.mrb[0].mxu0
      %v1844 = vpop.f32.mrb[0].mxu0
      %v1845 = vadd.f32 0.0, %v1844
      %v1846 = vpop.f32.mrb[0].mxu0
      %1847 = vmatprep.mubr.bf16.mxu0 %v1666
      %1848 = vmatmul.mubr.bf16.gmra.mrb[0].mxu0 %v1665
      %v1849 = vpop.f32.mrb[0].mxu0
      %v1850 = vadd.f32 0.0, %v1849
      %v1851 = vpop.f32.mrb[0].mxu0
      %v1852 = vpop.f32.mrb[0].mxu0
      %v1853 = vadd.f32 0.0, %v1852
      %v1854 = vpop.f32.mrb[0].mxu0
      %1855 = vmatprep.mubr.bf16.mxu0 %v1668
      %1856 = vmatmul.mubr.bf16.gmra.mrb[0].mxu0 %v1667
      %v1857 = vpop.f32.mrb[0].mxu0
      %v1858 = vadd.f32 0.0, %v1857
      %v1859 = vpop.f32.mrb[0].mxu0
      %v1860 = vpop.f32.mrb[0].mxu0
      %v1861 = vadd.f32 0.0, %v1860
      %v1862 = vpop.f32.mrb[0].mxu0
      %1863 = vmatprep.mubr.bf16.mxu0 %v1670
      %1864 = vmatmul.mubr.bf16.gmra.mrb[0].mxu0 %v1669
      %v1865 = vpop.f32.mrb[0].mxu0
      %v1866 = vadd.f32 0.0, %v1865
      %v1867 = vpop.f32.mrb[0].mxu0
      %v1868 = vpop.f32.mrb[0].mxu0
      %v1869 = vadd.f32 0.0, %v1868
      %v1870 = vpop.f32.mrb[0].mxu0
      %1871 = vmatprep.mubr.bf16.mxu0 %v1672
      %1872 = vmatmul.mubr.bf16.gmra.mrb[0].mxu0 %v1671
      %v1873 = vpop.f32.mrb[0].mxu0
      %v1874 = vadd.f32 0.0, %v1873
      %v1875 = vpop.f32.mrb[0].mxu0
      %v1876 = vpop.f32.mrb[0].mxu0
      %v1877 = vadd.f32 0.0, %v1876
      %v1878 = vpop.f32.mrb[0].mxu0
      %1879 = vmatprep.mubr.bf16.mxu0 %v1674
      %1880 = vmatmul.mubr.bf16.gmra.mrb[0].mxu0 %v1673
      %v1881 = vpop.f32.mrb[0].mxu0
      %v1882 = vadd.f32 0.0, %v1881
      %v1883 = vpop.f32.mrb[0].mxu0
      %v1884 = vpop.f32.mrb[0].mxu0
      %v1885 = vadd.f32 0.0, %v1884
      %v1886 = vpop.f32.mrb[0].mxu0
      %1887 = vmatprep.mubr.bf16.mxu0 %v1676
      %1888 = vmatmul.mubr.bf16.gmra.mrb[0].mxu0 %v1675
      %v1889 = vpop.f32.mrb[0].mxu0
      %v1890 = vadd.f32 0.0, %v1889
      %v1891 = vpop.f32.mrb[0].mxu0
      %v1892 = vpop.f32.mrb[0].mxu0
      %v1893 = vadd.f32 0.0, %v1892
      %v1894 = vpop.f32.mrb[0].mxu0
      %1895 = vmatprep.mubr.bf16.mxu0 %v1678
      %1896 = vmatmul.mubr.bf16.gmra.mrb[0].mxu0 %v1677
      %v1897 = vpop.f32.mrb[0].mxu0
      %v1898 = vadd.f32 0.0, %v1897
      %v1899 = vpop.f32.mrb[0].mxu0
      %v1900 = vpop.f32.mrb[0].mxu0
      %v1901 = vadd.f32 0.0, %v1900
      %v1902 = vpop.f32.mrb[0].mxu0
      %1903 = vdwg.mxu0
      %v1904 = vpack.c.bf16 %v1845, %v1842
      %v1905 = vpack.c.bf16 %v1853, %v1850
      %v1906 = vpack.c.bf16 %v1861, %v1858
      %v1907 = vpack.c.bf16 %v1869, %v1866
      %v1908 = vpack.c.bf16 %v1877, %v1874
      %v1909 = vpack.c.bf16 %v1885, %v1882
      %v1910 = vpack.c.bf16 %v1893, %v1890
      %v1911 = vpack.c.bf16 %v1901, %v1898
      %1912 = vst [vmem:[#allocation2 + $0x8] sm:$0xff] %v1904
      %1913 = vst [vmem:[#allocation2 + $0x28] sm:$0xff] %v1905
      %1914 = vst [vmem:[#allocation2 + $0x48] sm:$0xff] %v1906
      %1915 = vst [vmem:[#allocation2 + $0x68] sm:$0xff] %v1907
      %1916 = vst [vmem:[#allocation2 + $0x88] sm:$0xff] %v1908
      %1917 = vst [vmem:[#allocation2 + $0xa8] sm:$0xff] %v1909
      %1918 = vst [vmem:[#allocation2 + $0xc8] sm:$0xff] %v1910
      %1919 = vst [vmem:[#allocation2 + $0xe8] sm:$0xff] %v1911
      %v1920 = vld [vmem:[%s260 + $0x8] sm:$0xf]
      %v1921 = vld [vmem:[%s260 + $0x18] sm:$0xf]
      %v1922 = vld [vmem:[%s260 + $0x28] sm:$0xf]
      %v1923 = vld [vmem:[%s260 + $0x38] sm:$0xf]
      %v1924 = vld [vmem:[%s260 + $0x48] sm:$0xf]
      %v1925 = vld [vmem:[%s260 + $0x58] sm:$0xf]
      %v1926 = vld [vmem:[%s260 + $0x68] sm:$0xf]
      %v1927 = vld [vmem:[%s260 + $0x78] sm:$0xf]
      %v1928 = vld [vmem:[%s260 + $0x88] sm:$0xf]
      %v1929 = vld [vmem:[%s260 + $0x98] sm:$0xf]
      %v1930 = vld [vmem:[%s260 + $0xa8] sm:$0xf]
      %v1931 = vld [vmem:[%s260 + $0xb8] sm:$0xf]
      %v1932 = vld [vmem:[%s260 + $0xc8] sm:$0xf]
      %v1933 = vld [vmem:[%s260 + $0xd8] sm:$0xf]
      %v1934 = vld [vmem:[%s260 + $0xe8] sm:$0xf]
      %v1935 = vld [vmem:[%s260 + $0xf8] sm:$0xf]
      %v1936 = vld [vmem:[%s1 + $0x8] sm:$0xf]
      %v1937 = vld [vmem:[%s1 + $0x18] sm:$0xf]
      %v1938 = vld [vmem:[%s1 + $0x28] sm:$0xf]
      %v1939 = vld [vmem:[%s1 + $0x38] sm:$0xf]
      %v1940 = vld [vmem:[%s1 + $0x48] sm:$0xf]
      %v1941 = vld [vmem:[%s1 + $0x58] sm:$0xf]
      %v1942 = vld [vmem:[%s1 + $0x68] sm:$0xf]
      %v1943 = vld [vmem:[%s1 + $0x78] sm:$0xf]
      %v1944 = vld [vmem:[%s1 + $0x88] sm:$0xf]
      %v1945 = vld [vmem:[%s1 + $0x98] sm:$0xf]
      %v1946 = vld [vmem:[%s1 + $0xa8] sm:$0xf]
      %v1947 = vld [vmem:[%s1 + $0xb8] sm:$0xf]
      %v1948 = vld [vmem:[%s1 + $0xc8] sm:$0xf]
      %v1949 = vld [vmem:[%s1 + $0xd8] sm:$0xf]
      %v1950 = vld [vmem:[%s1 + $0xe8] sm:$0xf]
      %v1951 = vld [vmem:[%s1 + $0xf8] sm:$0xf]
      %v1952 = vld [vmem:[%s1 + $0x108] sm:$0xf]
      %v1953 = vld [vmem:[%s1 + $0x118] sm:$0xf]
      %v1954 = vld [vmem:[%s1 + $0x128] sm:$0xf]
      %v1955 = vld [vmem:[%s1 + $0x138] sm:$0xf]
      %v1956 = vld [vmem:[%s1 + $0x148] sm:$0xf]
      %v1957 = vld [vmem:[%s1 + $0x158] sm:$0xf]
      %v1958 = vld [vmem:[%s1 + $0x168] sm:$0xf]
      %v1959 = vld [vmem:[%s1 + $0x178] sm:$0xf]
      %v1960 = vld [vmem:[%s1 + $0x188] sm:$0xf]
      %v1961 = vld [vmem:[%s1 + $0x198] sm:$0xf]
      %v1962 = vld [vmem:[%s1 + $0x1a8] sm:$0xf]
      %v1963 = vld [vmem:[%s1 + $0x1b8] sm:$0xf]
      %v1964 = vld [vmem:[%s1 + $0x1c8] sm:$0xf]
      %v1965 = vld [vmem:[%s1 + $0x1d8] sm:$0xf]
      %v1966 = vld [vmem:[%s1 + $0x1e8] sm:$0xf]
      %v1967 = vld [vmem:[%s1 + $0x1f8] sm:$0xf]
      %v1984 = vunpack.c.l.b16 %v1920
      %v1985 = vunpack.c.l.b16 %v1921
      %v1986 = vunpack.c.l.b16 %v1922
      %v1987 = vunpack.c.l.b16 %v1923
      %v1988 = vunpack.c.l.b16 %v1924
      %v1989 = vunpack.c.l.b16 %v1925
      %v1990 = vunpack.c.l.b16 %v1926
      %v1991 = vunpack.c.l.b16 %v1927
      %v1992 = vunpack.c.l.b16 %v1928
      %v1993 = vunpack.c.l.b16 %v1929
      %v1994 = vunpack.c.l.b16 %v1930
      %v1995 = vunpack.c.l.b16 %v1931
      %v1996 = vunpack.c.l.b16 %v1932
      %v1997 = vunpack.c.l.b16 %v1933
      %v1998 = vunpack.c.l.b16 %v1934
      %v1999 = vunpack.c.l.b16 %v1935
      %v2000 = vpack.c.b16 %v1985, %v1984
      %v2001 = vpack.c.b16 %v1987, %v1986
      %v2002 = vpack.c.b16 %v1989, %v1988
      %v2003 = vpack.c.b16 %v1991, %v1990
      %v2004 = vpack.c.b16 %v1993, %v1992
      %v2005 = vpack.c.b16 %v1995, %v1994
      %v2006 = vpack.c.b16 %v1997, %v1996
      %v2007 = vpack.c.b16 %v1999, %v1998
      %v2048 = vunpack.c.l.b16 %v1936
      %v2049 = vunpack.c.l.b16 %v1937
      %v2050 = vunpack.c.l.b16 %v1938
      %v2051 = vunpack.c.l.b16 %v1939
      %v2052 = vunpack.c.l.b16 %v1940
      %v2053 = vunpack.c.l.b16 %v1941
      %v2054 = vunpack.c.l.b16 %v1942
      %v2055 = vunpack.c.l.b16 %v1943
      %v2056 = vunpack.c.l.b16 %v1944
      %v2057 = vunpack.c.l.b16 %v1945
      %v2058 = vunpack.c.l.b16 %v1946
      %v2059 = vunpack.c.l.b16 %v1947
      %v2060 = vunpack.c.l.b16 %v1948
      %v2061 = vunpack.c.l.b16 %v1949
      %v2062 = vunpack.c.l.b16 %v1950
      %v2063 = vunpack.c.l.b16 %v1951
      %v2064 = vunpack.c.l.b16 %v1952
      %v2065 = vunpack.c.l.b16 %v1953
      %v2066 = vunpack.c.l.b16 %v1954
      %v2067 = vunpack.c.l.b16 %v1955
      %v2068 = vunpack.c.l.b16 %v1956
      %v2069 = vunpack.c.l.b16 %v1957
      %v2070 = vunpack.c.l.b16 %v1958
      %v2071 = vunpack.c.l.b16 %v1959
      %v2072 = vunpack.c.l.b16 %v1960
      %v2073 = vunpack.c.l.b16 %v1961
      %v2074 = vunpack.c.l.b16 %v1962
      %v2075 = vunpack.c.l.b16 %v1963
      %v2076 = vunpack.c.l.b16 %v1964
      %v2077 = vunpack.c.l.b16 %v1965
      %v2078 = vunpack.c.l.b16 %v1966
      %v2079 = vunpack.c.l.b16 %v1967
      %v2080 = vpack.c.b16 %v2049, %v2048
      %v2081 = vpack.c.b16 %v2051, %v2050
      %v2082 = vpack.c.b16 %v2053, %v2052
      %v2083 = vpack.c.b16 %v2055, %v2054
      %v2084 = vpack.c.b16 %v2057, %v2056
      %v2085 = vpack.c.b16 %v2059, %v2058
      %v2086 = vpack.c.b16 %v2061, %v2060
      %v2087 = vpack.c.b16 %v2063, %v2062
      %v2088 = vpack.c.b16 %v2065, %v2064
      %v2089 = vpack.c.b16 %v2067, %v2066
      %v2090 = vpack.c.b16 %v2069, %v2068
      %v2091 = vpack.c.b16 %v2071, %v2070
      %v2092 = vpack.c.b16 %v2073, %v2072
      %v2093 = vpack.c.b16 %v2075, %v2074
      %v2094 = vpack.c.b16 %v2077, %v2076
      %v2095 = vpack.c.b16 %v2079, %v2078
      %2112 = vmatprep.subr.bf16.mxu0 0
      %2113 = vmatpush1.bf16.xpose.msra.mxu0 %v2080
      %2114 = vmatprep.subr.bf16.mxu0 0
      %2115 = vmatpush1.bf16.xpose.msra.mxu0 %v2081
      %2116 = vmatprep.subr.bf16.mxu0 0
      %2117 = vmatpush1.bf16.xpose.msra.mxu0 %v2082
      %2118 = vmatprep.subr.bf16.mxu0 0
      %2119 = vmatpush1.bf16.xpose.msra.mxu0 %v2083
      %2120 = vmatprep.subr.bf16.mxu0 0
      %2121 = vmatpush1.bf16.xpose.msra.mxu0 %v2084
      %2122 = vmatprep.subr.bf16.mxu0 0
      %2123 = vmatpush1.bf16.xpose.msra.mxu0 %v2085
      %2124 = vmatprep.subr.bf16.mxu0 0
      %2125 = vmatpush1.bf16.xpose.msra.mxu0 %v2086
      %2126 = vmatprep.subr.bf16.mxu0 0
      %2127 = vmatpush1.bf16.xpose.msra.mxu0 %v2087
      %2128 = vmatprep.subr.bf16.mxu0 0
      %2129 = vmatpush1.bf16.xpose.msra.mxu0 %v2088
      %2130 = vmatprep.subr.bf16.mxu0 0
      %2131 = vmatpush1.bf16.xpose.msra.mxu0 %v2089
      %2132 = vmatprep.subr.bf16.mxu0 0
      %2133 = vmatpush1.bf16.xpose.msra.mxu0 %v2090
      %2134 = vmatprep.subr.bf16.mxu0 0
      %2135 = vmatpush1.bf16.xpose.msra.mxu0 %v2091
      %2136 = vmatprep.subr.bf16.mxu0 0
      %2137 = vmatpush1.bf16.xpose.msra.mxu0 %v2092
      %2138 = vmatprep.subr.bf16.mxu0 0
      %2139 = vmatpush1.bf16.xpose.msra.mxu0 %v2093
      %2140 = vmatprep.subr.bf16.mxu0 0
      %2141 = vmatpush1.bf16.xpose.msra.mxu0 %v2094
      %2142 = vmatprep.subr.bf16.mxu0 0
      %2143 = vmatpush1.bf16.xpose.msra.mxu0 %v2095
      %2144 = vmatprep.mubr.bf16.mxu0 0
      %2145 = vmatmul.mubr.bf16.gmra.mrb[0].mxu0 %v2000
      %v2146 = vpop.f32.mrb[0].mxu0
      %v2147 = vadd.f32 %v282, %v2146
      %v2148 = vpop.f32.mrb[0].mxu0
      %v2149 = vadd.f32 %v283, %v2148
      %v2150 = vpop.f32.mrb[0].mxu0
      %v2151 = vadd.f32 %v282, %v2150
      %v2152 = vpop.f32.mrb[0].mxu0
      %v2153 = vadd.f32 %v283, %v2152
      %2154 = vmatprep.mubr.bf16.mxu0 0
      %2155 = vmatmul.mubr.bf16.gmra.mrb[0].mxu0 %v2001
      %v2156 = vpop.f32.mrb[0].mxu0
      %v2157 = vadd.f32 %v282, %v2156
      %v2158 = vpop.f32.mrb[0].mxu0
      %v2159 = vadd.f32 %v283, %v2158
      %v2160 = vpop.f32.mrb[0].mxu0
      %v2161 = vadd.f32 %v282, %v2160
      %v2162 = vpop.f32.mrb[0].mxu0
      %v2163 = vadd.f32 %v283, %v2162
      %2164 = vmatprep.mubr.bf16.mxu0 0
      %2165 = vmatmul.mubr.bf16.gmra.mrb[0].mxu0 %v2002
      %v2166 = vpop.f32.mrb[0].mxu0
      %v2167 = vadd.f32 %v282, %v2166
      %v2168 = vpop.f32.mrb[0].mxu0
      %v2169 = vadd.f32 %v283, %v2168
      %v2170 = vpop.f32.mrb[0].mxu0
      %v2171 = vadd.f32 %v282, %v2170
      %v2172 = vpop.f32.mrb[0].mxu0
      %v2173 = vadd.f32 %v283, %v2172
      %2174 = vmatprep.mubr.bf16.mxu0 0
      %2175 = vmatmul.mubr.bf16.gmra.mrb[0].mxu0 %v2003
      %v2176 = vpop.f32.mrb[0].mxu0
      %v2177 = vadd.f32 %v282, %v2176
      %v2178 = vpop.f32.mrb[0].mxu0
      %v2179 = vadd.f32 %v283, %v2178
      %v2180 = vpop.f32.mrb[0].mxu0
      %v2181 = vadd.f32 %v282, %v2180
      %v2182 = vpop.f32.mrb[0].mxu0
      %v2183 = vadd.f32 %v283, %v2182
      %2184 = vmatprep.mubr.bf16.mxu0 0
      %2185 = vmatmul.mubr.bf16.gmra.mrb[0].mxu0 %v2004
      %v2186 = vpop.f32.mrb[0].mxu0
      %v2187 = vadd.f32 %v282, %v2186
      %v2188 = vpop.f32.mrb[0].mxu0
      %v2189 = vadd.f32 %v283, %v2188
      %v2190 = vpop.f32.mrb[0].mxu0
      %v2191 = vadd.f32 %v282, %v2190
      %v2192 = vpop.f32.mrb[0].mxu0
      %v2193 = vadd.f32 %v283, %v2192
      %2194 = vmatprep.mubr.bf16.mxu0 0
      %2195 = vmatmul.mubr.bf16.gmra.mrb[0].mxu0 %v2005
      %v2196 = vpop.f32.mrb[0].mxu0
      %v2197 = vadd.f32 %v282, %v2196
      %v2198 = vpop.f32.mrb[0].mxu0
      %v2199 = vadd.f32 %v283, %v2198
      %v2200 = vpop.f32.mrb[0].mxu0
      %v2201 = vadd.f32 %v282, %v2200
      %v2202 = vpop.f32.mrb[0].mxu0
      %v2203 = vadd.f32 %v283, %v2202
      %2204 = vmatprep.mubr.bf16.mxu0 0
      %2205 = vmatmul.mubr.bf16.gmra.mrb[0].mxu0 %v2006
      %v2206 = vpop.f32.mrb[0].mxu0
      %v2207 = vadd.f32 %v282, %v2206
      %v2208 = vpop.f32.mrb[0].mxu0
      %v2209 = vadd.f32 %v283, %v2208
      %v2210 = vpop.f32.mrb[0].mxu0
      %v2211 = vadd.f32 %v282, %v2210
      %v2212 = vpop.f32.mrb[0].mxu0
      %v2213 = vadd.f32 %v283, %v2212
      %2214 = vmatprep.mubr.bf16.mxu0 0
      %2215 = vmatmul.mubr.bf16.gmra.mrb[0].mxu0 %v2007
      %v2216 = vpop.f32.mrb[0].mxu0
      %v2217 = vadd.f32 %v282, %v2216
      %v2218 = vpop.f32.mrb[0].mxu0
      %v2219 = vadd.f32 %v283, %v2218
      %v2220 = vpop.f32.mrb[0].mxu0
      %v2221 = vadd.f32 %v282, %v2220
      %v2222 = vpop.f32.mrb[0].mxu0
      %v2223 = vadd.f32 %v283, %v2222
      %2224 = vdwg.mxu0
      %v2225 = vmax.f32 %v2147, %v2149
      %2226 = vmax.xlane.f32.xlu0 %v2225
      %v2227 = vpop.xlane.xlu0 %2226
      %v2228 = vmax.f32 %v2151, %v2153
      %2229 = vmax.xlane.f32.xlu0 %v2228
      %v2230 = vpop.xlane.xlu0 %2229
      %v2231 = vmax.f32 %v2157, %v2159
      %2232 = vmax.xlane.f32.xlu0 %v2231
      %v2233 = vpop.xlane.xlu0 %2232
      %v2234 = vmax.f32 %v2161, %v2163
      %2235 = vmax.xlane.f32.xlu0 %v2234
      %v2236 = vpop.xlane.xlu0 %2235
      %v2237 = vmax.f32 %v2167, %v2169
      %2238 = vmax.xlane.f32.xlu0 %v2237
      %v2239 = vpop.xlane.xlu0 %2238
      %v2240 = vmax.f32 %v2171, %v2173
      %2241 = vmax.xlane.f32.xlu0 %v2240
      %v2242 = vpop.xlane.xlu0 %2241
      %v2243 = vmax.f32 %v2177, %v2179
      %2244 = vmax.xlane.f32.xlu0 %v2243
      %v2245 = vpop.xlane.xlu0 %2244
      %v2246 = vmax.f32 %v2181, %v2183
      %2247 = vmax.xlane.f32.xlu0 %v2246
      %v2248 = vpop.xlane.xlu0 %2247
      %v2249 = vmax.f32 %v2187, %v2189
      %2250 = vmax.xlane.f32.xlu0 %v2249
      %v2251 = vpop.xlane.xlu0 %2250
      %v2252 = vmax.f32 %v2191, %v2193
      %2253 = vmax.xlane.f32.xlu0 %v2252
      %v2254 = vpop.xlane.xlu0 %2253
      %v2255 = vmax.f32 %v2197, %v2199
      %2256 = vmax.xlane.f32.xlu0 %v2255
      %v2257 = vpop.xlane.xlu0 %2256
      %v2258 = vmax.f32 %v2201, %v2203
      %2259 = vmax.xlane.f32.xlu0 %v2258
      %v2260 = vpop.xlane.xlu0 %2259
      %v2261 = vmax.f32 %v2207, %v2209
      %2262 = vmax.xlane.f32.xlu0 %v2261
      %v2263 = vpop.xlane.xlu0 %2262
      %v2264 = vmax.f32 %v2211, %v2213
      %2265 = vmax.xlane.f32.xlu0 %v2264
      %v2266 = vpop.xlane.xlu0 %2265
      %v2267 = vmax.f32 %v2217, %v2219
      %2268 = vmax.xlane.f32.xlu0 %v2267
      %v2269 = vpop.xlane.xlu0 %2268
      %v2270 = vmax.f32 %v2221, %v2223
      %2271 = vmax.xlane.f32.xlu0 %v2270
      %v2272 = vpop.xlane.xlu0 %2271
      %v2273 = vsub.f32 %v2147, %v2227
      %v2274 = vsub.f32 %v2149, %v2227
      %v2275 = vsub.f32 %v2151, %v2230
      %v2276 = vsub.f32 %v2153, %v2230
      %v2277 = vsub.f32 %v2157, %v2233
      %v2278 = vsub.f32 %v2159, %v2233
      %v2279 = vsub.f32 %v2161, %v2236
      %v2280 = vsub.f32 %v2163, %v2236
      %v2281 = vsub.f32 %v2167, %v2239
      %v2282 = vsub.f32 %v2169, %v2239
      %v2283 = vsub.f32 %v2171, %v2242
      %v2284 = vsub.f32 %v2173, %v2242
      %v2285 = vsub.f32 %v2177, %v2245
      %v2286 = vsub.f32 %v2179, %v2245
      %v2287 = vsub.f32 %v2181, %v2248
      %v2288 = vsub.f32 %v2183, %v2248
      %v2289 = vsub.f32 %v2187, %v2251
      %v2290 = vsub.f32 %v2189, %v2251
      %v2291 = vsub.f32 %v2191, %v2254
      %v2292 = vsub.f32 %v2193, %v2254
      %v2293 = vsub.f32 %v2197, %v2257
      %v2294 = vsub.f32 %v2199, %v2257
      %v2295 = vsub.f32 %v2201, %v2260
      %v2296 = vsub.f32 %v2203, %v2260
      %v2297 = vsub.f32 %v2207, %v2263
      %v2298 = vsub.f32 %v2209, %v2263
      %v2299 = vsub.f32 %v2211, %v2266
      %v2300 = vsub.f32 %v2213, %v2266
      %v2301 = vsub.f32 %v2217, %v2269
      %v2302 = vsub.f32 %v2219, %v2269
      %v2303 = vsub.f32 %v2221, %v2272
      %v2304 = vsub.f32 %v2223, %v2272
      %v2305 = vmul.f32 %v2273, 1.442695
      %v2306 = vpow.pop %v2305
      %v2307 = vmul.f32 %v2274, 1.442695
      %v2308 = vpow.pop %v2307
      %v2309 = vmul.f32 %v2275, 1.442695
      %v2310 = vpow.pop %v2309
      %v2311 = vmul.f32 %v2276, 1.442695
      %v2312 = vpow.pop %v2311
      %v2313 = vmul.f32 %v2277, 1.442695
      %v2314 = vpow.pop %v2313
      %v2315 = vmul.f32 %v2278, 1.442695
      %v2316 = vpow.pop %v2315
      %v2317 = vmul.f32 %v2279, 1.442695
      %v2318 = vpow.pop %v2317
      %v2319 = vmul.f32 %v2280, 1.442695
      %v2320 = vpow.pop %v2319
      %v2321 = vmul.f32 %v2281, 1.442695
      %v2322 = vpow.pop %v2321
      %v2323 = vmul.f32 %v2282, 1.442695
      %v2324 = vpow.pop %v2323
      %v2325 = vmul.f32 %v2283, 1.442695
      %v2326 = vpow.pop %v2325
      %v2327 = vmul.f32 %v2284, 1.442695
      %v2328 = vpow.pop %v2327
      %v2329 = vmul.f32 %v2285, 1.442695
      %v2330 = vpow.pop %v2329
      %v2331 = vmul.f32 %v2286, 1.442695
      %v2332 = vpow.pop %v2331
      %v2333 = vmul.f32 %v2287, 1.442695
      %v2334 = vpow.pop %v2333
      %v2335 = vmul.f32 %v2288, 1.442695
      %v2336 = vpow.pop %v2335
      %v2337 = vmul.f32 %v2289, 1.442695
      %v2338 = vpow.pop %v2337
      %v2339 = vmul.f32 %v2290, 1.442695
      %v2340 = vpow.pop %v2339
      %v2341 = vmul.f32 %v2291, 1.442695
      %v2342 = vpow.pop %v2341
      %v2343 = vmul.f32 %v2292, 1.442695
      %v2344 = vpow.pop %v2343
      %v2345 = vmul.f32 %v2293, 1.442695
      %v2346 = vpow.pop %v2345
      %v2347 = vmul.f32 %v2294, 1.442695
      %v2348 = vpow.pop %v2347
      %v2349 = vmul.f32 %v2295, 1.442695
      %v2350 = vpow.pop %v2349
      %v2351 = vmul.f32 %v2296, 1.442695
      %v2352 = vpow.pop %v2351
      %v2353 = vmul.f32 %v2297, 1.442695
      %v2354 = vpow.pop %v2353
      %v2355 = vmul.f32 %v2298, 1.442695
      %v2356 = vpow.pop %v2355
      %v2357 = vmul.f32 %v2299, 1.442695
      %v2358 = vpow.pop %v2357
      %v2359 = vmul.f32 %v2300, 1.442695
      %v2360 = vpow.pop %v2359
      %v2361 = vmul.f32 %v2301, 1.442695
      %v2362 = vpow.pop %v2361
      %v2363 = vmul.f32 %v2302, 1.442695
      %v2364 = vpow.pop %v2363
      %v2365 = vmul.f32 %v2303, 1.442695
      %v2366 = vpow.pop %v2365
      %v2367 = vmul.f32 %v2304, 1.442695
      %v2368 = vpow.pop %v2367
      %v2369 = vadd.f32 %v2306, %v2308
      %2370 = vadd.xlane.f32.xlu0 %v2369
      %v2371 = vpop.xlane.xlu0 %2370
      %v2372 = vadd.f32 %v2310, %v2312
      %2373 = vadd.xlane.f32.xlu0 %v2372
      %v2374 = vpop.xlane.xlu0 %2373
      %v2375 = vadd.f32 %v2314, %v2316
      %2376 = vadd.xlane.f32.xlu0 %v2375
      %v2377 = vpop.xlane.xlu0 %2376
      %v2378 = vadd.f32 %v2318, %v2320
      %2379 = vadd.xlane.f32.xlu0 %v2378
      %v2380 = vpop.xlane.xlu0 %2379
      %v2381 = vadd.f32 %v2322, %v2324
      %2382 = vadd.xlane.f32.xlu0 %v2381
      %v2383 = vpop.xlane.xlu0 %2382
      %v2384 = vadd.f32 %v2326, %v2328
      %2385 = vadd.xlane.f32.xlu0 %v2384
      %v2386 = vpop.xlane.xlu0 %2385
      %v2387 = vadd.f32 %v2330, %v2332
      %2388 = vadd.xlane.f32.xlu0 %v2387
      %v2389 = vpop.xlane.xlu0 %2388
      %v2390 = vadd.f32 %v2334, %v2336
      %2391 = vadd.xlane.f32.xlu0 %v2390
      %v2392 = vpop.xlane.xlu0 %2391
      %v2393 = vadd.f32 %v2338, %v2340
      %2394 = vadd.xlane.f32.xlu0 %v2393
      %v2395 = vpop.xlane.xlu0 %2394
      %v2396 = vadd.f32 %v2342, %v2344
      %2397 = vadd.xlane.f32.xlu0 %v2396
      %v2398 = vpop.xlane.xlu0 %2397
      %v2399 = vadd.f32 %v2346, %v2348
      %2400 = vadd.xlane.f32.xlu0 %v2399
      %v2401 = vpop.xlane.xlu0 %2400
      %v2402 = vadd.f32 %v2350, %v2352
      %2403 = vadd.xlane.f32.xlu0 %v2402
      %v2404 = vpop.xlane.xlu0 %2403
      %v2405 = vadd.f32 %v2354, %v2356
      %2406 = vadd.xlane.f32.xlu0 %v2405
      %v2407 = vpop.xlane.xlu0 %2406
      %v2408 = vadd.f32 %v2358, %v2360
      %2409 = vadd.xlane.f32.xlu0 %v2408
      %v2410 = vpop.xlane.xlu0 %2409
      %v2411 = vadd.f32 %v2362, %v2364
      %2412 = vadd.xlane.f32.xlu0 %v2411
      %v2413 = vpop.xlane.xlu0 %2412
      %v2414 = vadd.f32 %v2366, %v2368
      %2415 = vadd.xlane.f32.xlu0 %v2414
      %v2416 = vpop.xlane.xlu0 %2415
      %v2417 = vrcp.pop %v2371
      %v2418 = vrcp.pop %v2374
      %v2419 = vrcp.pop %v2377
      %v2420 = vrcp.pop %v2380
      %v2421 = vrcp.pop %v2383
      %v2422 = vrcp.pop %v2386
      %v2423 = vrcp.pop %v2389
      %v2424 = vrcp.pop %v2392
      %v2425 = vrcp.pop %v2395
      %v2426 = vrcp.pop %v2398
      %v2427 = vrcp.pop %v2401
      %v2428 = vrcp.pop %v2404
      %v2429 = vrcp.pop %v2407
      %v2430 = vrcp.pop %v2410
      %v2431 = vrcp.pop %v2413
      %v2432 = vrcp.pop %v2416
      %v2433 = vmul.f32 %v2306, %v2417
      %v2434 = vmul.f32 %v2308, %v2417
      %v2435 = vmul.f32 %v2310, %v2418
      %v2436 = vmul.f32 %v2312, %v2418
      %v2437 = vmul.f32 %v2314, %v2419
      %v2438 = vmul.f32 %v2316, %v2419
      %v2439 = vmul.f32 %v2318, %v2420
      %v2440 = vmul.f32 %v2320, %v2420
      %v2441 = vmul.f32 %v2322, %v2421
      %v2442 = vmul.f32 %v2324, %v2421
      %v2443 = vmul.f32 %v2326, %v2422
      %v2444 = vmul.f32 %v2328, %v2422
      %v2445 = vmul.f32 %v2330, %v2423
      %v2446 = vmul.f32 %v2332, %v2423
      %v2447 = vmul.f32 %v2334, %v2424
      %v2448 = vmul.f32 %v2336, %v2424
      %v2449 = vmul.f32 %v2338, %v2425
      %v2450 = vmul.f32 %v2340, %v2425
      %v2451 = vmul.f32 %v2342, %v2426
      %v2452 = vmul.f32 %v2344, %v2426
      %v2453 = vmul.f32 %v2346, %v2427
      %v2454 = vmul.f32 %v2348, %v2427
      %v2455 = vmul.f32 %v2350, %v2428
      %v2456 = vmul.f32 %v2352, %v2428
      %v2457 = vmul.f32 %v2354, %v2429
      %v2458 = vmul.f32 %v2356, %v2429
      %v2459 = vmul.f32 %v2358, %v2430
      %v2460 = vmul.f32 %v2360, %v2430
      %v2461 = vmul.f32 %v2362, %v2431
      %v2462 = vmul.f32 %v2364, %v2431
      %v2463 = vmul.f32 %v2366, %v2432
      %v2464 = vmul.f32 %v2368, %v2432
      %v2465 = vadd.f32 %v1631, %v2433
      %v2466 = vadd.f32 %v1632, %v2434
      %v2467 = vadd.f32 %v1633, %v2435
      %v2468 = vadd.f32 %v1634, %v2436
      %v2469 = vadd.f32 %v1635, %v2437
      %v2470 = vadd.f32 %v1636, %v2438
      %v2471 = vadd.f32 %v1637, %v2439
      %v2472 = vadd.f32 %v1638, %v2440
      %v2473 = vadd.f32 %v1639, %v2441
      %v2474 = vadd.f32 %v1640, %v2442
      %v2475 = vadd.f32 %v1641, %v2443
      %v2476 = vadd.f32 %v1642, %v2444
      %v2477 = vadd.f32 %v1643, %v2445
      %v2478 = vadd.f32 %v1644, %v2446
      %v2479 = vadd.f32 %v1645, %v2447
      %v2480 = vadd.f32 %v1646, %v2448
      %v2481 = vadd.f32 %v1647, %v2449
      %v2482 = vadd.f32 %v1648, %v2450
      %v2483 = vadd.f32 %v1649, %v2451
      %v2484 = vadd.f32 %v1650, %v2452
      %v2485 = vadd.f32 %v1651, %v2453
      %v2486 = vadd.f32 %v1652, %v2454
      %v2487 = vadd.f32 %v1653, %v2455
      %v2488 = vadd.f32 %v1654, %v2456
      %v2489 = vadd.f32 %v1655, %v2457
      %v2490 = vadd.f32 %v1656, %v2458
      %v2491 = vadd.f32 %v1657, %v2459
      %v2492 = vadd.f32 %v1658, %v2460
      %v2493 = vadd.f32 %v1659, %v2461
      %v2494 = vadd.f32 %v1660, %v2462
      %v2495 = vadd.f32 %v1661, %v2463
      %v2496 = vadd.f32 %v1662, %v2464
      %v2497 = vpack.c.bf16 %v2435, %v2433
      %v2498 = vpack.c.bf16 %v2436, %v2434
      %v2499 = vpack.c.bf16 %v2439, %v2437
      %v2500 = vpack.c.bf16 %v2440, %v2438
      %v2501 = vpack.c.bf16 %v2443, %v2441
      %v2502 = vpack.c.bf16 %v2444, %v2442
      %v2503 = vpack.c.bf16 %v2447, %v2445
      %v2504 = vpack.c.bf16 %v2448, %v2446
      %v2505 = vpack.c.bf16 %v2451, %v2449
      %v2506 = vpack.c.bf16 %v2452, %v2450
      %v2507 = vpack.c.bf16 %v2455, %v2453
      %v2508 = vpack.c.bf16 %v2456, %v2454
      %v2509 = vpack.c.bf16 %v2459, %v2457
      %v2510 = vpack.c.bf16 %v2460, %v2458
      %v2511 = vpack.c.bf16 %v2463, %v2461
      %v2512 = vpack.c.bf16 %v2464, %v2462
      %v2513 = vld [vmem:[%s2 + $0x8] sm:$0xf]
      %v2514 = vld [vmem:[%s2 + $0x18] sm:$0xf]
      %v2515 = vld [vmem:[%s2 + $0x28] sm:$0xf]
      %v2516 = vld [vmem:[%s2 + $0x38] sm:$0xf]
      %v2517 = vld [vmem:[%s2 + $0x48] sm:$0xf]
      %v2518 = vld [vmem:[%s2 + $0x58] sm:$0xf]
      %v2519 = vld [vmem:[%s2 + $0x68] sm:$0xf]
      %v2520 = vld [vmem:[%s2 + $0x78] sm:$0xf]
      %v2521 = vld [vmem:[%s2 + $0x88] sm:$0xf]
      %v2522 = vld [vmem:[%s2 + $0x98] sm:$0xf]
      %v2523 = vld [vmem:[%s2 + $0xa8] sm:$0xf]
      %v2524 = vld [vmem:[%s2 + $0xb8] sm:$0xf]
      %v2525 = vld [vmem:[%s2 + $0xc8] sm:$0xf]
      %v2526 = vld [vmem:[%s2 + $0xd8] sm:$0xf]
      %v2527 = vld [vmem:[%s2 + $0xe8] sm:$0xf]
      %v2528 = vld [vmem:[%s2 + $0xf8] sm:$0xf]
      %v2529 = vld [vmem:[%s2 + $0x108] sm:$0xf]
      %v2530 = vld [vmem:[%s2 + $0x118] sm:$0xf]
      %v2531 = vld [vmem:[%s2 + $0x128] sm:$0xf]
      %v2532 = vld [vmem:[%s2 + $0x138] sm:$0xf]
      %v2533 = vld [vmem:[%s2 + $0x148] sm:$0xf]
      %v2534 = vld [vmem:[%s2 + $0x158] sm:$0xf]
      %v2535 = vld [vmem:[%s2 + $0x168] sm:$0xf]
      %v2536 = vld [vmem:[%s2 + $0x178] sm:$0xf]
      %v2537 = vld [vmem:[%s2 + $0x188] sm:$0xf]
      %v2538 = vld [vmem:[%s2 + $0x198] sm:$0xf]
      %v2539 = vld [vmem:[%s2 + $0x1a8] sm:$0xf]
      %v2540 = vld [vmem:[%s2 + $0x1b8] sm:$0xf]
      %v2541 = vld [vmem:[%s2 + $0x1c8] sm:$0xf]
      %v2542 = vld [vmem:[%s2 + $0x1d8] sm:$0xf]
      %v2543 = vld [vmem:[%s2 + $0x1e8] sm:$0xf]
      %v2544 = vld [vmem:[%s2 + $0x1f8] sm:$0xf]
      %v2577 = vunpack.c.l.b16 %v2513
      %v2578 = vunpack.c.l.b16 %v2514
      %v2579 = vunpack.c.l.b16 %v2515
      %v2580 = vunpack.c.l.b16 %v2516
      %v2581 = vunpack.c.l.b16 %v2517
      %v2582 = vunpack.c.l.b16 %v2518
      %v2583 = vunpack.c.l.b16 %v2519
      %v2584 = vunpack.c.l.b16 %v2520
      %v2585 = vunpack.c.l.b16 %v2521
      %v2586 = vunpack.c.l.b16 %v2522
      %v2587 = vunpack.c.l.b16 %v2523
      %v2588 = vunpack.c.l.b16 %v2524
      %v2589 = vunpack.c.l.b16 %v2525
      %v2590 = vunpack.c.l.b16 %v2526
      %v2591 = vunpack.c.l.b16 %v2527
      %v2592 = vunpack.c.l.b16 %v2528
      %v2593 = vunpack.c.l.b16 %v2529
      %v2594 = vunpack.c.l.b16 %v2530
      %v2595 = vunpack.c.l.b16 %v2531
      %v2596 = vunpack.c.l.b16 %v2532
      %v2597 = vunpack.c.l.b16 %v2533
      %v2598 = vunpack.c.l.b16 %v2534
      %v2599 = vunpack.c.l.b16 %v2535
      %v2600 = vunpack.c.l.b16 %v2536
      %v2601 = vunpack.c.l.b16 %v2537
      %v2602 = vunpack.c.l.b16 %v2538
      %v2603 = vunpack.c.l.b16 %v2539
      %v2604 = vunpack.c.l.b16 %v2540
      %v2605 = vunpack.c.l.b16 %v2541
      %v2606 = vunpack.c.l.b16 %v2542
      %v2607 = vunpack.c.l.b16 %v2543
      %v2608 = vunpack.c.l.b16 %v2544
      %v2609 = vpack.c.b16 %v2578, %v2577
      %v2610 = vpack.c.b16 %v2580, %v2579
      %v2611 = vpack.c.b16 %v2582, %v2581
      %v2612 = vpack.c.b16 %v2584, %v2583
      %v2613 = vpack.c.b16 %v2586, %v2585
      %v2614 = vpack.c.b16 %v2588, %v2587
      %v2615 = vpack.c.b16 %v2590, %v2589
      %v2616 = vpack.c.b16 %v2592, %v2591
      %v2617 = vpack.c.b16 %v2594, %v2593
      %v2618 = vpack.c.b16 %v2596, %v2595
      %v2619 = vpack.c.b16 %v2598, %v2597
      %v2620 = vpack.c.b16 %v2600, %v2599
      %v2621 = vpack.c.b16 %v2602, %v2601
      %v2622 = vpack.c.b16 %v2604, %v2603
      %v2623 = vpack.c.b16 %v2606, %v2605
      %v2624 = vpack.c.b16 %v2608, %v2607
      %2641 = vmatprep.subr.bf16.mxu0 0
      %2642 = vmatpush1.bf16.msra.mxu0 %v2609
      %2643 = vmatprep.subr.bf16.mxu0 0
      %2644 = vmatpush1.bf16.msra.mxu0 %v2610
      %2645 = vmatprep.subr.bf16.mxu0 0
      %2646 = vmatpush1.bf16.msra.mxu0 %v2611
      %2647 = vmatprep.subr.bf16.mxu0 0
      %2648 = vmatpush1.bf16.msra.mxu0 %v2612
      %2649 = vmatprep.subr.bf16.mxu0 0
      %2650 = vmatpush1.bf16.msra.mxu0 %v2613
      %2651 = vmatprep.subr.bf16.mxu0 0
      %2652 = vmatpush1.bf16.msra.mxu0 %v2614
      %2653 = vmatprep.subr.bf16.mxu0 0
      %2654 = vmatpush1.bf16.msra.mxu0 %v2615
      %2655 = vmatprep.subr.bf16.mxu0 0
      %2656 = vmatpush1.bf16.msra.mxu0 %v2616
      %2657 = vmatprep.subr.bf16.mxu0 0
      %2658 = vmatpush1.bf16.msra.mxu0 %v2617
      %2659 = vmatprep.subr.bf16.mxu0 0
      %2660 = vmatpush1.bf16.msra.mxu0 %v2618
      %2661 = vmatprep.subr.bf16.mxu0 0
      %2662 = vmatpush1.bf16.msra.mxu0 %v2619
      %2663 = vmatprep.subr.bf16.mxu0 0
      %2664 = vmatpush1.bf16.msra.mxu0 %v2620
      %2665 = vmatprep.subr.bf16.mxu0 0
      %2666 = vmatpush1.bf16.msra.mxu0 %v2621
      %2667 = vmatprep.subr.bf16.mxu0 0
      %2668 = vmatpush1.bf16.msra.mxu0 %v2622
      %2669 = vmatprep.subr.bf16.mxu0 0
      %2670 = vmatpush1.bf16.msra.mxu0 %v2623
      %2671 = vmatprep.subr.bf16.mxu0 0
      %2672 = vmatpush1.bf16.msra.mxu0 %v2624
      %2673 = vmatprep.mubr.bf16.mxu0 %v2498
      %2674 = vmatmul.mubr.bf16.gmra.mrb[0].mxu0 %v2497
      %v2675 = vpop.f32.mrb[0].mxu0
      %v2676 = vadd.f32 0.0, %v2675
      %v2677 = vpop.f32.mrb[0].mxu0
      %v2678 = vpop.f32.mrb[0].mxu0
      %v2679 = vadd.f32 0.0, %v2678
      %v2680 = vpop.f32.mrb[0].mxu0
      %2681 = vmatprep.mubr.bf16.mxu0 %v2500
      %2682 = vmatmul.mubr.bf16.gmra.mrb[0].mxu0 %v2499
      %v2683 = vpop.f32.mrb[0].mxu0
      %v2684 = vadd.f32 0.0, %v2683
      %v2685 = vpop.f32.mrb[0].mxu0
      %v2686 = vpop.f32.mrb[0].mxu0
      %v2687 = vadd.f32 0.0, %v2686
      %v2688 = vpop.f32.mrb[0].mxu0
      %2689 = vmatprep.mubr.bf16.mxu0 %v2502
      %2690 = vmatmul.mubr.bf16.gmra.mrb[0].mxu0 %v2501
      %v2691 = vpop.f32.mrb[0].mxu0
      %v2692 = vadd.f32 0.0, %v2691
      %v2693 = vpop.f32.mrb[0].mxu0
      %v2694 = vpop.f32.mrb[0].mxu0
      %v2695 = vadd.f32 0.0, %v2694
      %v2696 = vpop.f32.mrb[0].mxu0
      %2697 = vmatprep.mubr.bf16.mxu0 %v2504
      %2698 = vmatmul.mubr.bf16.gmra.mrb[0].mxu0 %v2503
      %v2699 = vpop.f32.mrb[0].mxu0
      %v2700 = vadd.f32 0.0, %v2699
      %v2701 = vpop.f32.mrb[0].mxu0
      %v2702 = vpop.f32.mrb[0].mxu0
      %v2703 = vadd.f32 0.0, %v2702
      %v2704 = vpop.f32.mrb[0].mxu0
      %2705 = vmatprep.mubr.bf16.mxu0 %v2506
      %2706 = vmatmul.mubr.bf16.gmra.mrb[0].mxu0 %v2505
      %v2707 = vpop.f32.mrb[0].mxu0
      %v2708 = vadd.f32 0.0, %v2707
      %v2709 = vpop.f32.mrb[0].mxu0
      %v2710 = vpop.f32.mrb[0].mxu0
      %v2711 = vadd.f32 0.0, %v2710
      %v2712 = vpop.f32.mrb[0].mxu0
      %2713 = vmatprep.mubr.bf16.mxu0 %v2508
      %2714 = vmatmul.mubr.bf16.gmra.mrb[0].mxu0 %v2507
      %v2715 = vpop.f32.mrb[0].mxu0
      %v2716 = vadd.f32 0.0, %v2715
      %v2717 = vpop.f32.mrb[0].mxu0
      %v2718 = vpop.f32.mrb[0].mxu0
      %v2719 = vadd.f32 0.0, %v2718
      %v2720 = vpop.f32.mrb[0].mxu0
      %2721 = vmatprep.mubr.bf16.mxu0 %v2510
      %2722 = vmatmul.mubr.bf16.gmra.mrb[0].mxu0 %v2509
      %v2723 = vpop.f32.mrb[0].mxu0
      %v2724 = vadd.f32 0.0, %v2723
      %v2725 = vpop.f32.mrb[0].mxu0
      %v2726 = vpop.f32.mrb[0].mxu0
      %v2727 = vadd.f32 0.0, %v2726
      %v2728 = vpop.f32.mrb[0].mxu0
      %2729 = vmatprep.mubr.bf16.mxu0 %v2512
      %2730 = vmatmul.mubr.bf16.gmra.mrb[0].mxu0 %v2511
      %v2731 = vpop.f32.mrb[0].mxu0
      %v2732 = vadd.f32 0.0, %v2731
      %v2733 = vpop.f32.mrb[0].mxu0
      %v2734 = vpop.f32.mrb[0].mxu0
      %v2735 = vadd.f32 0.0, %v2734
      %v2736 = vpop.f32.mrb[0].mxu0
      %2737 = vdwg.mxu0
      %v2738 = vpack.c.bf16 %v2679, %v2676
      %v2739 = vpack.c.bf16 %v2687, %v2684
      %v2740 = vpack.c.bf16 %v2695, %v2692
      %v2741 = vpack.c.bf16 %v2703, %v2700
      %v2742 = vpack.c.bf16 %v2711, %v2708
      %v2743 = vpack.c.bf16 %v2719, %v2716
      %v2744 = vpack.c.bf16 %v2727, %v2724
      %v2745 = vpack.c.bf16 %v2735, %v2732
      %2746 = vst [vmem:[#allocation2 + $0x10] sm:$0xff] %v2738
      %2747 = vst [vmem:[#allocation2 + $0x30] sm:$0xff] %v2739
      %2748 = vst [vmem:[#allocation2 + $0x50] sm:$0xff] %v2740
      %2749 = vst [vmem:[#allocation2 + $0x70] sm:$0xff] %v2741
      %2750 = vst [vmem:[#allocation2 + $0x90] sm:$0xff] %v2742
      %2751 = vst [vmem:[#allocation2 + $0xb0] sm:$0xff] %v2743
      %2752 = vst [vmem:[#allocation2 + $0xd0] sm:$0xff] %v2744
      %2753 = vst [vmem:[#allocation2 + $0xf0] sm:$0xff] %v2745
      %v2754 = vld [vmem:[%s260 + $0xc] sm:$0xf]
      %v2755 = vld [vmem:[%s260 + $0x1c] sm:$0xf]
      %v2756 = vld [vmem:[%s260 + $0x2c] sm:$0xf]
      %v2757 = vld [vmem:[%s260 + $0x3c] sm:$0xf]
      %v2758 = vld [vmem:[%s260 + $0x4c] sm:$0xf]
      %v2759 = vld [vmem:[%s260 + $0x5c] sm:$0xf]
      %v2760 = vld [vmem:[%s260 + $0x6c] sm:$0xf]
      %v2761 = vld [vmem:[%s260 + $0x7c] sm:$0xf]
      %v2762 = vld [vmem:[%s260 + $0x8c] sm:$0xf]
      %v2763 = vld [vmem:[%s260 + $0x9c] sm:$0xf]
      %v2764 = vld [vmem:[%s260 + $0xac] sm:$0xf]
      %v2765 = vld [vmem:[%s260 + $0xbc] sm:$0xf]
      %v2766 = vld [vmem:[%s260 + $0xcc] sm:$0xf]
      %v2767 = vld [vmem:[%s260 + $0xdc] sm:$0xf]
      %v2768 = vld [vmem:[%s260 + $0xec] sm:$0xf]
      %v2769 = vld [vmem:[%s260 + $0xfc] sm:$0xf]
      %v2770 = vld [vmem:[%s1 + $0xc] sm:$0xf]
      %v2771 = vld [vmem:[%s1 + $0x1c] sm:$0xf]
      %v2772 = vld [vmem:[%s1 + $0x2c] sm:$0xf]
      %v2773 = vld [vmem:[%s1 + $0x3c] sm:$0xf]
      %v2774 = vld [vmem:[%s1 + $0x4c] sm:$0xf]
      %v2775 = vld [vmem:[%s1 + $0x5c] sm:$0xf]
      %v2776 = vld [vmem:[%s1 + $0x6c] sm:$0xf]
      %v2777 = vld [vmem:[%s1 + $0x7c] sm:$0xf]
      %v2778 = vld [vmem:[%s1 + $0x8c] sm:$0xf]
      %v2779 = vld [vmem:[%s1 + $0x9c] sm:$0xf]
      %v2780 = vld [vmem:[%s1 + $0xac] sm:$0xf]
      %v2781 = vld [vmem:[%s1 + $0xbc] sm:$0xf]
      %v2782 = vld [vmem:[%s1 + $0xcc] sm:$0xf]
      %v2783 = vld [vmem:[%s1 + $0xdc] sm:$0xf]
      %v2784 = vld [vmem:[%s1 + $0xec] sm:$0xf]
      %v2785 = vld [vmem:[%s1 + $0xfc] sm:$0xf]
      %v2786 = vld [vmem:[%s1 + $0x10c] sm:$0xf]
      %v2787 = vld [vmem:[%s1 + $0x11c] sm:$0xf]
      %v2788 = vld [vmem:[%s1 + $0x12c] sm:$0xf]
      %v2789 = vld [vmem:[%s1 + $0x13c] sm:$0xf]
      %v2790 = vld [vmem:[%s1 + $0x14c] sm:$0xf]
      %v2791 = vld [vmem:[%s1 + $0x15c] sm:$0xf]
      %v2792 = vld [vmem:[%s1 + $0x16c] sm:$0xf]
      %v2793 = vld [vmem:[%s1 + $0x17c] sm:$0xf]
      %v2794 = vld [vmem:[%s1 + $0x18c] sm:$0xf]
      %v2795 = vld [vmem:[%s1 + $0x19c] sm:$0xf]
      %v2796 = vld [vmem:[%s1 + $0x1ac] sm:$0xf]
      %v2797 = vld [vmem:[%s1 + $0x1bc] sm:$0xf]
      %v2798 = vld [vmem:[%s1 + $0x1cc] sm:$0xf]
      %v2799 = vld [vmem:[%s1 + $0x1dc] sm:$0xf]
      %v2800 = vld [vmem:[%s1 + $0x1ec] sm:$0xf]
      %v2801 = vld [vmem:[%s1 + $0x1fc] sm:$0xf]
      %v2818 = vunpack.c.l.b16 %v2754
      %v2819 = vunpack.c.l.b16 %v2755
      %v2820 = vunpack.c.l.b16 %v2756
      %v2821 = vunpack.c.l.b16 %v2757
      %v2822 = vunpack.c.l.b16 %v2758
      %v2823 = vunpack.c.l.b16 %v2759
      %v2824 = vunpack.c.l.b16 %v2760
      %v2825 = vunpack.c.l.b16 %v2761
      %v2826 = vunpack.c.l.b16 %v2762
      %v2827 = vunpack.c.l.b16 %v2763
      %v2828 = vunpack.c.l.b16 %v2764
      %v2829 = vunpack.c.l.b16 %v2765
      %v2830 = vunpack.c.l.b16 %v2766
      %v2831 = vunpack.c.l.b16 %v2767
      %v2832 = vunpack.c.l.b16 %v2768
      %v2833 = vunpack.c.l.b16 %v2769
      %v2834 = vpack.c.b16 %v2819, %v2818
      %v2835 = vpack.c.b16 %v2821, %v2820
      %v2836 = vpack.c.b16 %v2823, %v2822
      %v2837 = vpack.c.b16 %v2825, %v2824
      %v2838 = vpack.c.b16 %v2827, %v2826
      %v2839 = vpack.c.b16 %v2829, %v2828
      %v2840 = vpack.c.b16 %v2831, %v2830
      %v2841 = vpack.c.b16 %v2833, %v2832
      %v2882 = vunpack.c.l.b16 %v2770
      %v2883 = vunpack.c.l.b16 %v2771
      %v2884 = vunpack.c.l.b16 %v2772
      %v2885 = vunpack.c.l.b16 %v2773
      %v2886 = vunpack.c.l.b16 %v2774
      %v2887 = vunpack.c.l.b16 %v2775
      %v2888 = vunpack.c.l.b16 %v2776
      %v2889 = vunpack.c.l.b16 %v2777
      %v2890 = vunpack.c.l.b16 %v2778
      %v2891 = vunpack.c.l.b16 %v2779
      %v2892 = vunpack.c.l.b16 %v2780
      %v2893 = vunpack.c.l.b16 %v2781
      %v2894 = vunpack.c.l.b16 %v2782
      %v2895 = vunpack.c.l.b16 %v2783
      %v2896 = vunpack.c.l.b16 %v2784
      %v2897 = vunpack.c.l.b16 %v2785
      %v2898 = vunpack.c.l.b16 %v2786
      %v2899 = vunpack.c.l.b16 %v2787
      %v2900 = vunpack.c.l.b16 %v2788
      %v2901 = vunpack.c.l.b16 %v2789
      %v2902 = vunpack.c.l.b16 %v2790
      %v2903 = vunpack.c.l.b16 %v2791
      %v2904 = vunpack.c.l.b16 %v2792
      %v2905 = vunpack.c.l.b16 %v2793
      %v2906 = vunpack.c.l.b16 %v2794
      %v2907 = vunpack.c.l.b16 %v2795
      %v2908 = vunpack.c.l.b16 %v2796
      %v2909 = vunpack.c.l.b16 %v2797
      %v2910 = vunpack.c.l.b16 %v2798
      %v2911 = vunpack.c.l.b16 %v2799
      %v2912 = vunpack.c.l.b16 %v2800
      %v2913 = vunpack.c.l.b16 %v2801
      %v2914 = vpack.c.b16 %v2883, %v2882
      %v2915 = vpack.c.b16 %v2885, %v2884
      %v2916 = vpack.c.b16 %v2887, %v2886
      %v2917 = vpack.c.b16 %v2889, %v2888
      %v2918 = vpack.c.b16 %v2891, %v2890
      %v2919 = vpack.c.b16 %v2893, %v2892
      %v2920 = vpack.c.b16 %v2895, %v2894
      %v2921 = vpack.c.b16 %v2897, %v2896
      %v2922 = vpack.c.b16 %v2899, %v2898
      %v2923 = vpack.c.b16 %v2901, %v2900
      %v2924 = vpack.c.b16 %v2903, %v2902
      %v2925 = vpack.c.b16 %v2905, %v2904
      %v2926 = vpack.c.b16 %v2907, %v2906
      %v2927 = vpack.c.b16 %v2909, %v2908
      %v2928 = vpack.c.b16 %v2911, %v2910
      %v2929 = vpack.c.b16 %v2913, %v2912
      %2946 = vmatprep.subr.bf16.mxu0 0
      %2947 = vmatpush1.bf16.xpose.msra.mxu0 %v2914
      %2948 = vmatprep.subr.bf16.mxu0 0
      %2949 = vmatpush1.bf16.xpose.msra.mxu0 %v2915
      %2950 = vmatprep.subr.bf16.mxu0 0
      %2951 = vmatpush1.bf16.xpose.msra.mxu0 %v2916
      %2952 = vmatprep.subr.bf16.mxu0 0
      %2953 = vmatpush1.bf16.xpose.msra.mxu0 %v2917
      %2954 = vmatprep.subr.bf16.mxu0 0
      %2955 = vmatpush1.bf16.xpose.msra.mxu0 %v2918
      %2956 = vmatprep.subr.bf16.mxu0 0
      %2957 = vmatpush1.bf16.xpose.msra.mxu0 %v2919
      %2958 = vmatprep.subr.bf16.mxu0 0
      %2959 = vmatpush1.bf16.xpose.msra.mxu0 %v2920
      %2960 = vmatprep.subr.bf16.mxu0 0
      %2961 = vmatpush1.bf16.xpose.msra.mxu0 %v2921
      %2962 = vmatprep.subr.bf16.mxu0 0
      %2963 = vmatpush1.bf16.xpose.msra.mxu0 %v2922
      %2964 = vmatprep.subr.bf16.mxu0 0
      %2965 = vmatpush1.bf16.xpose.msra.mxu0 %v2923
      %2966 = vmatprep.subr.bf16.mxu0 0
      %2967 = vmatpush1.bf16.xpose.msra.mxu0 %v2924
      %2968 = vmatprep.subr.bf16.mxu0 0
      %2969 = vmatpush1.bf16.xpose.msra.mxu0 %v2925
      %2970 = vmatprep.subr.bf16.mxu0 0
      %2971 = vmatpush1.bf16.xpose.msra.mxu0 %v2926
      %2972 = vmatprep.subr.bf16.mxu0 0
      %2973 = vmatpush1.bf16.xpose.msra.mxu0 %v2927
      %2974 = vmatprep.subr.bf16.mxu0 0
      %2975 = vmatpush1.bf16.xpose.msra.mxu0 %v2928
      %2976 = vmatprep.subr.bf16.mxu0 0
      %2977 = vmatpush1.bf16.xpose.msra.mxu0 %v2929
      %2978 = vmatprep.mubr.bf16.mxu0 0
      %2979 = vmatmul.mubr.bf16.gmra.mrb[0].mxu0 %v2834
      %v2980 = vpop.f32.mrb[0].mxu0
      %v2981 = vadd.f32 %v282, %v2980
      %v2982 = vpop.f32.mrb[0].mxu0
      %v2983 = vadd.f32 %v283, %v2982
      %v2984 = vpop.f32.mrb[0].mxu0
      %v2985 = vadd.f32 %v282, %v2984
      %v2986 = vpop.f32.mrb[0].mxu0
      %v2987 = vadd.f32 %v283, %v2986
      %2988 = vmatprep.mubr.bf16.mxu0 0
      %2989 = vmatmul.mubr.bf16.gmra.mrb[0].mxu0 %v2835
      %v2990 = vpop.f32.mrb[0].mxu0
      %v2991 = vadd.f32 %v282, %v2990
      %v2992 = vpop.f32.mrb[0].mxu0
      %v2993 = vadd.f32 %v283, %v2992
      %v2994 = vpop.f32.mrb[0].mxu0
      %v2995 = vadd.f32 %v282, %v2994
      %v2996 = vpop.f32.mrb[0].mxu0
      %v2997 = vadd.f32 %v283, %v2996
      %2998 = vmatprep.mubr.bf16.mxu0 0
      %2999 = vmatmul.mubr.bf16.gmra.mrb[0].mxu0 %v2836
      %v3000 = vpop.f32.mrb[0].mxu0
      %v3001 = vadd.f32 %v282, %v3000
      %v3002 = vpop.f32.mrb[0].mxu0
      %v3003 = vadd.f32 %v283, %v3002
      %v3004 = vpop.f32.mrb[0].mxu0
      %v3005 = vadd.f32 %v282, %v3004
      %v3006 = vpop.f32.mrb[0].mxu0
      %v3007 = vadd.f32 %v283, %v3006
      %3008 = vmatprep.mubr.bf16.mxu0 0
      %3009 = vmatmul.mubr.bf16.gmra.mrb[0].mxu0 %v2837
      %v3010 = vpop.f32.mrb[0].mxu0
      %v3011 = vadd.f32 %v282, %v3010
      %v3012 = vpop.f32.mrb[0].mxu0
      %v3013 = vadd.f32 %v283, %v3012
      %v3014 = vpop.f32.mrb[0].mxu0
      %v3015 = vadd.f32 %v282, %v3014
      %v3016 = vpop.f32.mrb[0].mxu0
      %v3017 = vadd.f32 %v283, %v3016
      %3018 = vmatprep.mubr.bf16.mxu0 0
      %3019 = vmatmul.mubr.bf16.gmra.mrb[0].mxu0 %v2838
      %v3020 = vpop.f32.mrb[0].mxu0
      %v3021 = vadd.f32 %v282, %v3020
      %v3022 = vpop.f32.mrb[0].mxu0
      %v3023 = vadd.f32 %v283, %v3022
      %v3024 = vpop.f32.mrb[0].mxu0
      %v3025 = vadd.f32 %v282, %v3024
      %v3026 = vpop.f32.mrb[0].mxu0
      %v3027 = vadd.f32 %v283, %v3026
      %3028 = vmatprep.mubr.bf16.mxu0 0
      %3029 = vmatmul.mubr.bf16.gmra.mrb[0].mxu0 %v2839
      %v3030 = vpop.f32.mrb[0].mxu0
      %v3031 = vadd.f32 %v282, %v3030
      %v3032 = vpop.f32.mrb[0].mxu0
      %v3033 = vadd.f32 %v283, %v3032
      %v3034 = vpop.f32.mrb[0].mxu0
      %v3035 = vadd.f32 %v282, %v3034
      %v3036 = vpop.f32.mrb[0].mxu0
      %v3037 = vadd.f32 %v283, %v3036
      %3038 = vmatprep.mubr.bf16.mxu0 0
      %3039 = vmatmul.mubr.bf16.gmra.mrb[0].mxu0 %v2840
      %v3040 = vpop.f32.mrb[0].mxu0
      %v3041 = vadd.f32 %v282, %v3040
      %v3042 = vpop.f32.mrb[0].mxu0
      %v3043 = vadd.f32 %v283, %v3042
      %v3044 = vpop.f32.mrb[0].mxu0
      %v3045 = vadd.f32 %v282, %v3044
      %v3046 = vpop.f32.mrb[0].mxu0
      %v3047 = vadd.f32 %v283, %v3046
      %3048 = vmatprep.mubr.bf16.mxu0 0
      %3049 = vmatmul.mubr.bf16.gmra.mrb[0].mxu0 %v2841
      %v3050 = vpop.f32.mrb[0].mxu0
      %v3051 = vadd.f32 %v282, %v3050
      %v3052 = vpop.f32.mrb[0].mxu0
      %v3053 = vadd.f32 %v283, %v3052
      %v3054 = vpop.f32.mrb[0].mxu0
      %v3055 = vadd.f32 %v282, %v3054
      %v3056 = vpop.f32.mrb[0].mxu0
      %v3057 = vadd.f32 %v283, %v3056
      %3058 = vdwg.mxu0
      %v3059 = vmax.f32 %v2981, %v2983
      %3060 = vmax.xlane.f32.xlu0 %v3059
      %v3061 = vpop.xlane.xlu0 %3060
      %v3062 = vmax.f32 %v2985, %v2987
      %3063 = vmax.xlane.f32.xlu0 %v3062
      %v3064 = vpop.xlane.xlu0 %3063
      %v3065 = vmax.f32 %v2991, %v2993
      %3066 = vmax.xlane.f32.xlu0 %v3065
      %v3067 = vpop.xlane.xlu0 %3066
      %v3068 = vmax.f32 %v2995, %v2997
      %3069 = vmax.xlane.f32.xlu0 %v3068
      %v3070 = vpop.xlane.xlu0 %3069
      %v3071 = vmax.f32 %v3001, %v3003
      %3072 = vmax.xlane.f32.xlu0 %v3071
      %v3073 = vpop.xlane.xlu0 %3072
      %v3074 = vmax.f32 %v3005, %v3007
      %3075 = vmax.xlane.f32.xlu0 %v3074
      %v3076 = vpop.xlane.xlu0 %3075
      %v3077 = vmax.f32 %v3011, %v3013
      %3078 = vmax.xlane.f32.xlu0 %v3077
      %v3079 = vpop.xlane.xlu0 %3078
      %v3080 = vmax.f32 %v3015, %v3017
      %3081 = vmax.xlane.f32.xlu0 %v3080
      %v3082 = vpop.xlane.xlu0 %3081
      %v3083 = vmax.f32 %v3021, %v3023
      %3084 = vmax.xlane.f32.xlu0 %v3083
      %v3085 = vpop.xlane.xlu0 %3084
      %v3086 = vmax.f32 %v3025, %v3027
      %3087 = vmax.xlane.f32.xlu0 %v3086
      %v3088 = vpop.xlane.xlu0 %3087
      %v3089 = vmax.f32 %v3031, %v3033
      %3090 = vmax.xlane.f32.xlu0 %v3089
      %v3091 = vpop.xlane.xlu0 %3090
      %v3092 = vmax.f32 %v3035, %v3037
      %3093 = vmax.xlane.f32.xlu0 %v3092
      %v3094 = vpop.xlane.xlu0 %3093
      %v3095 = vmax.f32 %v3041, %v3043
      %3096 = vmax.xlane.f32.xlu0 %v3095
      %v3097 = vpop.xlane.xlu0 %3096
      %v3098 = vmax.f32 %v3045, %v3047
      %3099 = vmax.xlane.f32.xlu0 %v3098
      %v3100 = vpop.xlane.xlu0 %3099
      %v3101 = vmax.f32 %v3051, %v3053
      %3102 = vmax.xlane.f32.xlu0 %v3101
      %v3103 = vpop.xlane.xlu0 %3102
      %v3104 = vmax.f32 %v3055, %v3057
      %3105 = vmax.xlane.f32.xlu0 %v3104
      %v3106 = vpop.xlane.xlu0 %3105
      %v3107 = vsub.f32 %v2981, %v3061
      %v3108 = vsub.f32 %v2983, %v3061
      %v3109 = vsub.f32 %v2985, %v3064
      %v3110 = vsub.f32 %v2987, %v3064
      %v3111 = vsub.f32 %v2991, %v3067
      %v3112 = vsub.f32 %v2993, %v3067
      %v3113 = vsub.f32 %v2995, %v3070
      %v3114 = vsub.f32 %v2997, %v3070
      %v3115 = vsub.f32 %v3001, %v3073
      %v3116 = vsub.f32 %v3003, %v3073
      %v3117 = vsub.f32 %v3005, %v3076
      %v3118 = vsub.f32 %v3007, %v3076
      %v3119 = vsub.f32 %v3011, %v3079
      %v3120 = vsub.f32 %v3013, %v3079
      %v3121 = vsub.f32 %v3015, %v3082
      %v3122 = vsub.f32 %v3017, %v3082
      %v3123 = vsub.f32 %v3021, %v3085
      %v3124 = vsub.f32 %v3023, %v3085
      %v3125 = vsub.f32 %v3025, %v3088
      %v3126 = vsub.f32 %v3027, %v3088
      %v3127 = vsub.f32 %v3031, %v3091
      %v3128 = vsub.f32 %v3033, %v3091
      %v3129 = vsub.f32 %v3035, %v3094
      %v3130 = vsub.f32 %v3037, %v3094
      %v3131 = vsub.f32 %v3041, %v3097
      %v3132 = vsub.f32 %v3043, %v3097
      %v3133 = vsub.f32 %v3045, %v3100
      %v3134 = vsub.f32 %v3047, %v3100
      %v3135 = vsub.f32 %v3051, %v3103
      %v3136 = vsub.f32 %v3053, %v3103
      %v3137 = vsub.f32 %v3055, %v3106
      %v3138 = vsub.f32 %v3057, %v3106
      %v3139 = vmul.f32 %v3107, 1.442695
      %v3140 = vpow.pop %v3139
      %v3141 = vmul.f32 %v3108, 1.442695
      %v3142 = vpow.pop %v3141
      %v3143 = vmul.f32 %v3109, 1.442695
      %v3144 = vpow.pop %v3143
      %v3145 = vmul.f32 %v3110, 1.442695
      %v3146 = vpow.pop %v3145
      %v3147 = vmul.f32 %v3111, 1.442695
      %v3148 = vpow.pop %v3147
      %v3149 = vmul.f32 %v3112, 1.442695
      %v3150 = vpow.pop %v3149
      %v3151 = vmul.f32 %v3113, 1.442695
      %v3152 = vpow.pop %v3151
      %v3153 = vmul.f32 %v3114, 1.442695
      %v3154 = vpow.pop %v3153
      %v3155 = vmul.f32 %v3115, 1.442695
      %v3156 = vpow.pop %v3155
      %v3157 = vmul.f32 %v3116, 1.442695
      %v3158 = vpow.pop %v3157
      %v3159 = vmul.f32 %v3117, 1.442695
      %v3160 = vpow.pop %v3159
      %v3161 = vmul.f32 %v3118, 1.442695
      %v3162 = vpow.pop %v3161
      %v3163 = vmul.f32 %v3119, 1.442695
      %v3164 = vpow.pop %v3163
      %v3165 = vmul.f32 %v3120, 1.442695
      %v3166 = vpow.pop %v3165
      %v3167 = vmul.f32 %v3121, 1.442695
      %v3168 = vpow.pop %v3167
      %v3169 = vmul.f32 %v3122, 1.442695
      %v3170 = vpow.pop %v3169
      %v3171 = vmul.f32 %v3123, 1.442695
      %v3172 = vpow.pop %v3171
      %v3173 = vmul.f32 %v3124, 1.442695
      %v3174 = vpow.pop %v3173
      %v3175 = vmul.f32 %v3125, 1.442695
      %v3176 = vpow.pop %v3175
      %v3177 = vmul.f32 %v3126, 1.442695
      %v3178 = vpow.pop %v3177
      %v3179 = vmul.f32 %v3127, 1.442695
      %v3180 = vpow.pop %v3179
      %v3181 = vmul.f32 %v3128, 1.442695
      %v3182 = vpow.pop %v3181
      %v3183 = vmul.f32 %v3129, 1.442695
      %v3184 = vpow.pop %v3183
      %v3185 = vmul.f32 %v3130, 1.442695
      %v3186 = vpow.pop %v3185
      %v3187 = vmul.f32 %v3131, 1.442695
      %v3188 = vpow.pop %v3187
      %v3189 = vmul.f32 %v3132, 1.442695
      %v3190 = vpow.pop %v3189
      %v3191 = vmul.f32 %v3133, 1.442695
      %v3192 = vpow.pop %v3191
      %v3193 = vmul.f32 %v3134, 1.442695
      %v3194 = vpow.pop %v3193
      %v3195 = vmul.f32 %v3135, 1.442695
      %v3196 = vpow.pop %v3195
      %v3197 = vmul.f32 %v3136, 1.442695
      %v3198 = vpow.pop %v3197
      %v3199 = vmul.f32 %v3137, 1.442695
      %v3200 = vpow.pop %v3199
      %v3201 = vmul.f32 %v3138, 1.442695
      %v3202 = vpow.pop %v3201
      %v3203 = vadd.f32 %v3140, %v3142
      %3204 = vadd.xlane.f32.xlu0 %v3203
      %v3205 = vpop.xlane.xlu0 %3204
      %v3206 = vadd.f32 %v3144, %v3146
      %3207 = vadd.xlane.f32.xlu0 %v3206
      %v3208 = vpop.xlane.xlu0 %3207
      %v3209 = vadd.f32 %v3148, %v3150
      %3210 = vadd.xlane.f32.xlu0 %v3209
      %v3211 = vpop.xlane.xlu0 %3210
      %v3212 = vadd.f32 %v3152, %v3154
      %3213 = vadd.xlane.f32.xlu0 %v3212
      %v3214 = vpop.xlane.xlu0 %3213
      %v3215 = vadd.f32 %v3156, %v3158
      %3216 = vadd.xlane.f32.xlu0 %v3215
      %v3217 = vpop.xlane.xlu0 %3216
      %v3218 = vadd.f32 %v3160, %v3162
      %3219 = vadd.xlane.f32.xlu0 %v3218
      %v3220 = vpop.xlane.xlu0 %3219
      %v3221 = vadd.f32 %v3164, %v3166
      %3222 = vadd.xlane.f32.xlu0 %v3221
      %v3223 = vpop.xlane.xlu0 %3222
      %v3224 = vadd.f32 %v3168, %v3170
      %3225 = vadd.xlane.f32.xlu0 %v3224
      %v3226 = vpop.xlane.xlu0 %3225
      %v3227 = vadd.f32 %v3172, %v3174
      %3228 = vadd.xlane.f32.xlu0 %v3227
      %v3229 = vpop.xlane.xlu0 %3228
      %v3230 = vadd.f32 %v3176, %v3178
      %3231 = vadd.xlane.f32.xlu0 %v3230
      %v3232 = vpop.xlane.xlu0 %3231
      %v3233 = vadd.f32 %v3180, %v3182
      %3234 = vadd.xlane.f32.xlu0 %v3233
      %v3235 = vpop.xlane.xlu0 %3234
      %v3236 = vadd.f32 %v3184, %v3186
      %3237 = vadd.xlane.f32.xlu0 %v3236
      %v3238 = vpop.xlane.xlu0 %3237
      %v3239 = vadd.f32 %v3188, %v3190
      %3240 = vadd.xlane.f32.xlu0 %v3239
      %v3241 = vpop.xlane.xlu0 %3240
      %v3242 = vadd.f32 %v3192, %v3194
      %3243 = vadd.xlane.f32.xlu0 %v3242
      %v3244 = vpop.xlane.xlu0 %3243
      %v3245 = vadd.f32 %v3196, %v3198
      %3246 = vadd.xlane.f32.xlu0 %v3245
      %v3247 = vpop.xlane.xlu0 %3246
      %v3248 = vadd.f32 %v3200, %v3202
      %3249 = vadd.xlane.f32.xlu0 %v3248
      %v3250 = vpop.xlane.xlu0 %3249
      %v3251 = vrcp.pop %v3205
      %v3252 = vrcp.pop %v3208
      %v3253 = vrcp.pop %v3211
      %v3254 = vrcp.pop %v3214
      %v3255 = vrcp.pop %v3217
      %v3256 = vrcp.pop %v3220
      %v3257 = vrcp.pop %v3223
      %v3258 = vrcp.pop %v3226
      %v3259 = vrcp.pop %v3229
      %v3260 = vrcp.pop %v3232
      %v3261 = vrcp.pop %v3235
      %v3262 = vrcp.pop %v3238
      %v3263 = vrcp.pop %v3241
      %v3264 = vrcp.pop %v3244
      %v3265 = vrcp.pop %v3247
      %v3266 = vrcp.pop %v3250
      %v3267 = vmul.f32 %v3140, %v3251
      %v3268 = vmul.f32 %v3142, %v3251
      %v3269 = vmul.f32 %v3144, %v3252
      %v3270 = vmul.f32 %v3146, %v3252
      %v3271 = vmul.f32 %v3148, %v3253
      %v3272 = vmul.f32 %v3150, %v3253
      %v3273 = vmul.f32 %v3152, %v3254
      %v3274 = vmul.f32 %v3154, %v3254
      %v3275 = vmul.f32 %v3156, %v3255
      %v3276 = vmul.f32 %v3158, %v3255
      %v3277 = vmul.f32 %v3160, %v3256
      %v3278 = vmul.f32 %v3162, %v3256
      %v3279 = vmul.f32 %v3164, %v3257
      %v3280 = vmul.f32 %v3166, %v3257
      %v3281 = vmul.f32 %v3168, %v3258
      %v3282 = vmul.f32 %v3170, %v3258
      %v3283 = vmul.f32 %v3172, %v3259
      %v3284 = vmul.f32 %v3174, %v3259
      %v3285 = vmul.f32 %v3176, %v3260
      %v3286 = vmul.f32 %v3178, %v3260
      %v3287 = vmul.f32 %v3180, %v3261
      %v3288 = vmul.f32 %v3182, %v3261
      %v3289 = vmul.f32 %v3184, %v3262
      %v3290 = vmul.f32 %v3186, %v3262
      %v3291 = vmul.f32 %v3188, %v3263
      %v3292 = vmul.f32 %v3190, %v3263
      %v3293 = vmul.f32 %v3192, %v3264
      %v3294 = vmul.f32 %v3194, %v3264
      %v3295 = vmul.f32 %v3196, %v3265
      %v3296 = vmul.f32 %v3198, %v3265
      %v3297 = vmul.f32 %v3200, %v3266
      %v3298 = vmul.f32 %v3202, %v3266
      %v3299 = vadd.f32 %v2465, %v3267
      %v3300 = vadd.f32 %v2466, %v3268
      %v3301 = vadd.f32 %v2467, %v3269
      %v3302 = vadd.f32 %v2468, %v3270
      %v3303 = vadd.f32 %v2469, %v3271
      %v3304 = vadd.f32 %v2470, %v3272
      %v3305 = vadd.f32 %v2471, %v3273
      %v3306 = vadd.f32 %v2472, %v3274
      %v3307 = vadd.f32 %v2473, %v3275
      %v3308 = vadd.f32 %v2474, %v3276
      %v3309 = vadd.f32 %v2475, %v3277
      %v3310 = vadd.f32 %v2476, %v3278
      %v3311 = vadd.f32 %v2477, %v3279
      %v3312 = vadd.f32 %v2478, %v3280
      %v3313 = vadd.f32 %v2479, %v3281
      %v3314 = vadd.f32 %v2480, %v3282
      %v3315 = vadd.f32 %v2481, %v3283
      %v3316 = vadd.f32 %v2482, %v3284
      %v3317 = vadd.f32 %v2483, %v3285
      %v3318 = vadd.f32 %v2484, %v3286
      %v3319 = vadd.f32 %v2485, %v3287
      %v3320 = vadd.f32 %v2486, %v3288
      %v3321 = vadd.f32 %v2487, %v3289
      %v3322 = vadd.f32 %v2488, %v3290
      %v3323 = vadd.f32 %v2489, %v3291
      %v3324 = vadd.f32 %v2490, %v3292
      %v3325 = vadd.f32 %v2491, %v3293
      %v3326 = vadd.f32 %v2492, %v3294
      %v3327 = vadd.f32 %v2493, %v3295
      %v3328 = vadd.f32 %v2494, %v3296
      %v3329 = vadd.f32 %v2495, %v3297
      %v3330 = vadd.f32 %v2496, %v3298
      %v3331 = vpack.c.bf16 %v3269, %v3267
      %v3332 = vpack.c.bf16 %v3270, %v3268
      %v3333 = vpack.c.bf16 %v3273, %v3271
      %v3334 = vpack.c.bf16 %v3274, %v3272
      %v3335 = vpack.c.bf16 %v3277, %v3275
      %v3336 = vpack.c.bf16 %v3278, %v3276
      %v3337 = vpack.c.bf16 %v3281, %v3279
      %v3338 = vpack.c.bf16 %v3282, %v3280
      %v3339 = vpack.c.bf16 %v3285, %v3283
      %v3340 = vpack.c.bf16 %v3286, %v3284
      %v3341 = vpack.c.bf16 %v3289, %v3287
      %v3342 = vpack.c.bf16 %v3290, %v3288
      %v3343 = vpack.c.bf16 %v3293, %v3291
      %v3344 = vpack.c.bf16 %v3294, %v3292
      %v3345 = vpack.c.bf16 %v3297, %v3295
      %v3346 = vpack.c.bf16 %v3298, %v3296
      %v3347 = vld [vmem:[%s2 + $0xc] sm:$0xf]
      %v3348 = vld [vmem:[%s2 + $0x1c] sm:$0xf]
      %v3349 = vld [vmem:[%s2 + $0x2c] sm:$0xf]
      %v3350 = vld [vmem:[%s2 + $0x3c] sm:$0xf]
      %v3351 = vld [vmem:[%s2 + $0x4c] sm:$0xf]
      %v3352 = vld [vmem:[%s2 + $0x5c] sm:$0xf]
      %v3353 = vld [vmem:[%s2 + $0x6c] sm:$0xf]
      %v3354 = vld [vmem:[%s2 + $0x7c] sm:$0xf]
      %v3355 = vld [vmem:[%s2 + $0x8c] sm:$0xf]
      %v3356 = vld [vmem:[%s2 + $0x9c] sm:$0xf]
      %v3357 = vld [vmem:[%s2 + $0xac] sm:$0xf]
      %v3358 = vld [vmem:[%s2 + $0xbc] sm:$0xf]
      %v3359 = vld [vmem:[%s2 + $0xcc] sm:$0xf]
      %v3360 = vld [vmem:[%s2 + $0xdc] sm:$0xf]
      %v3361 = vld [vmem:[%s2 + $0xec] sm:$0xf]
      %v3362 = vld [vmem:[%s2 + $0xfc] sm:$0xf]
      %v3363 = vld [vmem:[%s2 + $0x10c] sm:$0xf]
      %v3364 = vld [vmem:[%s2 + $0x11c] sm:$0xf]
      %v3365 = vld [vmem:[%s2 + $0x12c] sm:$0xf]
      %v3366 = vld [vmem:[%s2 + $0x13c] sm:$0xf]
      %v3367 = vld [vmem:[%s2 + $0x14c] sm:$0xf]
      %v3368 = vld [vmem:[%s2 + $0x15c] sm:$0xf]
      %v3369 = vld [vmem:[%s2 + $0x16c] sm:$0xf]
      %v3370 = vld [vmem:[%s2 + $0x17c] sm:$0xf]
      %v3371 = vld [vmem:[%s2 + $0x18c] sm:$0xf]
      %v3372 = vld [vmem:[%s2 + $0x19c] sm:$0xf]
      %v3373 = vld [vmem:[%s2 + $0x1ac] sm:$0xf]
      %v3374 = vld [vmem:[%s2 + $0x1bc] sm:$0xf]
      %v3375 = vld [vmem:[%s2 + $0x1cc] sm:$0xf]
      %v3376 = vld [vmem:[%s2 + $0x1dc] sm:$0xf]
      %v3377 = vld [vmem:[%s2 + $0x1ec] sm:$0xf]
      %v3378 = vld [vmem:[%s2 + $0x1fc] sm:$0xf]
      %v3411 = vunpack.c.l.b16 %v3347
      %v3412 = vunpack.c.l.b16 %v3348
      %v3413 = vunpack.c.l.b16 %v3349
      %v3414 = vunpack.c.l.b16 %v3350
      %v3415 = vunpack.c.l.b16 %v3351
      %v3416 = vunpack.c.l.b16 %v3352
      %v3417 = vunpack.c.l.b16 %v3353
      %v3418 = vunpack.c.l.b16 %v3354
      %v3419 = vunpack.c.l.b16 %v3355
      %v3420 = vunpack.c.l.b16 %v3356
      %v3421 = vunpack.c.l.b16 %v3357
      %v3422 = vunpack.c.l.b16 %v3358
      %v3423 = vunpack.c.l.b16 %v3359
      %v3424 = vunpack.c.l.b16 %v3360
      %v3425 = vunpack.c.l.b16 %v3361
      %v3426 = vunpack.c.l.b16 %v3362
      %v3427 = vunpack.c.l.b16 %v3363
      %v3428 = vunpack.c.l.b16 %v3364
      %v3429 = vunpack.c.l.b16 %v3365
      %v3430 = vunpack.c.l.b16 %v3366
      %v3431 = vunpack.c.l.b16 %v3367
      %v3432 = vunpack.c.l.b16 %v3368
      %v3433 = vunpack.c.l.b16 %v3369
      %v3434 = vunpack.c.l.b16 %v3370
      %v3435 = vunpack.c.l.b16 %v3371
      %v3436 = vunpack.c.l.b16 %v3372
      %v3437 = vunpack.c.l.b16 %v3373
      %v3438 = vunpack.c.l.b16 %v3374
      %v3439 = vunpack.c.l.b16 %v3375
      %v3440 = vunpack.c.l.b16 %v3376
      %v3441 = vunpack.c.l.b16 %v3377
      %v3442 = vunpack.c.l.b16 %v3378
      %v3443 = vpack.c.b16 %v3412, %v3411
      %v3444 = vpack.c.b16 %v3414, %v3413
      %v3445 = vpack.c.b16 %v3416, %v3415
      %v3446 = vpack.c.b16 %v3418, %v3417
      %v3447 = vpack.c.b16 %v3420, %v3419
      %v3448 = vpack.c.b16 %v3422, %v3421
      %v3449 = vpack.c.b16 %v3424, %v3423
      %v3450 = vpack.c.b16 %v3426, %v3425
      %v3451 = vpack.c.b16 %v3428, %v3427
      %v3452 = vpack.c.b16 %v3430, %v3429
      %v3453 = vpack.c.b16 %v3432, %v3431
      %v3454 = vpack.c.b16 %v3434, %v3433
      %v3455 = vpack.c.b16 %v3436, %v3435
      %v3456 = vpack.c.b16 %v3438, %v3437
      %v3457 = vpack.c.b16 %v3440, %v3439
      %v3458 = vpack.c.b16 %v3442, %v3441
      %3475 = vmatprep.subr.bf16.mxu0 0
      %3476 = vmatpush1.bf16.msra.mxu0 %v3443
      %3477 = vmatprep.subr.bf16.mxu0 0
      %3478 = vmatpush1.bf16.msra.mxu0 %v3444
      %3479 = vmatprep.subr.bf16.mxu0 0
      %3480 = vmatpush1.bf16.msra.mxu0 %v3445
      %3481 = vmatprep.subr.bf16.mxu0 0
      %3482 = vmatpush1.bf16.msra.mxu0 %v3446
      %3483 = vmatprep.subr.bf16.mxu0 0
      %3484 = vmatpush1.bf16.msra.mxu0 %v3447
      %3485 = vmatprep.subr.bf16.mxu0 0
      %3486 = vmatpush1.bf16.msra.mxu0 %v3448
      %3487 = vmatprep.subr.bf16.mxu0 0
      %3488 = vmatpush1.bf16.msra.mxu0 %v3449
      %3489 = vmatprep.subr.bf16.mxu0 0
      %3490 = vmatpush1.bf16.msra.mxu0 %v3450
      %3491 = vmatprep.subr.bf16.mxu0 0
      %3492 = vmatpush1.bf16.msra.mxu0 %v3451
      %3493 = vmatprep.subr.bf16.mxu0 0
      %3494 = vmatpush1.bf16.msra.mxu0 %v3452
      %3495 = vmatprep.subr.bf16.mxu0 0
      %3496 = vmatpush1.bf16.msra.mxu0 %v3453
      %3497 = vmatprep.subr.bf16.mxu0 0
      %3498 = vmatpush1.bf16.msra.mxu0 %v3454
      %3499 = vmatprep.subr.bf16.mxu0 0
      %3500 = vmatpush1.bf16.msra.mxu0 %v3455
      %3501 = vmatprep.subr.bf16.mxu0 0
      %3502 = vmatpush1.bf16.msra.mxu0 %v3456
      %3503 = vmatprep.subr.bf16.mxu0 0
      %3504 = vmatpush1.bf16.msra.mxu0 %v3457
      %3505 = vmatprep.subr.bf16.mxu0 0
      %3506 = vmatpush1.bf16.msra.mxu0 %v3458
      %3507 = vmatprep.mubr.bf16.mxu0 %v3332
      %3508 = vmatmul.mubr.bf16.gmra.mrb[0].mxu0 %v3331
      %v3509 = vpop.f32.mrb[0].mxu0
      %v3510 = vadd.f32 0.0, %v3509
      %v3511 = vpop.f32.mrb[0].mxu0
      %v3512 = vpop.f32.mrb[0].mxu0
      %v3513 = vadd.f32 0.0, %v3512
      %v3514 = vpop.f32.mrb[0].mxu0
      %3515 = vmatprep.mubr.bf16.mxu0 %v3334
      %3516 = vmatmul.mubr.bf16.gmra.mrb[0].mxu0 %v3333
      %v3517 = vpop.f32.mrb[0].mxu0
      %v3518 = vadd.f32 0.0, %v3517
      %v3519 = vpop.f32.mrb[0].mxu0
      %v3520 = vpop.f32.mrb[0].mxu0
      %v3521 = vadd.f32 0.0, %v3520
      %v3522 = vpop.f32.mrb[0].mxu0
      %3523 = vmatprep.mubr.bf16.mxu0 %v3336
      %3524 = vmatmul.mubr.bf16.gmra.mrb[0].mxu0 %v3335
      %v3525 = vpop.f32.mrb[0].mxu0
      %v3526 = vadd.f32 0.0, %v3525
      %v3527 = vpop.f32.mrb[0].mxu0
      %v3528 = vpop.f32.mrb[0].mxu0
      %v3529 = vadd.f32 0.0, %v3528
      %v3530 = vpop.f32.mrb[0].mxu0
      %3531 = vmatprep.mubr.bf16.mxu0 %v3338
      %3532 = vmatmul.mubr.bf16.gmra.mrb[0].mxu0 %v3337
      %v3533 = vpop.f32.mrb[0].mxu0
      %v3534 = vadd.f32 0.0, %v3533
      %v3535 = vpop.f32.mrb[0].mxu0
      %v3536 = vpop.f32.mrb[0].mxu0
      %v3537 = vadd.f32 0.0, %v3536
      %v3538 = vpop.f32.mrb[0].mxu0
      %3539 = vmatprep.mubr.bf16.mxu0 %v3340
      %3540 = vmatmul.mubr.bf16.gmra.mrb[0].mxu0 %v3339
      %v3541 = vpop.f32.mrb[0].mxu0
      %v3542 = vadd.f32 0.0, %v3541
      %v3543 = vpop.f32.mrb[0].mxu0
      %v3544 = vpop.f32.mrb[0].mxu0
      %v3545 = vadd.f32 0.0, %v3544
      %v3546 = vpop.f32.mrb[0].mxu0
      %3547 = vmatprep.mubr.bf16.mxu0 %v3342
      %3548 = vmatmul.mubr.bf16.gmra.mrb[0].mxu0 %v3341
      %v3549 = vpop.f32.mrb[0].mxu0
      %v3550 = vadd.f32 0.0, %v3549
      %v3551 = vpop.f32.mrb[0].mxu0
      %v3552 = vpop.f32.mrb[0].mxu0
      %v3553 = vadd.f32 0.0, %v3552
      %v3554 = vpop.f32.mrb[0].mxu0
      %3555 = vmatprep.mubr.bf16.mxu0 %v3344
      %3556 = vmatmul.mubr.bf16.gmra.mrb[0].mxu0 %v3343
      %v3557 = vpop.f32.mrb[0].mxu0
      %v3558 = vadd.f32 0.0, %v3557
      %v3559 = vpop.f32.mrb[0].mxu0
      %v3560 = vpop.f32.mrb[0].mxu0
      %v3561 = vadd.f32 0.0, %v3560
      %v3562 = vpop.f32.mrb[0].mxu0
      %3563 = vmatprep.mubr.bf16.mxu0 %v3346
      %3564 = vmatmul.mubr.bf16.gmra.mrb[0].mxu0 %v3345
      %v3565 = vpop.f32.mrb[0].mxu0
      %v3566 = vadd.f32 0.0, %v3565
      %v3567 = vpop.f32.mrb[0].mxu0
      %v3568 = vpop.f32.mrb[0].mxu0
      %v3569 = vadd.f32 0.0, %v3568
      %v3570 = vpop.f32.mrb[0].mxu0
      %3571 = vdwg.mxu0
      %v3572 = vpack.c.bf16 %v3513, %v3510
      %v3573 = vpack.c.bf16 %v3521, %v3518
      %v3574 = vpack.c.bf16 %v3529, %v3526
      %v3575 = vpack.c.bf16 %v3537, %v3534
      %v3576 = vpack.c.bf16 %v3545, %v3542
      %v3577 = vpack.c.bf16 %v3553, %v3550
      %v3578 = vpack.c.bf16 %v3561, %v3558
      %v3579 = vpack.c.bf16 %v3569, %v3566
      %3580 = vst [vmem:[#allocation2 + $0x18] sm:$0xff] %v3572
      %3581 = vst [vmem:[#allocation2 + $0x38] sm:$0xff] %v3573
      %3582 = vst [vmem:[#allocation2 + $0x58] sm:$0xff] %v3574
      %3583 = vst [vmem:[#allocation2 + $0x78] sm:$0xff] %v3575
      %3584 = vst [vmem:[#allocation2 + $0x98] sm:$0xff] %v3576
      %3585 = vst [vmem:[#allocation2 + $0xb8] sm:$0xff] %v3577
      %3586 = vst [vmem:[#allocation2 + $0xd8] sm:$0xff] %v3578
      %3587 = vst [vmem:[#allocation2 + $0xf8] sm:$0xff] %v3579
      %v3588 = vmul.f32 %v3299, 0.25
      %v3589 = vmul.f32 %v3300, 0.25
      %v3590 = vmul.f32 %v3301, 0.25
      %v3591 = vmul.f32 %v3302, 0.25
      %v3592 = vmul.f32 %v3303, 0.25
      %v3593 = vmul.f32 %v3304, 0.25
      %v3594 = vmul.f32 %v3305, 0.25
      %v3595 = vmul.f32 %v3306, 0.25
      %v3596 = vmul.f32 %v3307, 0.25
      %v3597 = vmul.f32 %v3308, 0.25
      %v3598 = vmul.f32 %v3309, 0.25
      %v3599 = vmul.f32 %v3310, 0.25
      %v3600 = vmul.f32 %v3311, 0.25
      %v3601 = vmul.f32 %v3312, 0.25
      %v3602 = vmul.f32 %v3313, 0.25
      %v3603 = vmul.f32 %v3314, 0.25
      %v3604 = vmul.f32 %v3315, 0.25
      %v3605 = vmul.f32 %v3316, 0.25
      %v3606 = vmul.f32 %v3317, 0.25
      %v3607 = vmul.f32 %v3318, 0.25
      %v3608 = vmul.f32 %v3319, 0.25
      %v3609 = vmul.f32 %v3320, 0.25
      %v3610 = vmul.f32 %v3321, 0.25
      %v3611 = vmul.f32 %v3322, 0.25
      %v3612 = vmul.f32 %v3323, 0.25
      %v3613 = vmul.f32 %v3324, 0.25
      %v3614 = vmul.f32 %v3325, 0.25
      %v3615 = vmul.f32 %v3326, 0.25
      %v3616 = vmul.f32 %v3327, 0.25
      %v3617 = vmul.f32 %v3328, 0.25
      %v3618 = vmul.f32 %v3329, 0.25
      %v3619 = vmul.f32 %v3330, 0.25
      %v3620 = vpack.c.bf16 %v3590, %v3588
      %v3621 = vpack.c.bf16 %v3591, %v3589
      %v3622 = vpack.c.bf16 %v3594, %v3592
      %v3623 = vpack.c.bf16 %v3595, %v3593
      %v3624 = vpack.c.bf16 %v3598, %v3596
      %v3625 = vpack.c.bf16 %v3599, %v3597
      %v3626 = vpack.c.bf16 %v3602, %v3600
      %v3627 = vpack.c.bf16 %v3603, %v3601
      %v3628 = vpack.c.bf16 %v3606, %v3604
      %v3629 = vpack.c.bf16 %v3607, %v3605
      %v3630 = vpack.c.bf16 %v3610, %v3608
      %v3631 = vpack.c.bf16 %v3611, %v3609
      %v3632 = vpack.c.bf16 %v3614, %v3612
      %v3633 = vpack.c.bf16 %v3615, %v3613
      %v3634 = vpack.c.bf16 %v3618, %v3616
      %v3635 = vpack.c.bf16 %v3619, %v3617
      %v3652 = vunpack.c.l.b16 %v3620
      %v3653 = vunpack.c.l.b16 %v3621
      %v3654 = vunpack.c.h.b16 %v3620
      %v3655 = vunpack.c.h.b16 %v3621
      %v3656 = vunpack.c.l.b16 %v3622
      %v3657 = vunpack.c.l.b16 %v3623
      %v3658 = vunpack.c.h.b16 %v3622
      %v3659 = vunpack.c.h.b16 %v3623
      %v3660 = vunpack.c.l.b16 %v3624
      %v3661 = vunpack.c.l.b16 %v3625
      %v3662 = vunpack.c.h.b16 %v3624
      %v3663 = vunpack.c.h.b16 %v3625
      %v3664 = vunpack.c.l.b16 %v3626
      %v3665 = vunpack.c.l.b16 %v3627
      %v3666 = vunpack.c.h.b16 %v3626
      %v3667 = vunpack.c.h.b16 %v3627
      %v3668 = vunpack.c.l.b16 %v3628
      %v3669 = vunpack.c.l.b16 %v3629
      %v3670 = vunpack.c.h.b16 %v3628
      %v3671 = vunpack.c.h.b16 %v3629
      %v3672 = vunpack.c.l.b16 %v3630
      %v3673 = vunpack.c.l.b16 %v3631
      %v3674 = vunpack.c.h.b16 %v3630
      %v3675 = vunpack.c.h.b16 %v3631
      %v3676 = vunpack.c.l.b16 %v3632
      %v3677 = vunpack.c.l.b16 %v3633
      %v3678 = vunpack.c.h.b16 %v3632
      %v3679 = vunpack.c.h.b16 %v3633
      %v3680 = vunpack.c.l.b16 %v3634
      %v3681 = vunpack.c.l.b16 %v3635
      %v3682 = vunpack.c.h.b16 %v3634
      %v3683 = vunpack.c.h.b16 %v3635
      %v3684 = vpack.c.b16 %v3653, %v3652
      %v3685 = vpack.c.b16 %v3655, %v3654
      %v3686 = vpack.c.b16 %v3657, %v3656
      %v3687 = vpack.c.b16 %v3659, %v3658
      %v3688 = vpack.c.b16 %v3661, %v3660
      %v3689 = vpack.c.b16 %v3663, %v3662
      %v3690 = vpack.c.b16 %v3665, %v3664
      %v3691 = vpack.c.b16 %v3667, %v3666
      %v3692 = vpack.c.b16 %v3669, %v3668
      %v3693 = vpack.c.b16 %v3671, %v3670
      %v3694 = vpack.c.b16 %v3673, %v3672
      %v3695 = vpack.c.b16 %v3675, %v3674
      %v3696 = vpack.c.b16 %v3677, %v3676
      %v3697 = vpack.c.b16 %v3679, %v3678
      %v3698 = vpack.c.b16 %v3681, %v3680
      %v3699 = vpack.c.b16 %v3683, %v3682
      %3716 = vst [vmem:[%s274] sm:$0xff] %v3684
      %3717 = vst [vmem:[%s274 + $0x8] sm:$0xff] %v3685
      %3718 = vst [vmem:[%s274 + $0x10] sm:$0xff] %v3686
      %3719 = vst [vmem:[%s274 + $0x18] sm:$0xff] %v3687
      %3720 = vst [vmem:[%s274 + $0x20] sm:$0xff] %v3688
      %3721 = vst [vmem:[%s274 + $0x28] sm:$0xff] %v3689
      %3722 = vst [vmem:[%s274 + $0x30] sm:$0xff] %v3690
      %3723 = vst [vmem:[%s274 + $0x38] sm:$0xff] %v3691
      %3724 = vst [vmem:[%s274 + $0x40] sm:$0xff] %v3692
      %3725 = vst [vmem:[%s274 + $0x48] sm:$0xff] %v3693
      %3726 = vst [vmem:[%s274 + $0x50] sm:$0xff] %v3694
      %3727 = vst [vmem:[%s274 + $0x58] sm:$0xff] %v3695
      %3728 = vst [vmem:[%s274 + $0x60] sm:$0xff] %v3696
      %3729 = vst [vmem:[%s274 + $0x68] sm:$0xff] %v3697
      %3730 = vst [vmem:[%s274 + $0x70] sm:$0xff] %v3698
      %3731 = vst [vmem:[%s274 + $0x78] sm:$0xff] %v3699
      %v3732 = vld [vmem:[#allocation2] sm:$0xff]
      %v3733 = vld [vmem:[#allocation2 + $0x8] sm:$0xff]
      %v3734 = vld [vmem:[#allocation2 + $0x10] sm:$0xff]
      %v3735 = vld [vmem:[#allocation2 + $0x18] sm:$0xff]
      %v3736 = vld [vmem:[#allocation2 + $0x20] sm:$0xff]
      %v3737 = vld [vmem:[#allocation2 + $0x28] sm:$0xff]
      %v3738 = vld [vmem:[#allocation2 + $0x30] sm:$0xff]
      %v3739 = vld [vmem:[#allocation2 + $0x38] sm:$0xff]
      %v3740 = vld [vmem:[#allocation2 + $0x40] sm:$0xff]
      %v3741 = vld [vmem:[#allocation2 + $0x48] sm:$0xff]
      %v3742 = vld [vmem:[#allocation2 + $0x50] sm:$0xff]
      %v3743 = vld [vmem:[#allocation2 + $0x58] sm:$0xff]
      %v3744 = vld [vmem:[#allocation2 + $0x60] sm:$0xff]
      %v3745 = vld [vmem:[#allocation2 + $0x68] sm:$0xff]
      %v3746 = vld [vmem:[#allocation2 + $0x70] sm:$0xff]
      %v3747 = vld [vmem:[#allocation2 + $0x78] sm:$0xff]
      %v3748 = vld [vmem:[#allocation2 + $0x80] sm:$0xff]
      %v3749 = vld [vmem:[#allocation2 + $0x88] sm:$0xff]
      %v3750 = vld [vmem:[#allocation2 + $0x90] sm:$0xff]
      %v3751 = vld [vmem:[#allocation2 + $0x98] sm:$0xff]
      %v3752 = vld [vmem:[#allocation2 + $0xa0] sm:$0xff]
      %v3753 = vld [vmem:[#allocation2 + $0xa8] sm:$0xff]
      %v3754 = vld [vmem:[#allocation2 + $0xb0] sm:$0xff]
      %v3755 = vld [vmem:[#allocation2 + $0xb8] sm:$0xff]
      %v3756 = vld [vmem:[#allocation2 + $0xc0] sm:$0xff]
      %v3757 = vld [vmem:[#allocation2 + $0xc8] sm:$0xff]
      %v3758 = vld [vmem:[#allocation2 + $0xd0] sm:$0xff]
      %v3759 = vld [vmem:[#allocation2 + $0xd8] sm:$0xff]
      %v3760 = vld [vmem:[#allocation2 + $0xe0] sm:$0xff]
      %v3761 = vld [vmem:[#allocation2 + $0xe8] sm:$0xff]
      %v3762 = vld [vmem:[#allocation2 + $0xf0] sm:$0xff]
      %v3763 = vld [vmem:[#allocation2 + $0xf8] sm:$0xff]
      %v3764 = vld [vmem:[%s3] sm:$0xff]
      %v3765 = vld [vmem:[%s3 + $0x8] sm:$0xff]
      %v3766 = vld [vmem:[%s3 + $0x10] sm:$0xff]
      %v3767 = vld [vmem:[%s3 + $0x18] sm:$0xff]
      %v3768 = vld [vmem:[%s3 + $0x20] sm:$0xff]
      %v3769 = vld [vmem:[%s3 + $0x28] sm:$0xff]
      %v3770 = vld [vmem:[%s3 + $0x30] sm:$0xff]
      %v3771 = vld [vmem:[%s3 + $0x38] sm:$0xff]
      %v3772 = vld [vmem:[%s3 + $0x40] sm:$0xff]
      %v3773 = vld [vmem:[%s3 + $0x48] sm:$0xff]
      %v3774 = vld [vmem:[%s3 + $0x50] sm:$0xff]
      %v3775 = vld [vmem:[%s3 + $0x58] sm:$0xff]
      %v3776 = vld [vmem:[%s3 + $0x60] sm:$0xff]
      %v3777 = vld [vmem:[%s3 + $0x68] sm:$0xff]
      %v3778 = vld [vmem:[%s3 + $0x70] sm:$0xff]
      %v3779 = vld [vmem:[%s3 + $0x78] sm:$0xff]
      %v3780 = vld [vmem:[%s3 + $0x80] sm:$0xff]
      %v3781 = vld [vmem:[%s3 + $0x88] sm:$0xff]
      %v3782 = vld [vmem:[%s3 + $0x90] sm:$0xff]
      %v3783 = vld [vmem:[%s3 + $0x98] sm:$0xff]
      %v3784 = vld [vmem:[%s3 + $0xa0] sm:$0xff]
      %v3785 = vld [vmem:[%s3 + $0xa8] sm:$0xff]
      %v3786 = vld [vmem:[%s3 + $0xb0] sm:$0xff]
      %v3787 = vld [vmem:[%s3 + $0xb8] sm:$0xff]
      %v3788 = vld [vmem:[%s3 + $0xc0] sm:$0xff]
      %v3789 = vld [vmem:[%s3 + $0xc8] sm:$0xff]
      %v3790 = vld [vmem:[%s3 + $0xd0] sm:$0xff]
      %v3791 = vld [vmem:[%s3 + $0xd8] sm:$0xff]
      %v3792 = vld [vmem:[%s3 + $0xe0] sm:$0xff]
      %v3793 = vld [vmem:[%s3 + $0xe8] sm:$0xff]
      %v3794 = vld [vmem:[%s3 + $0xf0] sm:$0xff]
      %v3795 = vld [vmem:[%s3 + $0xf8] sm:$0xff]
      %v3796 = vld [vmem:[%s3 + $0x100] sm:$0xff]
      %v3797 = vld [vmem:[%s3 + $0x108] sm:$0xff]
      %v3798 = vld [vmem:[%s3 + $0x110] sm:$0xff]
      %v3799 = vld [vmem:[%s3 + $0x118] sm:$0xff]
      %v3800 = vld [vmem:[%s3 + $0x120] sm:$0xff]
      %v3801 = vld [vmem:[%s3 + $0x128] sm:$0xff]
      %v3802 = vld [vmem:[%s3 + $0x130] sm:$0xff]
      %v3803 = vld [vmem:[%s3 + $0x138] sm:$0xff]
      %v3804 = vld [vmem:[%s3 + $0x140] sm:$0xff]
      %v3805 = vld [vmem:[%s3 + $0x148] sm:$0xff]
      %v3806 = vld [vmem:[%s3 + $0x150] sm:$0xff]
      %v3807 = vld [vmem:[%s3 + $0x158] sm:$0xff]
      %v3808 = vld [vmem:[%s3 + $0x160] sm:$0xff]
      %v3809 = vld [vmem:[%s3 + $0x168] sm:$0xff]
      %v3810 = vld [vmem:[%s3 + $0x170] sm:$0xff]
      %v3811 = vld [vmem:[%s3 + $0x178] sm:$0xff]
      %v3812 = vld [vmem:[%s3 + $0x180] sm:$0xff]
      %v3813 = vld [vmem:[%s3 + $0x188] sm:$0xff]
      %v3814 = vld [vmem:[%s3 + $0x190] sm:$0xff]
      %v3815 = vld [vmem:[%s3 + $0x198] sm:$0xff]
      %v3816 = vld [vmem:[%s3 + $0x1a0] sm:$0xff]
      %v3817 = vld [vmem:[%s3 + $0x1a8] sm:$0xff]
      %v3818 = vld [vmem:[%s3 + $0x1b0] sm:$0xff]
      %v3819 = vld [vmem:[%s3 + $0x1b8] sm:$0xff]
      %v3820 = vld [vmem:[%s3 + $0x1c0] sm:$0xff]
      %v3821 = vld [vmem:[%s3 + $0x1c8] sm:$0xff]
      %v3822 = vld [vmem:[%s3 + $0x1d0] sm:$0xff]
      %v3823 = vld [vmem:[%s3 + $0x1d8] sm:$0xff]
      %v3824 = vld [vmem:[%s3 + $0x1e0] sm:$0xff]
      %v3825 = vld [vmem:[%s3 + $0x1e8] sm:$0xff]
      %v3826 = vld [vmem:[%s3 + $0x1f0] sm:$0xff]
      %v3827 = vld [vmem:[%s3 + $0x1f8] sm:$0xff]
      %v3828 = vld [vmem:[%s3 + $0x200] sm:$0xff]
      %v3829 = vld [vmem:[%s3 + $0x208] sm:$0xff]
      %v3830 = vld [vmem:[%s3 + $0x210] sm:$0xff]
      %v3831 = vld [vmem:[%s3 + $0x218] sm:$0xff]
      %v3832 = vld [vmem:[%s3 + $0x220] sm:$0xff]
      %v3833 = vld [vmem:[%s3 + $0x228] sm:$0xff]
      %v3834 = vld [vmem:[%s3 + $0x230] sm:$0xff]
      %v3835 = vld [vmem:[%s3 + $0x238] sm:$0xff]
      %v3836 = vld [vmem:[%s3 + $0x240] sm:$0xff]
      %v3837 = vld [vmem:[%s3 + $0x248] sm:$0xff]
      %v3838 = vld [vmem:[%s3 + $0x250] sm:$0xff]
      %v3839 = vld [vmem:[%s3 + $0x258] sm:$0xff]
      %v3840 = vld [vmem:[%s3 + $0x260] sm:$0xff]
      %v3841 = vld [vmem:[%s3 + $0x268] sm:$0xff]
      %v3842 = vld [vmem:[%s3 + $0x270] sm:$0xff]
      %v3843 = vld [vmem:[%s3 + $0x278] sm:$0xff]
      %v3844 = vld [vmem:[%s3 + $0x280] sm:$0xff]
      %v3845 = vld [vmem:[%s3 + $0x288] sm:$0xff]
      %v3846 = vld [vmem:[%s3 + $0x290] sm:$0xff]
      %v3847 = vld [vmem:[%s3 + $0x298] sm:$0xff]
      %v3848 = vld [vmem:[%s3 + $0x2a0] sm:$0xff]
      %v3849 = vld [vmem:[%s3 + $0x2a8] sm:$0xff]
      %v3850 = vld [vmem:[%s3 + $0x2b0] sm:$0xff]
      %v3851 = vld [vmem:[%s3 + $0x2b8] sm:$0xff]
      %v3852 = vld [vmem:[%s3 + $0x2c0] sm:$0xff]
      %v3853 = vld [vmem:[%s3 + $0x2c8] sm:$0xff]
      %v3854 = vld [vmem:[%s3 + $0x2d0] sm:$0xff]
      %v3855 = vld [vmem:[%s3 + $0x2d8] sm:$0xff]
      %v3856 = vld [vmem:[%s3 + $0x2e0] sm:$0xff]
      %v3857 = vld [vmem:[%s3 + $0x2e8] sm:$0xff]
      %v3858 = vld [vmem:[%s3 + $0x2f0] sm:$0xff]
      %v3859 = vld [vmem:[%s3 + $0x2f8] sm:$0xff]
      %v3860 = vld [vmem:[%s3 + $0x300] sm:$0xff]
      %v3861 = vld [vmem:[%s3 + $0x308] sm:$0xff]
      %v3862 = vld [vmem:[%s3 + $0x310] sm:$0xff]
      %v3863 = vld [vmem:[%s3 + $0x318] sm:$0xff]
      %v3864 = vld [vmem:[%s3 + $0x320] sm:$0xff]
      %v3865 = vld [vmem:[%s3 + $0x328] sm:$0xff]
      %v3866 = vld [vmem:[%s3 + $0x330] sm:$0xff]
      %v3867 = vld [vmem:[%s3 + $0x338] sm:$0xff]
      %v3868 = vld [vmem:[%s3 + $0x340] sm:$0xff]
      %v3869 = vld [vmem:[%s3 + $0x348] sm:$0xff]
      %v3870 = vld [vmem:[%s3 + $0x350] sm:$0xff]
      %v3871 = vld [vmem:[%s3 + $0x358] sm:$0xff]
      %v3872 = vld [vmem:[%s3 + $0x360] sm:$0xff]
      %v3873 = vld [vmem:[%s3 + $0x368] sm:$0xff]
      %v3874 = vld [vmem:[%s3 + $0x370] sm:$0xff]
      %v3875 = vld [vmem:[%s3 + $0x378] sm:$0xff]
      %v3876 = vld [vmem:[%s3 + $0x380] sm:$0xff]
      %v3877 = vld [vmem:[%s3 + $0x388] sm:$0xff]
      %v3878 = vld [vmem:[%s3 + $0x390] sm:$0xff]
      %v3879 = vld [vmem:[%s3 + $0x398] sm:$0xff]
      %v3880 = vld [vmem:[%s3 + $0x3a0] sm:$0xff]
      %v3881 = vld [vmem:[%s3 + $0x3a8] sm:$0xff]
      %v3882 = vld [vmem:[%s3 + $0x3b0] sm:$0xff]
      %v3883 = vld [vmem:[%s3 + $0x3b8] sm:$0xff]
      %v3884 = vld [vmem:[%s3 + $0x3c0] sm:$0xff]
      %v3885 = vld [vmem:[%s3 + $0x3c8] sm:$0xff]
      %v3886 = vld [vmem:[%s3 + $0x3d0] sm:$0xff]
      %v3887 = vld [vmem:[%s3 + $0x3d8] sm:$0xff]
      %v3888 = vld [vmem:[%s3 + $0x3e0] sm:$0xff]
      %v3889 = vld [vmem:[%s3 + $0x3e8] sm:$0xff]
      %v3890 = vld [vmem:[%s3 + $0x3f0] sm:$0xff]
      %v3891 = vld [vmem:[%s3 + $0x3f8] sm:$0xff]
      %v3892 = vld [vmem:[%s4] sm:$0xf]
      %v3894 = vlaneseq
      %v3895 = vshrl.u32 %v3894, 7
      %v3896 = vsub.s32 0, %v3895
      %v3897 = vrot.slane %v3892, %v3896
      %v3898 = vlaneseq
      %v3899 = vshrl.u32 %v3898, 7
      %v3900 = vsub.s32 1, %v3899
      %v3901 = vrot.slane %v3892, %v3900
      %v3902 = vlaneseq
      %v3903 = vshrl.u32 %v3902, 7
      %v3904 = vsub.s32 2, %v3903
      %v3905 = vrot.slane %v3892, %v3904
      %v3906 = vlaneseq
      %v3907 = vshrl.u32 %v3906, 7
      %v3908 = vsub.s32 3, %v3907
      %v3909 = vrot.slane %v3892, %v3908
      %v4042 = vunpack.c.l.b16 %v3764
      %v4043 = vunpack.c.h.b16 %v3764
      %v4044 = vunpack.c.l.b16 %v3765
      %v4045 = vunpack.c.h.b16 %v3765
      %v4046 = vunpack.c.l.b16 %v3766
      %v4047 = vunpack.c.h.b16 %v3766
      %v4048 = vunpack.c.l.b16 %v3767
      %v4049 = vunpack.c.h.b16 %v3767
      %v4050 = vunpack.c.l.b16 %v3768
      %v4051 = vunpack.c.h.b16 %v3768
      %v4052 = vunpack.c.l.b16 %v3769
      %v4053 = vunpack.c.h.b16 %v3769
      %v4054 = vunpack.c.l.b16 %v3770
      %v4055 = vunpack.c.h.b16 %v3770
      %v4056 = vunpack.c.l.b16 %v3771
      %v4057 = vunpack.c.h.b16 %v3771
      %v4058 = vunpack.c.l.b16 %v3772
      %v4059 = vunpack.c.h.b16 %v3772
      %v4060 = vunpack.c.l.b16 %v3773
      %v4061 = vunpack.c.h.b16 %v3773
      %v4062 = vunpack.c.l.b16 %v3774
      %v4063 = vunpack.c.h.b16 %v3774
      %v4064 = vunpack.c.l.b16 %v3775
      %v4065 = vunpack.c.h.b16 %v3775
      %v4066 = vunpack.c.l.b16 %v3776
      %v4067 = vunpack.c.h.b16 %v3776
      %v4068 = vunpack.c.l.b16 %v3777
      %v4069 = vunpack.c.h.b16 %v3777
      %v4070 = vunpack.c.l.b16 %v3778
      %v4071 = vunpack.c.h.b16 %v3778
      %v4072 = vunpack.c.l.b16 %v3779
      %v4073 = vunpack.c.h.b16 %v3779
      %v4074 = vunpack.c.l.b16 %v3780
      %v4075 = vunpack.c.h.b16 %v3780
      %v4076 = vunpack.c.l.b16 %v3781
      %v4077 = vunpack.c.h.b16 %v3781
      %v4078 = vunpack.c.l.b16 %v3782
      %v4079 = vunpack.c.h.b16 %v3782
      %v4080 = vunpack.c.l.b16 %v3783
      %v4081 = vunpack.c.h.b16 %v3783
      %v4082 = vunpack.c.l.b16 %v3784
      %v4083 = vunpack.c.h.b16 %v3784
      %v4084 = vunpack.c.l.b16 %v3785
      %v4085 = vunpack.c.h.b16 %v3785
      %v4086 = vunpack.c.l.b16 %v3786
      %v4087 = vunpack.c.h.b16 %v3786
      %v4088 = vunpack.c.l.b16 %v3787
      %v4089 = vunpack.c.h.b16 %v3787
      %v4090 = vunpack.c.l.b16 %v3788
      %v4091 = vunpack.c.h.b16 %v3788
      %v4092 = vunpack.c.l.b16 %v3789
      %v4093 = vunpack.c.h.b16 %v3789
      %v4094 = vunpack.c.l.b16 %v3790
      %v4095 = vunpack.c.h.b16 %v3790
      %v4096 = vunpack.c.l.b16 %v3791
      %v4097 = vunpack.c.h.b16 %v3791
      %v4098 = vunpack.c.l.b16 %v3792
      %v4099 = vunpack.c.h.b16 %v3792
      %v4100 = vunpack.c.l.b16 %v3793
      %v4101 = vunpack.c.h.b16 %v3793
      %v4102 = vunpack.c.l.b16 %v3794
      %v4103 = vunpack.c.h.b16 %v3794
      %v4104 = vunpack.c.l.b16 %v3795
      %v4105 = vunpack.c.h.b16 %v3795
      %v4106 = vunpack.c.l.b16 %v3796
      %v4107 = vunpack.c.h.b16 %v3796
      %v4108 = vunpack.c.l.b16 %v3797
      %v4109 = vunpack.c.h.b16 %v3797
      %v4110 = vunpack.c.l.b16 %v3798
      %v4111 = vunpack.c.h.b16 %v3798
      %v4112 = vunpack.c.l.b16 %v3799
      %v4113 = vunpack.c.h.b16 %v3799
      %v4114 = vunpack.c.l.b16 %v3800
      %v4115 = vunpack.c.h.b16 %v3800
      %v4116 = vunpack.c.l.b16 %v3801
      %v4117 = vunpack.c.h.b16 %v3801
      %v4118 = vunpack.c.l.b16 %v3802
      %v4119 = vunpack.c.h.b16 %v3802
      %v4120 = vunpack.c.l.b16 %v3803
      %v4121 = vunpack.c.h.b16 %v3803
      %v4122 = vunpack.c.l.b16 %v3804
      %v4123 = vunpack.c.h.b16 %v3804
      %v4124 = vunpack.c.l.b16 %v3805
      %v4125 = vunpack.c.h.b16 %v3805
      %v4126 = vunpack.c.l.b16 %v3806
      %v4127 = vunpack.c.h.b16 %v3806
      %v4128 = vunpack.c.l.b16 %v3807
      %v4129 = vunpack.c.h.b16 %v3807
      %v4130 = vunpack.c.l.b16 %v3808
      %v4131 = vunpack.c.h.b16 %v3808
      %v4132 = vunpack.c.l.b16 %v3809
      %v4133 = vunpack.c.h.b16 %v3809
      %v4134 = vunpack.c.l.b16 %v3810
      %v4135 = vunpack.c.h.b16 %v3810
      %v4136 = vunpack.c.l.b16 %v3811
      %v4137 = vunpack.c.h.b16 %v3811
      %v4138 = vunpack.c.l.b16 %v3812
      %v4139 = vunpack.c.h.b16 %v3812
      %v4140 = vunpack.c.l.b16 %v3813
      %v4141 = vunpack.c.h.b16 %v3813
      %v4142 = vunpack.c.l.b16 %v3814
      %v4143 = vunpack.c.h.b16 %v3814
      %v4144 = vunpack.c.l.b16 %v3815
      %v4145 = vunpack.c.h.b16 %v3815
      %v4146 = vunpack.c.l.b16 %v3816
      %v4147 = vunpack.c.h.b16 %v3816
      %v4148 = vunpack.c.l.b16 %v3817
      %v4149 = vunpack.c.h.b16 %v3817
      %v4150 = vunpack.c.l.b16 %v3818
      %v4151 = vunpack.c.h.b16 %v3818
      %v4152 = vunpack.c.l.b16 %v3819
      %v4153 = vunpack.c.h.b16 %v3819
      %v4154 = vunpack.c.l.b16 %v3820
      %v4155 = vunpack.c.h.b16 %v3820
      %v4156 = vunpack.c.l.b16 %v3821
      %v4157 = vunpack.c.h.b16 %v3821
      %v4158 = vunpack.c.l.b16 %v3822
      %v4159 = vunpack.c.h.b16 %v3822
      %v4160 = vunpack.c.l.b16 %v3823
      %v4161 = vunpack.c.h.b16 %v3823
      %v4162 = vunpack.c.l.b16 %v3824
      %v4163 = vunpack.c.h.b16 %v3824
      %v4164 = vunpack.c.l.b16 %v3825
      %v4165 = vunpack.c.h.b16 %v3825
      %v4166 = vunpack.c.l.b16 %v3826
      %v4167 = vunpack.c.h.b16 %v3826
      %v4168 = vunpack.c.l.b16 %v3827
      %v4169 = vunpack.c.h.b16 %v3827
      %v4170 = vunpack.c.l.b16 %v3828
      %v4171 = vunpack.c.h.b16 %v3828
      %v4172 = vunpack.c.l.b16 %v3829
      %v4173 = vunpack.c.h.b16 %v3829
      %v4174 = vunpack.c.l.b16 %v3830
      %v4175 = vunpack.c.h.b16 %v3830
      %v4176 = vunpack.c.l.b16 %v3831
      %v4177 = vunpack.c.h.b16 %v3831
      %v4178 = vunpack.c.l.b16 %v3832
      %v4179 = vunpack.c.h.b16 %v3832
      %v4180 = vunpack.c.l.b16 %v3833
      %v4181 = vunpack.c.h.b16 %v3833
      %v4182 = vunpack.c.l.b16 %v3834
      %v4183 = vunpack.c.h.b16 %v3834
      %v4184 = vunpack.c.l.b16 %v3835
      %v4185 = vunpack.c.h.b16 %v3835
      %v4186 = vunpack.c.l.b16 %v3836
      %v4187 = vunpack.c.h.b16 %v3836
      %v4188 = vunpack.c.l.b16 %v3837
      %v4189 = vunpack.c.h.b16 %v3837
      %v4190 = vunpack.c.l.b16 %v3838
      %v4191 = vunpack.c.h.b16 %v3838
      %v4192 = vunpack.c.l.b16 %v3839
      %v4193 = vunpack.c.h.b16 %v3839
      %v4194 = vunpack.c.l.b16 %v3840
      %v4195 = vunpack.c.h.b16 %v3840
      %v4196 = vunpack.c.l.b16 %v3841
      %v4197 = vunpack.c.h.b16 %v3841
      %v4198 = vunpack.c.l.b16 %v3842
      %v4199 = vunpack.c.h.b16 %v3842
      %v4200 = vunpack.c.l.b16 %v3843
      %v4201 = vunpack.c.h.b16 %v3843
      %v4202 = vunpack.c.l.b16 %v3844
      %v4203 = vunpack.c.h.b16 %v3844
      %v4204 = vunpack.c.l.b16 %v3845
      %v4205 = vunpack.c.h.b16 %v3845
      %v4206 = vunpack.c.l.b16 %v3846
      %v4207 = vunpack.c.h.b16 %v3846
      %v4208 = vunpack.c.l.b16 %v3847
      %v4209 = vunpack.c.h.b16 %v3847
      %v4210 = vunpack.c.l.b16 %v3848
      %v4211 = vunpack.c.h.b16 %v3848
      %v4212 = vunpack.c.l.b16 %v3849
      %v4213 = vunpack.c.h.b16 %v3849
      %v4214 = vunpack.c.l.b16 %v3850
      %v4215 = vunpack.c.h.b16 %v3850
      %v4216 = vunpack.c.l.b16 %v3851
      %v4217 = vunpack.c.h.b16 %v3851
      %v4218 = vunpack.c.l.b16 %v3852
      %v4219 = vunpack.c.h.b16 %v3852
      %v4220 = vunpack.c.l.b16 %v3853
      %v4221 = vunpack.c.h.b16 %v3853
      %v4222 = vunpack.c.l.b16 %v3854
      %v4223 = vunpack.c.h.b16 %v3854
      %v4224 = vunpack.c.l.b16 %v3855
      %v4225 = vunpack.c.h.b16 %v3855
      %v4226 = vunpack.c.l.b16 %v3856
      %v4227 = vunpack.c.h.b16 %v3856
      %v4228 = vunpack.c.l.b16 %v3857
      %v4229 = vunpack.c.h.b16 %v3857
      %v4230 = vunpack.c.l.b16 %v3858
      %v4231 = vunpack.c.h.b16 %v3858
      %v4232 = vunpack.c.l.b16 %v3859
      %v4233 = vunpack.c.h.b16 %v3859
      %v4234 = vunpack.c.l.b16 %v3860
      %v4235 = vunpack.c.h.b16 %v3860
      %v4236 = vunpack.c.l.b16 %v3861
      %v4237 = vunpack.c.h.b16 %v3861
      %v4238 = vunpack.c.l.b16 %v3862
      %v4239 = vunpack.c.h.b16 %v3862
      %v4240 = vunpack.c.l.b16 %v3863
      %v4241 = vunpack.c.h.b16 %v3863
      %v4242 = vunpack.c.l.b16 %v3864
      %v4243 = vunpack.c.h.b16 %v3864
      %v4244 = vunpack.c.l.b16 %v3865
      %v4245 = vunpack.c.h.b16 %v3865
      %v4246 = vunpack.c.l.b16 %v3866
      %v4247 = vunpack.c.h.b16 %v3866
      %v4248 = vunpack.c.l.b16 %v3867
      %v4249 = vunpack.c.h.b16 %v3867
      %v4250 = vunpack.c.l.b16 %v3868
      %v4251 = vunpack.c.h.b16 %v3868
      %v4252 = vunpack.c.l.b16 %v3869
      %v4253 = vunpack.c.h.b16 %v3869
      %v4254 = vunpack.c.l.b16 %v3870
      %v4255 = vunpack.c.h.b16 %v3870
      %v4256 = vunpack.c.l.b16 %v3871
      %v4257 = vunpack.c.h.b16 %v3871
      %v4258 = vunpack.c.l.b16 %v3872
      %v4259 = vunpack.c.h.b16 %v3872
      %v4260 = vunpack.c.l.b16 %v3873
      %v4261 = vunpack.c.h.b16 %v3873
      %v4262 = vunpack.c.l.b16 %v3874
      %v4263 = vunpack.c.h.b16 %v3874
      %v4264 = vunpack.c.l.b16 %v3875
      %v4265 = vunpack.c.h.b16 %v3875
      %v4266 = vunpack.c.l.b16 %v3876
      %v4267 = vunpack.c.h.b16 %v3876
      %v4268 = vunpack.c.l.b16 %v3877
      %v4269 = vunpack.c.h.b16 %v3877
      %v4270 = vunpack.c.l.b16 %v3878
      %v4271 = vunpack.c.h.b16 %v3878
      %v4272 = vunpack.c.l.b16 %v3879
      %v4273 = vunpack.c.h.b16 %v3879
      %v4274 = vunpack.c.l.b16 %v3880
      %v4275 = vunpack.c.h.b16 %v3880
      %v4276 = vunpack.c.l.b16 %v3881
      %v4277 = vunpack.c.h.b16 %v3881
      %v4278 = vunpack.c.l.b16 %v3882
      %v4279 = vunpack.c.h.b16 %v3882
      %v4280 = vunpack.c.l.b16 %v3883
      %v4281 = vunpack.c.h.b16 %v3883
      %v4282 = vunpack.c.l.b16 %v3884
      %v4283 = vunpack.c.h.b16 %v3884
      %v4284 = vunpack.c.l.b16 %v3885
      %v4285 = vunpack.c.h.b16 %v3885
      %v4286 = vunpack.c.l.b16 %v3886
      %v4287 = vunpack.c.h.b16 %v3886
      %v4288 = vunpack.c.l.b16 %v3887
      %v4289 = vunpack.c.h.b16 %v3887
      %v4290 = vunpack.c.l.b16 %v3888
      %v4291 = vunpack.c.h.b16 %v3888
      %v4292 = vunpack.c.l.b16 %v3889
      %v4293 = vunpack.c.h.b16 %v3889
      %v4294 = vunpack.c.l.b16 %v3890
      %v4295 = vunpack.c.h.b16 %v3890
      %v4296 = vunpack.c.l.b16 %v3891
      %v4297 = vunpack.c.h.b16 %v3891
      %v4298 = vpack.c.b16 %v4046, %v4042
      %v4299 = vpack.c.b16 %v4047, %v4043
      %v4300 = vpack.c.b16 %v4048, %v4044
      %v4301 = vpack.c.b16 %v4049, %v4045
      %v4302 = vpack.c.b16 %v4054, %v4050
      %v4303 = vpack.c.b16 %v4055, %v4051
      %v4304 = vpack.c.b16 %v4056, %v4052
      %v4305 = vpack.c.b16 %v4057, %v4053
      %v4306 = vpack.c.b16 %v4062, %v4058
      %v4307 = vpack.c.b16 %v4063, %v4059
      %v4308 = vpack.c.b16 %v4064, %v4060
      %v4309 = vpack.c.b16 %v4065, %v4061
      %v4310 = vpack.c.b16 %v4070, %v4066
      %v4311 = vpack.c.b16 %v4071, %v4067
      %v4312 = vpack.c.b16 %v4072, %v4068
      %v4313 = vpack.c.b16 %v4073, %v4069
      %v4314 = vpack.c.b16 %v4078, %v4074
      %v4315 = vpack.c.b16 %v4079, %v4075
      %v4316 = vpack.c.b16 %v4080, %v4076
      %v4317 = vpack.c.b16 %v4081, %v4077
      %v4318 = vpack.c.b16 %v4086, %v4082
      %v4319 = vpack.c.b16 %v4087, %v4083
      %v4320 = vpack.c.b16 %v4088, %v4084
      %v4321 = vpack.c.b16 %v4089, %v4085
      %v4322 = vpack.c.b16 %v4094, %v4090
      %v4323 = vpack.c.b16 %v4095, %v4091
      %v4324 = vpack.c.b16 %v4096, %v4092
      %v4325 = vpack.c.b16 %v4097, %v4093
      %v4326 = vpack.c.b16 %v4102, %v4098
      %v4327 = vpack.c.b16 %v4103, %v4099
      %v4328 = vpack.c.b16 %v4104, %v4100
      %v4329 = vpack.c.b16 %v4105, %v4101
      %v4330 = vpack.c.b16 %v4110, %v4106
      %v4331 = vpack.c.b16 %v4111, %v4107
      %v4332 = vpack.c.b16 %v4112, %v4108
      %v4333 = vpack.c.b16 %v4113, %v4109
      %v4334 = vpack.c.b16 %v4118, %v4114
      %v4335 = vpack.c.b16 %v4119, %v4115
      %v4336 = vpack.c.b16 %v4120, %v4116
      %v4337 = vpack.c.b16 %v4121, %v4117
      %v4338 = vpack.c.b16 %v4126, %v4122
      %v4339 = vpack.c.b16 %v4127, %v4123
      %v4340 = vpack.c.b16 %v4128, %v4124
      %v4341 = vpack.c.b16 %v4129, %v4125
      %v4342 = vpack.c.b16 %v4134, %v4130
      %v4343 = vpack.c.b16 %v4135, %v4131
      %v4344 = vpack.c.b16 %v4136, %v4132
      %v4345 = vpack.c.b16 %v4137, %v4133
      %v4346 = vpack.c.b16 %v4142, %v4138
      %v4347 = vpack.c.b16 %v4143, %v4139
      %v4348 = vpack.c.b16 %v4144, %v4140
      %v4349 = vpack.c.b16 %v4145, %v4141
      %v4350 = vpack.c.b16 %v4150, %v4146
      %v4351 = vpack.c.b16 %v4151, %v4147
      %v4352 = vpack.c.b16 %v4152, %v4148
      %v4353 = vpack.c.b16 %v4153, %v4149
      %v4354 = vpack.c.b16 %v4158, %v4154
      %v4355 = vpack.c.b16 %v4159, %v4155
      %v4356 = vpack.c.b16 %v4160, %v4156
      %v4357 = vpack.c.b16 %v4161, %v4157
      %v4358 = vpack.c.b16 %v4166, %v4162
      %v4359 = vpack.c.b16 %v4167, %v4163
      %v4360 = vpack.c.b16 %v4168, %v4164
      %v4361 = vpack.c.b16 %v4169, %v4165
      %v4362 = vpack.c.b16 %v4174, %v4170
      %v4363 = vpack.c.b16 %v4175, %v4171
      %v4364 = vpack.c.b16 %v4176, %v4172
      %v4365 = vpack.c.b16 %v4177, %v4173
      %v4366 = vpack.c.b16 %v4182, %v4178
      %v4367 = vpack.c.b16 %v4183, %v4179
      %v4368 = vpack.c.b16 %v4184, %v4180
      %v4369 = vpack.c.b16 %v4185, %v4181
      %v4370 = vpack.c.b16 %v4190, %v4186
      %v4371 = vpack.c.b16 %v4191, %v4187
      %v4372 = vpack.c.b16 %v4192, %v4188
      %v4373 = vpack.c.b16 %v4193, %v4189
      %v4374 = vpack.c.b16 %v4198, %v4194
      %v4375 = vpack.c.b16 %v4199, %v4195
      %v4376 = vpack.c.b16 %v4200, %v4196
      %v4377 = vpack.c.b16 %v4201, %v4197
      %v4378 = vpack.c.b16 %v4206, %v4202
      %v4379 = vpack.c.b16 %v4207, %v4203
      %v4380 = vpack.c.b16 %v4208, %v4204
      %v4381 = vpack.c.b16 %v4209, %v4205
      %v4382 = vpack.c.b16 %v4214, %v4210
      %v4383 = vpack.c.b16 %v4215, %v4211
      %v4384 = vpack.c.b16 %v4216, %v4212
      %v4385 = vpack.c.b16 %v4217, %v4213
      %v4386 = vpack.c.b16 %v4222, %v4218
      %v4387 = vpack.c.b16 %v4223, %v4219
      %v4388 = vpack.c.b16 %v4224, %v4220
      %v4389 = vpack.c.b16 %v4225, %v4221
      %v4390 = vpack.c.b16 %v4230, %v4226
      %v4391 = vpack.c.b16 %v4231, %v4227
      %v4392 = vpack.c.b16 %v4232, %v4228
      %v4393 = vpack.c.b16 %v4233, %v4229
      %v4394 = vpack.c.b16 %v4238, %v4234
      %v4395 = vpack.c.b16 %v4239, %v4235
      %v4396 = vpack.c.b16 %v4240, %v4236
      %v4397 = vpack.c.b16 %v4241, %v4237
      %v4398 = vpack.c.b16 %v4246, %v4242
      %v4399 = vpack.c.b16 %v4247, %v4243
      %v4400 = vpack.c.b16 %v4248, %v4244
      %v4401 = vpack.c.b16 %v4249, %v4245
      %v4402 = vpack.c.b16 %v4254, %v4250
      %v4403 = vpack.c.b16 %v4255, %v4251
      %v4404 = vpack.c.b16 %v4256, %v4252
      %v4405 = vpack.c.b16 %v4257, %v4253
      %v4406 = vpack.c.b16 %v4262, %v4258
      %v4407 = vpack.c.b16 %v4263, %v4259
      %v4408 = vpack.c.b16 %v4264, %v4260
      %v4409 = vpack.c.b16 %v4265, %v4261
      %v4410 = vpack.c.b16 %v4270, %v4266
      %v4411 = vpack.c.b16 %v4271, %v4267
      %v4412 = vpack.c.b16 %v4272, %v4268
      %v4413 = vpack.c.b16 %v4273, %v4269
      %v4414 = vpack.c.b16 %v4278, %v4274
      %v4415 = vpack.c.b16 %v4279, %v4275
      %v4416 = vpack.c.b16 %v4280, %v4276
      %v4417 = vpack.c.b16 %v4281, %v4277
      %v4418 = vpack.c.b16 %v4286, %v4282
      %v4419 = vpack.c.b16 %v4287, %v4283
      %v4420 = vpack.c.b16 %v4288, %v4284
      %v4421 = vpack.c.b16 %v4289, %v4285
      %v4422 = vpack.c.b16 %v4294, %v4290
      %v4423 = vpack.c.b16 %v4295, %v4291
      %v4424 = vpack.c.b16 %v4296, %v4292
      %v4425 = vpack.c.b16 %v4297, %v4293
      %4554 = vmatprep.subr.bf16.mxu0 %v4299
      %4555 = vmatpush1.bf16.msra.mxu0 %v4298
      %4556 = vmatprep.subr.bf16.mxu0 %v4303
      %4557 = vmatpush1.bf16.msra.mxu0 %v4302
      %4558 = vmatprep.subr.bf16.mxu0 %v4307
      %4559 = vmatpush1.bf16.msra.mxu0 %v4306
      %4560 = vmatprep.subr.bf16.mxu0 %v4311
      %4561 = vmatpush1.bf16.msra.mxu0 %v4310
      %4562 = vmatprep.subr.bf16.mxu0 %v4315
      %4563 = vmatpush1.bf16.msra.mxu0 %v4314
      %4564 = vmatprep.subr.bf16.mxu0 %v4319
      %4565 = vmatpush1.bf16.msra.mxu0 %v4318
      %4566 = vmatprep.subr.bf16.mxu0 %v4323
      %4567 = vmatpush1.bf16.msra.mxu0 %v4322
      %4568 = vmatprep.subr.bf16.mxu0 %v4327
      %4569 = vmatpush1.bf16.msra.mxu0 %v4326
      %4570 = vmatprep.subr.bf16.mxu0 %v4331
      %4571 = vmatpush1.bf16.msra.mxu0 %v4330
      %4572 = vmatprep.subr.bf16.mxu0 %v4335
      %4573 = vmatpush1.bf16.msra.mxu0 %v4334
      %4574 = vmatprep.subr.bf16.mxu0 %v4339
      %4575 = vmatpush1.bf16.msra.mxu0 %v4338
      %4576 = vmatprep.subr.bf16.mxu0 %v4343
      %4577 = vmatpush1.bf16.msra.mxu0 %v4342
      %4578 = vmatprep.subr.bf16.mxu0 %v4347
      %4579 = vmatpush1.bf16.msra.mxu0 %v4346
      %4580 = vmatprep.subr.bf16.mxu0 %v4351
      %4581 = vmatpush1.bf16.msra.mxu0 %v4350
      %4582 = vmatprep.subr.bf16.mxu0 %v4355
      %4583 = vmatpush1.bf16.msra.mxu0 %v4354
      %4584 = vmatprep.subr.bf16.mxu0 %v4359
      %4585 = vmatpush1.bf16.msra.mxu0 %v4358
      %4586 = vmatprep.mubr.bf16.mxu0 %v3733
      %4587 = vmatmul.mubr.bf16.gmra.mrb[0].mxu0 %v3732
      %v4588 = vpop.f32.mrb[0].mxu0
      %v4589 = vadd.f32 %v3897, %v4588
      %v4590 = vpop.f32.mrb[0].mxu0
      %v4591 = vadd.f32 %v3901, %v4590
      %v4592 = vpop.f32.mrb[0].mxu0
      %v4593 = vadd.f32 %v3897, %v4592
      %v4594 = vpop.f32.mrb[0].mxu0
      %v4595 = vadd.f32 %v3901, %v4594
      %4596 = vmatprep.mubr.bf16.mxu0 %v3737
      %4597 = vmatmul.mubr.bf16.gmra.mrb[0].mxu0 %v3736
      %v4598 = vpop.f32.mrb[0].mxu0
      %v4599 = vadd.f32 %v3897, %v4598
      %v4600 = vpop.f32.mrb[0].mxu0
      %v4601 = vadd.f32 %v3901, %v4600
      %v4602 = vpop.f32.mrb[0].mxu0
      %v4603 = vadd.f32 %v3897, %v4602
      %v4604 = vpop.f32.mrb[0].mxu0
      %v4605 = vadd.f32 %v3901, %v4604
      %4606 = vmatprep.mubr.bf16.mxu0 %v3741
      %4607 = vmatmul.mubr.bf16.gmra.mrb[0].mxu0 %v3740
      %v4608 = vpop.f32.mrb[0].mxu0
      %v4609 = vadd.f32 %v3897, %v4608
      %v4610 = vpop.f32.mrb[0].mxu0
      %v4611 = vadd.f32 %v3901, %v4610
      %v4612 = vpop.f32.mrb[0].mxu0
      %v4613 = vadd.f32 %v3897, %v4612
      %v4614 = vpop.f32.mrb[0].mxu0
      %v4615 = vadd.f32 %v3901, %v4614
      %4616 = vmatprep.mubr.bf16.mxu0 %v3745
      %4617 = vmatmul.mubr.bf16.gmra.mrb[0].mxu0 %v3744
      %v4618 = vpop.f32.mrb[0].mxu0
      %v4619 = vadd.f32 %v3897, %v4618
      %v4620 = vpop.f32.mrb[0].mxu0
      %v4621 = vadd.f32 %v3901, %v4620
      %v4622 = vpop.f32.mrb[0].mxu0
      %v4623 = vadd.f32 %v3897, %v4622
      %v4624 = vpop.f32.mrb[0].mxu0
      %v4625 = vadd.f32 %v3901, %v4624
      %4626 = vmatprep.mubr.bf16.mxu0 %v3749
      %4627 = vmatmul.mubr.bf16.gmra.mrb[0].mxu0 %v3748
      %v4628 = vpop.f32.mrb[0].mxu0
      %v4629 = vadd.f32 %v3897, %v4628
      %v4630 = vpop.f32.mrb[0].mxu0
      %v4631 = vadd.f32 %v3901, %v4630
      %v4632 = vpop.f32.mrb[0].mxu0
      %v4633 = vadd.f32 %v3897, %v4632
      %v4634 = vpop.f32.mrb[0].mxu0
      %v4635 = vadd.f32 %v3901, %v4634
      %4636 = vmatprep.mubr.bf16.mxu0 %v3753
      %4637 = vmatmul.mubr.bf16.gmra.mrb[0].mxu0 %v3752
      %v4638 = vpop.f32.mrb[0].mxu0
      %v4639 = vadd.f32 %v3897, %v4638
      %v4640 = vpop.f32.mrb[0].mxu0
      %v4641 = vadd.f32 %v3901, %v4640
      %v4642 = vpop.f32.mrb[0].mxu0
      %v4643 = vadd.f32 %v3897, %v4642
      %v4644 = vpop.f32.mrb[0].mxu0
      %v4645 = vadd.f32 %v3901, %v4644
      %4646 = vmatprep.mubr.bf16.mxu0 %v3757
      %4647 = vmatmul.mubr.bf16.gmra.mrb[0].mxu0 %v3756
      %v4648 = vpop.f32.mrb[0].mxu0
      %v4649 = vadd.f32 %v3897, %v4648
      %v4650 = vpop.f32.mrb[0].mxu0
      %v4651 = vadd.f32 %v3901, %v4650
      %v4652 = vpop.f32.mrb[0].mxu0
      %v4653 = vadd.f32 %v3897, %v4652
      %v4654 = vpop.f32.mrb[0].mxu0
      %v4655 = vadd.f32 %v3901, %v4654
      %4656 = vmatprep.mubr.bf16.mxu0 %v3761
      %4657 = vmatmul.mubr.bf16.gmra.mrb[0].mxu0 %v3760
      %v4658 = vpop.f32.mrb[0].mxu0
      %v4659 = vadd.f32 %v3897, %v4658
      %v4660 = vpop.f32.mrb[0].mxu0
      %v4661 = vadd.f32 %v3901, %v4660
      %v4662 = vpop.f32.mrb[0].mxu0
      %v4663 = vadd.f32 %v3897, %v4662
      %v4664 = vpop.f32.mrb[0].mxu0
      %v4665 = vadd.f32 %v3901, %v4664
      %4666 = vdwg.mxu0
      %4667 = vmatprep.subr.bf16.mxu0 %v4363
      %4668 = vmatpush1.bf16.msra.mxu0 %v4362
      %4669 = vmatprep.subr.bf16.mxu0 %v4367
      %4670 = vmatpush1.bf16.msra.mxu0 %v4366
      %4671 = vmatprep.subr.bf16.mxu0 %v4371
      %4672 = vmatpush1.bf16.msra.mxu0 %v4370
      %4673 = vmatprep.subr.bf16.mxu0 %v4375
      %4674 = vmatpush1.bf16.msra.mxu0 %v4374
      %4675 = vmatprep.subr.bf16.mxu0 %v4379
      %4676 = vmatpush1.bf16.msra.mxu0 %v4378
      %4677 = vmatprep.subr.bf16.mxu0 %v4383
      %4678 = vmatpush1.bf16.msra.mxu0 %v4382
      %4679 = vmatprep.subr.bf16.mxu0 %v4387
      %4680 = vmatpush1.bf16.msra.mxu0 %v4386
      %4681 = vmatprep.subr.bf16.mxu0 %v4391
      %4682 = vmatpush1.bf16.msra.mxu0 %v4390
      %4683 = vmatprep.subr.bf16.mxu0 %v4395
      %4684 = vmatpush1.bf16.msra.mxu0 %v4394
      %4685 = vmatprep.subr.bf16.mxu0 %v4399
      %4686 = vmatpush1.bf16.msra.mxu0 %v4398
      %4687 = vmatprep.subr.bf16.mxu0 %v4403
      %4688 = vmatpush1.bf16.msra.mxu0 %v4402
      %4689 = vmatprep.subr.bf16.mxu0 %v4407
      %4690 = vmatpush1.bf16.msra.mxu0 %v4406
      %4691 = vmatprep.subr.bf16.mxu0 %v4411
      %4692 = vmatpush1.bf16.msra.mxu0 %v4410
      %4693 = vmatprep.subr.bf16.mxu0 %v4415
      %4694 = vmatpush1.bf16.msra.mxu0 %v4414
      %4695 = vmatprep.subr.bf16.mxu0 %v4419
      %4696 = vmatpush1.bf16.msra.mxu0 %v4418
      %4697 = vmatprep.subr.bf16.mxu0 %v4423
      %4698 = vmatpush1.bf16.msra.mxu0 %v4422
      %4699 = vmatprep.mubr.bf16.mxu0 %v3735
      %4700 = vmatmul.mubr.bf16.gmra.mrb[0].mxu0 %v3734
      %v4701 = vpop.f32.mrb[0].mxu0
      %v4702 = vadd.f32 %v4589, %v4701
      %v4703 = vpop.f32.mrb[0].mxu0
      %v4704 = vadd.f32 %v4591, %v4703
      %v4705 = vpop.f32.mrb[0].mxu0
      %v4706 = vadd.f32 %v4593, %v4705
      %v4707 = vpop.f32.mrb[0].mxu0
      %v4708 = vadd.f32 %v4595, %v4707
      %4709 = vmatprep.mubr.bf16.mxu0 %v3739
      %4710 = vmatmul.mubr.bf16.gmra.mrb[0].mxu0 %v3738
      %v4711 = vpop.f32.mrb[0].mxu0
      %v4712 = vadd.f32 %v4599, %v4711
      %v4713 = vpop.f32.mrb[0].mxu0
      %v4714 = vadd.f32 %v4601, %v4713
      %v4715 = vpop.f32.mrb[0].mxu0
      %v4716 = vadd.f32 %v4603, %v4715
      %v4717 = vpop.f32.mrb[0].mxu0
      %v4718 = vadd.f32 %v4605, %v4717
      %4719 = vmatprep.mubr.bf16.mxu0 %v3743
      %4720 = vmatmul.mubr.bf16.gmra.mrb[0].mxu0 %v3742
      %v4721 = vpop.f32.mrb[0].mxu0
      %v4722 = vadd.f32 %v4609, %v4721
      %v4723 = vpop.f32.mrb[0].mxu0
      %v4724 = vadd.f32 %v4611, %v4723
      %v4725 = vpop.f32.mrb[0].mxu0
      %v4726 = vadd.f32 %v4613, %v4725
      %v4727 = vpop.f32.mrb[0].mxu0
      %v4728 = vadd.f32 %v4615, %v4727
      %4729 = vmatprep.mubr.bf16.mxu0 %v3747
      %4730 = vmatmul.mubr.bf16.gmra.mrb[0].mxu0 %v3746
      %v4731 = vpop.f32.mrb[0].mxu0
      %v4732 = vadd.f32 %v4619, %v4731
      %v4733 = vpop.f32.mrb[0].mxu0
      %v4734 = vadd.f32 %v4621, %v4733
      %v4735 = vpop.f32.mrb[0].mxu0
      %v4736 = vadd.f32 %v4623, %v4735
      %v4737 = vpop.f32.mrb[0].mxu0
      %v4738 = vadd.f32 %v4625, %v4737
      %4739 = vmatprep.mubr.bf16.mxu0 %v3751
      %4740 = vmatmul.mubr.bf16.gmra.mrb[0].mxu0 %v3750
      %v4741 = vpop.f32.mrb[0].mxu0
      %v4742 = vadd.f32 %v4629, %v4741
      %v4743 = vpop.f32.mrb[0].mxu0
      %v4744 = vadd.f32 %v4631, %v4743
      %v4745 = vpop.f32.mrb[0].mxu0
      %v4746 = vadd.f32 %v4633, %v4745
      %v4747 = vpop.f32.mrb[0].mxu0
      %v4748 = vadd.f32 %v4635, %v4747
      %4749 = vmatprep.mubr.bf16.mxu0 %v3755
      %4750 = vmatmul.mubr.bf16.gmra.mrb[0].mxu0 %v3754
      %v4751 = vpop.f32.mrb[0].mxu0
      %v4752 = vadd.f32 %v4639, %v4751
      %v4753 = vpop.f32.mrb[0].mxu0
      %v4754 = vadd.f32 %v4641, %v4753
      %v4755 = vpop.f32.mrb[0].mxu0
      %v4756 = vadd.f32 %v4643, %v4755
      %v4757 = vpop.f32.mrb[0].mxu0
      %v4758 = vadd.f32 %v4645, %v4757
      %4759 = vmatprep.mubr.bf16.mxu0 %v3759
      %4760 = vmatmul.mubr.bf16.gmra.mrb[0].mxu0 %v3758
      %v4761 = vpop.f32.mrb[0].mxu0
      %v4762 = vadd.f32 %v4649, %v4761
      %v4763 = vpop.f32.mrb[0].mxu0
      %v4764 = vadd.f32 %v4651, %v4763
      %v4765 = vpop.f32.mrb[0].mxu0
      %v4766 = vadd.f32 %v4653, %v4765
      %v4767 = vpop.f32.mrb[0].mxu0
      %v4768 = vadd.f32 %v4655, %v4767
      %4769 = vmatprep.mubr.bf16.mxu0 %v3763
      %4770 = vmatmul.mubr.bf16.gmra.mrb[0].mxu0 %v3762
      %v4771 = vpop.f32.mrb[0].mxu0
      %v4772 = vadd.f32 %v4659, %v4771
      %v4773 = vpop.f32.mrb[0].mxu0
      %v4774 = vadd.f32 %v4661, %v4773
      %v4775 = vpop.f32.mrb[0].mxu0
      %v4776 = vadd.f32 %v4663, %v4775
      %v4777 = vpop.f32.mrb[0].mxu0
      %v4778 = vadd.f32 %v4665, %v4777
      %4779 = vdwg.mxu0
      %4780 = vmatprep.subr.bf16.mxu0 %v4301
      %4781 = vmatpush1.bf16.msra.mxu0 %v4300
      %4782 = vmatprep.subr.bf16.mxu0 %v4305
      %4783 = vmatpush1.bf16.msra.mxu0 %v4304
      %4784 = vmatprep.subr.bf16.mxu0 %v4309
      %4785 = vmatpush1.bf16.msra.mxu0 %v4308
      %4786 = vmatprep.subr.bf16.mxu0 %v4313
      %4787 = vmatpush1.bf16.msra.mxu0 %v4312
      %4788 = vmatprep.subr.bf16.mxu0 %v4317
      %4789 = vmatpush1.bf16.msra.mxu0 %v4316
      %4790 = vmatprep.subr.bf16.mxu0 %v4321
      %4791 = vmatpush1.bf16.msra.mxu0 %v4320
      %4792 = vmatprep.subr.bf16.mxu0 %v4325
      %4793 = vmatpush1.bf16.msra.mxu0 %v4324
      %4794 = vmatprep.subr.bf16.mxu0 %v4329
      %4795 = vmatpush1.bf16.msra.mxu0 %v4328
      %4796 = vmatprep.subr.bf16.mxu0 %v4333
      %4797 = vmatpush1.bf16.msra.mxu0 %v4332
      %4798 = vmatprep.subr.bf16.mxu0 %v4337
      %4799 = vmatpush1.bf16.msra.mxu0 %v4336
      %4800 = vmatprep.subr.bf16.mxu0 %v4341
      %4801 = vmatpush1.bf16.msra.mxu0 %v4340
      %4802 = vmatprep.subr.bf16.mxu0 %v4345
      %4803 = vmatpush1.bf16.msra.mxu0 %v4344
      %4804 = vmatprep.subr.bf16.mxu0 %v4349
      %4805 = vmatpush1.bf16.msra.mxu0 %v4348
      %4806 = vmatprep.subr.bf16.mxu0 %v4353
      %4807 = vmatpush1.bf16.msra.mxu0 %v4352
      %4808 = vmatprep.subr.bf16.mxu0 %v4357
      %4809 = vmatpush1.bf16.msra.mxu0 %v4356
      %4810 = vmatprep.subr.bf16.mxu0 %v4361
      %4811 = vmatpush1.bf16.msra.mxu0 %v4360
      %4812 = vmatprep.mubr.bf16.mxu0 %v3733
      %4813 = vmatmul.mubr.bf16.gmra.mrb[0].mxu0 %v3732
      %v4814 = vpop.f32.mrb[0].mxu0
      %v4815 = vadd.f32 %v3905, %v4814
      %v4816 = vpop.f32.mrb[0].mxu0
      %v4817 = vadd.f32 %v3909, %v4816
      %v4818 = vpop.f32.mrb[0].mxu0
      %v4819 = vadd.f32 %v3905, %v4818
      %v4820 = vpop.f32.mrb[0].mxu0
      %v4821 = vadd.f32 %v3909, %v4820
      %4822 = vmatprep.mubr.bf16.mxu0 %v3737
      %4823 = vmatmul.mubr.bf16.gmra.mrb[0].mxu0 %v3736
      %v4824 = vpop.f32.mrb[0].mxu0
      %v4825 = vadd.f32 %v3905, %v4824
      %v4826 = vpop.f32.mrb[0].mxu0
      %v4827 = vadd.f32 %v3909, %v4826
      %v4828 = vpop.f32.mrb[0].mxu0
      %v4829 = vadd.f32 %v3905, %v4828
      %v4830 = vpop.f32.mrb[0].mxu0
      %v4831 = vadd.f32 %v3909, %v4830
      %4832 = vmatprep.mubr.bf16.mxu0 %v3741
      %4833 = vmatmul.mubr.bf16.gmra.mrb[0].mxu0 %v3740
      %v4834 = vpop.f32.mrb[0].mxu0
      %v4835 = vadd.f32 %v3905, %v4834
      %v4836 = vpop.f32.mrb[0].mxu0
      %v4837 = vadd.f32 %v3909, %v4836
      %v4838 = vpop.f32.mrb[0].mxu0
      %v4839 = vadd.f32 %v3905, %v4838
      %v4840 = vpop.f32.mrb[0].mxu0
      %v4841 = vadd.f32 %v3909, %v4840
      %4842 = vmatprep.mubr.bf16.mxu0 %v3745
      %4843 = vmatmul.mubr.bf16.gmra.mrb[0].mxu0 %v3744
      %v4844 = vpop.f32.mrb[0].mxu0
      %v4845 = vadd.f32 %v3905, %v4844
      %v4846 = vpop.f32.mrb[0].mxu0
      %v4847 = vadd.f32 %v3909, %v4846
      %v4848 = vpop.f32.mrb[0].mxu0
      %v4849 = vadd.f32 %v3905, %v4848
      %v4850 = vpop.f32.mrb[0].mxu0
      %v4851 = vadd.f32 %v3909, %v4850
      %4852 = vmatprep.mubr.bf16.mxu0 %v3749
      %4853 = vmatmul.mubr.bf16.gmra.mrb[0].mxu0 %v3748
      %v4854 = vpop.f32.mrb[0].mxu0
      %v4855 = vadd.f32 %v3905, %v4854
      %v4856 = vpop.f32.mrb[0].mxu0
      %v4857 = vadd.f32 %v3909, %v4856
      %v4858 = vpop.f32.mrb[0].mxu0
      %v4859 = vadd.f32 %v3905, %v4858
      %v4860 = vpop.f32.mrb[0].mxu0
      %v4861 = vadd.f32 %v3909, %v4860
      %4862 = vmatprep.mubr.bf16.mxu0 %v3753
      %4863 = vmatmul.mubr.bf16.gmra.mrb[0].mxu0 %v3752
      %v4864 = vpop.f32.mrb[0].mxu0
      %v4865 = vadd.f32 %v3905, %v4864
      %v4866 = vpop.f32.mrb[0].mxu0
      %v4867 = vadd.f32 %v3909, %v4866
      %v4868 = vpop.f32.mrb[0].mxu0
      %v4869 = vadd.f32 %v3905, %v4868
      %v4870 = vpop.f32.mrb[0].mxu0
      %v4871 = vadd.f32 %v3909, %v4870
      %4872 = vmatprep.mubr.bf16.mxu0 %v3757
      %4873 = vmatmul.mubr.bf16.gmra.mrb[0].mxu0 %v3756
      %v4874 = vpop.f32.mrb[0].mxu0
      %v4875 = vadd.f32 %v3905, %v4874
      %v4876 = vpop.f32.mrb[0].mxu0
      %v4877 = vadd.f32 %v3909, %v4876
      %v4878 = vpop.f32.mrb[0].mxu0
      %v4879 = vadd.f32 %v3905, %v4878
      %v4880 = vpop.f32.mrb[0].mxu0
      %v4881 = vadd.f32 %v3909, %v4880
      %4882 = vmatprep.mubr.bf16.mxu0 %v3761
      %4883 = vmatmul.mubr.bf16.gmra.mrb[0].mxu0 %v3760
      %v4884 = vpop.f32.mrb[0].mxu0
      %v4885 = vadd.f32 %v3905, %v4884
      %v4886 = vpop.f32.mrb[0].mxu0
      %v4887 = vadd.f32 %v3909, %v4886
      %v4888 = vpop.f32.mrb[0].mxu0
      %v4889 = vadd.f32 %v3905, %v4888
      %v4890 = vpop.f32.mrb[0].mxu0
      %v4891 = vadd.f32 %v3909, %v4890
      %4892 = vdwg.mxu0
      %4893 = vmatprep.subr.bf16.mxu0 %v4365
      %4894 = vmatpush1.bf16.msra.mxu0 %v4364
      %4895 = vmatprep.subr.bf16.mxu0 %v4369
      %4896 = vmatpush1.bf16.msra.mxu0 %v4368
      %4897 = vmatprep.subr.bf16.mxu0 %v4373
      %4898 = vmatpush1.bf16.msra.mxu0 %v4372
      %4899 = vmatprep.subr.bf16.mxu0 %v4377
      %4900 = vmatpush1.bf16.msra.mxu0 %v4376
      %4901 = vmatprep.subr.bf16.mxu0 %v4381
      %4902 = vmatpush1.bf16.msra.mxu0 %v4380
      %4903 = vmatprep.subr.bf16.mxu0 %v4385
      %4904 = vmatpush1.bf16.msra.mxu0 %v4384
      %4905 = vmatprep.subr.bf16.mxu0 %v4389
      %4906 = vmatpush1.bf16.msra.mxu0 %v4388
      %4907 = vmatprep.subr.bf16.mxu0 %v4393
      %4908 = vmatpush1.bf16.msra.mxu0 %v4392
      %4909 = vmatprep.subr.bf16.mxu0 %v4397
      %4910 = vmatpush1.bf16.msra.mxu0 %v4396
      %4911 = vmatprep.subr.bf16.mxu0 %v4401
      %4912 = vmatpush1.bf16.msra.mxu0 %v4400
      %4913 = vmatprep.subr.bf16.mxu0 %v4405
      %4914 = vmatpush1.bf16.msra.mxu0 %v4404
      %4915 = vmatprep.subr.bf16.mxu0 %v4409
      %4916 = vmatpush1.bf16.msra.mxu0 %v4408
      %4917 = vmatprep.subr.bf16.mxu0 %v4413
      %4918 = vmatpush1.bf16.msra.mxu0 %v4412
      %4919 = vmatprep.subr.bf16.mxu0 %v4417
      %4920 = vmatpush1.bf16.msra.mxu0 %v4416
      %4921 = vmatprep.subr.bf16.mxu0 %v4421
      %4922 = vmatpush1.bf16.msra.mxu0 %v4420
      %4923 = vmatprep.subr.bf16.mxu0 %v4425
      %4924 = vmatpush1.bf16.msra.mxu0 %v4424
      %4925 = vmatprep.mubr.bf16.mxu0 %v3735
      %4926 = vmatmul.mubr.bf16.gmra.mrb[0].mxu0 %v3734
      %v4927 = vpop.f32.mrb[0].mxu0
      %v4928 = vadd.f32 %v4815, %v4927
      %v4929 = vpop.f32.mrb[0].mxu0
      %v4930 = vadd.f32 %v4817, %v4929
      %v4931 = vpop.f32.mrb[0].mxu0
      %v4932 = vadd.f32 %v4819, %v4931
      %v4933 = vpop.f32.mrb[0].mxu0
      %v4934 = vadd.f32 %v4821, %v4933
      %4935 = vmatprep.mubr.bf16.mxu0 %v3739
      %4936 = vmatmul.mubr.bf16.gmra.mrb[0].mxu0 %v3738
      %v4937 = vpop.f32.mrb[0].mxu0
      %v4938 = vadd.f32 %v4825, %v4937
      %v4939 = vpop.f32.mrb[0].mxu0
      %v4940 = vadd.f32 %v4827, %v4939
      %v4941 = vpop.f32.mrb[0].mxu0
      %v4942 = vadd.f32 %v4829, %v4941
      %v4943 = vpop.f32.mrb[0].mxu0
      %v4944 = vadd.f32 %v4831, %v4943
      %4945 = vmatprep.mubr.bf16.mxu0 %v3743
      %4946 = vmatmul.mubr.bf16.gmra.mrb[0].mxu0 %v3742
      %v4947 = vpop.f32.mrb[0].mxu0
      %v4948 = vadd.f32 %v4835, %v4947
      %v4949 = vpop.f32.mrb[0].mxu0
      %v4950 = vadd.f32 %v4837, %v4949
      %v4951 = vpop.f32.mrb[0].mxu0
      %v4952 = vadd.f32 %v4839, %v4951
      %v4953 = vpop.f32.mrb[0].mxu0
      %v4954 = vadd.f32 %v4841, %v4953
      %4955 = vmatprep.mubr.bf16.mxu0 %v3747
      %4956 = vmatmul.mubr.bf16.gmra.mrb[0].mxu0 %v3746
      %v4957 = vpop.f32.mrb[0].mxu0
      %v4958 = vadd.f32 %v4845, %v4957
      %v4959 = vpop.f32.mrb[0].mxu0
      %v4960 = vadd.f32 %v4847, %v4959
      %v4961 = vpop.f32.mrb[0].mxu0
      %v4962 = vadd.f32 %v4849, %v4961
      %v4963 = vpop.f32.mrb[0].mxu0
      %v4964 = vadd.f32 %v4851, %v4963
      %4965 = vmatprep.mubr.bf16.mxu0 %v3751
      %4966 = vmatmul.mubr.bf16.gmra.mrb[0].mxu0 %v3750
      %v4967 = vpop.f32.mrb[0].mxu0
      %v4968 = vadd.f32 %v4855, %v4967
      %v4969 = vpop.f32.mrb[0].mxu0
      %v4970 = vadd.f32 %v4857, %v4969
      %v4971 = vpop.f32.mrb[0].mxu0
      %v4972 = vadd.f32 %v4859, %v4971
      %v4973 = vpop.f32.mrb[0].mxu0
      %v4974 = vadd.f32 %v4861, %v4973
      %4975 = vmatprep.mubr.bf16.mxu0 %v3755
      %4976 = vmatmul.mubr.bf16.gmra.mrb[0].mxu0 %v3754
      %v4977 = vpop.f32.mrb[0].mxu0
      %v4978 = vadd.f32 %v4865, %v4977
      %v4979 = vpop.f32.mrb[0].mxu0
      %v4980 = vadd.f32 %v4867, %v4979
      %v4981 = vpop.f32.mrb[0].mxu0
      %v4982 = vadd.f32 %v4869, %v4981
      %v4983 = vpop.f32.mrb[0].mxu0
      %v4984 = vadd.f32 %v4871, %v4983
      %4985 = vmatprep.mubr.bf16.mxu0 %v3759
      %4986 = vmatmul.mubr.bf16.gmra.mrb[0].mxu0 %v3758
      %v4987 = vpop.f32.mrb[0].mxu0
      %v4988 = vadd.f32 %v4875, %v4987
      %v4989 = vpop.f32.mrb[0].mxu0
      %v4990 = vadd.f32 %v4877, %v4989
      %v4991 = vpop.f32.mrb[0].mxu0
      %v4992 = vadd.f32 %v4879, %v4991
      %v4993 = vpop.f32.mrb[0].mxu0
      %v4994 = vadd.f32 %v4881, %v4993
      %4995 = vmatprep.mubr.bf16.mxu0 %v3763
      %4996 = vmatmul.mubr.bf16.gmra.mrb[0].mxu0 %v3762
      %v4997 = vpop.f32.mrb[0].mxu0
      %v4998 = vadd.f32 %v4885, %v4997
      %v4999 = vpop.f32.mrb[0].mxu0
      %v5000 = vadd.f32 %v4887, %v4999
      %v5001 = vpop.f32.mrb[0].mxu0
      %v5002 = vadd.f32 %v4889, %v5001
      %v5003 = vpop.f32.mrb[0].mxu0
      %v5004 = vadd.f32 %v4891, %v5003
      %5005 = vdwg.mxu0
      %5006 = vst [vmem:[%s267] sm:$0xff] %v4702
      %5007 = vst [vmem:[%s267 + $0x8] sm:$0xff] %v4704
      %5008 = vst [vmem:[%s267 + $0x10] sm:$0xff] %v4928
      %5009 = vst [vmem:[%s267 + $0x18] sm:$0xff] %v4930
      %5010 = vst [vmem:[%s267 + $0x20] sm:$0xff] %v4706
      %5011 = vst [vmem:[%s267 + $0x28] sm:$0xff] %v4708
      %5012 = vst [vmem:[%s267 + $0x30] sm:$0xff] %v4932
      %5013 = vst [vmem:[%s267 + $0x38] sm:$0xff] %v4934
      %5014 = vst [vmem:[%s267 + $0x40] sm:$0xff] %v4712
      %5015 = vst [vmem:[%s267 + $0x48] sm:$0xff] %v4714
      %5016 = vst [vmem:[%s267 + $0x50] sm:$0xff] %v4938
      %5017 = vst [vmem:[%s267 + $0x58] sm:$0xff] %v4940
      %5018 = vst [vmem:[%s267 + $0x60] sm:$0xff] %v4716
      %5019 = vst [vmem:[%s267 + $0x68] sm:$0xff] %v4718
      %5020 = vst [vmem:[%s267 + $0x70] sm:$0xff] %v4942
      %5021 = vst [vmem:[%s267 + $0x78] sm:$0xff] %v4944
      %5022 = vst [vmem:[%s267 + $0x80] sm:$0xff] %v4722
      %5023 = vst [vmem:[%s267 + $0x88] sm:$0xff] %v4724
      %5024 = vst [vmem:[%s267 + $0x90] sm:$0xff] %v4948
      %5025 = vst [vmem:[%s267 + $0x98] sm:$0xff] %v4950
      %5026 = vst [vmem:[%s267 + $0xa0] sm:$0xff] %v4726
      %5027 = vst [vmem:[%s267 + $0xa8] sm:$0xff] %v4728
      %5028 = vst [vmem:[%s267 + $0xb0] sm:$0xff] %v4952
      %5029 = vst [vmem:[%s267 + $0xb8] sm:$0xff] %v4954
      %5030 = vst [vmem:[%s267 + $0xc0] sm:$0xff] %v4732
      %5031 = vst [vmem:[%s267 + $0xc8] sm:$0xff] %v4734
      %5032 = vst [vmem:[%s267 + $0xd0] sm:$0xff] %v4958
      %5033 = vst [vmem:[%s267 + $0xd8] sm:$0xff] %v4960
      %5034 = vst [vmem:[%s267 + $0xe0] sm:$0xff] %v4736
      %5035 = vst [vmem:[%s267 + $0xe8] sm:$0xff] %v4738
      %5036 = vst [vmem:[%s267 + $0xf0] sm:$0xff] %v4962
      %5037 = vst [vmem:[%s267 + $0xf8] sm:$0xff] %v4964
      %5038 = vst [vmem:[%s267 + $0x100] sm:$0xff] %v4742
      %5039 = vst [vmem:[%s267 + $0x108] sm:$0xff] %v4744
      %5040 = vst [vmem:[%s267 + $0x110] sm:$0xff] %v4968
      %5041 = vst [vmem:[%s267 + $0x118] sm:$0xff] %v4970
      %5042 = vst [vmem:[%s267 + $0x120] sm:$0xff] %v4746
      %5043 = vst [vmem:[%s267 + $0x128] sm:$0xff] %v4748
      %5044 = vst [vmem:[%s267 + $0x130] sm:$0xff] %v4972
      %5045 = vst [vmem:[%s267 + $0x138] sm:$0xff] %v4974
      %5046 = vst [vmem:[%s267 + $0x140] sm:$0xff] %v4752
      %5047 = vst [vmem:[%s267 + $0x148] sm:$0xff] %v4754
      %5048 = vst [vmem:[%s267 + $0x150] sm:$0xff] %v4978
      %5049 = vst [vmem:[%s267 + $0x158] sm:$0xff] %v4980
      %5050 = vst [vmem:[%s267 + $0x160] sm:$0xff] %v4756
      %5051 = vst [vmem:[%s267 + $0x168] sm:$0xff] %v4758
      %5052 = vst [vmem:[%s267 + $0x170] sm:$0xff] %v4982
      %5053 = vst [vmem:[%s267 + $0x178] sm:$0xff] %v4984
      %5054 = vst [vmem:[%s267 + $0x180] sm:$0xff] %v4762
      %5055 = vst [vmem:[%s267 + $0x188] sm:$0xff] %v4764
      %5056 = vst [vmem:[%s267 + $0x190] sm:$0xff] %v4988
      %5057 = vst [vmem:[%s267 + $0x198] sm:$0xff] %v4990
      %5058 = vst [vmem:[%s267 + $0x1a0] sm:$0xff] %v4766
      %5059 = vst [vmem:[%s267 + $0x1a8] sm:$0xff] %v4768
      %5060 = vst [vmem:[%s267 + $0x1b0] sm:$0xff] %v4992
      %5061 = vst [vmem:[%s267 + $0x1b8] sm:$0xff] %v4994
      %5062 = vst [vmem:[%s267 + $0x1c0] sm:$0xff] %v4772
      %5063 = vst [vmem:[%s267 + $0x1c8] sm:$0xff] %v4774
      %5064 = vst [vmem:[%s267 + $0x1d0] sm:$0xff] %v4998
      %5065 = vst [vmem:[%s267 + $0x1d8] sm:$0xff] %v5000
      %5066 = vst [vmem:[%s267 + $0x1e0] sm:$0xff] %v4776
      %5067 = vst [vmem:[%s267 + $0x1e8] sm:$0xff] %v4778
      %5068 = vst [vmem:[%s267 + $0x1f0] sm:$0xff] %v5002
      %5069 = vst [vmem:[%s267 + $0x1f8] sm:$0xff] %v5004
      %s5070 = smul.u32 16, %s18
      %p5071 = scmp.lt.s32.totalorder %s5070, 31
      %s5072 = scalar_select %p5071, %s5070, 31
      %s5073 = smul.addr %s5072, 4
      %s5074 = smul.addr %s5073, 8
      %s5075 = scalar_lea.vmem %s5, %s5074
      %s5076 = smul.u32 16, %s18
      %p5077 = scmp.lt.s32.totalorder %s5076, 31
      %s5078 = scalar_select %p5077, %s5076, 31
      %s5079 = smul.addr %s5078, 2
      %s5080 = smul.addr %s5079, 4
      %s5081 = scalar_lea.vmem %s6, %s5080
      // Predicated region
      $region41: #{mha_gcn_forward.5} parent=39 // pred_check
        %p5082 = pneg %p146
      $region42: #{mha_gcn_forward.5} parent=39 // pred_check_branch
        %5084 = sbr.rel (%p5082) target = $region44
      $region43: #{mha_gcn_forward.5} parent=39 // pred_region
        %s5085 = smul.u32 16, %s18
      $region44: #{mha_gcn_forward.5} parent=39 // pred_fallthru
        _
      // Predicated region
      $region45: #{mha_gcn_forward.5} parent=39 // pred_check
        %p5086 = pneg %p172
      $region46: #{mha_gcn_forward.5} parent=39 // pred_check_branch
        %5088 = sbr.rel (%p5086) target = $region48
      $region47: #{mha_gcn_forward.5} parent=39 // pred_region
        %s5089 = smul.u32 16, %s18
      $region48: #{mha_gcn_forward.5} parent=39 // pred_fallthru
        _
    $region40: #{mha_gcn_forward.5} parent=5 // pred_fallthru
      _
    %p5090 = scmp.le.s32.totalorder 2, %s13
    // Predicated region
    $region49: #{mha_gcn_forward.5} parent=5 // pred_check
      %p5091 = pneg %p5090
    $region50: #{mha_gcn_forward.5} parent=5 // pred_check_branch
      %5093 = sbr.rel (%p5091) target = $region52
    $region51: #{mha_gcn_forward.5} parent=5 // pred_region
      %s5094 = ssub.s32 %s13, 2
      // Predicated region
      $region53: #{mha_gcn_forward.5} parent=51 // pred_check
        %p5095 = pneg %p152
      $region54: #{mha_gcn_forward.5} parent=51 // pred_check_branch
        %5097 = sbr.rel (%p5095) target = $region56
      $region55: #{mha_gcn_forward.5} parent=51 // pred_region
        %s5098 = smul.u32 16, %s19
        %p5099 = scmp.lt.s32.totalorder %s5098, 31
        %s5100 = scalar_select %p5099, %s5098, 31
        %s5101 = smul.addr %s5100, 4
        %s5102 = smul.addr %s5101, 8
        %s5103 = scalar_lea.vmem %s5, %s5102
      $region56: #{mha_gcn_forward.5} parent=51 // pred_fallthru
        _
      // Predicated region
      $region57: #{mha_gcn_forward.5} parent=51 // pred_check
        %p5104 = pneg %p178
      $region58: #{mha_gcn_forward.5} parent=51 // pred_check_branch
        %5106 = sbr.rel (%p5104) target = $region60
      $region59: #{mha_gcn_forward.5} parent=51 // pred_region
        %s5107 = smul.u32 16, %s19
        %p5108 = scmp.lt.s32.totalorder %s5107, 31
        %s5109 = scalar_select %p5108, %s5107, 31
        %s5110 = smul.addr %s5109, 2
        %s5111 = smul.addr %s5110, 4
        %s5112 = scalar_lea.vmem %s6, %s5111
      $region60: #{mha_gcn_forward.5} parent=51 // pred_fallthru
        _
    $region52: #{mha_gcn_forward.5} parent=5 // pred_fallthru
      _
  $region6: #{mha_gcn_forward.5} parent=0 // loop_footer
    %s17 = sadd.s32 1, %s13
  $region7: #{mha_gcn_forward.5} parent=0 // loop_footer_branch
    %12 = sbr.rel target = $region3
  $region8: #{mha_gcn_forward.5} parent=0 // loop_exit
    _

</llo_original>
